<compile_context>
chip_gen: v7x
topology: tpu7x:2x2x1
jax: 0.10.0
libtpu: 0.0.40
codegen_flags: <defaults>
</compile_context>

<pallas_src>
import functools
import numpy as np

import jax
import jax.numpy as jnp
from jax.experimental import pallas as pl
from jax.experimental.pallas import tpu as pltpu


def _round_up(x, m):
    return ((x + m - 1) // m) * m


# ---------------------------------------------------------------------------
# Pallas kernels
# ---------------------------------------------------------------------------

def _matmul_kernel(a_ref, b_ref, o_ref):
    # Grid = (M tiles, K tiles); K is the inner ("arbitrary") reduction axis,
    # output block is resident across it (accumulator in f32).
    @pl.when(pl.program_id(1) == 0)
    def _():
        o_ref[...] = jnp.zeros_like(o_ref)

    o_ref[...] += jnp.dot(a_ref[...], b_ref[...],
                          preferred_element_type=jnp.float32)


def pallas_matmul(a, b):
    """(M,K) @ (K,N) -> (M,N) f32.  bf16 MXU inputs, f32 accumulation.

    Adaptive tiling: K padded to a 128 multiple only (single K step when
    K <= 512); M tiled at 256 rows and marked "parallel" (v7x megacore)."""
    M, K = a.shape
    K2, N = b.shape
    assert K == K2
    TM = min(256, _round_up(M, 16))          # 16-row multiple (bf16 sublane pack)
    Mp = _round_up(M, TM)
    Kp0 = _round_up(K, 128)
    TK = Kp0 if Kp0 <= 512 else 512
    Kp = _round_up(Kp0, TK)
    Np = _round_up(N, 128)

    a_p = jnp.pad(a.astype(jnp.bfloat16), ((0, Mp - M), (0, Kp - K)))
    b_p = jnp.pad(b.astype(jnp.bfloat16), ((0, Kp - K), (0, Np - N)))

    out = pl.pallas_call(
        _matmul_kernel,
        out_shape=jax.ShapeDtypeStruct((Mp, Np), jnp.float32),
        grid=(Mp // TM, Kp // TK),
        in_specs=[
            pl.BlockSpec((TM, TK), lambda i, k: (i, k)),
            pl.BlockSpec((TK, Np), lambda i, k: (k, 0)),
        ],
        out_specs=pl.BlockSpec((TM, Np), lambda i, k: (i, 0)),
        compiler_params=pltpu.CompilerParams(
            dimension_semantics=("parallel", "arbitrary")),
    )(a_p, b_p)
    return out[:M, :N]


def _hessian_mu1_kernel(a_ref, w_ref, o_ref):
    # Fused Hessian conv + mu1 eigenvalue epilogue.
    # Weight columns (sigma^2 pre-folded, each filter lane-replicated x128):
    #   [0:128) -> Ixx, [128:256) -> Ixy, [256:384) -> Iyy
    # so all slices are vreg-aligned and the output store is lane-dense (128).
    s = jnp.dot(a_ref[...], w_ref[...], preferred_element_type=jnp.float32)
    ixx = s[:, 0:128]
    ixy = s[:, 128:256]
    iyy = s[:, 256:384]
    diff = ixx - iyy
    tmp = jnp.sqrt(diff * diff + 4.0 * ixy * ixy)
    o_ref[...] = 0.5 * (ixx + iyy + tmp)


def hessian_mu1(x, w_cat, k, pad):
    """Fused (Ixx, Ixy, Iyy) convolution + mu1 epilogue.

    Exploits the rank-1 channel structure of the Hessian filters: every output
    channel of F.conv2d(x, weightxx) equals conv(sum_c x[:, c], DGaxx), so the
    im2col matrix has K = k*k instead of k*k*Cin and the three filters share a
    single MXU pass.  Returns mu1 of shape (N, H, W, 1); all Cin channels of
    the reference mu1 are identical and are broadcast at the consumer.
    """
    N, H, W, _ = x.shape
    xs = jnp.sum(x, axis=-1, keepdims=True)                 # (N, H, W, 1)
    patches, (Nn, Ho, Wo) = _im2col(xs, k, k, 1, pad)       # (rows, k*k)
    rows, K = patches.shape
    TM = min(256, _round_up(rows, 16))
    Mp = _round_up(rows, TM)
    Kp = _round_up(K, 128)

    a_p = jnp.pad(patches.astype(jnp.bfloat16), ((0, Mp - rows), (0, Kp - K)))
    w_p = jnp.pad(w_cat.astype(jnp.bfloat16), ((0, Kp - K), (0, 0)))  # (Kp, 384)

    out = pl.pallas_call(
        _hessian_mu1_kernel,
        out_shape=jax.ShapeDtypeStruct((Mp, 128), jnp.float32),
        grid=(Mp // TM,),
        in_specs=[
            pl.BlockSpec((TM, Kp), lambda i: (i, 0)),
            pl.BlockSpec((Kp, 384), lambda i: (0, 0)),
        ],
        out_specs=pl.BlockSpec((TM, 128), lambda i: (i, 0)),
        compiler_params=pltpu.CompilerParams(
            dimension_semantics=("parallel",)),
    )(a_p, w_p)
    # All 128 lanes are identical mu1 values; keep one column.
    return out[:rows, :1].reshape(Nn, Ho, Wo, 1)


def _batchnorm_kernel(x_ref, o_ref, *, eps):
    # Training-mode BatchNorm2d with default affine params (gamma=1, beta=0):
    # per-channel batch mean / biased variance over all N*H*W rows.
    x = x_ref[...]
    mean = jnp.mean(x, axis=0, keepdims=True)
    d = x - mean
    var = jnp.mean(d * d, axis=0, keepdims=True)
    o_ref[...] = d * jax.lax.rsqrt(var + eps)


def batchnorm(x, eps=1e-5):
    # Single-block kernel: working set here is <= (2*32*32, 16) f32 = 128 KiB.
    # TODO(synk): switch to a two-pass row-tiled reduction for large spatial
    # sizes (v7x 64 MiB VMEM); single-block stats cannot be naively tiled.
    N, H, W, C = x.shape
    xf = x.reshape(N * H * W, C)
    out = pl.pallas_call(
        functools.partial(_batchnorm_kernel, eps=float(eps)),
        out_shape=jax.ShapeDtypeStruct(xf.shape, jnp.float32),
    )(xf)
    return out.reshape(N, H, W, C)


# ---------------------------------------------------------------------------
# Conv helpers (im2col glue in plain JAX; the matmul hot path is Pallas)
# ---------------------------------------------------------------------------

def _im2col(x, kh, kw, stride, pad):
    # x: (N, H, W, C) -> patches (N*Ho*Wo, kh*kw*C) ordered (kh, kw, C)
    N, H, W, C = x.shape
    xp = jnp.pad(x, ((0, 0), (pad, pad), (pad, pad), (0, 0)))
    Ho = (H + 2 * pad - kh) // stride + 1
    Wo = (W + 2 * pad - kw) // stride + 1
    cols = []
    for ih in range(kh):
        for iw in range(kw):
            patch = xp[:, ih:ih + (Ho - 1) * stride + 1:stride,
                          iw:iw + (Wo - 1) * stride + 1:stride, :]
            cols.append(patch)
    patches = jnp.concatenate(cols, axis=-1)
    return patches.reshape(N * Ho * Wo, kh * kw * C), (N, Ho, Wo)


def conv2d_nhwc(x, w, stride, pad):
    """x: (N,H,W,Cin) NHWC; w: PyTorch Conv2d layout (Cout, Cin, kh, kw); no bias."""
    Cout, Cin, kh, kw = w.shape
    patches, (N, Ho, Wo) = _im2col(x, kh, kw, stride, pad)
    wmat = jnp.transpose(w, (2, 3, 1, 0)).reshape(kh * kw * Cin, Cout)
    y = pallas_matmul(patches, wmat)
    return y.reshape(N, Ho, Wo, Cout)


def fused_conv_transpose_2x2_s2(mu1, x, w1, w2):
    """Two ConvTranspose2d(kernel=2, stride=2, no bias) branches fused into one
    block-diagonal matmul (stride == kernel -> no output overlap).

    mu1: (N,H,W,1) single-channel mu1 map (reference channels are identical);
    x:   (N,H,W,Cin); w1, w2: PyTorch layout (Cin, Cout, 2, 2).
    Returns (N, 2H, 2W, 2*Cout) = channel-concat[convT1(mu1), convT2(x)],
    i.e. exactly the tensor conv3 consumes (no separate concatenate)."""
    N, H, W, Cin = x.shape
    Cin1, Cout, kh, kw = w1.shape
    assert Cin1 == Cin and kh == 2 and kw == 2 and w2.shape == w1.shape
    # Broadcast mu1 back to Cin identical channels so conv1's per-channel
    # summation matches the reference exactly.
    mu1_b = jnp.broadcast_to(mu1, (N, H, W, Cin))
    a = jnp.concatenate([mu1_b.reshape(N * H * W, Cin),
                         x.reshape(N * H * W, Cin)], axis=1)       # (rows, 2Cin)
    w1m = jnp.transpose(w1, (0, 2, 3, 1)).reshape(Cin, kh * kw * Cout)
    w2m = jnp.transpose(w2, (0, 2, 3, 1)).reshape(Cin, kh * kw * Cout)
    wz = jnp.zeros_like(w1m)
    wbig = jnp.concatenate(
        [jnp.concatenate([w1m, wz], axis=1),
         jnp.concatenate([wz, w2m], axis=1)], axis=0)              # (2Cin, 8Cout)
    y = pallas_matmul(a, wbig)                                     # (rows, 8Cout)
    # columns factor as (branch=2, kh, kw, Cout); interleave taps into space.
    y = y.reshape(N, H, W, 2, kh, kw, Cout)
    y = jnp.transpose(y, (0, 1, 4, 2, 5, 3, 6))        # (n, h, ih, w, iw, branch, o)
    return y.reshape(N, H * kh, W * kw, 2 * Cout)


# ---------------------------------------------------------------------------
# Parameter construction (deterministic, synthetic)
# ---------------------------------------------------------------------------

def make_hessian_wcat(sigmaK):
    """(k*k, 384) weight: [wxx | wxy | wyy], each lane-replicated x128, with the
    reference's sigma^2 post-scale folded in.  Flattened in (ih, iw) order to
    match _im2col."""
    sigma = sigmaK / 3.0
    r = np.arange(-sigmaK, sigmaK + 1, dtype=np.float64)
    X, Y = np.meshgrid(r, r, indexing='ij')
    X2, Y2 = X ** 2, Y ** 2
    g = np.exp(-(X2 + Y2) / (2.0 * sigma ** 2))
    DGaxx = 1.0 / (2.0 * np.pi * sigma ** 4) * (X2 / sigma ** 2 - 1.0) * g
    DGaxy = 1.0 / (2.0 * np.pi * sigma ** 6) * (X * Y) * g
    DGayy = DGaxx.T
    scale = sigma * sigma
    cols = []
    for w in (DGaxx, DGaxy, DGayy):
        v = (w * scale).reshape(-1, 1)                     # (k*k, 1)
        cols.append(np.broadcast_to(v, (v.shape[0], 128)))
    return jnp.asarray(np.concatenate(cols, axis=1), jnp.float32)   # (k*k, 384)


def init_conv_w(key, cout, cin, k):
    bound = 1.0 / np.sqrt(cin * k * k)
    return jax.random.uniform(key, (cout, cin, k, k), jnp.float32, -bound, bound)


def init_convT_w(key, cin, cout, k):
    bound = 1.0 / np.sqrt(cin * k * k)
    return jax.random.uniform(key, (cin, cout, k, k), jnp.float32, -bound, bound)


def init_params(key, in_channels, out_channels, sigmaK, ksize=2):
    k1, k2, k3 = jax.random.split(key, 3)
    return dict(
        w_hess=make_hessian_wcat(sigmaK),
        conv1_w=init_convT_w(k1, in_channels, out_channels, ksize),
        conv2_w=init_convT_w(k2, in_channels, out_channels, ksize),
        conv3_w=init_conv_w(k3, out_channels, 2 * out_channels, 3),
    )


# ---------------------------------------------------------------------------
# HessianLayerU forward
# ---------------------------------------------------------------------------

def hessian_layer_u_fwd(x, p, sigmaK):
    """x: (N,H,W,Cin) NHWC.  ConvTranspose kernel=2, stride=2 (as used in the net)."""
    k = 2 * sigmaK + 1
    # Ixx/Ixy/Iyy + mu1 (sigma^2 folded into weights), fused in one kernel.
    mu1 = hessian_mu1(x, p['w_hess'], k, sigmaK)                   # (N,H,W,1)
    # conv1(mu1) and conv2(x) share one matmul; their outputs land channel-
    # adjacent so one BatchNorm call covers norm1 and norm2 and the result is
    # already the concatenated input of conv3.
    y = fused_conv_transpose_2x2_s2(mu1, x, p['conv1_w'], p['conv2_w'])
    y = batchnorm(y)                                               # norm1 ++ norm2
    y = conv2d_nhwc(y, p['conv3_w'], 1, 1)                         # conv3
    return batchnorm(y)                                            # norm3


# ---------------------------------------------------------------------------
# Main
# ---------------------------------------------------------------------------

if __name__ == "__main__":
    key = jax.random.PRNGKey(0)
    kx, kp = jax.random.split(key)

    # HessianLayerU(in_channels=4, out_channels=8, ksize=2, stride=2, sigma=5)
    N, Cin, H, W = 2, 4, 16, 16
    Cout, sigmaK = 8, 5

    x_nchw = jax.random.normal(kx, (N, Cin, H, W), jnp.float32)    # PyTorch NCHW
    x_nhwc = jnp.transpose(x_nchw, (0, 2, 3, 1))                   # kernel layout

    params = init_params(kp, Cin, Cout, sigmaK)

    fwd = jax.jit(functools.partial(hessian_layer_u_fwd, sigmaK=sigmaK))
    out = fwd(x_nhwc, params)
    out = jax.block_until_ready(out)

    assert out.shape == (N, 2 * H, 2 * W, Cout), out.shape         # NHWC of (2,8,32,32)
    assert bool(jnp.all(jnp.isfinite(out)))
    print("KERNEL_OK")
</pallas_src>

<mosaic_0001>
module attributes {stable_mosaic.version = 11 : i64} {
  func.func @_hessian_mu1_kernel(%arg0: i32, %arg1: memref<256x128xbf16, #tpu.memory_space<vmem>>, %arg2: memref<128x384xbf16, #tpu.memory_space<vmem>>, %arg3: memref<256x128xf32, #tpu.memory_space<vmem>>) attributes {dimension_semantics = [#tpu.dimension_semantics<parallel>], iteration_bounds = array<i64: 2>, scalar_prefetch = 0 : i64, scratch_operands = 0 : i64, tpu.core_type = #tpu.core_type<tc>, window_params = [{transform_indices = @transform_0, window_bounds = array<i64: 256, 128>}, {pipeline_mode = #tpu.pipeline_mode<synchronous>, transform_indices = @transform_1, window_bounds = array<i64: 128, 384>}, {transform_indices = @transform_2, window_bounds = array<i64: 256, 128>}]} {
    %c0 = arith.constant 0 : index
    %c0_0 = arith.constant 0 : index
    %0 = vector.load %arg1[%c0, %c0_0] : memref<256x128xbf16, #tpu.memory_space<vmem>>, vector<256x128xbf16>
    %c0_1 = arith.constant 0 : index
    %c0_2 = arith.constant 0 : index
    %1 = vector.load %arg2[%c0_1, %c0_2] : memref<128x384xbf16, #tpu.memory_space<vmem>>, vector<128x384xbf16>
    %cst = arith.constant dense<0.000000e+00> : vector<256x384xf32>
    %2 = tpu.matmul %0, %1, %cst {dimension_numbers = #tpu.dot_dimension_numbers<[1], [0], [0], [1], [0, 0, 1, 1], [], []>} : vector<256x128xbf16>, vector<128x384xbf16>, vector<256x384xf32> -> vector<256x384xf32>
    %3 = vector.extract_strided_slice %2 {offsets = [0, 0], sizes = [256, 128], strides = [1, 1]} : vector<256x384xf32> to vector<256x128xf32>
    %4 = vector.extract_strided_slice %2 {offsets = [0, 128], sizes = [256, 128], strides = [1, 1]} : vector<256x384xf32> to vector<256x128xf32>
    %5 = vector.extract_strided_slice %2 {offsets = [0, 256], sizes = [256, 128], strides = [1, 1]} : vector<256x384xf32> to vector<256x128xf32>
    %6 = arith.subf %3, %5 : vector<256x128xf32>
    %7 = arith.mulf %6, %6 : vector<256x128xf32>
    %cst_3 = arith.constant 4.000000e+00 : f32
    %8 = vector.broadcast %cst_3 : f32 to vector<256x128xf32>
    %9 = arith.mulf %8, %4 : vector<256x128xf32>
    %10 = arith.mulf %9, %4 : vector<256x128xf32>
    %11 = arith.addf %7, %10 : vector<256x128xf32>
    %12 = math.sqrt %11 : vector<256x128xf32>
    %13 = arith.addf %3, %5 : vector<256x128xf32>
    %14 = arith.addf %13, %12 : vector<256x128xf32>
    %cst_4 = arith.constant 5.000000e-01 : f32
    %15 = vector.broadcast %cst_4 : f32 to vector<256x128xf32>
    %16 = arith.mulf %15, %14 : vector<256x128xf32>
    %c0_5 = arith.constant 0 : index
    %c0_6 = arith.constant 0 : index
    %17 = vector.load %arg3[%c0_5, %c0_6] : memref<256x128xf32, #tpu.memory_space<vmem>>, vector<256x128xf32>
    tpu.vector_store %arg3[%c0_5, %c0_6], %16 {strides = array<i32>} : memref<256x128xf32, #tpu.memory_space<vmem>>, vector<256x128xf32>,
    return
  }
  func.func @transform_0(%arg0: i32) -> (i32, i32) {
    %c0_i32 = arith.constant 0 : i32
    %c0_i32_0 = arith.constant 0 : i32
    return %arg0, %c0_i32 : i32, i32
  }
  func.func @transform_1(%arg0: i32) -> (i32, i32) {
    %c0_i32 = arith.constant 0 : i32
    %c0_i32_0 = arith.constant 0 : i32
    %c0_i32_1 = arith.constant 0 : i32
    return %c0_i32, %c0_i32_0 : i32, i32
  }
  func.func @transform_2(%arg0: i32) -> (i32, i32) {
    %c0_i32 = arith.constant 0 : i32
    %c0_i32_0 = arith.constant 0 : i32
    return %arg0, %c0_i32 : i32, i32
  }
}

module attributes {stable_mosaic.version = 11 : i64} {
  func.func @_matmul_kernel(%arg0: i32, %arg1: i32, %arg2: memref<256x128xbf16, #tpu.memory_space<vmem>>, %arg3: memref<128x128xbf16, #tpu.memory_space<vmem>>, %arg4: memref<256x128xf32, #tpu.memory_space<vmem>>) attributes {dimension_semantics = [#tpu.dimension_semantics<parallel>, #tpu.dimension_semantics<arbitrary>], iteration_bounds = array<i64: 2, 1>, scalar_prefetch = 0 : i64, scratch_operands = 0 : i64, tpu.core_type = #tpu.core_type<tc>, window_params = [{transform_indices = @transform_0, window_bounds = array<i64: 256, 128>}, {transform_indices = @transform_1, window_bounds = array<i64: 128, 128>}, {transform_indices = @transform_2, window_bounds = array<i64: 256, 128>}]} {
    %c0_i32 = arith.constant 0 : i32
    %0 = arith.cmpi eq, %arg1, %c0_i32 : i32
    %1 = arith.extui %0 : i1 to i32
    %c0_i32_0 = arith.constant 0 : i32
    %2 = arith.cmpi ne, %1, %c0_i32_0 : i32
    scf.if %2 {
      %cst_8 = arith.constant 0.000000e+00 : f32
      %9 = vector.broadcast %cst_8 : f32 to vector<256x128xf32>
      %c0_9 = arith.constant 0 : index
      %c0_10 = arith.constant 0 : index
      %10 = vector.load %arg4[%c0_9, %c0_10] : memref<256x128xf32, #tpu.memory_space<vmem>>, vector<256x128xf32>
      tpu.vector_store %arg4[%c0_9, %c0_10], %9 {strides = array<i32>} : memref<256x128xf32, #tpu.memory_space<vmem>>, vector<256x128xf32>,
    } else {
    }
    %c0 = arith.constant 0 : index
    %c0_1 = arith.constant 0 : index
    %3 = vector.load %arg4[%c0, %c0_1] : memref<256x128xf32, #tpu.memory_space<vmem>>, vector<256x128xf32>
    %c0_2 = arith.constant 0 : index
    %c0_3 = arith.constant 0 : index
    %4 = vector.load %arg2[%c0_2, %c0_3] : memref<256x128xbf16, #tpu.memory_space<vmem>>, vector<256x128xbf16>
    %c0_4 = arith.constant 0 : index
    %c0_5 = arith.constant 0 : index
    %5 = vector.load %arg3[%c0_4, %c0_5] : memref<128x128xbf16, #tpu.memory_space<vmem>>, vector<128x128xbf16>
    %cst = arith.constant dense<0.000000e+00> : vector<256x128xf32>
    %6 = tpu.matmul %4, %5, %cst {dimension_numbers = #tpu.dot_dimension_numbers<[1], [0], [0], [1], [0, 0, 1, 1], [], []>} : vector<256x128xbf16>, vector<128x128xbf16>, vector<256x128xf32> -> vector<256x128xf32>
    %7 = arith.addf %3, %6 : vector<256x128xf32>
    %c0_6 = arith.constant 0 : index
    %c0_7 = arith.constant 0 : index
    %8 = vector.load %arg4[%c0_6, %c0_7] : memref<256x128xf32, #tpu.memory_space<vmem>>, vector<256x128xf32>
    tpu.vector_store %arg4[%c0_6, %c0_7], %7 {strides = array<i32>} : memref<256x128xf32, #tpu.memory_space<vmem>>, vector<256x128xf32>,
    return
  }
  func.func @transform_0(%arg0: i32, %arg1: i32) -> (i32, i32) {
    %c0_i32 = arith.constant 0 : i32
    return %arg0, %arg1 : i32, i32
  }
  func.func @transform_1(%arg0: i32, %arg1: i32) -> (i32, i32) {
    %c0_i32 = arith.constant 0 : i32
    %c0_i32_0 = arith.constant 0 : i32
    return %arg1, %c0_i32 : i32, i32
  }
  func.func @transform_2(%arg0: i32, %arg1: i32) -> (i32, i32) {
    %c0_i32 = arith.constant 0 : i32
    %c0_i32_0 = arith.constant 0 : i32
    return %arg0, %c0_i32 : i32, i32
  }
}

module attributes {stable_mosaic.version = 11 : i64} {
  func.func @_batchnorm_kernel(%arg0: memref<2048x16xf32, #tpu.memory_space<vmem>>, %arg1: memref<2048x16xf32, #tpu.memory_space<vmem>>) attributes {dimension_semantics = [], scalar_prefetch = 0 : i64, scratch_operands = 0 : i64, tpu.core_type = #tpu.core_type<tc>} {
    %c0 = arith.constant 0 : index
    %c0_0 = arith.constant 0 : index
    %0 = vector.load %arg0[%c0, %c0_0] : memref<2048x16xf32, #tpu.memory_space<vmem>>, vector<2048x16xf32>
    %cst = arith.constant dense<0.000000e+00> : vector<16xf32>
    %1 = vector.multi_reduction <add>, %0, %cst [0] : vector<2048x16xf32> to vector<16xf32>
    %2 = vector.shape_cast %1 : vector<16xf32> to vector<1x16xf32>
    %cst_1 = arith.constant 2.048000e+03 : f32
    %3 = vector.broadcast %cst_1 : f32 to vector<1x16xf32>
    %4 = arith.divf %2, %3 : vector<1x16xf32>
    %5 = vector.broadcast %4 : vector<1x16xf32> to vector<2048x16xf32>
    %6 = arith.subf %0, %5 : vector<2048x16xf32>
    %7 = arith.mulf %6, %6 : vector<2048x16xf32>
    %cst_2 = arith.constant dense<0.000000e+00> : vector<16xf32>
    %8 = vector.multi_reduction <add>, %7, %cst_2 [0] : vector<2048x16xf32> to vector<16xf32>
    %9 = vector.shape_cast %8 : vector<16xf32> to vector<1x16xf32>
    %cst_3 = arith.constant 2.048000e+03 : f32
    %10 = vector.broadcast %cst_3 : f32 to vector<1x16xf32>
    %11 = arith.divf %9, %10 : vector<1x16xf32>
    %cst_4 = arith.constant 9.99999974E-6 : f32
    %12 = vector.broadcast %cst_4 : f32 to vector<1x16xf32>
    %13 = arith.addf %11, %12 : vector<1x16xf32>
    %14 = math.rsqrt %13 : vector<1x16xf32>
    %15 = vector.broadcast %14 : vector<1x16xf32> to vector<2048x16xf32>
    %16 = arith.mulf %6, %15 : vector<2048x16xf32>
    %c0_5 = arith.constant 0 : index
    %c0_6 = arith.constant 0 : index
    %17 = vector.load %arg1[%c0_5, %c0_6] : memref<2048x16xf32, #tpu.memory_space<vmem>>, vector<2048x16xf32>
    tpu.vector_store %arg1[%c0_5, %c0_6], %16 {strides = array<i32>} : memref<2048x16xf32, #tpu.memory_space<vmem>>, vector<2048x16xf32>,
    return
  }
}

module attributes {stable_mosaic.version = 11 : i64} {
  func.func @_matmul_kernel(%arg0: i32, %arg1: i32, %arg2: memref<256x256xbf16, #tpu.memory_space<vmem>>, %arg3: memref<256x128xbf16, #tpu.memory_space<vmem>>, %arg4: memref<256x128xf32, #tpu.memory_space<vmem>>) attributes {dimension_semantics = [#tpu.dimension_semantics<parallel>, #tpu.dimension_semantics<arbitrary>], iteration_bounds = array<i64: 8, 1>, scalar_prefetch = 0 : i64, scratch_operands = 0 : i64, tpu.core_type = #tpu.core_type<tc>, window_params = [{transform_indices = @transform_0, window_bounds = array<i64: 256, 256>}, {transform_indices = @transform_1, window_bounds = array<i64: 256, 128>}, {transform_indices = @transform_2, window_bounds = array<i64: 256, 128>}]} {
    %c0_i32 = arith.constant 0 : i32
    %0 = arith.cmpi eq, %arg1, %c0_i32 : i32
    %1 = arith.extui %0 : i1 to i32
    %c0_i32_0 = arith.constant 0 : i32
    %2 = arith.cmpi ne, %1, %c0_i32_0 : i32
    scf.if %2 {
      %cst_8 = arith.constant 0.000000e+00 : f32
      %9 = vector.broadcast %cst_8 : f32 to vector<256x128xf32>
      %c0_9 = arith.constant 0 : index
      %c0_10 = arith.constant 0 : index
      %10 = vector.load %arg4[%c0_9, %c0_10] : memref<256x128xf32, #tpu.memory_space<vmem>>, vector<256x128xf32>
      tpu.vector_store %arg4[%c0_9, %c0_10], %9 {strides = array<i32>} : memref<256x128xf32, #tpu.memory_space<vmem>>, vector<256x128xf32>,
    } else {
    }
    %c0 = arith.constant 0 : index
    %c0_1 = arith.constant 0 : index
    %3 = vector.load %arg4[%c0, %c0_1] : memref<256x128xf32, #tpu.memory_space<vmem>>, vector<256x128xf32>
    %c0_2 = arith.constant 0 : index
    %c0_3 = arith.constant 0 : index
    %4 = vector.load %arg2[%c0_2, %c0_3] : memref<256x256xbf16, #tpu.memory_space<vmem>>, vector<256x256xbf16>
    %c0_4 = arith.constant 0 : index
    %c0_5 = arith.constant 0 : index
    %5 = vector.load %arg3[%c0_4, %c0_5] : memref<256x128xbf16, #tpu.memory_space<vmem>>, vector<256x128xbf16>
    %cst = arith.constant dense<0.000000e+00> : vector<256x128xf32>
    %6 = tpu.matmul %4, %5, %cst {dimension_numbers = #tpu.dot_dimension_numbers<[1], [0], [0], [1], [0, 0, 1, 1], [], []>} : vector<256x256xbf16>, vector<256x128xbf16>, vector<256x128xf32> -> vector<256x128xf32>
    %7 = arith.addf %3, %6 : vector<256x128xf32>
    %c0_6 = arith.constant 0 : index
    %c0_7 = arith.constant 0 : index
    %8 = vector.load %arg4[%c0_6, %c0_7] : memref<256x128xf32, #tpu.memory_space<vmem>>, vector<256x128xf32>
    tpu.vector_store %arg4[%c0_6, %c0_7], %7 {strides = array<i32>} : memref<256x128xf32, #tpu.memory_space<vmem>>, vector<256x128xf32>,
    return
  }
  func.func @transform_0(%arg0: i32, %arg1: i32) -> (i32, i32) {
    %c0_i32 = arith.constant 0 : i32
    return %arg0, %arg1 : i32, i32
  }
  func.func @transform_1(%arg0: i32, %arg1: i32) -> (i32, i32) {
    %c0_i32 = arith.constant 0 : i32
    %c0_i32_0 = arith.constant 0 : i32
    return %arg1, %c0_i32 : i32, i32
  }
  func.func @transform_2(%arg0: i32, %arg1: i32) -> (i32, i32) {
    %c0_i32 = arith.constant 0 : i32
    %c0_i32_0 = arith.constant 0 : i32
    return %arg0, %c0_i32 : i32, i32
  }
}

module attributes {stable_mosaic.version = 11 : i64} {
  func.func @_batchnorm_kernel(%arg0: memref<2048x8xf32, #tpu.memory_space<vmem>>, %arg1: memref<2048x8xf32, #tpu.memory_space<vmem>>) attributes {dimension_semantics = [], scalar_prefetch = 0 : i64, scratch_operands = 0 : i64, tpu.core_type = #tpu.core_type<tc>} {
    %c0 = arith.constant 0 : index
    %c0_0 = arith.constant 0 : index
    %0 = vector.load %arg0[%c0, %c0_0] : memref<2048x8xf32, #tpu.memory_space<vmem>>, vector<2048x8xf32>
    %cst = arith.constant dense<0.000000e+00> : vector<8xf32>
    %1 = vector.multi_reduction <add>, %0, %cst [0] : vector<2048x8xf32> to vector<8xf32>
    %2 = vector.shape_cast %1 : vector<8xf32> to vector<1x8xf32>
    %cst_1 = arith.constant 2.048000e+03 : f32
    %3 = vector.broadcast %cst_1 : f32 to vector<1x8xf32>
    %4 = arith.divf %2, %3 : vector<1x8xf32>
    %5 = vector.broadcast %4 : vector<1x8xf32> to vector<2048x8xf32>
    %6 = arith.subf %0, %5 : vector<2048x8xf32>
    %7 = arith.mulf %6, %6 : vector<2048x8xf32>
    %cst_2 = arith.constant dense<0.000000e+00> : vector<8xf32>
    %8 = vector.multi_reduction <add>, %7, %cst_2 [0] : vector<2048x8xf32> to vector<8xf32>
    %9 = vector.shape_cast %8 : vector<8xf32> to vector<1x8xf32>
    %cst_3 = arith.constant 2.048000e+03 : f32
    %10 = vector.broadcast %cst_3 : f32 to vector<1x8xf32>
    %11 = arith.divf %9, %10 : vector<1x8xf32>
    %cst_4 = arith.constant 9.99999974E-6 : f32
    %12 = vector.broadcast %cst_4 : f32 to vector<1x8xf32>
    %13 = arith.addf %11, %12 : vector<1x8xf32>
    %14 = math.rsqrt %13 : vector<1x8xf32>
    %15 = vector.broadcast %14 : vector<1x8xf32> to vector<2048x8xf32>
    %16 = arith.mulf %6, %15 : vector<2048x8xf32>
    %c0_5 = arith.constant 0 : index
    %c0_6 = arith.constant 0 : index
    %17 = vector.load %arg1[%c0_5, %c0_6] : memref<2048x8xf32, #tpu.memory_space<vmem>>, vector<2048x8xf32>
    tpu.vector_store %arg1[%c0_5, %c0_6], %16 {strides = array<i32>} : memref<2048x8xf32, #tpu.memory_space<vmem>>, vector<2048x8xf32>,
    return
  }
}

</mosaic_0001>

<llo_original>
// kernel: hessian_layer_u_fwd.5
$region0: #{hessian_layer_u_fwd.5}
  #allocation0 [shape = 'u32[]', space=smem, size = 0x4, offset = 0x4, fixed_abs, tag = 'smem constant byte address 0x4 - core index']
  #allocation1 [shape = 'u32[144,128]{1,0:T(1,128)}', space=vmem, size = 0x12000, scoped, tag = 'internal scratch']
  %s0 = inlined_call_operand.vmem [shape: bf16[512,128], index: 0, kind: input, shape index: {}]
  %s1 = inlined_call_operand.vmem [shape: bf16[128,384], index: 1, kind: input, shape index: {}]
  %s2 = inlined_call_operand.vmem [shape: f32[512,128], index: 2, kind: output, shape index: {}]
  %s3 = sld [smem:[#allocation0]]
  $region41: #{hessian_layer_u_fwd.5} parent=0
    _
  %s5 = ssub.s32 1, %s3
  %s6 = scalar_select 0, %s5, %s3
  loop: start=0, step=1, limit=4
  $region2: #{hessian_layer_u_fwd.5} parent=0 // loop_pre_header
    _
  $region3: #{hessian_layer_u_fwd.5} parent=0 // loop_header
    %s8 = sphi 0, %s12
    %p9 = scmp.ge.s32.totalorder %s8, 4
    %s18 = sphi 0, %s20
    %s21 = sphi 0, %s18
    %s22 = sphi 0, %s21
    %s38 = sphi 0, %s22
    %s42 = sphi 0, %s42
    %s44 = sphi 0, %s42
    %s45 = sphi 0, %s44
    %s59 = sphi 0, %s45
    %s65 = sphi 0, %s67
    %s68 = sphi 0, %s65
    %s69 = sphi 0, %s68
    %s85 = sphi 0, %s69
  $region4: #{hessian_layer_u_fwd.5} parent=0 // loop_header_branch
    %11 = sbr.rel (%p9) target = $region8
  $region5: #{hessian_layer_u_fwd.5} parent=0 // loop_body
    %s13 = ssub.s32 %s8, 1
    %s14 = ssub.s32 %s8, 2
    %s15 = sadd.s32 %s8, 1
    %s16 = ssub.s32 %s8, %s15
    %p17 = scmp.eq.s32.totalorder %s16, 0
    %s19 = sadd.s32 %s18, 1
    %s20 = scalar_select %p17, %s18, %s19
    %p23 = pneg %p17
    %p24 = scmp.eq.s32.totalorder %s8, 1
    %p25 = por %p23, %p24
    %p26 = scmp.ne.s32.totalorder %s18, %s21
    %p27 = scmp.eq.s32.totalorder %s8, 0
    %p28 = por %p26, %p27
    %p29 = scmp.ne.s32.totalorder %s18, %s21
    %p30 = scmp.eq.s32.totalorder %s13, 1
    %p31 = por %p29, %p30
    %p32 = scmp.ne.s32.totalorder %s21, %s22
    %p33 = scmp.eq.s32.totalorder %s13, 0
    %p34 = por %p32, %p33
    %p35 = scmp.ne.s32.totalorder %s21, %s22
    %p36 = scmp.eq.s32.totalorder %s14, 1
    %p37 = por %p35, %p36
    %p39 = scmp.ne.s32.totalorder %s22, %s38
    %p40 = scmp.eq.s32.totalorder %s14, 0
    %p41 = por %p39, %p40
    %s43 = sadd.s32 %s42, 1
    %p46 = scmp.eq.s32.totalorder %s8, 1
    %p47 = scmp.ne.s32.totalorder %s42, %s44
    %p48 = scmp.eq.s32.totalorder %s8, 0
    %p49 = por %p47, %p48
    %p50 = scmp.ne.s32.totalorder %s42, %s44
    %p51 = scmp.eq.s32.totalorder %s13, 1
    %p52 = por %p50, %p51
    %p53 = scmp.ne.s32.totalorder %s44, %s45
    %p54 = scmp.eq.s32.totalorder %s13, 0
    %p55 = por %p53, %p54
    %p56 = scmp.ne.s32.totalorder %s44, %s45
    %p57 = scmp.eq.s32.totalorder %s14, 1
    %p58 = por %p56, %p57
    %p60 = scmp.ne.s32.totalorder %s45, %s59
    %p61 = scmp.eq.s32.totalorder %s14, 0
    %p62 = por %p60, %p61
    %s63 = ssub.s32 %s8, %s15
    %p64 = scmp.eq.s32.totalorder %s63, 0
    %s66 = sadd.s32 %s65, 1
    %s67 = scalar_select %p64, %s65, %s66
    %p70 = pneg %p64
    %p71 = scmp.eq.s32.totalorder %s8, 1
    %p72 = por %p70, %p71
    %p73 = scmp.ne.s32.totalorder %s65, %s68
    %p74 = scmp.eq.s32.totalorder %s8, 0
    %p75 = por %p73, %p74
    %p76 = scmp.ne.s32.totalorder %s65, %s68
    %p77 = scmp.eq.s32.totalorder %s13, 1
    %p78 = por %p76, %p77
    %p79 = scmp.ne.s32.totalorder %s68, %s69
    %p80 = scmp.eq.s32.totalorder %s13, 0
    %p81 = por %p79, %p80
    %p82 = scmp.ne.s32.totalorder %s68, %s69
    %p83 = scmp.eq.s32.totalorder %s14, 1
    %p84 = por %p82, %p83
    %p86 = scmp.ne.s32.totalorder %s69, %s85
    %p87 = scmp.eq.s32.totalorder %s14, 0
    %p88 = por %p86, %p87
    %p89 = scmp.le.s32.totalorder 1, %s8
    %p90 = scmp.lt.s32.totalorder %s8, 3
    %p91 = pnand %p89, %p90
    %p92 = pneg %p91
    // Predicated region
    $region9: #{hessian_layer_u_fwd.5} parent=5 // pred_check
      _
    $region10: #{hessian_layer_u_fwd.5} parent=5 // pred_check_branch
      %94 = sbr.rel (%p91) target = $region12
    $region11: #{hessian_layer_u_fwd.5} parent=5 // pred_region
      %s95 = ssub.s32 %s8, 1
      // Predicated region
      $region13: #{hessian_layer_u_fwd.5} parent=11 // pred_check
        %p96 = pneg %p55
      $region14: #{hessian_layer_u_fwd.5} parent=11 // pred_check_branch
        %98 = sbr.rel (%p96) target = $region16
      $region15: #{hessian_layer_u_fwd.5} parent=11 // pred_region
        _
      $region16: #{hessian_layer_u_fwd.5} parent=11 // pred_fallthru
        _
    $region12: #{hessian_layer_u_fwd.5} parent=5 // pred_fallthru
      _
    %p99 = scmp.lt.s32.totalorder %s8, 2
    // Predicated region
    $region17: #{hessian_layer_u_fwd.5} parent=5 // pred_check
      %p100 = pneg %p99
    $region18: #{hessian_layer_u_fwd.5} parent=5 // pred_check_branch
      %102 = sbr.rel (%p100) target = $region20
    $region19: #{hessian_layer_u_fwd.5} parent=5 // pred_region
      // Predicated region
      $region21: #{hessian_layer_u_fwd.5} parent=19 // pred_check
        %p103 = pneg %p28
      $region22: #{hessian_layer_u_fwd.5} parent=19 // pred_check_branch
        %105 = sbr.rel (%p103) target = $region24
      $region23: #{hessian_layer_u_fwd.5} parent=19 // pred_region
        %s106 = smul.u32 32, %s8
        %p107 = scmp.lt.s32.totalorder %s106, 63
        %s108 = scalar_select %p107, %s106, 63
        %s109 = smul.addr %s108, 4
        %s110 = scalar_lea.vmem %s0, %s109
        %s111 = smul.u32 32, %s8
      $region24: #{hessian_layer_u_fwd.5} parent=19 // pred_fallthru
        _
    $region20: #{hessian_layer_u_fwd.5} parent=5 // pred_fallthru
      _
    %p112 = scmp.le.s32.totalorder 1, %s8
    %p113 = scmp.lt.s32.totalorder %s8, 3
    %p114 = pnand %p112, %p113
    %p115 = pneg %p114
    // Predicated region
    $region25: #{hessian_layer_u_fwd.5} parent=5 // pred_check
      _
    $region26: #{hessian_layer_u_fwd.5} parent=5 // pred_check_branch
      %117 = sbr.rel (%p114) target = $region28
    $region27: #{hessian_layer_u_fwd.5} parent=5 // pred_region
      %s118 = ssub.s32 %s8, 1
      %s119 = smul.u32 32, %s13
      %p120 = scmp.lt.s32.totalorder %s119, 63
      %s121 = scalar_select %p120, %s119, 63
      %s122 = smul.addr %s121, 4
      %s123 = scalar_lea.vmem %s0, %s122
      %p124 = pneg %p34
      %p125 = pneg %p31
      %p126 = pneg %p55
      %p127 = pneg %p52
      %p128 = pneg %p81
      %p129 = pneg %p78
      %s130 = smul.u32 32, %s13
      %p131 = scmp.lt.s32.totalorder %s130, 63
      %s132 = scalar_select %p131, %s130, 63
      %s133 = smul.addr %s132, 8
      %s134 = scalar_lea.vmem %s2, %s133
      %s135 = smul.u32 32, %s13
      %p136 = scmp.lt.s32.totalorder %s135, 63
      %s137 = scalar_select %p136, %s135, 63
      %s138 = smul.addr %s137, 4
      %s139 = scalar_lea.vmem %s0, %s138
      %s140 = smul.u32 32, %s13
      %s141 = smul.u32 32, %s13
      %p142 = scmp.lt.s32.totalorder %s141, 63
      %s143 = scalar_select %p142, %s141, 63
      %s144 = smul.addr %s143, 8
      %s145 = scalar_lea.vmem %s2, %s144
      %s146 = smul.u32 32, %s13
      %v148 = vld [vmem:[%s139] sm:$0xf]
      %v149 = vld [vmem:[%s139 + $0x4] sm:$0xf]
      %v150 = vld [vmem:[%s139 + $0x8] sm:$0xf]
      %v151 = vld [vmem:[%s139 + $0xc] sm:$0xf]
      %v152 = vld [vmem:[%s139 + $0x10] sm:$0xf]
      %v153 = vld [vmem:[%s139 + $0x14] sm:$0xf]
      %v154 = vld [vmem:[%s139 + $0x18] sm:$0xf]
      %v155 = vld [vmem:[%s139 + $0x1c] sm:$0xf]
      %v156 = vld [vmem:[%s139 + $0x20] sm:$0xf]
      %v157 = vld [vmem:[%s139 + $0x24] sm:$0xf]
      %v158 = vld [vmem:[%s139 + $0x28] sm:$0xf]
      %v159 = vld [vmem:[%s139 + $0x2c] sm:$0xf]
      %v160 = vld [vmem:[%s139 + $0x30] sm:$0xf]
      %v161 = vld [vmem:[%s139 + $0x34] sm:$0xf]
      %v162 = vld [vmem:[%s139 + $0x38] sm:$0xf]
      %v163 = vld [vmem:[%s139 + $0x3c] sm:$0xf]
      %v164 = vld [vmem:[%s139 + $0x40] sm:$0xf]
      %v165 = vld [vmem:[%s139 + $0x44] sm:$0xf]
      %v166 = vld [vmem:[%s139 + $0x48] sm:$0xf]
      %v167 = vld [vmem:[%s139 + $0x4c] sm:$0xf]
      %v168 = vld [vmem:[%s139 + $0x50] sm:$0xf]
      %v169 = vld [vmem:[%s139 + $0x54] sm:$0xf]
      %v170 = vld [vmem:[%s139 + $0x58] sm:$0xf]
      %v171 = vld [vmem:[%s139 + $0x5c] sm:$0xf]
      %v172 = vld [vmem:[%s139 + $0x60] sm:$0xf]
      %v173 = vld [vmem:[%s139 + $0x64] sm:$0xf]
      %v174 = vld [vmem:[%s139 + $0x68] sm:$0xf]
      %v175 = vld [vmem:[%s139 + $0x6c] sm:$0xf]
      %v176 = vld [vmem:[%s139 + $0x70] sm:$0xf]
      %v177 = vld [vmem:[%s139 + $0x74] sm:$0xf]
      %v178 = vld [vmem:[%s139 + $0x78] sm:$0xf]
      %v179 = vld [vmem:[%s139 + $0x7c] sm:$0xf]
      %v180 = vld [vmem:[%s1] sm:$0xff]
      %v181 = vld [vmem:[%s1 + $0x8] sm:$0xf]
      %v182 = vld [vmem:[%s1 + $0xc] sm:$0xff]
      %v183 = vld [vmem:[%s1 + $0x14] sm:$0xf]
      %v184 = vld [vmem:[%s1 + $0x18] sm:$0xff]
      %v185 = vld [vmem:[%s1 + $0x20] sm:$0xf]
      %v186 = vld [vmem:[%s1 + $0x24] sm:$0xff]
      %v187 = vld [vmem:[%s1 + $0x2c] sm:$0xf]
      %v188 = vld [vmem:[%s1 + $0x30] sm:$0xff]
      %v189 = vld [vmem:[%s1 + $0x38] sm:$0xf]
      %v190 = vld [vmem:[%s1 + $0x3c] sm:$0xff]
      %v191 = vld [vmem:[%s1 + $0x44] sm:$0xf]
      %v192 = vld [vmem:[%s1 + $0x48] sm:$0xff]
      %v193 = vld [vmem:[%s1 + $0x50] sm:$0xf]
      %v194 = vld [vmem:[%s1 + $0x54] sm:$0xff]
      %v195 = vld [vmem:[%s1 + $0x5c] sm:$0xf]
      %v196 = vld [vmem:[%s1 + $0x60] sm:$0xff]
      %v197 = vld [vmem:[%s1 + $0x68] sm:$0xf]
      %v198 = vld [vmem:[%s1 + $0x6c] sm:$0xff]
      %v199 = vld [vmem:[%s1 + $0x74] sm:$0xf]
      %v200 = vld [vmem:[%s1 + $0x78] sm:$0xff]
      %v201 = vld [vmem:[%s1 + $0x80] sm:$0xf]
      %v202 = vld [vmem:[%s1 + $0x84] sm:$0xff]
      %v203 = vld [vmem:[%s1 + $0x8c] sm:$0xf]
      %v204 = vld [vmem:[%s1 + $0x90] sm:$0xff]
      %v205 = vld [vmem:[%s1 + $0x98] sm:$0xf]
      %v206 = vld [vmem:[%s1 + $0x9c] sm:$0xff]
      %v207 = vld [vmem:[%s1 + $0xa4] sm:$0xf]
      %v208 = vld [vmem:[%s1 + $0xa8] sm:$0xff]
      %v209 = vld [vmem:[%s1 + $0xb0] sm:$0xf]
      %v210 = vld [vmem:[%s1 + $0xb4] sm:$0xff]
      %v211 = vld [vmem:[%s1 + $0xbc] sm:$0xf]
      %v244 = vunpack.c.l.b16 %v148
      %v245 = vunpack.c.l.b16 %v149
      %v246 = vunpack.c.l.b16 %v150
      %v247 = vunpack.c.l.b16 %v151
      %v248 = vunpack.c.l.b16 %v152
      %v249 = vunpack.c.l.b16 %v153
      %v250 = vunpack.c.l.b16 %v154
      %v251 = vunpack.c.l.b16 %v155
      %v252 = vunpack.c.l.b16 %v156
      %v253 = vunpack.c.l.b16 %v157
      %v254 = vunpack.c.l.b16 %v158
      %v255 = vunpack.c.l.b16 %v159
      %v256 = vunpack.c.l.b16 %v160
      %v257 = vunpack.c.l.b16 %v161
      %v258 = vunpack.c.l.b16 %v162
      %v259 = vunpack.c.l.b16 %v163
      %v260 = vunpack.c.l.b16 %v164
      %v261 = vunpack.c.l.b16 %v165
      %v262 = vunpack.c.l.b16 %v166
      %v263 = vunpack.c.l.b16 %v167
      %v264 = vunpack.c.l.b16 %v168
      %v265 = vunpack.c.l.b16 %v169
      %v266 = vunpack.c.l.b16 %v170
      %v267 = vunpack.c.l.b16 %v171
      %v268 = vunpack.c.l.b16 %v172
      %v269 = vunpack.c.l.b16 %v173
      %v270 = vunpack.c.l.b16 %v174
      %v271 = vunpack.c.l.b16 %v175
      %v272 = vunpack.c.l.b16 %v176
      %v273 = vunpack.c.l.b16 %v177
      %v274 = vunpack.c.l.b16 %v178
      %v275 = vunpack.c.l.b16 %v179
      %v276 = vpack.c.b16 %v245, %v244
      %v277 = vpack.c.b16 %v247, %v246
      %v278 = vpack.c.b16 %v249, %v248
      %v279 = vpack.c.b16 %v251, %v250
      %v280 = vpack.c.b16 %v253, %v252
      %v281 = vpack.c.b16 %v255, %v254
      %v282 = vpack.c.b16 %v257, %v256
      %v283 = vpack.c.b16 %v259, %v258
      %v284 = vpack.c.b16 %v261, %v260
      %v285 = vpack.c.b16 %v263, %v262
      %v286 = vpack.c.b16 %v265, %v264
      %v287 = vpack.c.b16 %v267, %v266
      %v288 = vpack.c.b16 %v269, %v268
      %v289 = vpack.c.b16 %v271, %v270
      %v290 = vpack.c.b16 %v273, %v272
      %v291 = vpack.c.b16 %v275, %v274
      %v340 = vunpack.c.l.b16 %v180
      %v341 = vunpack.c.h.b16 %v180
      %v342 = vunpack.c.l.b16 %v181
      %v343 = vunpack.c.l.b16 %v182
      %v344 = vunpack.c.h.b16 %v182
      %v345 = vunpack.c.l.b16 %v183
      %v346 = vunpack.c.l.b16 %v184
      %v347 = vunpack.c.h.b16 %v184
      %v348 = vunpack.c.l.b16 %v185
      %v349 = vunpack.c.l.b16 %v186
      %v350 = vunpack.c.h.b16 %v186
      %v351 = vunpack.c.l.b16 %v187
      %v352 = vunpack.c.l.b16 %v188
      %v353 = vunpack.c.h.b16 %v188
      %v354 = vunpack.c.l.b16 %v189
      %v355 = vunpack.c.l.b16 %v190
      %v356 = vunpack.c.h.b16 %v190
      %v357 = vunpack.c.l.b16 %v191
      %v358 = vunpack.c.l.b16 %v192
      %v359 = vunpack.c.h.b16 %v192
      %v360 = vunpack.c.l.b16 %v193
      %v361 = vunpack.c.l.b16 %v194
      %v362 = vunpack.c.h.b16 %v194
      %v363 = vunpack.c.l.b16 %v195
      %v364 = vunpack.c.l.b16 %v196
      %v365 = vunpack.c.h.b16 %v196
      %v366 = vunpack.c.l.b16 %v197
      %v367 = vunpack.c.l.b16 %v198
      %v368 = vunpack.c.h.b16 %v198
      %v369 = vunpack.c.l.b16 %v199
      %v370 = vunpack.c.l.b16 %v200
      %v371 = vunpack.c.h.b16 %v200
      %v372 = vunpack.c.l.b16 %v201
      %v373 = vunpack.c.l.b16 %v202
      %v374 = vunpack.c.h.b16 %v202
      %v375 = vunpack.c.l.b16 %v203
      %v376 = vunpack.c.l.b16 %v204
      %v377 = vunpack.c.h.b16 %v204
      %v378 = vunpack.c.l.b16 %v205
      %v379 = vunpack.c.l.b16 %v206
      %v380 = vunpack.c.h.b16 %v206
      %v381 = vunpack.c.l.b16 %v207
      %v382 = vunpack.c.l.b16 %v208
      %v383 = vunpack.c.h.b16 %v208
      %v384 = vunpack.c.l.b16 %v209
      %v385 = vunpack.c.l.b16 %v210
      %v386 = vunpack.c.h.b16 %v210
      %v387 = vunpack.c.l.b16 %v211
      %v388 = vpack.c.b16 %v343, %v340
      %v389 = vpack.c.b16 %v344, %v341
      %v390 = vpack.c.b16 %v345, %v342
      %v391 = vpack.c.b16 %v349, %v346
      %v392 = vpack.c.b16 %v350, %v347
      %v393 = vpack.c.b16 %v351, %v348
      %v394 = vpack.c.b16 %v355, %v352
      %v395 = vpack.c.b16 %v356, %v353
      %v396 = vpack.c.b16 %v357, %v354
      %v397 = vpack.c.b16 %v361, %v358
      %v398 = vpack.c.b16 %v362, %v359
      %v399 = vpack.c.b16 %v363, %v360
      %v400 = vpack.c.b16 %v367, %v364
      %v401 = vpack.c.b16 %v368, %v365
      %v402 = vpack.c.b16 %v369, %v366
      %v403 = vpack.c.b16 %v373, %v370
      %v404 = vpack.c.b16 %v374, %v371
      %v405 = vpack.c.b16 %v375, %v372
      %v406 = vpack.c.b16 %v379, %v376
      %v407 = vpack.c.b16 %v380, %v377
      %v408 = vpack.c.b16 %v381, %v378
      %v409 = vpack.c.b16 %v385, %v382
      %v410 = vpack.c.b16 %v386, %v383
      %v411 = vpack.c.b16 %v387, %v384
      %436 = vmatprep.subr.bf16.mxu0 %v389
      %437 = vmatpush1.bf16.msra.mxu0 %v388
      %438 = vmatprep.subr.bf16.mxu0 %v392
      %439 = vmatpush1.bf16.msra.mxu0 %v391
      %440 = vmatprep.subr.bf16.mxu0 %v395
      %441 = vmatpush1.bf16.msra.mxu0 %v394
      %442 = vmatprep.subr.bf16.mxu0 %v398
      %443 = vmatpush1.bf16.msra.mxu0 %v397
      %444 = vmatprep.subr.bf16.mxu0 %v401
      %445 = vmatpush1.bf16.msra.mxu0 %v400
      %446 = vmatprep.subr.bf16.mxu0 %v404
      %447 = vmatpush1.bf16.msra.mxu0 %v403
      %448 = vmatprep.subr.bf16.mxu0 %v407
      %449 = vmatpush1.bf16.msra.mxu0 %v406
      %450 = vmatprep.subr.bf16.mxu0 %v410
      %451 = vmatpush1.bf16.msra.mxu0 %v409
      %452 = vmatprep.subr.bf16.mxu0 0
      %453 = vmatpush1.bf16.msra.mxu0 0
      %454 = vmatprep.subr.bf16.mxu0 0
      %455 = vmatpush1.bf16.msra.mxu0 0
      %456 = vmatprep.subr.bf16.mxu0 0
      %457 = vmatpush1.bf16.msra.mxu0 0
      %458 = vmatprep.subr.bf16.mxu0 0
      %459 = vmatpush1.bf16.msra.mxu0 0
      %460 = vmatprep.subr.bf16.mxu0 0
      %461 = vmatpush1.bf16.msra.mxu0 0
      %462 = vmatprep.subr.bf16.mxu0 0
      %463 = vmatpush1.bf16.msra.mxu0 0
      %464 = vmatprep.subr.bf16.mxu0 0
      %465 = vmatpush1.bf16.msra.mxu0 0
      %466 = vmatprep.subr.bf16.mxu0 0
      %467 = vmatpush1.bf16.msra.mxu0 0
      %468 = vmatprep.mubr.bf16.mxu0 0
      %469 = vmatmul.mubr.bf16.gmra.mrb[0].mxu0 %v276
      %v470 = vpop.f32.mrb[0].mxu0
      %v471 = vadd.f32 0.0, %v470
      %v472 = vpop.f32.mrb[0].mxu0
      %v473 = vadd.f32 0.0, %v472
      %v474 = vpop.f32.mrb[0].mxu0
      %v475 = vadd.f32 0.0, %v474
      %v476 = vpop.f32.mrb[0].mxu0
      %v477 = vadd.f32 0.0, %v476
      %478 = vmatprep.mubr.bf16.mxu0 0
      %479 = vmatmul.mubr.bf16.gmra.mrb[0].mxu0 %v277
      %v480 = vpop.f32.mrb[0].mxu0
      %v481 = vadd.f32 0.0, %v480
      %v482 = vpop.f32.mrb[0].mxu0
      %v483 = vadd.f32 0.0, %v482
      %v484 = vpop.f32.mrb[0].mxu0
      %v485 = vadd.f32 0.0, %v484
      %v486 = vpop.f32.mrb[0].mxu0
      %v487 = vadd.f32 0.0, %v486
      %488 = vmatprep.mubr.bf16.mxu0 0
      %489 = vmatmul.mubr.bf16.gmra.mrb[0].mxu0 %v278
      %v490 = vpop.f32.mrb[0].mxu0
      %v491 = vadd.f32 0.0, %v490
      %v492 = vpop.f32.mrb[0].mxu0
      %v493 = vadd.f32 0.0, %v492
      %v494 = vpop.f32.mrb[0].mxu0
      %v495 = vadd.f32 0.0, %v494
      %v496 = vpop.f32.mrb[0].mxu0
      %v497 = vadd.f32 0.0, %v496
      %498 = vmatprep.mubr.bf16.mxu0 0
      %499 = vmatmul.mubr.bf16.gmra.mrb[0].mxu0 %v279
      %v500 = vpop.f32.mrb[0].mxu0
      %v501 = vadd.f32 0.0, %v500
      %v502 = vpop.f32.mrb[0].mxu0
      %v503 = vadd.f32 0.0, %v502
      %v504 = vpop.f32.mrb[0].mxu0
      %v505 = vadd.f32 0.0, %v504
      %v506 = vpop.f32.mrb[0].mxu0
      %v507 = vadd.f32 0.0, %v506
      %508 = vmatprep.mubr.bf16.mxu0 0
      %509 = vmatmul.mubr.bf16.gmra.mrb[0].mxu0 %v280
      %v510 = vpop.f32.mrb[0].mxu0
      %v511 = vadd.f32 0.0, %v510
      %v512 = vpop.f32.mrb[0].mxu0
      %v513 = vadd.f32 0.0, %v512
      %v514 = vpop.f32.mrb[0].mxu0
      %v515 = vadd.f32 0.0, %v514
      %v516 = vpop.f32.mrb[0].mxu0
      %v517 = vadd.f32 0.0, %v516
      %518 = vmatprep.mubr.bf16.mxu0 0
      %519 = vmatmul.mubr.bf16.gmra.mrb[0].mxu0 %v281
      %v520 = vpop.f32.mrb[0].mxu0
      %v521 = vadd.f32 0.0, %v520
      %v522 = vpop.f32.mrb[0].mxu0
      %v523 = vadd.f32 0.0, %v522
      %v524 = vpop.f32.mrb[0].mxu0
      %v525 = vadd.f32 0.0, %v524
      %v526 = vpop.f32.mrb[0].mxu0
      %v527 = vadd.f32 0.0, %v526
      %528 = vmatprep.mubr.bf16.mxu0 0
      %529 = vmatmul.mubr.bf16.gmra.mrb[0].mxu0 %v282
      %v530 = vpop.f32.mrb[0].mxu0
      %v531 = vadd.f32 0.0, %v530
      %v532 = vpop.f32.mrb[0].mxu0
      %v533 = vadd.f32 0.0, %v532
      %v534 = vpop.f32.mrb[0].mxu0
      %v535 = vadd.f32 0.0, %v534
      %v536 = vpop.f32.mrb[0].mxu0
      %v537 = vadd.f32 0.0, %v536
      %538 = vmatprep.mubr.bf16.mxu0 0
      %539 = vmatmul.mubr.bf16.gmra.mrb[0].mxu0 %v283
      %v540 = vpop.f32.mrb[0].mxu0
      %v541 = vadd.f32 0.0, %v540
      %v542 = vpop.f32.mrb[0].mxu0
      %v543 = vadd.f32 0.0, %v542
      %v544 = vpop.f32.mrb[0].mxu0
      %v545 = vadd.f32 0.0, %v544
      %v546 = vpop.f32.mrb[0].mxu0
      %v547 = vadd.f32 0.0, %v546
      %548 = vmatprep.mubr.bf16.mxu0 0
      %549 = vmatmul.mubr.bf16.gmra.mrb[0].mxu0 %v284
      %v550 = vpop.f32.mrb[0].mxu0
      %v551 = vadd.f32 0.0, %v550
      %v552 = vpop.f32.mrb[0].mxu0
      %v553 = vadd.f32 0.0, %v552
      %v554 = vpop.f32.mrb[0].mxu0
      %v555 = vadd.f32 0.0, %v554
      %v556 = vpop.f32.mrb[0].mxu0
      %v557 = vadd.f32 0.0, %v556
      %558 = vmatprep.mubr.bf16.mxu0 0
      %559 = vmatmul.mubr.bf16.gmra.mrb[0].mxu0 %v285
      %v560 = vpop.f32.mrb[0].mxu0
      %v561 = vadd.f32 0.0, %v560
      %v562 = vpop.f32.mrb[0].mxu0
      %v563 = vadd.f32 0.0, %v562
      %v564 = vpop.f32.mrb[0].mxu0
      %v565 = vadd.f32 0.0, %v564
      %v566 = vpop.f32.mrb[0].mxu0
      %v567 = vadd.f32 0.0, %v566
      %568 = vmatprep.mubr.bf16.mxu0 0
      %569 = vmatmul.mubr.bf16.gmra.mrb[0].mxu0 %v286
      %v570 = vpop.f32.mrb[0].mxu0
      %v571 = vadd.f32 0.0, %v570
      %v572 = vpop.f32.mrb[0].mxu0
      %v573 = vadd.f32 0.0, %v572
      %v574 = vpop.f32.mrb[0].mxu0
      %v575 = vadd.f32 0.0, %v574
      %v576 = vpop.f32.mrb[0].mxu0
      %v577 = vadd.f32 0.0, %v576
      %578 = vmatprep.mubr.bf16.mxu0 0
      %579 = vmatmul.mubr.bf16.gmra.mrb[0].mxu0 %v287
      %v580 = vpop.f32.mrb[0].mxu0
      %v581 = vadd.f32 0.0, %v580
      %v582 = vpop.f32.mrb[0].mxu0
      %v583 = vadd.f32 0.0, %v582
      %v584 = vpop.f32.mrb[0].mxu0
      %v585 = vadd.f32 0.0, %v584
      %v586 = vpop.f32.mrb[0].mxu0
      %v587 = vadd.f32 0.0, %v586
      %588 = vmatprep.mubr.bf16.mxu0 0
      %589 = vmatmul.mubr.bf16.gmra.mrb[0].mxu0 %v288
      %v590 = vpop.f32.mrb[0].mxu0
      %v591 = vadd.f32 0.0, %v590
      %v592 = vpop.f32.mrb[0].mxu0
      %v593 = vadd.f32 0.0, %v592
      %v594 = vpop.f32.mrb[0].mxu0
      %v595 = vadd.f32 0.0, %v594
      %v596 = vpop.f32.mrb[0].mxu0
      %v597 = vadd.f32 0.0, %v596
      %598 = vmatprep.mubr.bf16.mxu0 0
      %599 = vmatmul.mubr.bf16.gmra.mrb[0].mxu0 %v289
      %v600 = vpop.f32.mrb[0].mxu0
      %v601 = vadd.f32 0.0, %v600
      %v602 = vpop.f32.mrb[0].mxu0
      %v603 = vadd.f32 0.0, %v602
      %v604 = vpop.f32.mrb[0].mxu0
      %v605 = vadd.f32 0.0, %v604
      %v606 = vpop.f32.mrb[0].mxu0
      %v607 = vadd.f32 0.0, %v606
      %608 = vmatprep.mubr.bf16.mxu0 0
      %609 = vmatmul.mubr.bf16.gmra.mrb[0].mxu0 %v290
      %v610 = vpop.f32.mrb[0].mxu0
      %v611 = vadd.f32 0.0, %v610
      %v612 = vpop.f32.mrb[0].mxu0
      %v613 = vadd.f32 0.0, %v612
      %v614 = vpop.f32.mrb[0].mxu0
      %v615 = vadd.f32 0.0, %v614
      %v616 = vpop.f32.mrb[0].mxu0
      %v617 = vadd.f32 0.0, %v616
      %618 = vmatprep.mubr.bf16.mxu0 0
      %619 = vmatmul.mubr.bf16.gmra.mrb[0].mxu0 %v291
      %v620 = vpop.f32.mrb[0].mxu0
      %v621 = vadd.f32 0.0, %v620
      %v622 = vpop.f32.mrb[0].mxu0
      %v623 = vadd.f32 0.0, %v622
      %v624 = vpop.f32.mrb[0].mxu0
      %v625 = vadd.f32 0.0, %v624
      %v626 = vpop.f32.mrb[0].mxu0
      %v627 = vadd.f32 0.0, %v626
      %628 = vdwg.mxu0
      %629 = vmatprep.subr.bf16.mxu0 0
      %630 = vmatpush1.bf16.msra.mxu0 %v390
      %631 = vmatprep.subr.bf16.mxu0 0
      %632 = vmatpush1.bf16.msra.mxu0 %v393
      %633 = vmatprep.subr.bf16.mxu0 0
      %634 = vmatpush1.bf16.msra.mxu0 %v396
      %635 = vmatprep.subr.bf16.mxu0 0
      %636 = vmatpush1.bf16.msra.mxu0 %v399
      %637 = vmatprep.subr.bf16.mxu0 0
      %638 = vmatpush1.bf16.msra.mxu0 %v402
      %639 = vmatprep.subr.bf16.mxu0 0
      %640 = vmatpush1.bf16.msra.mxu0 %v405
      %641 = vmatprep.subr.bf16.mxu0 0
      %642 = vmatpush1.bf16.msra.mxu0 %v408
      %643 = vmatprep.subr.bf16.mxu0 0
      %644 = vmatpush1.bf16.msra.mxu0 %v411
      %645 = vmatprep.subr.bf16.mxu0 0
      %646 = vmatpush1.bf16.msra.mxu0 0
      %647 = vmatprep.subr.bf16.mxu0 0
      %648 = vmatpush1.bf16.msra.mxu0 0
      %649 = vmatprep.subr.bf16.mxu0 0
      %650 = vmatpush1.bf16.msra.mxu0 0
      %651 = vmatprep.subr.bf16.mxu0 0
      %652 = vmatpush1.bf16.msra.mxu0 0
      %653 = vmatprep.subr.bf16.mxu0 0
      %654 = vmatpush1.bf16.msra.mxu0 0
      %655 = vmatprep.subr.bf16.mxu0 0
      %656 = vmatpush1.bf16.msra.mxu0 0
      %657 = vmatprep.subr.bf16.mxu0 0
      %658 = vmatpush1.bf16.msra.mxu0 0
      %659 = vmatprep.subr.bf16.mxu0 0
      %660 = vmatpush1.bf16.msra.mxu0 0
      %661 = vmatprep.mubr.bf16.mxu0 0
      %662 = vmatmul.mubr.bf16.gmra.mrb[0].mxu0 %v276
      %v663 = vpop.f32.mrb[0].mxu0
      %v664 = vadd.f32 0.0, %v663
      %v665 = vpop.f32.mrb[0].mxu0
      %v666 = vpop.f32.mrb[0].mxu0
      %v667 = vadd.f32 0.0, %v666
      %v668 = vpop.f32.mrb[0].mxu0
      %669 = vmatprep.mubr.bf16.mxu0 0
      %670 = vmatmul.mubr.bf16.gmra.mrb[0].mxu0 %v277
      %v671 = vpop.f32.mrb[0].mxu0
      %v672 = vadd.f32 0.0, %v671
      %v673 = vpop.f32.mrb[0].mxu0
      %v674 = vpop.f32.mrb[0].mxu0
      %v675 = vadd.f32 0.0, %v674
      %v676 = vpop.f32.mrb[0].mxu0
      %677 = vmatprep.mubr.bf16.mxu0 0
      %678 = vmatmul.mubr.bf16.gmra.mrb[0].mxu0 %v278
      %v679 = vpop.f32.mrb[0].mxu0
      %v680 = vadd.f32 0.0, %v679
      %v681 = vpop.f32.mrb[0].mxu0
      %v682 = vpop.f32.mrb[0].mxu0
      %v683 = vadd.f32 0.0, %v682
      %v684 = vpop.f32.mrb[0].mxu0
      %685 = vmatprep.mubr.bf16.mxu0 0
      %686 = vmatmul.mubr.bf16.gmra.mrb[0].mxu0 %v279
      %v687 = vpop.f32.mrb[0].mxu0
      %v688 = vadd.f32 0.0, %v687
      %v689 = vpop.f32.mrb[0].mxu0
      %v690 = vpop.f32.mrb[0].mxu0
      %v691 = vadd.f32 0.0, %v690
      %v692 = vpop.f32.mrb[0].mxu0
      %693 = vmatprep.mubr.bf16.mxu0 0
      %694 = vmatmul.mubr.bf16.gmra.mrb[0].mxu0 %v280
      %v695 = vpop.f32.mrb[0].mxu0
      %v696 = vadd.f32 0.0, %v695
      %v697 = vpop.f32.mrb[0].mxu0
      %v698 = vpop.f32.mrb[0].mxu0
      %v699 = vadd.f32 0.0, %v698
      %v700 = vpop.f32.mrb[0].mxu0
      %701 = vmatprep.mubr.bf16.mxu0 0
      %702 = vmatmul.mubr.bf16.gmra.mrb[0].mxu0 %v281
      %v703 = vpop.f32.mrb[0].mxu0
      %v704 = vadd.f32 0.0, %v703
      %v705 = vpop.f32.mrb[0].mxu0
      %v706 = vpop.f32.mrb[0].mxu0
      %v707 = vadd.f32 0.0, %v706
      %v708 = vpop.f32.mrb[0].mxu0
      %709 = vmatprep.mubr.bf16.mxu0 0
      %710 = vmatmul.mubr.bf16.gmra.mrb[0].mxu0 %v282
      %v711 = vpop.f32.mrb[0].mxu0
      %v712 = vadd.f32 0.0, %v711
      %v713 = vpop.f32.mrb[0].mxu0
      %v714 = vpop.f32.mrb[0].mxu0
      %v715 = vadd.f32 0.0, %v714
      %v716 = vpop.f32.mrb[0].mxu0
      %717 = vmatprep.mubr.bf16.mxu0 0
      %718 = vmatmul.mubr.bf16.gmra.mrb[0].mxu0 %v283
      %v719 = vpop.f32.mrb[0].mxu0
      %v720 = vadd.f32 0.0, %v719
      %v721 = vpop.f32.mrb[0].mxu0
      %v722 = vpop.f32.mrb[0].mxu0
      %v723 = vadd.f32 0.0, %v722
      %v724 = vpop.f32.mrb[0].mxu0
      %725 = vmatprep.mubr.bf16.mxu0 0
      %726 = vmatmul.mubr.bf16.gmra.mrb[0].mxu0 %v284
      %v727 = vpop.f32.mrb[0].mxu0
      %v728 = vadd.f32 0.0, %v727
      %v729 = vpop.f32.mrb[0].mxu0
      %v730 = vpop.f32.mrb[0].mxu0
      %v731 = vadd.f32 0.0, %v730
      %v732 = vpop.f32.mrb[0].mxu0
      %733 = vmatprep.mubr.bf16.mxu0 0
      %734 = vmatmul.mubr.bf16.gmra.mrb[0].mxu0 %v285
      %v735 = vpop.f32.mrb[0].mxu0
      %v736 = vadd.f32 0.0, %v735
      %v737 = vpop.f32.mrb[0].mxu0
      %v738 = vpop.f32.mrb[0].mxu0
      %v739 = vadd.f32 0.0, %v738
      %v740 = vpop.f32.mrb[0].mxu0
      %741 = vmatprep.mubr.bf16.mxu0 0
      %742 = vmatmul.mubr.bf16.gmra.mrb[0].mxu0 %v286
      %v743 = vpop.f32.mrb[0].mxu0
      %v744 = vadd.f32 0.0, %v743
      %v745 = vpop.f32.mrb[0].mxu0
      %v746 = vpop.f32.mrb[0].mxu0
      %v747 = vadd.f32 0.0, %v746
      %v748 = vpop.f32.mrb[0].mxu0
      %749 = vmatprep.mubr.bf16.mxu0 0
      %750 = vmatmul.mubr.bf16.gmra.mrb[0].mxu0 %v287
      %v751 = vpop.f32.mrb[0].mxu0
      %v752 = vadd.f32 0.0, %v751
      %v753 = vpop.f32.mrb[0].mxu0
      %v754 = vpop.f32.mrb[0].mxu0
      %v755 = vadd.f32 0.0, %v754
      %v756 = vpop.f32.mrb[0].mxu0
      %757 = vmatprep.mubr.bf16.mxu0 0
      %758 = vmatmul.mubr.bf16.gmra.mrb[0].mxu0 %v288
      %v759 = vpop.f32.mrb[0].mxu0
      %v760 = vadd.f32 0.0, %v759
      %v761 = vpop.f32.mrb[0].mxu0
      %v762 = vpop.f32.mrb[0].mxu0
      %v763 = vadd.f32 0.0, %v762
      %v764 = vpop.f32.mrb[0].mxu0
      %765 = vmatprep.mubr.bf16.mxu0 0
      %766 = vmatmul.mubr.bf16.gmra.mrb[0].mxu0 %v289
      %v767 = vpop.f32.mrb[0].mxu0
      %v768 = vadd.f32 0.0, %v767
      %v769 = vpop.f32.mrb[0].mxu0
      %v770 = vpop.f32.mrb[0].mxu0
      %v771 = vadd.f32 0.0, %v770
      %v772 = vpop.f32.mrb[0].mxu0
      %773 = vmatprep.mubr.bf16.mxu0 0
      %774 = vmatmul.mubr.bf16.gmra.mrb[0].mxu0 %v290
      %v775 = vpop.f32.mrb[0].mxu0
      %v776 = vadd.f32 0.0, %v775
      %v777 = vpop.f32.mrb[0].mxu0
      %v778 = vpop.f32.mrb[0].mxu0
      %v779 = vadd.f32 0.0, %v778
      %v780 = vpop.f32.mrb[0].mxu0
      %781 = vmatprep.mubr.bf16.mxu0 0
      %782 = vmatmul.mubr.bf16.gmra.mrb[0].mxu0 %v291
      %v783 = vpop.f32.mrb[0].mxu0
      %v784 = vadd.f32 0.0, %v783
      %v785 = vpop.f32.mrb[0].mxu0
      %v786 = vpop.f32.mrb[0].mxu0
      %v787 = vadd.f32 0.0, %v786
      %v788 = vpop.f32.mrb[0].mxu0
      %789 = vdwg.mxu0
      %v790 = vsub.f32 %v471, %v664
      %v791 = vsub.f32 %v475, %v667
      %v792 = vsub.f32 %v481, %v672
      %v793 = vsub.f32 %v485, %v675
      %v794 = vsub.f32 %v491, %v680
      %v795 = vsub.f32 %v495, %v683
      %v796 = vsub.f32 %v501, %v688
      %v797 = vsub.f32 %v505, %v691
      %v798 = vsub.f32 %v511, %v696
      %v799 = vsub.f32 %v515, %v699
      %v800 = vsub.f32 %v521, %v704
      %v801 = vsub.f32 %v525, %v707
      %v802 = vsub.f32 %v531, %v712
      %v803 = vsub.f32 %v535, %v715
      %v804 = vsub.f32 %v541, %v720
      %v805 = vsub.f32 %v545, %v723
      %v806 = vsub.f32 %v551, %v728
      %v807 = vsub.f32 %v555, %v731
      %v808 = vsub.f32 %v561, %v736
      %v809 = vsub.f32 %v565, %v739
      %v810 = vsub.f32 %v571, %v744
      %v811 = vsub.f32 %v575, %v747
      %v812 = vsub.f32 %v581, %v752
      %v813 = vsub.f32 %v585, %v755
      %v814 = vsub.f32 %v591, %v760
      %v815 = vsub.f32 %v595, %v763
      %v816 = vsub.f32 %v601, %v768
      %v817 = vsub.f32 %v605, %v771
      %v818 = vsub.f32 %v611, %v776
      %v819 = vsub.f32 %v615, %v779
      %v820 = vsub.f32 %v621, %v784
      %v821 = vsub.f32 %v625, %v787
      %v822 = vmul.f32 %v790, %v790
      %v823 = vmul.f32 %v791, %v791
      %v824 = vmul.f32 %v792, %v792
      %v825 = vmul.f32 %v793, %v793
      %v826 = vmul.f32 %v794, %v794
      %v827 = vmul.f32 %v795, %v795
      %v828 = vmul.f32 %v796, %v796
      %v829 = vmul.f32 %v797, %v797
      %v830 = vmul.f32 %v798, %v798
      %v831 = vmul.f32 %v799, %v799
      %v832 = vmul.f32 %v800, %v800
      %v833 = vmul.f32 %v801, %v801
      %v834 = vmul.f32 %v802, %v802
      %v835 = vmul.f32 %v803, %v803
      %v836 = vmul.f32 %v804, %v804
      %v837 = vmul.f32 %v805, %v805
      %v838 = vmul.f32 %v806, %v806
      %v839 = vmul.f32 %v807, %v807
      %v840 = vmul.f32 %v808, %v808
      %v841 = vmul.f32 %v809, %v809
      %v842 = vmul.f32 %v810, %v810
      %v843 = vmul.f32 %v811, %v811
      %v844 = vmul.f32 %v812, %v812
      %v845 = vmul.f32 %v813, %v813
      %v846 = vmul.f32 %v814, %v814
      %v847 = vmul.f32 %v815, %v815
      %v848 = vmul.f32 %v816, %v816
      %v849 = vmul.f32 %v817, %v817
      %v850 = vmul.f32 %v818, %v818
      %v851 = vmul.f32 %v819, %v819
      %v852 = vmul.f32 %v820, %v820
      %v853 = vmul.f32 %v821, %v821
      %v854 = vmul.f32 %v473, 4.0
      %v855 = vmul.f32 %v477, 4.0
      %v856 = vmul.f32 %v483, 4.0
      %v857 = vmul.f32 %v487, 4.0
      %v858 = vmul.f32 %v493, 4.0
      %v859 = vmul.f32 %v497, 4.0
      %v860 = vmul.f32 %v503, 4.0
      %v861 = vmul.f32 %v507, 4.0
      %v862 = vmul.f32 %v513, 4.0
      %v863 = vmul.f32 %v517, 4.0
      %v864 = vmul.f32 %v523, 4.0
      %v865 = vmul.f32 %v527, 4.0
      %v866 = vmul.f32 %v533, 4.0
      %v867 = vmul.f32 %v537, 4.0
      %v868 = vmul.f32 %v543, 4.0
      %v869 = vmul.f32 %v547, 4.0
      %v870 = vmul.f32 %v553, 4.0
      %v871 = vmul.f32 %v557, 4.0
      %v872 = vmul.f32 %v563, 4.0
      %v873 = vmul.f32 %v567, 4.0
      %v874 = vmul.f32 %v573, 4.0
      %v875 = vmul.f32 %v577, 4.0
      %v876 = vmul.f32 %v583, 4.0
      %v877 = vmul.f32 %v587, 4.0
      %v878 = vmul.f32 %v593, 4.0
      %v879 = vmul.f32 %v597, 4.0
      %v880 = vmul.f32 %v603, 4.0
      %v881 = vmul.f32 %v607, 4.0
      %v882 = vmul.f32 %v613, 4.0
      %v883 = vmul.f32 %v617, 4.0
      %v884 = vmul.f32 %v623, 4.0
      %v885 = vmul.f32 %v627, 4.0
      %v886 = vmul.f32 %v854, %v473
      %v887 = vmul.f32 %v855, %v477
      %v888 = vmul.f32 %v856, %v483
      %v889 = vmul.f32 %v857, %v487
      %v890 = vmul.f32 %v858, %v493
      %v891 = vmul.f32 %v859, %v497
      %v892 = vmul.f32 %v860, %v503
      %v893 = vmul.f32 %v861, %v507
      %v894 = vmul.f32 %v862, %v513
      %v895 = vmul.f32 %v863, %v517
      %v896 = vmul.f32 %v864, %v523
      %v897 = vmul.f32 %v865, %v527
      %v898 = vmul.f32 %v866, %v533
      %v899 = vmul.f32 %v867, %v537
      %v900 = vmul.f32 %v868, %v543
      %v901 = vmul.f32 %v869, %v547
      %v902 = vmul.f32 %v870, %v553
      %v903 = vmul.f32 %v871, %v557
      %v904 = vmul.f32 %v872, %v563
      %v905 = vmul.f32 %v873, %v567
      %v906 = vmul.f32 %v874, %v573
      %v907 = vmul.f32 %v875, %v577
      %v908 = vmul.f32 %v876, %v583
      %v909 = vmul.f32 %v877, %v587
      %v910 = vmul.f32 %v878, %v593
      %v911 = vmul.f32 %v879, %v597
      %v912 = vmul.f32 %v880, %v603
      %v913 = vmul.f32 %v881, %v607
      %v914 = vmul.f32 %v882, %v613
      %v915 = vmul.f32 %v883, %v617
      %v916 = vmul.f32 %v884, %v623
      %v917 = vmul.f32 %v885, %v627
      %v918 = vadd.f32 %v822, %v886
      %v919 = vadd.f32 %v823, %v887
      %v920 = vadd.f32 %v824, %v888
      %v921 = vadd.f32 %v825, %v889
      %v922 = vadd.f32 %v826, %v890
      %v923 = vadd.f32 %v827, %v891
      %v924 = vadd.f32 %v828, %v892
      %v925 = vadd.f32 %v829, %v893
      %v926 = vadd.f32 %v830, %v894
      %v927 = vadd.f32 %v831, %v895
      %v928 = vadd.f32 %v832, %v896
      %v929 = vadd.f32 %v833, %v897
      %v930 = vadd.f32 %v834, %v898
      %v931 = vadd.f32 %v835, %v899
      %v932 = vadd.f32 %v836, %v900
      %v933 = vadd.f32 %v837, %v901
      %v934 = vadd.f32 %v838, %v902
      %v935 = vadd.f32 %v839, %v903
      %v936 = vadd.f32 %v840, %v904
      %v937 = vadd.f32 %v841, %v905
      %v938 = vadd.f32 %v842, %v906
      %v939 = vadd.f32 %v843, %v907
      %v940 = vadd.f32 %v844, %v908
      %v941 = vadd.f32 %v845, %v909
      %v942 = vadd.f32 %v846, %v910
      %v943 = vadd.f32 %v847, %v911
      %v944 = vadd.f32 %v848, %v912
      %v945 = vadd.f32 %v849, %v913
      %v946 = vadd.f32 %v850, %v914
      %v947 = vadd.f32 %v851, %v915
      %v948 = vadd.f32 %v852, %v916
      %v949 = vadd.f32 %v853, %v917
      %v950 = vrsqrt.pop %v918
      %v951 = vmul.f32 %v918, %v950
      %vm952 = vcmp.eq.f32.partialorder %v918, inf
      %v953 = vsel %vm952, %v918, %v951
      %vm954 = vcmp.eq.f32.partialorder %v918, 0.0
      %v955 = vand.u32 %v918, 2147483648
      %v956 = vsel %vm954, %v955, %v953
      %v957 = vrsqrt.pop %v919
      %v958 = vmul.f32 %v919, %v957
      %vm959 = vcmp.eq.f32.partialorder %v919, inf
      %v960 = vsel %vm959, %v919, %v958
      %vm961 = vcmp.eq.f32.partialorder %v919, 0.0
      %v962 = vand.u32 %v919, 2147483648
      %v963 = vsel %vm961, %v962, %v960
      %v964 = vrsqrt.pop %v920
      %v965 = vmul.f32 %v920, %v964
      %vm966 = vcmp.eq.f32.partialorder %v920, inf
      %v967 = vsel %vm966, %v920, %v965
      %vm968 = vcmp.eq.f32.partialorder %v920, 0.0
      %v969 = vand.u32 %v920, 2147483648
      %v970 = vsel %vm968, %v969, %v967
      %v971 = vrsqrt.pop %v921
      %v972 = vmul.f32 %v921, %v971
      %vm973 = vcmp.eq.f32.partialorder %v921, inf
      %v974 = vsel %vm973, %v921, %v972
      %vm975 = vcmp.eq.f32.partialorder %v921, 0.0
      %v976 = vand.u32 %v921, 2147483648
      %v977 = vsel %vm975, %v976, %v974
      %v978 = vrsqrt.pop %v922
      %v979 = vmul.f32 %v922, %v978
      %vm980 = vcmp.eq.f32.partialorder %v922, inf
      %v981 = vsel %vm980, %v922, %v979
      %vm982 = vcmp.eq.f32.partialorder %v922, 0.0
      %v983 = vand.u32 %v922, 2147483648
      %v984 = vsel %vm982, %v983, %v981
      %v985 = vrsqrt.pop %v923
      %v986 = vmul.f32 %v923, %v985
      %vm987 = vcmp.eq.f32.partialorder %v923, inf
      %v988 = vsel %vm987, %v923, %v986
      %vm989 = vcmp.eq.f32.partialorder %v923, 0.0
      %v990 = vand.u32 %v923, 2147483648
      %v991 = vsel %vm989, %v990, %v988
      %v992 = vrsqrt.pop %v924
      %v993 = vmul.f32 %v924, %v992
      %vm994 = vcmp.eq.f32.partialorder %v924, inf
      %v995 = vsel %vm994, %v924, %v993
      %vm996 = vcmp.eq.f32.partialorder %v924, 0.0
      %v997 = vand.u32 %v924, 2147483648
      %v998 = vsel %vm996, %v997, %v995
      %v999 = vrsqrt.pop %v925
      %v1000 = vmul.f32 %v925, %v999
      %vm1001 = vcmp.eq.f32.partialorder %v925, inf
      %v1002 = vsel %vm1001, %v925, %v1000
      %vm1003 = vcmp.eq.f32.partialorder %v925, 0.0
      %v1004 = vand.u32 %v925, 2147483648
      %v1005 = vsel %vm1003, %v1004, %v1002
      %v1006 = vrsqrt.pop %v926
      %v1007 = vmul.f32 %v926, %v1006
      %vm1008 = vcmp.eq.f32.partialorder %v926, inf
      %v1009 = vsel %vm1008, %v926, %v1007
      %vm1010 = vcmp.eq.f32.partialorder %v926, 0.0
      %v1011 = vand.u32 %v926, 2147483648
      %v1012 = vsel %vm1010, %v1011, %v1009
      %v1013 = vrsqrt.pop %v927
      %v1014 = vmul.f32 %v927, %v1013
      %vm1015 = vcmp.eq.f32.partialorder %v927, inf
      %v1016 = vsel %vm1015, %v927, %v1014
      %vm1017 = vcmp.eq.f32.partialorder %v927, 0.0
      %v1018 = vand.u32 %v927, 2147483648
      %v1019 = vsel %vm1017, %v1018, %v1016
      %v1020 = vrsqrt.pop %v928
      %v1021 = vmul.f32 %v928, %v1020
      %vm1022 = vcmp.eq.f32.partialorder %v928, inf
      %v1023 = vsel %vm1022, %v928, %v1021
      %vm1024 = vcmp.eq.f32.partialorder %v928, 0.0
      %v1025 = vand.u32 %v928, 2147483648
      %v1026 = vsel %vm1024, %v1025, %v1023
      %v1027 = vrsqrt.pop %v929
      %v1028 = vmul.f32 %v929, %v1027
      %vm1029 = vcmp.eq.f32.partialorder %v929, inf
      %v1030 = vsel %vm1029, %v929, %v1028
      %vm1031 = vcmp.eq.f32.partialorder %v929, 0.0
      %v1032 = vand.u32 %v929, 2147483648
      %v1033 = vsel %vm1031, %v1032, %v1030
      %v1034 = vrsqrt.pop %v930
      %v1035 = vmul.f32 %v930, %v1034
      %vm1036 = vcmp.eq.f32.partialorder %v930, inf
      %v1037 = vsel %vm1036, %v930, %v1035
      %vm1038 = vcmp.eq.f32.partialorder %v930, 0.0
      %v1039 = vand.u32 %v930, 2147483648
      %v1040 = vsel %vm1038, %v1039, %v1037
      %v1041 = vrsqrt.pop %v931
      %v1042 = vmul.f32 %v931, %v1041
      %vm1043 = vcmp.eq.f32.partialorder %v931, inf
      %v1044 = vsel %vm1043, %v931, %v1042
      %vm1045 = vcmp.eq.f32.partialorder %v931, 0.0
      %v1046 = vand.u32 %v931, 2147483648
      %v1047 = vsel %vm1045, %v1046, %v1044
      %v1048 = vrsqrt.pop %v932
      %v1049 = vmul.f32 %v932, %v1048
      %vm1050 = vcmp.eq.f32.partialorder %v932, inf
      %v1051 = vsel %vm1050, %v932, %v1049
      %vm1052 = vcmp.eq.f32.partialorder %v932, 0.0
      %v1053 = vand.u32 %v932, 2147483648
      %v1054 = vsel %vm1052, %v1053, %v1051
      %v1055 = vrsqrt.pop %v933
      %v1056 = vmul.f32 %v933, %v1055
      %vm1057 = vcmp.eq.f32.partialorder %v933, inf
      %v1058 = vsel %vm1057, %v933, %v1056
      %vm1059 = vcmp.eq.f32.partialorder %v933, 0.0
      %v1060 = vand.u32 %v933, 2147483648
      %v1061 = vsel %vm1059, %v1060, %v1058
      %v1062 = vrsqrt.pop %v934
      %v1063 = vmul.f32 %v934, %v1062
      %vm1064 = vcmp.eq.f32.partialorder %v934, inf
      %v1065 = vsel %vm1064, %v934, %v1063
      %vm1066 = vcmp.eq.f32.partialorder %v934, 0.0
      %v1067 = vand.u32 %v934, 2147483648
      %v1068 = vsel %vm1066, %v1067, %v1065
      %v1069 = vrsqrt.pop %v935
      %v1070 = vmul.f32 %v935, %v1069
      %vm1071 = vcmp.eq.f32.partialorder %v935, inf
      %v1072 = vsel %vm1071, %v935, %v1070
      %vm1073 = vcmp.eq.f32.partialorder %v935, 0.0
      %v1074 = vand.u32 %v935, 2147483648
      %v1075 = vsel %vm1073, %v1074, %v1072
      %v1076 = vrsqrt.pop %v936
      %v1077 = vmul.f32 %v936, %v1076
      %vm1078 = vcmp.eq.f32.partialorder %v936, inf
      %v1079 = vsel %vm1078, %v936, %v1077
      %vm1080 = vcmp.eq.f32.partialorder %v936, 0.0
      %v1081 = vand.u32 %v936, 2147483648
      %v1082 = vsel %vm1080, %v1081, %v1079
      %v1083 = vrsqrt.pop %v937
      %v1084 = vmul.f32 %v937, %v1083
      %vm1085 = vcmp.eq.f32.partialorder %v937, inf
      %v1086 = vsel %vm1085, %v937, %v1084
      %vm1087 = vcmp.eq.f32.partialorder %v937, 0.0
      %v1088 = vand.u32 %v937, 2147483648
      %v1089 = vsel %vm1087, %v1088, %v1086
      %v1090 = vrsqrt.pop %v938
      %v1091 = vmul.f32 %v938, %v1090
      %vm1092 = vcmp.eq.f32.partialorder %v938, inf
      %v1093 = vsel %vm1092, %v938, %v1091
      %vm1094 = vcmp.eq.f32.partialorder %v938, 0.0
      %v1095 = vand.u32 %v938, 2147483648
      %v1096 = vsel %vm1094, %v1095, %v1093
      %v1097 = vrsqrt.pop %v939
      %v1098 = vmul.f32 %v939, %v1097
      %vm1099 = vcmp.eq.f32.partialorder %v939, inf
      %v1100 = vsel %vm1099, %v939, %v1098
      %vm1101 = vcmp.eq.f32.partialorder %v939, 0.0
      %v1102 = vand.u32 %v939, 2147483648
      %v1103 = vsel %vm1101, %v1102, %v1100
      %v1104 = vrsqrt.pop %v940
      %v1105 = vmul.f32 %v940, %v1104
      %vm1106 = vcmp.eq.f32.partialorder %v940, inf
      %v1107 = vsel %vm1106, %v940, %v1105
      %vm1108 = vcmp.eq.f32.partialorder %v940, 0.0
      %v1109 = vand.u32 %v940, 2147483648
      %v1110 = vsel %vm1108, %v1109, %v1107
      %v1111 = vrsqrt.pop %v941
      %v1112 = vmul.f32 %v941, %v1111
      %vm1113 = vcmp.eq.f32.partialorder %v941, inf
      %v1114 = vsel %vm1113, %v941, %v1112
      %vm1115 = vcmp.eq.f32.partialorder %v941, 0.0
      %v1116 = vand.u32 %v941, 2147483648
      %v1117 = vsel %vm1115, %v1116, %v1114
      %v1118 = vrsqrt.pop %v942
      %v1119 = vmul.f32 %v942, %v1118
      %vm1120 = vcmp.eq.f32.partialorder %v942, inf
      %v1121 = vsel %vm1120, %v942, %v1119
      %vm1122 = vcmp.eq.f32.partialorder %v942, 0.0
      %v1123 = vand.u32 %v942, 2147483648
      %v1124 = vsel %vm1122, %v1123, %v1121
      %v1125 = vrsqrt.pop %v943
      %v1126 = vmul.f32 %v943, %v1125
      %vm1127 = vcmp.eq.f32.partialorder %v943, inf
      %v1128 = vsel %vm1127, %v943, %v1126
      %vm1129 = vcmp.eq.f32.partialorder %v943, 0.0
      %v1130 = vand.u32 %v943, 2147483648
      %v1131 = vsel %vm1129, %v1130, %v1128
      %v1132 = vrsqrt.pop %v944
      %v1133 = vmul.f32 %v944, %v1132
      %vm1134 = vcmp.eq.f32.partialorder %v944, inf
      %v1135 = vsel %vm1134, %v944, %v1133
      %vm1136 = vcmp.eq.f32.partialorder %v944, 0.0
      %v1137 = vand.u32 %v944, 2147483648
      %v1138 = vsel %vm1136, %v1137, %v1135
      %v1139 = vrsqrt.pop %v945
      %v1140 = vmul.f32 %v945, %v1139
      %vm1141 = vcmp.eq.f32.partialorder %v945, inf
      %v1142 = vsel %vm1141, %v945, %v1140
      %vm1143 = vcmp.eq.f32.partialorder %v945, 0.0
      %v1144 = vand.u32 %v945, 2147483648
      %v1145 = vsel %vm1143, %v1144, %v1142
      %v1146 = vrsqrt.pop %v946
      %v1147 = vmul.f32 %v946, %v1146
      %vm1148 = vcmp.eq.f32.partialorder %v946, inf
      %v1149 = vsel %vm1148, %v946, %v1147
      %vm1150 = vcmp.eq.f32.partialorder %v946, 0.0
      %v1151 = vand.u32 %v946, 2147483648
      %v1152 = vsel %vm1150, %v1151, %v1149
      %v1153 = vrsqrt.pop %v947
      %v1154 = vmul.f32 %v947, %v1153
      %vm1155 = vcmp.eq.f32.partialorder %v947, inf
      %v1156 = vsel %vm1155, %v947, %v1154
      %vm1157 = vcmp.eq.f32.partialorder %v947, 0.0
      %v1158 = vand.u32 %v947, 2147483648
      %v1159 = vsel %vm1157, %v1158, %v1156
      %v1160 = vrsqrt.pop %v948
      %v1161 = vmul.f32 %v948, %v1160
      %vm1162 = vcmp.eq.f32.partialorder %v948, inf
      %v1163 = vsel %vm1162, %v948, %v1161
      %vm1164 = vcmp.eq.f32.partialorder %v948, 0.0
      %v1165 = vand.u32 %v948, 2147483648
      %v1166 = vsel %vm1164, %v1165, %v1163
      %v1167 = vrsqrt.pop %v949
      %v1168 = vmul.f32 %v949, %v1167
      %vm1169 = vcmp.eq.f32.partialorder %v949, inf
      %v1170 = vsel %vm1169, %v949, %v1168
      %vm1171 = vcmp.eq.f32.partialorder %v949, 0.0
      %v1172 = vand.u32 %v949, 2147483648
      %v1173 = vsel %vm1171, %v1172, %v1170
      %v1174 = vadd.f32 %v471, %v664
      %v1175 = vadd.f32 %v475, %v667
      %v1176 = vadd.f32 %v481, %v672
      %v1177 = vadd.f32 %v485, %v675
      %v1178 = vadd.f32 %v491, %v680
      %v1179 = vadd.f32 %v495, %v683
      %v1180 = vadd.f32 %v501, %v688
      %v1181 = vadd.f32 %v505, %v691
      %v1182 = vadd.f32 %v511, %v696
      %v1183 = vadd.f32 %v515, %v699
      %v1184 = vadd.f32 %v521, %v704
      %v1185 = vadd.f32 %v525, %v707
      %v1186 = vadd.f32 %v531, %v712
      %v1187 = vadd.f32 %v535, %v715
      %v1188 = vadd.f32 %v541, %v720
      %v1189 = vadd.f32 %v545, %v723
      %v1190 = vadd.f32 %v551, %v728
      %v1191 = vadd.f32 %v555, %v731
      %v1192 = vadd.f32 %v561, %v736
      %v1193 = vadd.f32 %v565, %v739
      %v1194 = vadd.f32 %v571, %v744
      %v1195 = vadd.f32 %v575, %v747
      %v1196 = vadd.f32 %v581, %v752
      %v1197 = vadd.f32 %v585, %v755
      %v1198 = vadd.f32 %v591, %v760
      %v1199 = vadd.f32 %v595, %v763
      %v1200 = vadd.f32 %v601, %v768
      %v1201 = vadd.f32 %v605, %v771
      %v1202 = vadd.f32 %v611, %v776
      %v1203 = vadd.f32 %v615, %v779
      %v1204 = vadd.f32 %v621, %v784
      %v1205 = vadd.f32 %v625, %v787
      %v1206 = vadd.f32 %v1174, %v956
      %v1207 = vadd.f32 %v1175, %v963
      %v1208 = vadd.f32 %v1176, %v970
      %v1209 = vadd.f32 %v1177, %v977
      %v1210 = vadd.f32 %v1178, %v984
      %v1211 = vadd.f32 %v1179, %v991
      %v1212 = vadd.f32 %v1180, %v998
      %v1213 = vadd.f32 %v1181, %v1005
      %v1214 = vadd.f32 %v1182, %v1012
      %v1215 = vadd.f32 %v1183, %v1019
      %v1216 = vadd.f32 %v1184, %v1026
      %v1217 = vadd.f32 %v1185, %v1033
      %v1218 = vadd.f32 %v1186, %v1040
      %v1219 = vadd.f32 %v1187, %v1047
      %v1220 = vadd.f32 %v1188, %v1054
      %v1221 = vadd.f32 %v1189, %v1061
      %v1222 = vadd.f32 %v1190, %v1068
      %v1223 = vadd.f32 %v1191, %v1075
      %v1224 = vadd.f32 %v1192, %v1082
      %v1225 = vadd.f32 %v1193, %v1089
      %v1226 = vadd.f32 %v1194, %v1096
      %v1227 = vadd.f32 %v1195, %v1103
      %v1228 = vadd.f32 %v1196, %v1110
      %v1229 = vadd.f32 %v1197, %v1117
      %v1230 = vadd.f32 %v1198, %v1124
      %v1231 = vadd.f32 %v1199, %v1131
      %v1232 = vadd.f32 %v1200, %v1138
      %v1233 = vadd.f32 %v1201, %v1145
      %v1234 = vadd.f32 %v1202, %v1152
      %v1235 = vadd.f32 %v1203, %v1159
      %v1236 = vadd.f32 %v1204, %v1166
      %v1237 = vadd.f32 %v1205, %v1173
      %v1238 = vmul.f32 %v1206, 0.5
      %v1239 = vmul.f32 %v1207, 0.5
      %v1240 = vmul.f32 %v1208, 0.5
      %v1241 = vmul.f32 %v1209, 0.5
      %v1242 = vmul.f32 %v1210, 0.5
      %v1243 = vmul.f32 %v1211, 0.5
      %v1244 = vmul.f32 %v1212, 0.5
      %v1245 = vmul.f32 %v1213, 0.5
      %v1246 = vmul.f32 %v1214, 0.5
      %v1247 = vmul.f32 %v1215, 0.5
      %v1248 = vmul.f32 %v1216, 0.5
      %v1249 = vmul.f32 %v1217, 0.5
      %v1250 = vmul.f32 %v1218, 0.5
      %v1251 = vmul.f32 %v1219, 0.5
      %v1252 = vmul.f32 %v1220, 0.5
      %v1253 = vmul.f32 %v1221, 0.5
      %v1254 = vmul.f32 %v1222, 0.5
      %v1255 = vmul.f32 %v1223, 0.5
      %v1256 = vmul.f32 %v1224, 0.5
      %v1257 = vmul.f32 %v1225, 0.5
      %v1258 = vmul.f32 %v1226, 0.5
      %v1259 = vmul.f32 %v1227, 0.5
      %v1260 = vmul.f32 %v1228, 0.5
      %v1261 = vmul.f32 %v1229, 0.5
      %v1262 = vmul.f32 %v1230, 0.5
      %v1263 = vmul.f32 %v1231, 0.5
      %v1264 = vmul.f32 %v1232, 0.5
      %v1265 = vmul.f32 %v1233, 0.5
      %v1266 = vmul.f32 %v1234, 0.5
      %v1267 = vmul.f32 %v1235, 0.5
      %v1268 = vmul.f32 %v1236, 0.5
      %v1269 = vmul.f32 %v1237, 0.5
      %1270 = vst [vmem:[%s145] sm:$0xff] %v1238
      %1271 = vst [vmem:[%s145 + $0x8] sm:$0xff] %v1239
      %1272 = vst [vmem:[%s145 + $0x10] sm:$0xff] %v1240
      %1273 = vst [vmem:[%s145 + $0x18] sm:$0xff] %v1241
      %1274 = vst [vmem:[%s145 + $0x20] sm:$0xff] %v1242
      %1275 = vst [vmem:[%s145 + $0x28] sm:$0xff] %v1243
      %1276 = vst [vmem:[%s145 + $0x30] sm:$0xff] %v1244
      %1277 = vst [vmem:[%s145 + $0x38] sm:$0xff] %v1245
      %1278 = vst [vmem:[%s145 + $0x40] sm:$0xff] %v1246
      %1279 = vst [vmem:[%s145 + $0x48] sm:$0xff] %v1247
      %1280 = vst [vmem:[%s145 + $0x50] sm:$0xff] %v1248
      %1281 = vst [vmem:[%s145 + $0x58] sm:$0xff] %v1249
      %1282 = vst [vmem:[%s145 + $0x60] sm:$0xff] %v1250
      %1283 = vst [vmem:[%s145 + $0x68] sm:$0xff] %v1251
      %1284 = vst [vmem:[%s145 + $0x70] sm:$0xff] %v1252
      %1285 = vst [vmem:[%s145 + $0x78] sm:$0xff] %v1253
      %1286 = vst [vmem:[%s145 + $0x80] sm:$0xff] %v1254
      %1287 = vst [vmem:[%s145 + $0x88] sm:$0xff] %v1255
      %1288 = vst [vmem:[%s145 + $0x90] sm:$0xff] %v1256
      %1289 = vst [vmem:[%s145 + $0x98] sm:$0xff] %v1257
      %1290 = vst [vmem:[%s145 + $0xa0] sm:$0xff] %v1258
      %1291 = vst [vmem:[%s145 + $0xa8] sm:$0xff] %v1259
      %1292 = vst [vmem:[%s145 + $0xb0] sm:$0xff] %v1260
      %1293 = vst [vmem:[%s145 + $0xb8] sm:$0xff] %v1261
      %1294 = vst [vmem:[%s145 + $0xc0] sm:$0xff] %v1262
      %1295 = vst [vmem:[%s145 + $0xc8] sm:$0xff] %v1263
      %1296 = vst [vmem:[%s145 + $0xd0] sm:$0xff] %v1264
      %1297 = vst [vmem:[%s145 + $0xd8] sm:$0xff] %v1265
      %1298 = vst [vmem:[%s145 + $0xe0] sm:$0xff] %v1266
      %1299 = vst [vmem:[%s145 + $0xe8] sm:$0xff] %v1267
      %1300 = vst [vmem:[%s145 + $0xf0] sm:$0xff] %v1268
      %1301 = vst [vmem:[%s145 + $0xf8] sm:$0xff] %v1269
      %s1302 = smul.u32 32, %s13
      %p1303 = scmp.lt.s32.totalorder %s1302, 63
      %s1304 = scalar_select %p1303, %s1302, 63
      %s1305 = smul.addr %s1304, 8
      %s1306 = scalar_lea.vmem %s2, %s1305
      // Predicated region
      $region29: #{hessian_layer_u_fwd.5} parent=27 // pred_check
        %p1307 = pneg %p78
      $region30: #{hessian_layer_u_fwd.5} parent=27 // pred_check_branch
        %1309 = sbr.rel (%p1307) target = $region32
      $region31: #{hessian_layer_u_fwd.5} parent=27 // pred_region
        %s1310 = smul.u32 32, %s13
      $region32: #{hessian_layer_u_fwd.5} parent=27 // pred_fallthru
        _
    $region28: #{hessian_layer_u_fwd.5} parent=5 // pred_fallthru
      _
    %p1311 = scmp.le.s32.totalorder 2, %s8
    // Predicated region
    $region33: #{hessian_layer_u_fwd.5} parent=5 // pred_check
      %p1312 = pneg %p1311
    $region34: #{hessian_layer_u_fwd.5} parent=5 // pred_check_branch
      %1314 = sbr.rel (%p1312) target = $region36
    $region35: #{hessian_layer_u_fwd.5} parent=5 // pred_region
      %s1315 = ssub.s32 %s8, 2
      // Predicated region
      $region37: #{hessian_layer_u_fwd.5} parent=35 // pred_check
        %p1316 = pneg %p84
      $region38: #{hessian_layer_u_fwd.5} parent=35 // pred_check_branch
        %1318 = sbr.rel (%p1316) target = $region40
      $region39: #{hessian_layer_u_fwd.5} parent=35 // pred_region
        %s1319 = smul.u32 32, %s14
        %p1320 = scmp.lt.s32.totalorder %s1319, 63
        %s1321 = scalar_select %p1320, %s1319, 63
        %s1322 = smul.addr %s1321, 8
        %s1323 = scalar_lea.vmem %s2, %s1322
      $region40: #{hessian_layer_u_fwd.5} parent=35 // pred_fallthru
        _
    $region36: #{hessian_layer_u_fwd.5} parent=5 // pred_fallthru
      _
  $region6: #{hessian_layer_u_fwd.5} parent=0 // loop_footer
    %s12 = sadd.s32 1, %s8
  $region7: #{hessian_layer_u_fwd.5} parent=0 // loop_footer_branch
    %7 = sbr.rel target = $region3
  $region8: #{hessian_layer_u_fwd.5} parent=0 // loop_exit
    _

// kernel: hessian_layer_u_fwd.6
$region0: #{hessian_layer_u_fwd.6}
  #allocation0 [shape = 'u32[]', space=smem, size = 0x4, offset = 0x4, fixed_abs, tag = 'smem constant byte address 0x4 - core index']
  #allocation1 [shape = 'u32[144,128]{1,0:T(1,128)}', space=vmem, size = 0x12000, scoped, tag = 'internal scratch']
  %s0 = inlined_call_operand.vmem [shape: bf16[512,128], index: 0, kind: input, shape index: {}]
  %s1 = inlined_call_operand.vmem [shape: bf16[128,128], index: 1, kind: input, shape index: {}]
  %s2 = inlined_call_operand.vmem [shape: f32[512,128], index: 2, kind: output, shape index: {}]
  %s3 = sld [smem:[#allocation0]]
  $region45: #{hessian_layer_u_fwd.6} parent=0
    _
  %s5 = ssub.s32 1, %s3
  %s6 = scalar_select 0, %s5, %s3
  loop: start=0, step=1, limit=4
  $region2: #{hessian_layer_u_fwd.6} parent=0 // loop_pre_header
    _
  $region3: #{hessian_layer_u_fwd.6} parent=0 // loop_header
    %s8 = sphi 0, %s12
    %p9 = scmp.ge.s32.totalorder %s8, 4
    %s15 = sphi 0, %s27
    %s16 = sphi 0, %s23
    %s17 = sphi 0, %s15
    %s18 = sphi 0, %s16
    %s19 = sphi 0, %s17
    %s20 = sphi 0, %s18
    %s32 = sphi 0, %s34
    %s35 = sphi 0, %s32
    %s36 = sphi 0, %s35
    %s52 = sphi 0, %s36
    %s58 = sphi 0, %s60
    %s61 = sphi 0, %s58
    %s62 = sphi 0, %s61
    %s78 = sphi 0, %s62
    %s84 = sphi 0, %s86
    %s87 = sphi 0, %s84
    %s88 = sphi 0, %s87
    %s104 = sphi 0, %s88
  $region4: #{hessian_layer_u_fwd.6} parent=0 // loop_header_branch
    %11 = sbr.rel (%p9) target = $region8
  $region5: #{hessian_layer_u_fwd.6} parent=0 // loop_body
    %s13 = ssub.s32 %s8, 1
    %s14 = ssub.s32 %s8, 2
    %s21 = sadd.s32 1, %s16
    %p22 = scmp.ge.s32.totalorder %s21, 1
    %s23 = scalar_select %p22, 0, %s21
    %s24 = sadd.s32 1, %s15
    %s25 = scalar_select %p22, %s24, %s15
    %p26 = scmp.ge.s32.totalorder %s25, 2
    %s27 = scalar_select %p26, 0, %s25
    %s28 = ssub.s32 %s15, %s27
    %s29 = ssub.s32 %s16, %s23
    %s30 = sor.u32 %s28, %s29
    %p31 = scmp.eq.s32.totalorder %s30, 0
    %s33 = sadd.s32 %s32, 1
    %s34 = scalar_select %p31, %s32, %s33
    %p37 = pneg %p31
    %p38 = scmp.eq.s32.totalorder %s8, 1
    %p39 = por %p37, %p38
    %p40 = scmp.ne.s32.totalorder %s32, %s35
    %p41 = scmp.eq.s32.totalorder %s8, 0
    %p42 = por %p40, %p41
    %p43 = scmp.ne.s32.totalorder %s32, %s35
    %p44 = scmp.eq.s32.totalorder %s13, 1
    %p45 = por %p43, %p44
    %p46 = scmp.ne.s32.totalorder %s35, %s36
    %p47 = scmp.eq.s32.totalorder %s13, 0
    %p48 = por %p46, %p47
    %p49 = scmp.ne.s32.totalorder %s35, %s36
    %p50 = scmp.eq.s32.totalorder %s14, 1
    %p51 = por %p49, %p50
    %p53 = scmp.ne.s32.totalorder %s36, %s52
    %p54 = scmp.eq.s32.totalorder %s14, 0
    %p55 = por %p53, %p54
    %s56 = ssub.s32 %s16, %s23
    %p57 = scmp.eq.s32.totalorder %s56, 0
    %s59 = sadd.s32 %s58, 1
    %s60 = scalar_select %p57, %s58, %s59
    %p63 = pneg %p57
    %p64 = scmp.eq.s32.totalorder %s8, 1
    %p65 = por %p63, %p64
    %p66 = scmp.ne.s32.totalorder %s58, %s61
    %p67 = scmp.eq.s32.totalorder %s8, 0
    %p68 = por %p66, %p67
    %p69 = scmp.ne.s32.totalorder %s58, %s61
    %p70 = scmp.eq.s32.totalorder %s13, 1
    %p71 = por %p69, %p70
    %p72 = scmp.ne.s32.totalorder %s61, %s62
    %p73 = scmp.eq.s32.totalorder %s13, 0
    %p74 = por %p72, %p73
    %p75 = scmp.ne.s32.totalorder %s61, %s62
    %p76 = scmp.eq.s32.totalorder %s14, 1
    %p77 = por %p75, %p76
    %p79 = scmp.ne.s32.totalorder %s62, %s78
    %p80 = scmp.eq.s32.totalorder %s14, 0
    %p81 = por %p79, %p80
    %s82 = ssub.s32 %s15, %s27
    %p83 = scmp.eq.s32.totalorder %s82, 0
    %s85 = sadd.s32 %s84, 1
    %s86 = scalar_select %p83, %s84, %s85
    %p89 = pneg %p83
    %p90 = scmp.eq.s32.totalorder %s8, 1
    %p91 = por %p89, %p90
    %p92 = scmp.ne.s32.totalorder %s84, %s87
    %p93 = scmp.eq.s32.totalorder %s8, 0
    %p94 = por %p92, %p93
    %p95 = scmp.ne.s32.totalorder %s84, %s87
    %p96 = scmp.eq.s32.totalorder %s13, 1
    %p97 = por %p95, %p96
    %p98 = scmp.ne.s32.totalorder %s87, %s88
    %p99 = scmp.eq.s32.totalorder %s13, 0
    %p100 = por %p98, %p99
    %p101 = scmp.ne.s32.totalorder %s87, %s88
    %p102 = scmp.eq.s32.totalorder %s14, 1
    %p103 = por %p101, %p102
    %p105 = scmp.ne.s32.totalorder %s88, %s104
    %p106 = scmp.eq.s32.totalorder %s14, 0
    %p107 = por %p105, %p106
    %p108 = scmp.le.s32.totalorder 1, %s8
    %p109 = scmp.lt.s32.totalorder %s8, 3
    %p110 = pnand %p108, %p109
    %p111 = pneg %p110
    // Predicated region
    $region9: #{hessian_layer_u_fwd.6} parent=5 // pred_check
      _
    $region10: #{hessian_layer_u_fwd.6} parent=5 // pred_check_branch
      %113 = sbr.rel (%p110) target = $region12
    $region11: #{hessian_layer_u_fwd.6} parent=5 // pred_region
      %s114 = ssub.s32 %s8, 1
      // Predicated region
      $region13: #{hessian_layer_u_fwd.6} parent=11 // pred_check
        %p115 = pneg %p74
      $region14: #{hessian_layer_u_fwd.6} parent=11 // pred_check_branch
        %117 = sbr.rel (%p115) target = $region16
      $region15: #{hessian_layer_u_fwd.6} parent=11 // pred_region
        %s118 = smul.u32 16, %s18
        %p119 = scmp.lt.s32.totalorder %s118, 15
        %s120 = scalar_select %p119, %s118, 15
        %s121 = smul.addr %s120, 4
        %s122 = scalar_lea.vmem %s1, %s121
        %s123 = smul.u32 16, %s18
      $region16: #{hessian_layer_u_fwd.6} parent=11 // pred_fallthru
        _
    $region12: #{hessian_layer_u_fwd.6} parent=5 // pred_fallthru
      _
    %p124 = scmp.lt.s32.totalorder %s8, 2
    // Predicated region
    $region17: #{hessian_layer_u_fwd.6} parent=5 // pred_check
      %p125 = pneg %p124
    $region18: #{hessian_layer_u_fwd.6} parent=5 // pred_check_branch
      %127 = sbr.rel (%p125) target = $region20
    $region19: #{hessian_layer_u_fwd.6} parent=5 // pred_region
      // Predicated region
      $region21: #{hessian_layer_u_fwd.6} parent=19 // pred_check
        %p128 = pneg %p42
      $region22: #{hessian_layer_u_fwd.6} parent=19 // pred_check_branch
        %130 = sbr.rel (%p128) target = $region24
      $region23: #{hessian_layer_u_fwd.6} parent=19 // pred_region
        %s131 = smul.u32 32, %s15
        %p132 = scmp.lt.s32.totalorder %s131, 63
        %s133 = scalar_select %p132, %s131, 63
        %p134 = scmp.lt.s32.totalorder %s16, 0
        %s135 = scalar_select %p134, %s16, 0
        %s136 = sadd.s32 %s135, %s133
        %s137 = smul.addr %s136, 4
        %s138 = scalar_lea.vmem %s0, %s137
        %s139 = smul.u32 32, %s15
      $region24: #{hessian_layer_u_fwd.6} parent=19 // pred_fallthru
        _
    $region20: #{hessian_layer_u_fwd.6} parent=5 // pred_fallthru
      _
    %p140 = scmp.le.s32.totalorder 1, %s8
    %p141 = scmp.lt.s32.totalorder %s8, 3
    %p142 = pnand %p140, %p141
    %p143 = pneg %p142
    // Predicated region
    $region25: #{hessian_layer_u_fwd.6} parent=5 // pred_check
      _
    $region26: #{hessian_layer_u_fwd.6} parent=5 // pred_check_branch
      %145 = sbr.rel (%p142) target = $region28
    $region27: #{hessian_layer_u_fwd.6} parent=5 // pred_region
      %s146 = ssub.s32 %s8, 1
      %s147 = smul.u32 32, %s17
      %p148 = scmp.lt.s32.totalorder %s147, 63
      %s149 = scalar_select %p148, %s147, 63
      %p150 = scmp.lt.s32.totalorder %s18, 0
      %s151 = scalar_select %p150, %s18, 0
      %s152 = sadd.s32 %s151, %s149
      %s153 = smul.addr %s152, 4
      %s154 = scalar_lea.vmem %s0, %s153
      %p155 = pneg %p48
      %p156 = pneg %p45
      %s157 = smul.u32 16, %s18
      %p158 = scmp.lt.s32.totalorder %s157, 15
      %s159 = scalar_select %p158, %s157, 15
      %s160 = smul.addr %s159, 4
      %s161 = scalar_lea.vmem %s1, %s160
      %p162 = pneg %p74
      %p163 = pneg %p71
      %p164 = pneg %p100
      %p165 = pneg %p97
      %s166 = smul.u32 32, %s17
      %p167 = scmp.lt.s32.totalorder %s166, 63
      %s168 = scalar_select %p167, %s166, 63
      %s169 = smul.addr %s168, 8
      %s170 = scalar_lea.vmem %s2, %s169
      %s171 = smul.u32 32, %s17
      %p172 = scmp.lt.s32.totalorder %s171, 63
      %s173 = scalar_select %p172, %s171, 63
      %p174 = scmp.lt.s32.totalorder %s18, 0
      %s175 = scalar_select %p174, %s18, 0
      %s176 = sadd.s32 %s175, %s173
      %s177 = smul.addr %s176, 4
      %s178 = scalar_lea.vmem %s0, %s177
      %s179 = smul.u32 32, %s17
      %s180 = smul.u32 16, %s18
      %p181 = scmp.lt.s32.totalorder %s180, 15
      %s182 = scalar_select %p181, %s180, 15
      %s183 = smul.addr %s182, 4
      %s184 = scalar_lea.vmem %s1, %s183
      %s185 = smul.u32 16, %s18
      %s186 = smul.u32 32, %s17
      %p187 = scmp.lt.s32.totalorder %s186, 63
      %s188 = scalar_select %p187, %s186, 63
      %s189 = smul.addr %s188, 8
      %s190 = scalar_lea.vmem %s2, %s189
      %s191 = smul.u32 32, %s17
      %p193 = scmp.eq.s32.totalorder %s18, 0
      // Predicated region
      $region29: #{hessian_layer_u_fwd.6} parent=27 // pred_check
        %p194 = pneg %p193
      $region30: #{hessian_layer_u_fwd.6} parent=27 // pred_check_branch
        %196 = sbr.rel (%p194) target = $region32
      $region31: #{hessian_layer_u_fwd.6} parent=27 // pred_region
        %197 = vst [vmem:[%s190] sm:$0xff] 0.0
        %198 = vst [vmem:[%s190 + $0x8] sm:$0xff] 0.0
        %199 = vst [vmem:[%s190 + $0x10] sm:$0xff] 0.0
        %200 = vst [vmem:[%s190 + $0x18] sm:$0xff] 0.0
        %201 = vst [vmem:[%s190 + $0x20] sm:$0xff] 0.0
        %202 = vst [vmem:[%s190 + $0x28] sm:$0xff] 0.0
        %203 = vst [vmem:[%s190 + $0x30] sm:$0xff] 0.0
        %204 = vst [vmem:[%s190 + $0x38] sm:$0xff] 0.0
        %205 = vst [vmem:[%s190 + $0x40] sm:$0xff] 0.0
        %206 = vst [vmem:[%s190 + $0x48] sm:$0xff] 0.0
        %207 = vst [vmem:[%s190 + $0x50] sm:$0xff] 0.0
        %208 = vst [vmem:[%s190 + $0x58] sm:$0xff] 0.0
        %209 = vst [vmem:[%s190 + $0x60] sm:$0xff] 0.0
        %210 = vst [vmem:[%s190 + $0x68] sm:$0xff] 0.0
        %211 = vst [vmem:[%s190 + $0x70] sm:$0xff] 0.0
        %212 = vst [vmem:[%s190 + $0x78] sm:$0xff] 0.0
        %213 = vst [vmem:[%s190 + $0x80] sm:$0xff] 0.0
        %214 = vst [vmem:[%s190 + $0x88] sm:$0xff] 0.0
        %215 = vst [vmem:[%s190 + $0x90] sm:$0xff] 0.0
        %216 = vst [vmem:[%s190 + $0x98] sm:$0xff] 0.0
        %217 = vst [vmem:[%s190 + $0xa0] sm:$0xff] 0.0
        %218 = vst [vmem:[%s190 + $0xa8] sm:$0xff] 0.0
        %219 = vst [vmem:[%s190 + $0xb0] sm:$0xff] 0.0
        %220 = vst [vmem:[%s190 + $0xb8] sm:$0xff] 0.0
        %221 = vst [vmem:[%s190 + $0xc0] sm:$0xff] 0.0
        %222 = vst [vmem:[%s190 + $0xc8] sm:$0xff] 0.0
        %223 = vst [vmem:[%s190 + $0xd0] sm:$0xff] 0.0
        %224 = vst [vmem:[%s190 + $0xd8] sm:$0xff] 0.0
        %225 = vst [vmem:[%s190 + $0xe0] sm:$0xff] 0.0
        %226 = vst [vmem:[%s190 + $0xe8] sm:$0xff] 0.0
        %227 = vst [vmem:[%s190 + $0xf0] sm:$0xff] 0.0
        %228 = vst [vmem:[%s190 + $0xf8] sm:$0xff] 0.0
      $region32: #{hessian_layer_u_fwd.6} parent=27 // pred_fallthru
        _
      %v229 = vld [vmem:[%s190] sm:$0xff]
      %v230 = vld [vmem:[%s190 + $0x8] sm:$0xff]
      %v231 = vld [vmem:[%s190 + $0x10] sm:$0xff]
      %v232 = vld [vmem:[%s190 + $0x18] sm:$0xff]
      %v233 = vld [vmem:[%s190 + $0x20] sm:$0xff]
      %v234 = vld [vmem:[%s190 + $0x28] sm:$0xff]
      %v235 = vld [vmem:[%s190 + $0x30] sm:$0xff]
      %v236 = vld [vmem:[%s190 + $0x38] sm:$0xff]
      %v237 = vld [vmem:[%s190 + $0x40] sm:$0xff]
      %v238 = vld [vmem:[%s190 + $0x48] sm:$0xff]
      %v239 = vld [vmem:[%s190 + $0x50] sm:$0xff]
      %v240 = vld [vmem:[%s190 + $0x58] sm:$0xff]
      %v241 = vld [vmem:[%s190 + $0x60] sm:$0xff]
      %v242 = vld [vmem:[%s190 + $0x68] sm:$0xff]
      %v243 = vld [vmem:[%s190 + $0x70] sm:$0xff]
      %v244 = vld [vmem:[%s190 + $0x78] sm:$0xff]
      %v245 = vld [vmem:[%s190 + $0x80] sm:$0xff]
      %v246 = vld [vmem:[%s190 + $0x88] sm:$0xff]
      %v247 = vld [vmem:[%s190 + $0x90] sm:$0xff]
      %v248 = vld [vmem:[%s190 + $0x98] sm:$0xff]
      %v249 = vld [vmem:[%s190 + $0xa0] sm:$0xff]
      %v250 = vld [vmem:[%s190 + $0xa8] sm:$0xff]
      %v251 = vld [vmem:[%s190 + $0xb0] sm:$0xff]
      %v252 = vld [vmem:[%s190 + $0xb8] sm:$0xff]
      %v253 = vld [vmem:[%s190 + $0xc0] sm:$0xff]
      %v254 = vld [vmem:[%s190 + $0xc8] sm:$0xff]
      %v255 = vld [vmem:[%s190 + $0xd0] sm:$0xff]
      %v256 = vld [vmem:[%s190 + $0xd8] sm:$0xff]
      %v257 = vld [vmem:[%s190 + $0xe0] sm:$0xff]
      %v258 = vld [vmem:[%s190 + $0xe8] sm:$0xff]
      %v259 = vld [vmem:[%s190 + $0xf0] sm:$0xff]
      %v260 = vld [vmem:[%s190 + $0xf8] sm:$0xff]
      %v261 = vld [vmem:[%s178] sm:$0xf]
      %v262 = vld [vmem:[%s178 + $0x4] sm:$0xf]
      %v263 = vld [vmem:[%s178 + $0x8] sm:$0xf]
      %v264 = vld [vmem:[%s178 + $0xc] sm:$0xf]
      %v265 = vld [vmem:[%s178 + $0x10] sm:$0xf]
      %v266 = vld [vmem:[%s178 + $0x14] sm:$0xf]
      %v267 = vld [vmem:[%s178 + $0x18] sm:$0xf]
      %v268 = vld [vmem:[%s178 + $0x1c] sm:$0xf]
      %v269 = vld [vmem:[%s178 + $0x20] sm:$0xf]
      %v270 = vld [vmem:[%s178 + $0x24] sm:$0xf]
      %v271 = vld [vmem:[%s178 + $0x28] sm:$0xf]
      %v272 = vld [vmem:[%s178 + $0x2c] sm:$0xf]
      %v273 = vld [vmem:[%s178 + $0x30] sm:$0xf]
      %v274 = vld [vmem:[%s178 + $0x34] sm:$0xf]
      %v275 = vld [vmem:[%s178 + $0x38] sm:$0xf]
      %v276 = vld [vmem:[%s178 + $0x3c] sm:$0xf]
      %v277 = vld [vmem:[%s178 + $0x40] sm:$0xf]
      %v278 = vld [vmem:[%s178 + $0x44] sm:$0xf]
      %v279 = vld [vmem:[%s178 + $0x48] sm:$0xf]
      %v280 = vld [vmem:[%s178 + $0x4c] sm:$0xf]
      %v281 = vld [vmem:[%s178 + $0x50] sm:$0xf]
      %v282 = vld [vmem:[%s178 + $0x54] sm:$0xf]
      %v283 = vld [vmem:[%s178 + $0x58] sm:$0xf]
      %v284 = vld [vmem:[%s178 + $0x5c] sm:$0xf]
      %v285 = vld [vmem:[%s178 + $0x60] sm:$0xf]
      %v286 = vld [vmem:[%s178 + $0x64] sm:$0xf]
      %v287 = vld [vmem:[%s178 + $0x68] sm:$0xf]
      %v288 = vld [vmem:[%s178 + $0x6c] sm:$0xf]
      %v289 = vld [vmem:[%s178 + $0x70] sm:$0xf]
      %v290 = vld [vmem:[%s178 + $0x74] sm:$0xf]
      %v291 = vld [vmem:[%s178 + $0x78] sm:$0xf]
      %v292 = vld [vmem:[%s178 + $0x7c] sm:$0xf]
      %v293 = vld [vmem:[%s184] sm:$0xf]
      %v294 = vld [vmem:[%s184 + $0x4] sm:$0xf]
      %v295 = vld [vmem:[%s184 + $0x8] sm:$0xf]
      %v296 = vld [vmem:[%s184 + $0xc] sm:$0xf]
      %v297 = vld [vmem:[%s184 + $0x10] sm:$0xf]
      %v298 = vld [vmem:[%s184 + $0x14] sm:$0xf]
      %v299 = vld [vmem:[%s184 + $0x18] sm:$0xf]
      %v300 = vld [vmem:[%s184 + $0x1c] sm:$0xf]
      %v301 = vld [vmem:[%s184 + $0x20] sm:$0xf]
      %v302 = vld [vmem:[%s184 + $0x24] sm:$0xf]
      %v303 = vld [vmem:[%s184 + $0x28] sm:$0xf]
      %v304 = vld [vmem:[%s184 + $0x2c] sm:$0xf]
      %v305 = vld [vmem:[%s184 + $0x30] sm:$0xf]
      %v306 = vld [vmem:[%s184 + $0x34] sm:$0xf]
      %v307 = vld [vmem:[%s184 + $0x38] sm:$0xf]
      %v308 = vld [vmem:[%s184 + $0x3c] sm:$0xf]
      %v341 = vunpack.c.l.b16 %v261
      %v342 = vunpack.c.l.b16 %v262
      %v343 = vunpack.c.l.b16 %v263
      %v344 = vunpack.c.l.b16 %v264
      %v345 = vunpack.c.l.b16 %v265
      %v346 = vunpack.c.l.b16 %v266
      %v347 = vunpack.c.l.b16 %v267
      %v348 = vunpack.c.l.b16 %v268
      %v349 = vunpack.c.l.b16 %v269
      %v350 = vunpack.c.l.b16 %v270
      %v351 = vunpack.c.l.b16 %v271
      %v352 = vunpack.c.l.b16 %v272
      %v353 = vunpack.c.l.b16 %v273
      %v354 = vunpack.c.l.b16 %v274
      %v355 = vunpack.c.l.b16 %v275
      %v356 = vunpack.c.l.b16 %v276
      %v357 = vunpack.c.l.b16 %v277
      %v358 = vunpack.c.l.b16 %v278
      %v359 = vunpack.c.l.b16 %v279
      %v360 = vunpack.c.l.b16 %v280
      %v361 = vunpack.c.l.b16 %v281
      %v362 = vunpack.c.l.b16 %v282
      %v363 = vunpack.c.l.b16 %v283
      %v364 = vunpack.c.l.b16 %v284
      %v365 = vunpack.c.l.b16 %v285
      %v366 = vunpack.c.l.b16 %v286
      %v367 = vunpack.c.l.b16 %v287
      %v368 = vunpack.c.l.b16 %v288
      %v369 = vunpack.c.l.b16 %v289
      %v370 = vunpack.c.l.b16 %v290
      %v371 = vunpack.c.l.b16 %v291
      %v372 = vunpack.c.l.b16 %v292
      %v373 = vpack.c.b16 %v342, %v341
      %v374 = vpack.c.b16 %v344, %v343
      %v375 = vpack.c.b16 %v346, %v345
      %v376 = vpack.c.b16 %v348, %v347
      %v377 = vpack.c.b16 %v350, %v349
      %v378 = vpack.c.b16 %v352, %v351
      %v379 = vpack.c.b16 %v354, %v353
      %v380 = vpack.c.b16 %v356, %v355
      %v381 = vpack.c.b16 %v358, %v357
      %v382 = vpack.c.b16 %v360, %v359
      %v383 = vpack.c.b16 %v362, %v361
      %v384 = vpack.c.b16 %v364, %v363
      %v385 = vpack.c.b16 %v366, %v365
      %v386 = vpack.c.b16 %v368, %v367
      %v387 = vpack.c.b16 %v370, %v369
      %v388 = vpack.c.b16 %v372, %v371
      %v421 = vunpack.c.l.b16 %v293
      %v422 = vunpack.c.l.b16 %v294
      %v423 = vunpack.c.l.b16 %v295
      %v424 = vunpack.c.l.b16 %v296
      %v425 = vunpack.c.l.b16 %v297
      %v426 = vunpack.c.l.b16 %v298
      %v427 = vunpack.c.l.b16 %v299
      %v428 = vunpack.c.l.b16 %v300
      %v429 = vunpack.c.l.b16 %v301
      %v430 = vunpack.c.l.b16 %v302
      %v431 = vunpack.c.l.b16 %v303
      %v432 = vunpack.c.l.b16 %v304
      %v433 = vunpack.c.l.b16 %v305
      %v434 = vunpack.c.l.b16 %v306
      %v435 = vunpack.c.l.b16 %v307
      %v436 = vunpack.c.l.b16 %v308
      %v437 = vpack.c.b16 %v422, %v421
      %v438 = vpack.c.b16 %v424, %v423
      %v439 = vpack.c.b16 %v426, %v425
      %v440 = vpack.c.b16 %v428, %v427
      %v441 = vpack.c.b16 %v430, %v429
      %v442 = vpack.c.b16 %v432, %v431
      %v443 = vpack.c.b16 %v434, %v433
      %v444 = vpack.c.b16 %v436, %v435
      %453 = vmatprep.subr.bf16.mxu0 0
      %454 = vmatpush1.bf16.msra.mxu0 %v437
      %455 = vmatprep.subr.bf16.mxu0 0
      %456 = vmatpush1.bf16.msra.mxu0 %v438
      %457 = vmatprep.subr.bf16.mxu0 0
      %458 = vmatpush1.bf16.msra.mxu0 %v439
      %459 = vmatprep.subr.bf16.mxu0 0
      %460 = vmatpush1.bf16.msra.mxu0 %v440
      %461 = vmatprep.subr.bf16.mxu0 0
      %462 = vmatpush1.bf16.msra.mxu0 %v441
      %463 = vmatprep.subr.bf16.mxu0 0
      %464 = vmatpush1.bf16.msra.mxu0 %v442
      %465 = vmatprep.subr.bf16.mxu0 0
      %466 = vmatpush1.bf16.msra.mxu0 %v443
      %467 = vmatprep.subr.bf16.mxu0 0
      %468 = vmatpush1.bf16.msra.mxu0 %v444
      %469 = vmatprep.subr.bf16.mxu0 0
      %470 = vmatpush1.bf16.msra.mxu0 0
      %471 = vmatprep.subr.bf16.mxu0 0
      %472 = vmatpush1.bf16.msra.mxu0 0
      %473 = vmatprep.subr.bf16.mxu0 0
      %474 = vmatpush1.bf16.msra.mxu0 0
      %475 = vmatprep.subr.bf16.mxu0 0
      %476 = vmatpush1.bf16.msra.mxu0 0
      %477 = vmatprep.subr.bf16.mxu0 0
      %478 = vmatpush1.bf16.msra.mxu0 0
      %479 = vmatprep.subr.bf16.mxu0 0
      %480 = vmatpush1.bf16.msra.mxu0 0
      %481 = vmatprep.subr.bf16.mxu0 0
      %482 = vmatpush1.bf16.msra.mxu0 0
      %483 = vmatprep.subr.bf16.mxu0 0
      %484 = vmatpush1.bf16.msra.mxu0 0
      %485 = vmatprep.mubr.bf16.mxu0 0
      %486 = vmatmul.mubr.bf16.gmra.mrb[0].mxu0 %v373
      %v487 = vpop.f32.mrb[0].mxu0
      %v488 = vadd.f32 0.0, %v487
      %v489 = vpop.f32.mrb[0].mxu0
      %v490 = vpop.f32.mrb[0].mxu0
      %v491 = vadd.f32 0.0, %v490
      %v492 = vpop.f32.mrb[0].mxu0
      %493 = vmatprep.mubr.bf16.mxu0 0
      %494 = vmatmul.mubr.bf16.gmra.mrb[0].mxu0 %v374
      %v495 = vpop.f32.mrb[0].mxu0
      %v496 = vadd.f32 0.0, %v495
      %v497 = vpop.f32.mrb[0].mxu0
      %v498 = vpop.f32.mrb[0].mxu0
      %v499 = vadd.f32 0.0, %v498
      %v500 = vpop.f32.mrb[0].mxu0
      %501 = vmatprep.mubr.bf16.mxu0 0
      %502 = vmatmul.mubr.bf16.gmra.mrb[0].mxu0 %v375
      %v503 = vpop.f32.mrb[0].mxu0
      %v504 = vadd.f32 0.0, %v503
      %v505 = vpop.f32.mrb[0].mxu0
      %v506 = vpop.f32.mrb[0].mxu0
      %v507 = vadd.f32 0.0, %v506
      %v508 = vpop.f32.mrb[0].mxu0
      %509 = vmatprep.mubr.bf16.mxu0 0
      %510 = vmatmul.mubr.bf16.gmra.mrb[0].mxu0 %v376
      %v511 = vpop.f32.mrb[0].mxu0
      %v512 = vadd.f32 0.0, %v511
      %v513 = vpop.f32.mrb[0].mxu0
      %v514 = vpop.f32.mrb[0].mxu0
      %v515 = vadd.f32 0.0, %v514
      %v516 = vpop.f32.mrb[0].mxu0
      %517 = vmatprep.mubr.bf16.mxu0 0
      %518 = vmatmul.mubr.bf16.gmra.mrb[0].mxu0 %v377
      %v519 = vpop.f32.mrb[0].mxu0
      %v520 = vadd.f32 0.0, %v519
      %v521 = vpop.f32.mrb[0].mxu0
      %v522 = vpop.f32.mrb[0].mxu0
      %v523 = vadd.f32 0.0, %v522
      %v524 = vpop.f32.mrb[0].mxu0
      %525 = vmatprep.mubr.bf16.mxu0 0
      %526 = vmatmul.mubr.bf16.gmra.mrb[0].mxu0 %v378
      %v527 = vpop.f32.mrb[0].mxu0
      %v528 = vadd.f32 0.0, %v527
      %v529 = vpop.f32.mrb[0].mxu0
      %v530 = vpop.f32.mrb[0].mxu0
      %v531 = vadd.f32 0.0, %v530
      %v532 = vpop.f32.mrb[0].mxu0
      %533 = vmatprep.mubr.bf16.mxu0 0
      %534 = vmatmul.mubr.bf16.gmra.mrb[0].mxu0 %v379
      %v535 = vpop.f32.mrb[0].mxu0
      %v536 = vadd.f32 0.0, %v535
      %v537 = vpop.f32.mrb[0].mxu0
      %v538 = vpop.f32.mrb[0].mxu0
      %v539 = vadd.f32 0.0, %v538
      %v540 = vpop.f32.mrb[0].mxu0
      %541 = vmatprep.mubr.bf16.mxu0 0
      %542 = vmatmul.mubr.bf16.gmra.mrb[0].mxu0 %v380
      %v543 = vpop.f32.mrb[0].mxu0
      %v544 = vadd.f32 0.0, %v543
      %v545 = vpop.f32.mrb[0].mxu0
      %v546 = vpop.f32.mrb[0].mxu0
      %v547 = vadd.f32 0.0, %v546
      %v548 = vpop.f32.mrb[0].mxu0
      %549 = vmatprep.mubr.bf16.mxu0 0
      %550 = vmatmul.mubr.bf16.gmra.mrb[0].mxu0 %v381
      %v551 = vpop.f32.mrb[0].mxu0
      %v552 = vadd.f32 0.0, %v551
      %v553 = vpop.f32.mrb[0].mxu0
      %v554 = vpop.f32.mrb[0].mxu0
      %v555 = vadd.f32 0.0, %v554
      %v556 = vpop.f32.mrb[0].mxu0
      %557 = vmatprep.mubr.bf16.mxu0 0
      %558 = vmatmul.mubr.bf16.gmra.mrb[0].mxu0 %v382
      %v559 = vpop.f32.mrb[0].mxu0
      %v560 = vadd.f32 0.0, %v559
      %v561 = vpop.f32.mrb[0].mxu0
      %v562 = vpop.f32.mrb[0].mxu0
      %v563 = vadd.f32 0.0, %v562
      %v564 = vpop.f32.mrb[0].mxu0
      %565 = vmatprep.mubr.bf16.mxu0 0
      %566 = vmatmul.mubr.bf16.gmra.mrb[0].mxu0 %v383
      %v567 = vpop.f32.mrb[0].mxu0
      %v568 = vadd.f32 0.0, %v567
      %v569 = vpop.f32.mrb[0].mxu0
      %v570 = vpop.f32.mrb[0].mxu0
      %v571 = vadd.f32 0.0, %v570
      %v572 = vpop.f32.mrb[0].mxu0
      %573 = vmatprep.mubr.bf16.mxu0 0
      %574 = vmatmul.mubr.bf16.gmra.mrb[0].mxu0 %v384
      %v575 = vpop.f32.mrb[0].mxu0
      %v576 = vadd.f32 0.0, %v575
      %v577 = vpop.f32.mrb[0].mxu0
      %v578 = vpop.f32.mrb[0].mxu0
      %v579 = vadd.f32 0.0, %v578
      %v580 = vpop.f32.mrb[0].mxu0
      %581 = vmatprep.mubr.bf16.mxu0 0
      %582 = vmatmul.mubr.bf16.gmra.mrb[0].mxu0 %v385
      %v583 = vpop.f32.mrb[0].mxu0
      %v584 = vadd.f32 0.0, %v583
      %v585 = vpop.f32.mrb[0].mxu0
      %v586 = vpop.f32.mrb[0].mxu0
      %v587 = vadd.f32 0.0, %v586
      %v588 = vpop.f32.mrb[0].mxu0
      %589 = vmatprep.mubr.bf16.mxu0 0
      %590 = vmatmul.mubr.bf16.gmra.mrb[0].mxu0 %v386
      %v591 = vpop.f32.mrb[0].mxu0
      %v592 = vadd.f32 0.0, %v591
      %v593 = vpop.f32.mrb[0].mxu0
      %v594 = vpop.f32.mrb[0].mxu0
      %v595 = vadd.f32 0.0, %v594
      %v596 = vpop.f32.mrb[0].mxu0
      %597 = vmatprep.mubr.bf16.mxu0 0
      %598 = vmatmul.mubr.bf16.gmra.mrb[0].mxu0 %v387
      %v599 = vpop.f32.mrb[0].mxu0
      %v600 = vadd.f32 0.0, %v599
      %v601 = vpop.f32.mrb[0].mxu0
      %v602 = vpop.f32.mrb[0].mxu0
      %v603 = vadd.f32 0.0, %v602
      %v604 = vpop.f32.mrb[0].mxu0
      %605 = vmatprep.mubr.bf16.mxu0 0
      %606 = vmatmul.mubr.bf16.gmra.mrb[0].mxu0 %v388
      %v607 = vpop.f32.mrb[0].mxu0
      %v608 = vadd.f32 0.0, %v607
      %v609 = vpop.f32.mrb[0].mxu0
      %v610 = vpop.f32.mrb[0].mxu0
      %v611 = vadd.f32 0.0, %v610
      %v612 = vpop.f32.mrb[0].mxu0
      %613 = vdwg.mxu0
      %v614 = vadd.f32 %v229, %v488
      %v615 = vadd.f32 %v230, %v491
      %v616 = vadd.f32 %v231, %v496
      %v617 = vadd.f32 %v232, %v499
      %v618 = vadd.f32 %v233, %v504
      %v619 = vadd.f32 %v234, %v507
      %v620 = vadd.f32 %v235, %v512
      %v621 = vadd.f32 %v236, %v515
      %v622 = vadd.f32 %v237, %v520
      %v623 = vadd.f32 %v238, %v523
      %v624 = vadd.f32 %v239, %v528
      %v625 = vadd.f32 %v240, %v531
      %v626 = vadd.f32 %v241, %v536
      %v627 = vadd.f32 %v242, %v539
      %v628 = vadd.f32 %v243, %v544
      %v629 = vadd.f32 %v244, %v547
      %v630 = vadd.f32 %v245, %v552
      %v631 = vadd.f32 %v246, %v555
      %v632 = vadd.f32 %v247, %v560
      %v633 = vadd.f32 %v248, %v563
      %v634 = vadd.f32 %v249, %v568
      %v635 = vadd.f32 %v250, %v571
      %v636 = vadd.f32 %v251, %v576
      %v637 = vadd.f32 %v252, %v579
      %v638 = vadd.f32 %v253, %v584
      %v639 = vadd.f32 %v254, %v587
      %v640 = vadd.f32 %v255, %v592
      %v641 = vadd.f32 %v256, %v595
      %v642 = vadd.f32 %v257, %v600
      %v643 = vadd.f32 %v258, %v603
      %v644 = vadd.f32 %v259, %v608
      %v645 = vadd.f32 %v260, %v611
      %646 = vst [vmem:[%s190] sm:$0xff] %v614
      %647 = vst [vmem:[%s190 + $0x8] sm:$0xff] %v615
      %648 = vst [vmem:[%s190 + $0x10] sm:$0xff] %v616
      %649 = vst [vmem:[%s190 + $0x18] sm:$0xff] %v617
      %650 = vst [vmem:[%s190 + $0x20] sm:$0xff] %v618
      %651 = vst [vmem:[%s190 + $0x28] sm:$0xff] %v619
      %652 = vst [vmem:[%s190 + $0x30] sm:$0xff] %v620
      %653 = vst [vmem:[%s190 + $0x38] sm:$0xff] %v621
      %654 = vst [vmem:[%s190 + $0x40] sm:$0xff] %v622
      %655 = vst [vmem:[%s190 + $0x48] sm:$0xff] %v623
      %656 = vst [vmem:[%s190 + $0x50] sm:$0xff] %v624
      %657 = vst [vmem:[%s190 + $0x58] sm:$0xff] %v625
      %658 = vst [vmem:[%s190 + $0x60] sm:$0xff] %v626
      %659 = vst [vmem:[%s190 + $0x68] sm:$0xff] %v627
      %660 = vst [vmem:[%s190 + $0x70] sm:$0xff] %v628
      %661 = vst [vmem:[%s190 + $0x78] sm:$0xff] %v629
      %662 = vst [vmem:[%s190 + $0x80] sm:$0xff] %v630
      %663 = vst [vmem:[%s190 + $0x88] sm:$0xff] %v631
      %664 = vst [vmem:[%s190 + $0x90] sm:$0xff] %v632
      %665 = vst [vmem:[%s190 + $0x98] sm:$0xff] %v633
      %666 = vst [vmem:[%s190 + $0xa0] sm:$0xff] %v634
      %667 = vst [vmem:[%s190 + $0xa8] sm:$0xff] %v635
      %668 = vst [vmem:[%s190 + $0xb0] sm:$0xff] %v636
      %669 = vst [vmem:[%s190 + $0xb8] sm:$0xff] %v637
      %670 = vst [vmem:[%s190 + $0xc0] sm:$0xff] %v638
      %671 = vst [vmem:[%s190 + $0xc8] sm:$0xff] %v639
      %672 = vst [vmem:[%s190 + $0xd0] sm:$0xff] %v640
      %673 = vst [vmem:[%s190 + $0xd8] sm:$0xff] %v641
      %674 = vst [vmem:[%s190 + $0xe0] sm:$0xff] %v642
      %675 = vst [vmem:[%s190 + $0xe8] sm:$0xff] %v643
      %676 = vst [vmem:[%s190 + $0xf0] sm:$0xff] %v644
      %677 = vst [vmem:[%s190 + $0xf8] sm:$0xff] %v645
      %s678 = smul.u32 32, %s17
      %p679 = scmp.lt.s32.totalorder %s678, 63
      %s680 = scalar_select %p679, %s678, 63
      %s681 = smul.addr %s680, 8
      %s682 = scalar_lea.vmem %s2, %s681
      // Predicated region
      $region33: #{hessian_layer_u_fwd.6} parent=27 // pred_check
        %p683 = pneg %p97
      $region34: #{hessian_layer_u_fwd.6} parent=27 // pred_check_branch
        %685 = sbr.rel (%p683) target = $region36
      $region35: #{hessian_layer_u_fwd.6} parent=27 // pred_region
        %s686 = smul.u32 32, %s17
      $region36: #{hessian_layer_u_fwd.6} parent=27 // pred_fallthru
        _
    $region28: #{hessian_layer_u_fwd.6} parent=5 // pred_fallthru
      _
    %p687 = scmp.le.s32.totalorder 2, %s8
    // Predicated region
    $region37: #{hessian_layer_u_fwd.6} parent=5 // pred_check
      %p688 = pneg %p687
    $region38: #{hessian_layer_u_fwd.6} parent=5 // pred_check_branch
      %690 = sbr.rel (%p688) target = $region40
    $region39: #{hessian_layer_u_fwd.6} parent=5 // pred_region
      %s691 = ssub.s32 %s8, 2
      // Predicated region
      $region41: #{hessian_layer_u_fwd.6} parent=39 // pred_check
        %p692 = pneg %p103
      $region42: #{hessian_layer_u_fwd.6} parent=39 // pred_check_branch
        %694 = sbr.rel (%p692) target = $region44
      $region43: #{hessian_layer_u_fwd.6} parent=39 // pred_region
        %s695 = smul.u32 32, %s19
        %p696 = scmp.lt.s32.totalorder %s695, 63
        %s697 = scalar_select %p696, %s695, 63
        %s698 = smul.addr %s697, 8
        %s699 = scalar_lea.vmem %s2, %s698
      $region44: #{hessian_layer_u_fwd.6} parent=39 // pred_fallthru
        _
    $region40: #{hessian_layer_u_fwd.6} parent=5 // pred_fallthru
      _
  $region6: #{hessian_layer_u_fwd.6} parent=0 // loop_footer
    %s12 = sadd.s32 1, %s8
  $region7: #{hessian_layer_u_fwd.6} parent=0 // loop_footer_branch
    %7 = sbr.rel target = $region3
  $region8: #{hessian_layer_u_fwd.6} parent=0 // loop_exit
    _

// kernel: hessian_layer_u_fwd.7
$region0: #{hessian_layer_u_fwd.7}
  #allocation0 [shape = 'u32[]', space=smem, size = 0x4, offset = 0x4, fixed_abs, tag = 'smem constant byte address 0x4 - core index']
  #allocation1 [shape = 'u32[144,128]{1,0:T(1,128)}', space=vmem, size = 0x12000, scoped, tag = 'internal scratch']
  %s0 = inlined_call_operand.vmem [shape: f32[2048,16], index: 0, kind: input, shape index: {}]
  %s1 = inlined_call_operand.vmem [shape: f32[2048,16], index: 1, kind: output, shape index: {}]
  %s2 = sld [smem:[#allocation0]]
  $region14: #{hessian_layer_u_fwd.7} parent=0
    _
  %s4 = ssub.s32 1, %s2
  %s5 = scalar_select 0, %s4, %s2
  // Predicated region
  $region2: #{hessian_layer_u_fwd.7} parent=0 // pred_check
    _
  $region3: #{hessian_layer_u_fwd.7} parent=0 // pred_check_branch
    %7 = sbr.rel (0) target = $region5
  $region4: #{hessian_layer_u_fwd.7} parent=0 // pred_region
    _
  $region5: #{hessian_layer_u_fwd.7} parent=0 // pred_fallthru
    _
  %v8 = vld [vmem:[%s0] sm:$0xff]
  %v9 = vld [vmem:[%s0 + $0x8] sm:$0xff]
  %v10 = vld [vmem:[%s0 + $0x10] sm:$0xff]
  %v11 = vld [vmem:[%s0 + $0x18] sm:$0xff]
  %v12 = vld [vmem:[%s0 + $0x20] sm:$0xff]
  %v13 = vld [vmem:[%s0 + $0x28] sm:$0xff]
  %v14 = vld [vmem:[%s0 + $0x30] sm:$0xff]
  %v15 = vld [vmem:[%s0 + $0x38] sm:$0xff]
  %v16 = vld [vmem:[%s0 + $0x40] sm:$0xff]
  %v17 = vld [vmem:[%s0 + $0x48] sm:$0xff]
  %v18 = vld [vmem:[%s0 + $0x50] sm:$0xff]
  %v19 = vld [vmem:[%s0 + $0x58] sm:$0xff]
  %v20 = vld [vmem:[%s0 + $0x60] sm:$0xff]
  %v21 = vld [vmem:[%s0 + $0x68] sm:$0xff]
  %v22 = vld [vmem:[%s0 + $0x70] sm:$0xff]
  %v23 = vld [vmem:[%s0 + $0x78] sm:$0xff]
  %v24 = vld [vmem:[%s0 + $0x80] sm:$0xff]
  %v25 = vld [vmem:[%s0 + $0x88] sm:$0xff]
  %v26 = vld [vmem:[%s0 + $0x90] sm:$0xff]
  %v27 = vld [vmem:[%s0 + $0x98] sm:$0xff]
  %v28 = vld [vmem:[%s0 + $0xa0] sm:$0xff]
  %v29 = vld [vmem:[%s0 + $0xa8] sm:$0xff]
  %v30 = vld [vmem:[%s0 + $0xb0] sm:$0xff]
  %v31 = vld [vmem:[%s0 + $0xb8] sm:$0xff]
  %v32 = vld [vmem:[%s0 + $0xc0] sm:$0xff]
  %v33 = vld [vmem:[%s0 + $0xc8] sm:$0xff]
  %v34 = vld [vmem:[%s0 + $0xd0] sm:$0xff]
  %v35 = vld [vmem:[%s0 + $0xd8] sm:$0xff]
  %v36 = vld [vmem:[%s0 + $0xe0] sm:$0xff]
  %v37 = vld [vmem:[%s0 + $0xe8] sm:$0xff]
  %v38 = vld [vmem:[%s0 + $0xf0] sm:$0xff]
  %v39 = vld [vmem:[%s0 + $0xf8] sm:$0xff]
  %v40 = vld [vmem:[%s0 + $0x100] sm:$0xff]
  %v41 = vld [vmem:[%s0 + $0x108] sm:$0xff]
  %v42 = vld [vmem:[%s0 + $0x110] sm:$0xff]
  %v43 = vld [vmem:[%s0 + $0x118] sm:$0xff]
  %v44 = vld [vmem:[%s0 + $0x120] sm:$0xff]
  %v45 = vld [vmem:[%s0 + $0x128] sm:$0xff]
  %v46 = vld [vmem:[%s0 + $0x130] sm:$0xff]
  %v47 = vld [vmem:[%s0 + $0x138] sm:$0xff]
  %v48 = vld [vmem:[%s0 + $0x140] sm:$0xff]
  %v49 = vld [vmem:[%s0 + $0x148] sm:$0xff]
  %v50 = vld [vmem:[%s0 + $0x150] sm:$0xff]
  %v51 = vld [vmem:[%s0 + $0x158] sm:$0xff]
  %v52 = vld [vmem:[%s0 + $0x160] sm:$0xff]
  %v53 = vld [vmem:[%s0 + $0x168] sm:$0xff]
  %v54 = vld [vmem:[%s0 + $0x170] sm:$0xff]
  %v55 = vld [vmem:[%s0 + $0x178] sm:$0xff]
  %v56 = vld [vmem:[%s0 + $0x180] sm:$0xff]
  %v57 = vld [vmem:[%s0 + $0x188] sm:$0xff]
  %v58 = vld [vmem:[%s0 + $0x190] sm:$0xff]
  %v59 = vld [vmem:[%s0 + $0x198] sm:$0xff]
  %v60 = vld [vmem:[%s0 + $0x1a0] sm:$0xff]
  %v61 = vld [vmem:[%s0 + $0x1a8] sm:$0xff]
  %v62 = vld [vmem:[%s0 + $0x1b0] sm:$0xff]
  %v63 = vld [vmem:[%s0 + $0x1b8] sm:$0xff]
  %v64 = vld [vmem:[%s0 + $0x1c0] sm:$0xff]
  %v65 = vld [vmem:[%s0 + $0x1c8] sm:$0xff]
  %v66 = vld [vmem:[%s0 + $0x1d0] sm:$0xff]
  %v67 = vld [vmem:[%s0 + $0x1d8] sm:$0xff]
  %v68 = vld [vmem:[%s0 + $0x1e0] sm:$0xff]
  %v69 = vld [vmem:[%s0 + $0x1e8] sm:$0xff]
  %v70 = vld [vmem:[%s0 + $0x1f0] sm:$0xff]
  %v71 = vld [vmem:[%s0 + $0x1f8] sm:$0xff]
  %v72 = vld [vmem:[%s0 + $0x200] sm:$0xff]
  %v73 = vld [vmem:[%s0 + $0x208] sm:$0xff]
  %v74 = vld [vmem:[%s0 + $0x210] sm:$0xff]
  %v75 = vld [vmem:[%s0 + $0x218] sm:$0xff]
  %v76 = vld [vmem:[%s0 + $0x220] sm:$0xff]
  %v77 = vld [vmem:[%s0 + $0x228] sm:$0xff]
  %v78 = vld [vmem:[%s0 + $0x230] sm:$0xff]
  %v79 = vld [vmem:[%s0 + $0x238] sm:$0xff]
  %v80 = vld [vmem:[%s0 + $0x240] sm:$0xff]
  %v81 = vld [vmem:[%s0 + $0x248] sm:$0xff]
  %v82 = vld [vmem:[%s0 + $0x250] sm:$0xff]
  %v83 = vld [vmem:[%s0 + $0x258] sm:$0xff]
  %v84 = vld [vmem:[%s0 + $0x260] sm:$0xff]
  %v85 = vld [vmem:[%s0 + $0x268] sm:$0xff]
  %v86 = vld [vmem:[%s0 + $0x270] sm:$0xff]
  %v87 = vld [vmem:[%s0 + $0x278] sm:$0xff]
  %v88 = vld [vmem:[%s0 + $0x280] sm:$0xff]
  %v89 = vld [vmem:[%s0 + $0x288] sm:$0xff]
  %v90 = vld [vmem:[%s0 + $0x290] sm:$0xff]
  %v91 = vld [vmem:[%s0 + $0x298] sm:$0xff]
  %v92 = vld [vmem:[%s0 + $0x2a0] sm:$0xff]
  %v93 = vld [vmem:[%s0 + $0x2a8] sm:$0xff]
  %v94 = vld [vmem:[%s0 + $0x2b0] sm:$0xff]
  %v95 = vld [vmem:[%s0 + $0x2b8] sm:$0xff]
  %v96 = vld [vmem:[%s0 + $0x2c0] sm:$0xff]
  %v97 = vld [vmem:[%s0 + $0x2c8] sm:$0xff]
  %v98 = vld [vmem:[%s0 + $0x2d0] sm:$0xff]
  %v99 = vld [vmem:[%s0 + $0x2d8] sm:$0xff]
  %v100 = vld [vmem:[%s0 + $0x2e0] sm:$0xff]
  %v101 = vld [vmem:[%s0 + $0x2e8] sm:$0xff]
  %v102 = vld [vmem:[%s0 + $0x2f0] sm:$0xff]
  %v103 = vld [vmem:[%s0 + $0x2f8] sm:$0xff]
  %v104 = vld [vmem:[%s0 + $0x300] sm:$0xff]
  %v105 = vld [vmem:[%s0 + $0x308] sm:$0xff]
  %v106 = vld [vmem:[%s0 + $0x310] sm:$0xff]
  %v107 = vld [vmem:[%s0 + $0x318] sm:$0xff]
  %v108 = vld [vmem:[%s0 + $0x320] sm:$0xff]
  %v109 = vld [vmem:[%s0 + $0x328] sm:$0xff]
  %v110 = vld [vmem:[%s0 + $0x330] sm:$0xff]
  %v111 = vld [vmem:[%s0 + $0x338] sm:$0xff]
  %v112 = vld [vmem:[%s0 + $0x340] sm:$0xff]
  %v113 = vld [vmem:[%s0 + $0x348] sm:$0xff]
  %v114 = vld [vmem:[%s0 + $0x350] sm:$0xff]
  %v115 = vld [vmem:[%s0 + $0x358] sm:$0xff]
  %v116 = vld [vmem:[%s0 + $0x360] sm:$0xff]
  %v117 = vld [vmem:[%s0 + $0x368] sm:$0xff]
  %v118 = vld [vmem:[%s0 + $0x370] sm:$0xff]
  %v119 = vld [vmem:[%s0 + $0x378] sm:$0xff]
  %v120 = vld [vmem:[%s0 + $0x380] sm:$0xff]
  %v121 = vld [vmem:[%s0 + $0x388] sm:$0xff]
  %v122 = vld [vmem:[%s0 + $0x390] sm:$0xff]
  %v123 = vld [vmem:[%s0 + $0x398] sm:$0xff]
  %v124 = vld [vmem:[%s0 + $0x3a0] sm:$0xff]
  %v125 = vld [vmem:[%s0 + $0x3a8] sm:$0xff]
  %v126 = vld [vmem:[%s0 + $0x3b0] sm:$0xff]
  %v127 = vld [vmem:[%s0 + $0x3b8] sm:$0xff]
  %v128 = vld [vmem:[%s0 + $0x3c0] sm:$0xff]
  %v129 = vld [vmem:[%s0 + $0x3c8] sm:$0xff]
  %v130 = vld [vmem:[%s0 + $0x3d0] sm:$0xff]
  %v131 = vld [vmem:[%s0 + $0x3d8] sm:$0xff]
  %v132 = vld [vmem:[%s0 + $0x3e0] sm:$0xff]
  %v133 = vld [vmem:[%s0 + $0x3e8] sm:$0xff]
  %v134 = vld [vmem:[%s0 + $0x3f0] sm:$0xff]
  %v135 = vld [vmem:[%s0 + $0x3f8] sm:$0xff]
  %v136 = vld [vmem:[%s0 + $0x400] sm:$0xff]
  %v137 = vld [vmem:[%s0 + $0x408] sm:$0xff]
  %v138 = vld [vmem:[%s0 + $0x410] sm:$0xff]
  %v139 = vld [vmem:[%s0 + $0x418] sm:$0xff]
  %v140 = vld [vmem:[%s0 + $0x420] sm:$0xff]
  %v141 = vld [vmem:[%s0 + $0x428] sm:$0xff]
  %v142 = vld [vmem:[%s0 + $0x430] sm:$0xff]
  %v143 = vld [vmem:[%s0 + $0x438] sm:$0xff]
  %v144 = vld [vmem:[%s0 + $0x440] sm:$0xff]
  %v145 = vld [vmem:[%s0 + $0x448] sm:$0xff]
  %v146 = vld [vmem:[%s0 + $0x450] sm:$0xff]
  %v147 = vld [vmem:[%s0 + $0x458] sm:$0xff]
  %v148 = vld [vmem:[%s0 + $0x460] sm:$0xff]
  %v149 = vld [vmem:[%s0 + $0x468] sm:$0xff]
  %v150 = vld [vmem:[%s0 + $0x470] sm:$0xff]
  %v151 = vld [vmem:[%s0 + $0x478] sm:$0xff]
  %v152 = vld [vmem:[%s0 + $0x480] sm:$0xff]
  %v153 = vld [vmem:[%s0 + $0x488] sm:$0xff]
  %v154 = vld [vmem:[%s0 + $0x490] sm:$0xff]
  %v155 = vld [vmem:[%s0 + $0x498] sm:$0xff]
  %v156 = vld [vmem:[%s0 + $0x4a0] sm:$0xff]
  %v157 = vld [vmem:[%s0 + $0x4a8] sm:$0xff]
  %v158 = vld [vmem:[%s0 + $0x4b0] sm:$0xff]
  %v159 = vld [vmem:[%s0 + $0x4b8] sm:$0xff]
  %v160 = vld [vmem:[%s0 + $0x4c0] sm:$0xff]
  %v161 = vld [vmem:[%s0 + $0x4c8] sm:$0xff]
  %v162 = vld [vmem:[%s0 + $0x4d0] sm:$0xff]
  %v163 = vld [vmem:[%s0 + $0x4d8] sm:$0xff]
  %v164 = vld [vmem:[%s0 + $0x4e0] sm:$0xff]
  %v165 = vld [vmem:[%s0 + $0x4e8] sm:$0xff]
  %v166 = vld [vmem:[%s0 + $0x4f0] sm:$0xff]
  %v167 = vld [vmem:[%s0 + $0x4f8] sm:$0xff]
  %v168 = vld [vmem:[%s0 + $0x500] sm:$0xff]
  %v169 = vld [vmem:[%s0 + $0x508] sm:$0xff]
  %v170 = vld [vmem:[%s0 + $0x510] sm:$0xff]
  %v171 = vld [vmem:[%s0 + $0x518] sm:$0xff]
  %v172 = vld [vmem:[%s0 + $0x520] sm:$0xff]
  %v173 = vld [vmem:[%s0 + $0x528] sm:$0xff]
  %v174 = vld [vmem:[%s0 + $0x530] sm:$0xff]
  %v175 = vld [vmem:[%s0 + $0x538] sm:$0xff]
  %v176 = vld [vmem:[%s0 + $0x540] sm:$0xff]
  %v177 = vld [vmem:[%s0 + $0x548] sm:$0xff]
  %v178 = vld [vmem:[%s0 + $0x550] sm:$0xff]
  %v179 = vld [vmem:[%s0 + $0x558] sm:$0xff]
  %v180 = vld [vmem:[%s0 + $0x560] sm:$0xff]
  %v181 = vld [vmem:[%s0 + $0x568] sm:$0xff]
  %v182 = vld [vmem:[%s0 + $0x570] sm:$0xff]
  %v183 = vld [vmem:[%s0 + $0x578] sm:$0xff]
  %v184 = vld [vmem:[%s0 + $0x580] sm:$0xff]
  %v185 = vld [vmem:[%s0 + $0x588] sm:$0xff]
  %v186 = vld [vmem:[%s0 + $0x590] sm:$0xff]
  %v187 = vld [vmem:[%s0 + $0x598] sm:$0xff]
  %v188 = vld [vmem:[%s0 + $0x5a0] sm:$0xff]
  %v189 = vld [vmem:[%s0 + $0x5a8] sm:$0xff]
  %v190 = vld [vmem:[%s0 + $0x5b0] sm:$0xff]
  %v191 = vld [vmem:[%s0 + $0x5b8] sm:$0xff]
  %v192 = vld [vmem:[%s0 + $0x5c0] sm:$0xff]
  %v193 = vld [vmem:[%s0 + $0x5c8] sm:$0xff]
  %v194 = vld [vmem:[%s0 + $0x5d0] sm:$0xff]
  %v195 = vld [vmem:[%s0 + $0x5d8] sm:$0xff]
  %v196 = vld [vmem:[%s0 + $0x5e0] sm:$0xff]
  %v197 = vld [vmem:[%s0 + $0x5e8] sm:$0xff]
  %v198 = vld [vmem:[%s0 + $0x5f0] sm:$0xff]
  %v199 = vld [vmem:[%s0 + $0x5f8] sm:$0xff]
  %v200 = vld [vmem:[%s0 + $0x600] sm:$0xff]
  %v201 = vld [vmem:[%s0 + $0x608] sm:$0xff]
  %v202 = vld [vmem:[%s0 + $0x610] sm:$0xff]
  %v203 = vld [vmem:[%s0 + $0x618] sm:$0xff]
  %v204 = vld [vmem:[%s0 + $0x620] sm:$0xff]
  %v205 = vld [vmem:[%s0 + $0x628] sm:$0xff]
  %v206 = vld [vmem:[%s0 + $0x630] sm:$0xff]
  %v207 = vld [vmem:[%s0 + $0x638] sm:$0xff]
  %v208 = vld [vmem:[%s0 + $0x640] sm:$0xff]
  %v209 = vld [vmem:[%s0 + $0x648] sm:$0xff]
  %v210 = vld [vmem:[%s0 + $0x650] sm:$0xff]
  %v211 = vld [vmem:[%s0 + $0x658] sm:$0xff]
  %v212 = vld [vmem:[%s0 + $0x660] sm:$0xff]
  %v213 = vld [vmem:[%s0 + $0x668] sm:$0xff]
  %v214 = vld [vmem:[%s0 + $0x670] sm:$0xff]
  %v215 = vld [vmem:[%s0 + $0x678] sm:$0xff]
  %v216 = vld [vmem:[%s0 + $0x680] sm:$0xff]
  %v217 = vld [vmem:[%s0 + $0x688] sm:$0xff]
  %v218 = vld [vmem:[%s0 + $0x690] sm:$0xff]
  %v219 = vld [vmem:[%s0 + $0x698] sm:$0xff]
  %v220 = vld [vmem:[%s0 + $0x6a0] sm:$0xff]
  %v221 = vld [vmem:[%s0 + $0x6a8] sm:$0xff]
  %v222 = vld [vmem:[%s0 + $0x6b0] sm:$0xff]
  %v223 = vld [vmem:[%s0 + $0x6b8] sm:$0xff]
  %v224 = vld [vmem:[%s0 + $0x6c0] sm:$0xff]
  %v225 = vld [vmem:[%s0 + $0x6c8] sm:$0xff]
  %v226 = vld [vmem:[%s0 + $0x6d0] sm:$0xff]
  %v227 = vld [vmem:[%s0 + $0x6d8] sm:$0xff]
  %v228 = vld [vmem:[%s0 + $0x6e0] sm:$0xff]
  %v229 = vld [vmem:[%s0 + $0x6e8] sm:$0xff]
  %v230 = vld [vmem:[%s0 + $0x6f0] sm:$0xff]
  %v231 = vld [vmem:[%s0 + $0x6f8] sm:$0xff]
  %v232 = vld [vmem:[%s0 + $0x700] sm:$0xff]
  %v233 = vld [vmem:[%s0 + $0x708] sm:$0xff]
  %v234 = vld [vmem:[%s0 + $0x710] sm:$0xff]
  %v235 = vld [vmem:[%s0 + $0x718] sm:$0xff]
  %v236 = vld [vmem:[%s0 + $0x720] sm:$0xff]
  %v237 = vld [vmem:[%s0 + $0x728] sm:$0xff]
  %v238 = vld [vmem:[%s0 + $0x730] sm:$0xff]
  %v239 = vld [vmem:[%s0 + $0x738] sm:$0xff]
  %v240 = vld [vmem:[%s0 + $0x740] sm:$0xff]
  %v241 = vld [vmem:[%s0 + $0x748] sm:$0xff]
  %v242 = vld [vmem:[%s0 + $0x750] sm:$0xff]
  %v243 = vld [vmem:[%s0 + $0x758] sm:$0xff]
  %v244 = vld [vmem:[%s0 + $0x760] sm:$0xff]
  %v245 = vld [vmem:[%s0 + $0x768] sm:$0xff]
  %v246 = vld [vmem:[%s0 + $0x770] sm:$0xff]
  %v247 = vld [vmem:[%s0 + $0x778] sm:$0xff]
  %v248 = vld [vmem:[%s0 + $0x780] sm:$0xff]
  %v249 = vld [vmem:[%s0 + $0x788] sm:$0xff]
  %v250 = vld [vmem:[%s0 + $0x790] sm:$0xff]
  %v251 = vld [vmem:[%s0 + $0x798] sm:$0xff]
  %v252 = vld [vmem:[%s0 + $0x7a0] sm:$0xff]
  %v253 = vld [vmem:[%s0 + $0x7a8] sm:$0xff]
  %v254 = vld [vmem:[%s0 + $0x7b0] sm:$0xff]
  %v255 = vld [vmem:[%s0 + $0x7b8] sm:$0xff]
  %v256 = vld [vmem:[%s0 + $0x7c0] sm:$0xff]
  %v257 = vld [vmem:[%s0 + $0x7c8] sm:$0xff]
  %v258 = vld [vmem:[%s0 + $0x7d0] sm:$0xff]
  %v259 = vld [vmem:[%s0 + $0x7d8] sm:$0xff]
  %v260 = vld [vmem:[%s0 + $0x7e0] sm:$0xff]
  %v261 = vld [vmem:[%s0 + $0x7e8] sm:$0xff]
  %v262 = vld [vmem:[%s0 + $0x7f0] sm:$0xff]
  %v263 = vld [vmem:[%s0 + $0x7f8] sm:$0xff]
  %vm264 = vcmask 130048
  %v265 = vsel %vm264, %v8, 0.0
  %v266 = vsel %vm264, %v9, 0.0
  %v267 = vadd.f32 %v265, %v266
  %v268 = vsel %vm264, %v10, 0.0
  %v269 = vadd.f32 %v267, %v268
  %v270 = vsel %vm264, %v11, 0.0
  %v271 = vadd.f32 %v269, %v270
  %v272 = vsel %vm264, %v12, 0.0
  %v273 = vadd.f32 %v271, %v272
  %v274 = vsel %vm264, %v13, 0.0
  %v275 = vadd.f32 %v273, %v274
  %v276 = vsel %vm264, %v14, 0.0
  %v277 = vadd.f32 %v275, %v276
  %v278 = vsel %vm264, %v15, 0.0
  %v279 = vadd.f32 %v277, %v278
  %v280 = vsel %vm264, %v16, 0.0
  %v281 = vadd.f32 %v279, %v280
  %v282 = vsel %vm264, %v17, 0.0
  %v283 = vadd.f32 %v281, %v282
  %v284 = vsel %vm264, %v18, 0.0
  %v285 = vadd.f32 %v283, %v284
  %v286 = vsel %vm264, %v19, 0.0
  %v287 = vadd.f32 %v285, %v286
  %v288 = vsel %vm264, %v20, 0.0
  %v289 = vadd.f32 %v287, %v288
  %v290 = vsel %vm264, %v21, 0.0
  %v291 = vadd.f32 %v289, %v290
  %v292 = vsel %vm264, %v22, 0.0
  %v293 = vadd.f32 %v291, %v292
  %v294 = vsel %vm264, %v23, 0.0
  %v295 = vadd.f32 %v293, %v294
  %v296 = vsel %vm264, %v24, 0.0
  %v297 = vadd.f32 %v295, %v296
  %v298 = vsel %vm264, %v25, 0.0
  %v299 = vadd.f32 %v297, %v298
  %v300 = vsel %vm264, %v26, 0.0
  %v301 = vadd.f32 %v299, %v300
  %v302 = vsel %vm264, %v27, 0.0
  %v303 = vadd.f32 %v301, %v302
  %v304 = vsel %vm264, %v28, 0.0
  %v305 = vadd.f32 %v303, %v304
  %v306 = vsel %vm264, %v29, 0.0
  %v307 = vadd.f32 %v305, %v306
  %v308 = vsel %vm264, %v30, 0.0
  %v309 = vadd.f32 %v307, %v308
  %v310 = vsel %vm264, %v31, 0.0
  %v311 = vadd.f32 %v309, %v310
  %v312 = vsel %vm264, %v32, 0.0
  %v313 = vadd.f32 %v311, %v312
  %v314 = vsel %vm264, %v33, 0.0
  %v315 = vadd.f32 %v313, %v314
  %v316 = vsel %vm264, %v34, 0.0
  %v317 = vadd.f32 %v315, %v316
  %v318 = vsel %vm264, %v35, 0.0
  %v319 = vadd.f32 %v317, %v318
  %v320 = vsel %vm264, %v36, 0.0
  %v321 = vadd.f32 %v319, %v320
  %v322 = vsel %vm264, %v37, 0.0
  %v323 = vadd.f32 %v321, %v322
  %v324 = vsel %vm264, %v38, 0.0
  %v325 = vadd.f32 %v323, %v324
  %v326 = vsel %vm264, %v39, 0.0
  %v327 = vadd.f32 %v325, %v326
  %v328 = vsel %vm264, %v40, 0.0
  %v329 = vadd.f32 %v327, %v328
  %v330 = vsel %vm264, %v41, 0.0
  %v331 = vadd.f32 %v329, %v330
  %v332 = vsel %vm264, %v42, 0.0
  %v333 = vadd.f32 %v331, %v332
  %v334 = vsel %vm264, %v43, 0.0
  %v335 = vadd.f32 %v333, %v334
  %v336 = vsel %vm264, %v44, 0.0
  %v337 = vadd.f32 %v335, %v336
  %v338 = vsel %vm264, %v45, 0.0
  %v339 = vadd.f32 %v337, %v338
  %v340 = vsel %vm264, %v46, 0.0
  %v341 = vadd.f32 %v339, %v340
  %v342 = vsel %vm264, %v47, 0.0
  %v343 = vadd.f32 %v341, %v342
  %v344 = vsel %vm264, %v48, 0.0
  %v345 = vadd.f32 %v343, %v344
  %v346 = vsel %vm264, %v49, 0.0
  %v347 = vadd.f32 %v345, %v346
  %v348 = vsel %vm264, %v50, 0.0
  %v349 = vadd.f32 %v347, %v348
  %v350 = vsel %vm264, %v51, 0.0
  %v351 = vadd.f32 %v349, %v350
  %v352 = vsel %vm264, %v52, 0.0
  %v353 = vadd.f32 %v351, %v352
  %v354 = vsel %vm264, %v53, 0.0
  %v355 = vadd.f32 %v353, %v354
  %v356 = vsel %vm264, %v54, 0.0
  %v357 = vadd.f32 %v355, %v356
  %v358 = vsel %vm264, %v55, 0.0
  %v359 = vadd.f32 %v357, %v358
  %v360 = vsel %vm264, %v56, 0.0
  %v361 = vadd.f32 %v359, %v360
  %v362 = vsel %vm264, %v57, 0.0
  %v363 = vadd.f32 %v361, %v362
  %v364 = vsel %vm264, %v58, 0.0
  %v365 = vadd.f32 %v363, %v364
  %v366 = vsel %vm264, %v59, 0.0
  %v367 = vadd.f32 %v365, %v366
  %v368 = vsel %vm264, %v60, 0.0
  %v369 = vadd.f32 %v367, %v368
  %v370 = vsel %vm264, %v61, 0.0
  %v371 = vadd.f32 %v369, %v370
  %v372 = vsel %vm264, %v62, 0.0
  %v373 = vadd.f32 %v371, %v372
  %v374 = vsel %vm264, %v63, 0.0
  %v375 = vadd.f32 %v373, %v374
  %v376 = vsel %vm264, %v64, 0.0
  %v377 = vadd.f32 %v375, %v376
  %v378 = vsel %vm264, %v65, 0.0
  %v379 = vadd.f32 %v377, %v378
  %v380 = vsel %vm264, %v66, 0.0
  %v381 = vadd.f32 %v379, %v380
  %v382 = vsel %vm264, %v67, 0.0
  %v383 = vadd.f32 %v381, %v382
  %v384 = vsel %vm264, %v68, 0.0
  %v385 = vadd.f32 %v383, %v384
  %v386 = vsel %vm264, %v69, 0.0
  %v387 = vadd.f32 %v385, %v386
  %v388 = vsel %vm264, %v70, 0.0
  %v389 = vadd.f32 %v387, %v388
  %v390 = vsel %vm264, %v71, 0.0
  %v391 = vadd.f32 %v389, %v390
  %v392 = vsel %vm264, %v72, 0.0
  %v393 = vadd.f32 %v391, %v392
  %v394 = vsel %vm264, %v73, 0.0
  %v395 = vadd.f32 %v393, %v394
  %v396 = vsel %vm264, %v74, 0.0
  %v397 = vadd.f32 %v395, %v396
  %v398 = vsel %vm264, %v75, 0.0
  %v399 = vadd.f32 %v397, %v398
  %v400 = vsel %vm264, %v76, 0.0
  %v401 = vadd.f32 %v399, %v400
  %v402 = vsel %vm264, %v77, 0.0
  %v403 = vadd.f32 %v401, %v402
  %v404 = vsel %vm264, %v78, 0.0
  %v405 = vadd.f32 %v403, %v404
  %v406 = vsel %vm264, %v79, 0.0
  %v407 = vadd.f32 %v405, %v406
  %v408 = vsel %vm264, %v80, 0.0
  %v409 = vadd.f32 %v407, %v408
  %v410 = vsel %vm264, %v81, 0.0
  %v411 = vadd.f32 %v409, %v410
  %v412 = vsel %vm264, %v82, 0.0
  %v413 = vadd.f32 %v411, %v412
  %v414 = vsel %vm264, %v83, 0.0
  %v415 = vadd.f32 %v413, %v414
  %v416 = vsel %vm264, %v84, 0.0
  %v417 = vadd.f32 %v415, %v416
  %v418 = vsel %vm264, %v85, 0.0
  %v419 = vadd.f32 %v417, %v418
  %v420 = vsel %vm264, %v86, 0.0
  %v421 = vadd.f32 %v419, %v420
  %v422 = vsel %vm264, %v87, 0.0
  %v423 = vadd.f32 %v421, %v422
  %v424 = vsel %vm264, %v88, 0.0
  %v425 = vadd.f32 %v423, %v424
  %v426 = vsel %vm264, %v89, 0.0
  %v427 = vadd.f32 %v425, %v426
  %v428 = vsel %vm264, %v90, 0.0
  %v429 = vadd.f32 %v427, %v428
  %v430 = vsel %vm264, %v91, 0.0
  %v431 = vadd.f32 %v429, %v430
  %v432 = vsel %vm264, %v92, 0.0
  %v433 = vadd.f32 %v431, %v432
  %v434 = vsel %vm264, %v93, 0.0
  %v435 = vadd.f32 %v433, %v434
  %v436 = vsel %vm264, %v94, 0.0
  %v437 = vadd.f32 %v435, %v436
  %v438 = vsel %vm264, %v95, 0.0
  %v439 = vadd.f32 %v437, %v438
  %v440 = vsel %vm264, %v96, 0.0
  %v441 = vadd.f32 %v439, %v440
  %v442 = vsel %vm264, %v97, 0.0
  %v443 = vadd.f32 %v441, %v442
  %v444 = vsel %vm264, %v98, 0.0
  %v445 = vadd.f32 %v443, %v444
  %v446 = vsel %vm264, %v99, 0.0
  %v447 = vadd.f32 %v445, %v446
  %v448 = vsel %vm264, %v100, 0.0
  %v449 = vadd.f32 %v447, %v448
  %v450 = vsel %vm264, %v101, 0.0
  %v451 = vadd.f32 %v449, %v450
  %v452 = vsel %vm264, %v102, 0.0
  %v453 = vadd.f32 %v451, %v452
  %v454 = vsel %vm264, %v103, 0.0
  %v455 = vadd.f32 %v453, %v454
  %v456 = vsel %vm264, %v104, 0.0
  %v457 = vadd.f32 %v455, %v456
  %v458 = vsel %vm264, %v105, 0.0
  %v459 = vadd.f32 %v457, %v458
  %v460 = vsel %vm264, %v106, 0.0
  %v461 = vadd.f32 %v459, %v460
  %v462 = vsel %vm264, %v107, 0.0
  %v463 = vadd.f32 %v461, %v462
  %v464 = vsel %vm264, %v108, 0.0
  %v465 = vadd.f32 %v463, %v464
  %v466 = vsel %vm264, %v109, 0.0
  %v467 = vadd.f32 %v465, %v466
  %v468 = vsel %vm264, %v110, 0.0
  %v469 = vadd.f32 %v467, %v468
  %v470 = vsel %vm264, %v111, 0.0
  %v471 = vadd.f32 %v469, %v470
  %v472 = vsel %vm264, %v112, 0.0
  %v473 = vadd.f32 %v471, %v472
  %v474 = vsel %vm264, %v113, 0.0
  %v475 = vadd.f32 %v473, %v474
  %v476 = vsel %vm264, %v114, 0.0
  %v477 = vadd.f32 %v475, %v476
  %v478 = vsel %vm264, %v115, 0.0
  %v479 = vadd.f32 %v477, %v478
  %v480 = vsel %vm264, %v116, 0.0
  %v481 = vadd.f32 %v479, %v480
  %v482 = vsel %vm264, %v117, 0.0
  %v483 = vadd.f32 %v481, %v482
  %v484 = vsel %vm264, %v118, 0.0
  %v485 = vadd.f32 %v483, %v484
  %v486 = vsel %vm264, %v119, 0.0
  %v487 = vadd.f32 %v485, %v486
  %v488 = vsel %vm264, %v120, 0.0
  %v489 = vadd.f32 %v487, %v488
  %v490 = vsel %vm264, %v121, 0.0
  %v491 = vadd.f32 %v489, %v490
  %v492 = vsel %vm264, %v122, 0.0
  %v493 = vadd.f32 %v491, %v492
  %v494 = vsel %vm264, %v123, 0.0
  %v495 = vadd.f32 %v493, %v494
  %v496 = vsel %vm264, %v124, 0.0
  %v497 = vadd.f32 %v495, %v496
  %v498 = vsel %vm264, %v125, 0.0
  %v499 = vadd.f32 %v497, %v498
  %v500 = vsel %vm264, %v126, 0.0
  %v501 = vadd.f32 %v499, %v500
  %v502 = vsel %vm264, %v127, 0.0
  %v503 = vadd.f32 %v501, %v502
  %v504 = vsel %vm264, %v128, 0.0
  %v505 = vadd.f32 %v503, %v504
  %v506 = vsel %vm264, %v129, 0.0
  %v507 = vadd.f32 %v505, %v506
  %v508 = vsel %vm264, %v130, 0.0
  %v509 = vadd.f32 %v507, %v508
  %v510 = vsel %vm264, %v131, 0.0
  %v511 = vadd.f32 %v509, %v510
  %v512 = vsel %vm264, %v132, 0.0
  %v513 = vadd.f32 %v511, %v512
  %v514 = vsel %vm264, %v133, 0.0
  %v515 = vadd.f32 %v513, %v514
  %v516 = vsel %vm264, %v134, 0.0
  %v517 = vadd.f32 %v515, %v516
  %v518 = vsel %vm264, %v135, 0.0
  %v519 = vadd.f32 %v517, %v518
  %v520 = vsel %vm264, %v136, 0.0
  %v521 = vadd.f32 %v519, %v520
  %v522 = vsel %vm264, %v137, 0.0
  %v523 = vadd.f32 %v521, %v522
  %v524 = vsel %vm264, %v138, 0.0
  %v525 = vadd.f32 %v523, %v524
  %v526 = vsel %vm264, %v139, 0.0
  %v527 = vadd.f32 %v525, %v526
  %v528 = vsel %vm264, %v140, 0.0
  %v529 = vadd.f32 %v527, %v528
  %v530 = vsel %vm264, %v141, 0.0
  %v531 = vadd.f32 %v529, %v530
  %v532 = vsel %vm264, %v142, 0.0
  %v533 = vadd.f32 %v531, %v532
  %v534 = vsel %vm264, %v143, 0.0
  %v535 = vadd.f32 %v533, %v534
  %v536 = vsel %vm264, %v144, 0.0
  %v537 = vadd.f32 %v535, %v536
  %v538 = vsel %vm264, %v145, 0.0
  %v539 = vadd.f32 %v537, %v538
  %v540 = vsel %vm264, %v146, 0.0
  %v541 = vadd.f32 %v539, %v540
  %v542 = vsel %vm264, %v147, 0.0
  %v543 = vadd.f32 %v541, %v542
  %v544 = vsel %vm264, %v148, 0.0
  %v545 = vadd.f32 %v543, %v544
  %v546 = vsel %vm264, %v149, 0.0
  %v547 = vadd.f32 %v545, %v546
  %v548 = vsel %vm264, %v150, 0.0
  %v549 = vadd.f32 %v547, %v548
  %v550 = vsel %vm264, %v151, 0.0
  %v551 = vadd.f32 %v549, %v550
  %v552 = vsel %vm264, %v152, 0.0
  %v553 = vadd.f32 %v551, %v552
  %v554 = vsel %vm264, %v153, 0.0
  %v555 = vadd.f32 %v553, %v554
  %v556 = vsel %vm264, %v154, 0.0
  %v557 = vadd.f32 %v555, %v556
  %v558 = vsel %vm264, %v155, 0.0
  %v559 = vadd.f32 %v557, %v558
  %v560 = vsel %vm264, %v156, 0.0
  %v561 = vadd.f32 %v559, %v560
  %v562 = vsel %vm264, %v157, 0.0
  %v563 = vadd.f32 %v561, %v562
  %v564 = vsel %vm264, %v158, 0.0
  %v565 = vadd.f32 %v563, %v564
  %v566 = vsel %vm264, %v159, 0.0
  %v567 = vadd.f32 %v565, %v566
  %v568 = vsel %vm264, %v160, 0.0
  %v569 = vadd.f32 %v567, %v568
  %v570 = vsel %vm264, %v161, 0.0
  %v571 = vadd.f32 %v569, %v570
  %v572 = vsel %vm264, %v162, 0.0
  %v573 = vadd.f32 %v571, %v572
  %v574 = vsel %vm264, %v163, 0.0
  %v575 = vadd.f32 %v573, %v574
  %v576 = vsel %vm264, %v164, 0.0
  %v577 = vadd.f32 %v575, %v576
  %v578 = vsel %vm264, %v165, 0.0
  %v579 = vadd.f32 %v577, %v578
  %v580 = vsel %vm264, %v166, 0.0
  %v581 = vadd.f32 %v579, %v580
  %v582 = vsel %vm264, %v167, 0.0
  %v583 = vadd.f32 %v581, %v582
  %v584 = vsel %vm264, %v168, 0.0
  %v585 = vadd.f32 %v583, %v584
  %v586 = vsel %vm264, %v169, 0.0
  %v587 = vadd.f32 %v585, %v586
  %v588 = vsel %vm264, %v170, 0.0
  %v589 = vadd.f32 %v587, %v588
  %v590 = vsel %vm264, %v171, 0.0
  %v591 = vadd.f32 %v589, %v590
  %v592 = vsel %vm264, %v172, 0.0
  %v593 = vadd.f32 %v591, %v592
  %v594 = vsel %vm264, %v173, 0.0
  %v595 = vadd.f32 %v593, %v594
  %v596 = vsel %vm264, %v174, 0.0
  %v597 = vadd.f32 %v595, %v596
  %v598 = vsel %vm264, %v175, 0.0
  %v599 = vadd.f32 %v597, %v598
  %v600 = vsel %vm264, %v176, 0.0
  %v601 = vadd.f32 %v599, %v600
  %v602 = vsel %vm264, %v177, 0.0
  %v603 = vadd.f32 %v601, %v602
  %v604 = vsel %vm264, %v178, 0.0
  %v605 = vadd.f32 %v603, %v604
  %v606 = vsel %vm264, %v179, 0.0
  %v607 = vadd.f32 %v605, %v606
  %v608 = vsel %vm264, %v180, 0.0
  %v609 = vadd.f32 %v607, %v608
  %v610 = vsel %vm264, %v181, 0.0
  %v611 = vadd.f32 %v609, %v610
  %v612 = vsel %vm264, %v182, 0.0
  %v613 = vadd.f32 %v611, %v612
  %v614 = vsel %vm264, %v183, 0.0
  %v615 = vadd.f32 %v613, %v614
  %v616 = vsel %vm264, %v184, 0.0
  %v617 = vadd.f32 %v615, %v616
  %v618 = vsel %vm264, %v185, 0.0
  %v619 = vadd.f32 %v617, %v618
  %v620 = vsel %vm264, %v186, 0.0
  %v621 = vadd.f32 %v619, %v620
  %v622 = vsel %vm264, %v187, 0.0
  %v623 = vadd.f32 %v621, %v622
  %v624 = vsel %vm264, %v188, 0.0
  %v625 = vadd.f32 %v623, %v624
  %v626 = vsel %vm264, %v189, 0.0
  %v627 = vadd.f32 %v625, %v626
  %v628 = vsel %vm264, %v190, 0.0
  %v629 = vadd.f32 %v627, %v628
  %v630 = vsel %vm264, %v191, 0.0
  %v631 = vadd.f32 %v629, %v630
  %v632 = vsel %vm264, %v192, 0.0
  %v633 = vadd.f32 %v631, %v632
  %v634 = vsel %vm264, %v193, 0.0
  %v635 = vadd.f32 %v633, %v634
  %v636 = vsel %vm264, %v194, 0.0
  %v637 = vadd.f32 %v635, %v636
  %v638 = vsel %vm264, %v195, 0.0
  %v639 = vadd.f32 %v637, %v638
  %v640 = vsel %vm264, %v196, 0.0
  %v641 = vadd.f32 %v639, %v640
  %v642 = vsel %vm264, %v197, 0.0
  %v643 = vadd.f32 %v641, %v642
  %v644 = vsel %vm264, %v198, 0.0
  %v645 = vadd.f32 %v643, %v644
  %v646 = vsel %vm264, %v199, 0.0
  %v647 = vadd.f32 %v645, %v646
  %v648 = vsel %vm264, %v200, 0.0
  %v649 = vadd.f32 %v647, %v648
  %v650 = vsel %vm264, %v201, 0.0
  %v651 = vadd.f32 %v649, %v650
  %v652 = vsel %vm264, %v202, 0.0
  %v653 = vadd.f32 %v651, %v652
  %v654 = vsel %vm264, %v203, 0.0
  %v655 = vadd.f32 %v653, %v654
  %v656 = vsel %vm264, %v204, 0.0
  %v657 = vadd.f32 %v655, %v656
  %v658 = vsel %vm264, %v205, 0.0
  %v659 = vadd.f32 %v657, %v658
  %v660 = vsel %vm264, %v206, 0.0
  %v661 = vadd.f32 %v659, %v660
  %v662 = vsel %vm264, %v207, 0.0
  %v663 = vadd.f32 %v661, %v662
  %v664 = vsel %vm264, %v208, 0.0
  %v665 = vadd.f32 %v663, %v664
  %v666 = vsel %vm264, %v209, 0.0
  %v667 = vadd.f32 %v665, %v666
  %v668 = vsel %vm264, %v210, 0.0
  %v669 = vadd.f32 %v667, %v668
  %v670 = vsel %vm264, %v211, 0.0
  %v671 = vadd.f32 %v669, %v670
  %v672 = vsel %vm264, %v212, 0.0
  %v673 = vadd.f32 %v671, %v672
  %v674 = vsel %vm264, %v213, 0.0
  %v675 = vadd.f32 %v673, %v674
  %v676 = vsel %vm264, %v214, 0.0
  %v677 = vadd.f32 %v675, %v676
  %v678 = vsel %vm264, %v215, 0.0
  %v679 = vadd.f32 %v677, %v678
  %v680 = vsel %vm264, %v216, 0.0
  %v681 = vadd.f32 %v679, %v680
  %v682 = vsel %vm264, %v217, 0.0
  %v683 = vadd.f32 %v681, %v682
  %v684 = vsel %vm264, %v218, 0.0
  %v685 = vadd.f32 %v683, %v684
  %v686 = vsel %vm264, %v219, 0.0
  %v687 = vadd.f32 %v685, %v686
  %v688 = vsel %vm264, %v220, 0.0
  %v689 = vadd.f32 %v687, %v688
  %v690 = vsel %vm264, %v221, 0.0
  %v691 = vadd.f32 %v689, %v690
  %v692 = vsel %vm264, %v222, 0.0
  %v693 = vadd.f32 %v691, %v692
  %v694 = vsel %vm264, %v223, 0.0
  %v695 = vadd.f32 %v693, %v694
  %v696 = vsel %vm264, %v224, 0.0
  %v697 = vadd.f32 %v695, %v696
  %v698 = vsel %vm264, %v225, 0.0
  %v699 = vadd.f32 %v697, %v698
  %v700 = vsel %vm264, %v226, 0.0
  %v701 = vadd.f32 %v699, %v700
  %v702 = vsel %vm264, %v227, 0.0
  %v703 = vadd.f32 %v701, %v702
  %v704 = vsel %vm264, %v228, 0.0
  %v705 = vadd.f32 %v703, %v704
  %v706 = vsel %vm264, %v229, 0.0
  %v707 = vadd.f32 %v705, %v706
  %v708 = vsel %vm264, %v230, 0.0
  %v709 = vadd.f32 %v707, %v708
  %v710 = vsel %vm264, %v231, 0.0
  %v711 = vadd.f32 %v709, %v710
  %v712 = vsel %vm264, %v232, 0.0
  %v713 = vadd.f32 %v711, %v712
  %v714 = vsel %vm264, %v233, 0.0
  %v715 = vadd.f32 %v713, %v714
  %v716 = vsel %vm264, %v234, 0.0
  %v717 = vadd.f32 %v715, %v716
  %v718 = vsel %vm264, %v235, 0.0
  %v719 = vadd.f32 %v717, %v718
  %v720 = vsel %vm264, %v236, 0.0
  %v721 = vadd.f32 %v719, %v720
  %v722 = vsel %vm264, %v237, 0.0
  %v723 = vadd.f32 %v721, %v722
  %v724 = vsel %vm264, %v238, 0.0
  %v725 = vadd.f32 %v723, %v724
  %v726 = vsel %vm264, %v239, 0.0
  %v727 = vadd.f32 %v725, %v726
  %v728 = vsel %vm264, %v240, 0.0
  %v729 = vadd.f32 %v727, %v728
  %v730 = vsel %vm264, %v241, 0.0
  %v731 = vadd.f32 %v729, %v730
  %v732 = vsel %vm264, %v242, 0.0
  %v733 = vadd.f32 %v731, %v732
  %v734 = vsel %vm264, %v243, 0.0
  %v735 = vadd.f32 %v733, %v734
  %v736 = vsel %vm264, %v244, 0.0
  %v737 = vadd.f32 %v735, %v736
  %v738 = vsel %vm264, %v245, 0.0
  %v739 = vadd.f32 %v737, %v738
  %v740 = vsel %vm264, %v246, 0.0
  %v741 = vadd.f32 %v739, %v740
  %v742 = vsel %vm264, %v247, 0.0
  %v743 = vadd.f32 %v741, %v742
  %v744 = vsel %vm264, %v248, 0.0
  %v745 = vadd.f32 %v743, %v744
  %v746 = vsel %vm264, %v249, 0.0
  %v747 = vadd.f32 %v745, %v746
  %v748 = vsel %vm264, %v250, 0.0
  %v749 = vadd.f32 %v747, %v748
  %v750 = vsel %vm264, %v251, 0.0
  %v751 = vadd.f32 %v749, %v750
  %v752 = vsel %vm264, %v252, 0.0
  %v753 = vadd.f32 %v751, %v752
  %v754 = vsel %vm264, %v253, 0.0
  %v755 = vadd.f32 %v753, %v754
  %v756 = vsel %vm264, %v254, 0.0
  %v757 = vadd.f32 %v755, %v756
  %v758 = vsel %vm264, %v255, 0.0
  %v759 = vadd.f32 %v757, %v758
  %v760 = vsel %vm264, %v256, 0.0
  %v761 = vadd.f32 %v759, %v760
  %v762 = vsel %vm264, %v257, 0.0
  %v763 = vadd.f32 %v761, %v762
  %v764 = vsel %vm264, %v258, 0.0
  %v765 = vadd.f32 %v763, %v764
  %v766 = vsel %vm264, %v259, 0.0
  %v767 = vadd.f32 %v765, %v766
  %v768 = vsel %vm264, %v260, 0.0
  %v769 = vadd.f32 %v767, %v768
  %v770 = vsel %vm264, %v261, 0.0
  %v771 = vadd.f32 %v769, %v770
  %v772 = vsel %vm264, %v262, 0.0
  %v773 = vadd.f32 %v771, %v772
  %v774 = vsel %vm264, %v263, 0.0
  %v775 = vadd.f32 %v773, %v774
  %v776 = vrot.slane %v775, 4
  %v777 = vadd.f32 %v775, %v776
  %v778 = vrot.slane %v777, 2
  %v779 = vadd.f32 %v777, %v778
  %v780 = vrot.slane %v779, 1
  %v781 = vadd.f32 %v779, %v780
  %v782 = vrcp.pop 2048.0
  %v783 = vmul.f32 %v781, %v782
  %v784 = vsub.f32 %v8, %v783
  %v785 = vsub.f32 %v9, %v783
  %v786 = vsub.f32 %v10, %v783
  %v787 = vsub.f32 %v11, %v783
  %v788 = vsub.f32 %v12, %v783
  %v789 = vsub.f32 %v13, %v783
  %v790 = vsub.f32 %v14, %v783
  %v791 = vsub.f32 %v15, %v783
  %v792 = vsub.f32 %v16, %v783
  %v793 = vsub.f32 %v17, %v783
  %v794 = vsub.f32 %v18, %v783
  %v795 = vsub.f32 %v19, %v783
  %v796 = vsub.f32 %v20, %v783
  %v797 = vsub.f32 %v21, %v783
  %v798 = vsub.f32 %v22, %v783
  %v799 = vsub.f32 %v23, %v783
  %v800 = vsub.f32 %v24, %v783
  %v801 = vsub.f32 %v25, %v783
  %v802 = vsub.f32 %v26, %v783
  %v803 = vsub.f32 %v27, %v783
  %v804 = vsub.f32 %v28, %v783
  %v805 = vsub.f32 %v29, %v783
  %v806 = vsub.f32 %v30, %v783
  %v807 = vsub.f32 %v31, %v783
  %v808 = vsub.f32 %v32, %v783
  %v809 = vsub.f32 %v33, %v783
  %v810 = vsub.f32 %v34, %v783
  %v811 = vsub.f32 %v35, %v783
  %v812 = vsub.f32 %v36, %v783
  %v813 = vsub.f32 %v37, %v783
  %v814 = vsub.f32 %v38, %v783
  %v815 = vsub.f32 %v39, %v783
  %v816 = vsub.f32 %v40, %v783
  %v817 = vsub.f32 %v41, %v783
  %v818 = vsub.f32 %v42, %v783
  %v819 = vsub.f32 %v43, %v783
  %v820 = vsub.f32 %v44, %v783
  %v821 = vsub.f32 %v45, %v783
  %v822 = vsub.f32 %v46, %v783
  %v823 = vsub.f32 %v47, %v783
  %v824 = vsub.f32 %v48, %v783
  %v825 = vsub.f32 %v49, %v783
  %v826 = vsub.f32 %v50, %v783
  %v827 = vsub.f32 %v51, %v783
  %v828 = vsub.f32 %v52, %v783
  %v829 = vsub.f32 %v53, %v783
  %v830 = vsub.f32 %v54, %v783
  %v831 = vsub.f32 %v55, %v783
  %v832 = vsub.f32 %v56, %v783
  %v833 = vsub.f32 %v57, %v783
  %v834 = vsub.f32 %v58, %v783
  %v835 = vsub.f32 %v59, %v783
  %v836 = vsub.f32 %v60, %v783
  %v837 = vsub.f32 %v61, %v783
  %v838 = vsub.f32 %v62, %v783
  %v839 = vsub.f32 %v63, %v783
  %v840 = vsub.f32 %v64, %v783
  %v841 = vsub.f32 %v65, %v783
  %v842 = vsub.f32 %v66, %v783
  %v843 = vsub.f32 %v67, %v783
  %v844 = vsub.f32 %v68, %v783
  %v845 = vsub.f32 %v69, %v783
  %v846 = vsub.f32 %v70, %v783
  %v847 = vsub.f32 %v71, %v783
  %v848 = vsub.f32 %v72, %v783
  %v849 = vsub.f32 %v73, %v783
  %v850 = vsub.f32 %v74, %v783
  %v851 = vsub.f32 %v75, %v783
  %v852 = vsub.f32 %v76, %v783
  %v853 = vsub.f32 %v77, %v783
  %v854 = vsub.f32 %v78, %v783
  %v855 = vsub.f32 %v79, %v783
  %v856 = vsub.f32 %v80, %v783
  %v857 = vsub.f32 %v81, %v783
  %v858 = vsub.f32 %v82, %v783
  %v859 = vsub.f32 %v83, %v783
  %v860 = vsub.f32 %v84, %v783
  %v861 = vsub.f32 %v85, %v783
  %v862 = vsub.f32 %v86, %v783
  %v863 = vsub.f32 %v87, %v783
  %v864 = vsub.f32 %v88, %v783
  %v865 = vsub.f32 %v89, %v783
  %v866 = vsub.f32 %v90, %v783
  %v867 = vsub.f32 %v91, %v783
  %v868 = vsub.f32 %v92, %v783
  %v869 = vsub.f32 %v93, %v783
  %v870 = vsub.f32 %v94, %v783
  %v871 = vsub.f32 %v95, %v783
  %v872 = vsub.f32 %v96, %v783
  %v873 = vsub.f32 %v97, %v783
  %v874 = vsub.f32 %v98, %v783
  %v875 = vsub.f32 %v99, %v783
  %v876 = vsub.f32 %v100, %v783
  %v877 = vsub.f32 %v101, %v783
  %v878 = vsub.f32 %v102, %v783
  %v879 = vsub.f32 %v103, %v783
  %v880 = vsub.f32 %v104, %v783
  %v881 = vsub.f32 %v105, %v783
  %v882 = vsub.f32 %v106, %v783
  %v883 = vsub.f32 %v107, %v783
  %v884 = vsub.f32 %v108, %v783
  %v885 = vsub.f32 %v109, %v783
  %v886 = vsub.f32 %v110, %v783
  %v887 = vsub.f32 %v111, %v783
  %v888 = vsub.f32 %v112, %v783
  %v889 = vsub.f32 %v113, %v783
  %v890 = vsub.f32 %v114, %v783
  %v891 = vsub.f32 %v115, %v783
  %v892 = vsub.f32 %v116, %v783
  %v893 = vsub.f32 %v117, %v783
  %v894 = vsub.f32 %v118, %v783
  %v895 = vsub.f32 %v119, %v783
  %v896 = vsub.f32 %v120, %v783
  %v897 = vsub.f32 %v121, %v783
  %v898 = vsub.f32 %v122, %v783
  %v899 = vsub.f32 %v123, %v783
  %v900 = vsub.f32 %v124, %v783
  %v901 = vsub.f32 %v125, %v783
  %v902 = vsub.f32 %v126, %v783
  %v903 = vsub.f32 %v127, %v783
  %v904 = vsub.f32 %v128, %v783
  %v905 = vsub.f32 %v129, %v783
  %v906 = vsub.f32 %v130, %v783
  %v907 = vsub.f32 %v131, %v783
  %v908 = vsub.f32 %v132, %v783
  %v909 = vsub.f32 %v133, %v783
  %v910 = vsub.f32 %v134, %v783
  %v911 = vsub.f32 %v135, %v783
  %v912 = vsub.f32 %v136, %v783
  %v913 = vsub.f32 %v137, %v783
  %v914 = vsub.f32 %v138, %v783
  %v915 = vsub.f32 %v139, %v783
  %v916 = vsub.f32 %v140, %v783
  %v917 = vsub.f32 %v141, %v783
  %v918 = vsub.f32 %v142, %v783
  %v919 = vsub.f32 %v143, %v783
  %v920 = vsub.f32 %v144, %v783
  %v921 = vsub.f32 %v145, %v783
  %v922 = vsub.f32 %v146, %v783
  %v923 = vsub.f32 %v147, %v783
  %v924 = vsub.f32 %v148, %v783
  %v925 = vsub.f32 %v149, %v783
  %v926 = vsub.f32 %v150, %v783
  %v927 = vsub.f32 %v151, %v783
  %v928 = vsub.f32 %v152, %v783
  %v929 = vsub.f32 %v153, %v783
  %v930 = vsub.f32 %v154, %v783
  %v931 = vsub.f32 %v155, %v783
  %v932 = vsub.f32 %v156, %v783
  %v933 = vsub.f32 %v157, %v783
  %v934 = vsub.f32 %v158, %v783
  %v935 = vsub.f32 %v159, %v783
  %v936 = vsub.f32 %v160, %v783
  %v937 = vsub.f32 %v161, %v783
  %v938 = vsub.f32 %v162, %v783
  %v939 = vsub.f32 %v163, %v783
  %v940 = vsub.f32 %v164, %v783
  %v941 = vsub.f32 %v165, %v783
  %v942 = vsub.f32 %v166, %v783
  %v943 = vsub.f32 %v167, %v783
  %v944 = vsub.f32 %v168, %v783
  %v945 = vsub.f32 %v169, %v783
  %v946 = vsub.f32 %v170, %v783
  %v947 = vsub.f32 %v171, %v783
  %v948 = vsub.f32 %v172, %v783
  %v949 = vsub.f32 %v173, %v783
  %v950 = vsub.f32 %v174, %v783
  %v951 = vsub.f32 %v175, %v783
  %v952 = vsub.f32 %v176, %v783
  %v953 = vsub.f32 %v177, %v783
  %v954 = vsub.f32 %v178, %v783
  %v955 = vsub.f32 %v179, %v783
  %v956 = vsub.f32 %v180, %v783
  %v957 = vsub.f32 %v181, %v783
  %v958 = vsub.f32 %v182, %v783
  %v959 = vsub.f32 %v183, %v783
  %v960 = vsub.f32 %v184, %v783
  %v961 = vsub.f32 %v185, %v783
  %v962 = vsub.f32 %v186, %v783
  %v963 = vsub.f32 %v187, %v783
  %v964 = vsub.f32 %v188, %v783
  %v965 = vsub.f32 %v189, %v783
  %v966 = vsub.f32 %v190, %v783
  %v967 = vsub.f32 %v191, %v783
  %v968 = vsub.f32 %v192, %v783
  %v969 = vsub.f32 %v193, %v783
  %v970 = vsub.f32 %v194, %v783
  %v971 = vsub.f32 %v195, %v783
  %v972 = vsub.f32 %v196, %v783
  %v973 = vsub.f32 %v197, %v783
  %v974 = vsub.f32 %v198, %v783
  %v975 = vsub.f32 %v199, %v783
  %v976 = vsub.f32 %v200, %v783
  %v977 = vsub.f32 %v201, %v783
  %v978 = vsub.f32 %v202, %v783
  %v979 = vsub.f32 %v203, %v783
  %v980 = vsub.f32 %v204, %v783
  %v981 = vsub.f32 %v205, %v783
  %v982 = vsub.f32 %v206, %v783
  %v983 = vsub.f32 %v207, %v783
  %v984 = vsub.f32 %v208, %v783
  %v985 = vsub.f32 %v209, %v783
  %v986 = vsub.f32 %v210, %v783
  %v987 = vsub.f32 %v211, %v783
  %v988 = vsub.f32 %v212, %v783
  %v989 = vsub.f32 %v213, %v783
  %v990 = vsub.f32 %v214, %v783
  %v991 = vsub.f32 %v215, %v783
  %v992 = vsub.f32 %v216, %v783
  %v993 = vsub.f32 %v217, %v783
  %v994 = vsub.f32 %v218, %v783
  %v995 = vsub.f32 %v219, %v783
  %v996 = vsub.f32 %v220, %v783
  %v997 = vsub.f32 %v221, %v783
  %v998 = vsub.f32 %v222, %v783
  %v999 = vsub.f32 %v223, %v783
  %v1000 = vsub.f32 %v224, %v783
  %v1001 = vsub.f32 %v225, %v783
  %v1002 = vsub.f32 %v226, %v783
  %v1003 = vsub.f32 %v227, %v783
  %v1004 = vsub.f32 %v228, %v783
  %v1005 = vsub.f32 %v229, %v783
  %v1006 = vsub.f32 %v230, %v783
  %v1007 = vsub.f32 %v231, %v783
  %v1008 = vsub.f32 %v232, %v783
  %v1009 = vsub.f32 %v233, %v783
  %v1010 = vsub.f32 %v234, %v783
  %v1011 = vsub.f32 %v235, %v783
  %v1012 = vsub.f32 %v236, %v783
  %v1013 = vsub.f32 %v237, %v783
  %v1014 = vsub.f32 %v238, %v783
  %v1015 = vsub.f32 %v239, %v783
  %v1016 = vsub.f32 %v240, %v783
  %v1017 = vsub.f32 %v241, %v783
  %v1018 = vsub.f32 %v242, %v783
  %v1019 = vsub.f32 %v243, %v783
  %v1020 = vsub.f32 %v244, %v783
  %v1021 = vsub.f32 %v245, %v783
  %v1022 = vsub.f32 %v246, %v783
  %v1023 = vsub.f32 %v247, %v783
  %v1024 = vsub.f32 %v248, %v783
  %v1025 = vsub.f32 %v249, %v783
  %v1026 = vsub.f32 %v250, %v783
  %v1027 = vsub.f32 %v251, %v783
  %v1028 = vsub.f32 %v252, %v783
  %v1029 = vsub.f32 %v253, %v783
  %v1030 = vsub.f32 %v254, %v783
  %v1031 = vsub.f32 %v255, %v783
  %v1032 = vsub.f32 %v256, %v783
  %v1033 = vsub.f32 %v257, %v783
  %v1034 = vsub.f32 %v258, %v783
  %v1035 = vsub.f32 %v259, %v783
  %v1036 = vsub.f32 %v260, %v783
  %v1037 = vsub.f32 %v261, %v783
  %v1038 = vsub.f32 %v262, %v783
  %v1039 = vsub.f32 %v263, %v783
  %v1040 = vmul.f32 %v784, %v784
  %v1041 = vmul.f32 %v785, %v785
  %v1042 = vmul.f32 %v786, %v786
  %v1043 = vmul.f32 %v787, %v787
  %v1044 = vmul.f32 %v788, %v788
  %v1045 = vmul.f32 %v789, %v789
  %v1046 = vmul.f32 %v790, %v790
  %v1047 = vmul.f32 %v791, %v791
  %v1048 = vmul.f32 %v792, %v792
  %v1049 = vmul.f32 %v793, %v793
  %v1050 = vmul.f32 %v794, %v794
  %v1051 = vmul.f32 %v795, %v795
  %v1052 = vmul.f32 %v796, %v796
  %v1053 = vmul.f32 %v797, %v797
  %v1054 = vmul.f32 %v798, %v798
  %v1055 = vmul.f32 %v799, %v799
  %v1056 = vmul.f32 %v800, %v800
  %v1057 = vmul.f32 %v801, %v801
  %v1058 = vmul.f32 %v802, %v802
  %v1059 = vmul.f32 %v803, %v803
  %v1060 = vmul.f32 %v804, %v804
  %v1061 = vmul.f32 %v805, %v805
  %v1062 = vmul.f32 %v806, %v806
  %v1063 = vmul.f32 %v807, %v807
  %v1064 = vmul.f32 %v808, %v808
  %v1065 = vmul.f32 %v809, %v809
  %v1066 = vmul.f32 %v810, %v810
  %v1067 = vmul.f32 %v811, %v811
  %v1068 = vmul.f32 %v812, %v812
  %v1069 = vmul.f32 %v813, %v813
  %v1070 = vmul.f32 %v814, %v814
  %v1071 = vmul.f32 %v815, %v815
  %v1072 = vmul.f32 %v816, %v816
  %v1073 = vmul.f32 %v817, %v817
  %v1074 = vmul.f32 %v818, %v818
  %v1075 = vmul.f32 %v819, %v819
  %v1076 = vmul.f32 %v820, %v820
  %v1077 = vmul.f32 %v821, %v821
  %v1078 = vmul.f32 %v822, %v822
  %v1079 = vmul.f32 %v823, %v823
  %v1080 = vmul.f32 %v824, %v824
  %v1081 = vmul.f32 %v825, %v825
  %v1082 = vmul.f32 %v826, %v826
  %v1083 = vmul.f32 %v827, %v827
  %v1084 = vmul.f32 %v828, %v828
  %v1085 = vmul.f32 %v829, %v829
  %v1086 = vmul.f32 %v830, %v830
  %v1087 = vmul.f32 %v831, %v831
  %v1088 = vmul.f32 %v832, %v832
  %v1089 = vmul.f32 %v833, %v833
  %v1090 = vmul.f32 %v834, %v834
  %v1091 = vmul.f32 %v835, %v835
  %v1092 = vmul.f32 %v836, %v836
  %v1093 = vmul.f32 %v837, %v837
  %v1094 = vmul.f32 %v838, %v838
  %v1095 = vmul.f32 %v839, %v839
  %v1096 = vmul.f32 %v840, %v840
  %v1097 = vmul.f32 %v841, %v841
  %v1098 = vmul.f32 %v842, %v842
  %v1099 = vmul.f32 %v843, %v843
  %v1100 = vmul.f32 %v844, %v844
  %v1101 = vmul.f32 %v845, %v845
  %v1102 = vmul.f32 %v846, %v846
  %v1103 = vmul.f32 %v847, %v847
  %v1104 = vmul.f32 %v848, %v848
  %v1105 = vmul.f32 %v849, %v849
  %v1106 = vmul.f32 %v850, %v850
  %v1107 = vmul.f32 %v851, %v851
  %v1108 = vmul.f32 %v852, %v852
  %v1109 = vmul.f32 %v853, %v853
  %v1110 = vmul.f32 %v854, %v854
  %v1111 = vmul.f32 %v855, %v855
  %v1112 = vmul.f32 %v856, %v856
  %v1113 = vmul.f32 %v857, %v857
  %v1114 = vmul.f32 %v858, %v858
  %v1115 = vmul.f32 %v859, %v859
  %v1116 = vmul.f32 %v860, %v860
  %v1117 = vmul.f32 %v861, %v861
  %v1118 = vmul.f32 %v862, %v862
  %v1119 = vmul.f32 %v863, %v863
  %v1120 = vmul.f32 %v864, %v864
  %v1121 = vmul.f32 %v865, %v865
  %v1122 = vmul.f32 %v866, %v866
  %v1123 = vmul.f32 %v867, %v867
  %v1124 = vmul.f32 %v868, %v868
  %v1125 = vmul.f32 %v869, %v869
  %v1126 = vmul.f32 %v870, %v870
  %v1127 = vmul.f32 %v871, %v871
  %v1128 = vmul.f32 %v872, %v872
  %v1129 = vmul.f32 %v873, %v873
  %v1130 = vmul.f32 %v874, %v874
  %v1131 = vmul.f32 %v875, %v875
  %v1132 = vmul.f32 %v876, %v876
  %v1133 = vmul.f32 %v877, %v877
  %v1134 = vmul.f32 %v878, %v878
  %v1135 = vmul.f32 %v879, %v879
  %v1136 = vmul.f32 %v880, %v880
  %v1137 = vmul.f32 %v881, %v881
  %v1138 = vmul.f32 %v882, %v882
  %v1139 = vmul.f32 %v883, %v883
  %v1140 = vmul.f32 %v884, %v884
  %v1141 = vmul.f32 %v885, %v885
  %v1142 = vmul.f32 %v886, %v886
  %v1143 = vmul.f32 %v887, %v887
  %v1144 = vmul.f32 %v888, %v888
  %v1145 = vmul.f32 %v889, %v889
  %v1146 = vmul.f32 %v890, %v890
  %v1147 = vmul.f32 %v891, %v891
  %v1148 = vmul.f32 %v892, %v892
  %v1149 = vmul.f32 %v893, %v893
  %v1150 = vmul.f32 %v894, %v894
  %v1151 = vmul.f32 %v895, %v895
  %v1152 = vmul.f32 %v896, %v896
  %v1153 = vmul.f32 %v897, %v897
  %v1154 = vmul.f32 %v898, %v898
  %v1155 = vmul.f32 %v899, %v899
  %v1156 = vmul.f32 %v900, %v900
  %v1157 = vmul.f32 %v901, %v901
  %v1158 = vmul.f32 %v902, %v902
  %v1159 = vmul.f32 %v903, %v903
  %v1160 = vmul.f32 %v904, %v904
  %v1161 = vmul.f32 %v905, %v905
  %v1162 = vmul.f32 %v906, %v906
  %v1163 = vmul.f32 %v907, %v907
  %v1164 = vmul.f32 %v908, %v908
  %v1165 = vmul.f32 %v909, %v909
  %v1166 = vmul.f32 %v910, %v910
  %v1167 = vmul.f32 %v911, %v911
  %v1168 = vmul.f32 %v912, %v912
  %v1169 = vmul.f32 %v913, %v913
  %v1170 = vmul.f32 %v914, %v914
  %v1171 = vmul.f32 %v915, %v915
  %v1172 = vmul.f32 %v916, %v916
  %v1173 = vmul.f32 %v917, %v917
  %v1174 = vmul.f32 %v918, %v918
  %v1175 = vmul.f32 %v919, %v919
  %v1176 = vmul.f32 %v920, %v920
  %v1177 = vmul.f32 %v921, %v921
  %v1178 = vmul.f32 %v922, %v922
  %v1179 = vmul.f32 %v923, %v923
  %v1180 = vmul.f32 %v924, %v924
  %v1181 = vmul.f32 %v925, %v925
  %v1182 = vmul.f32 %v926, %v926
  %v1183 = vmul.f32 %v927, %v927
  %v1184 = vmul.f32 %v928, %v928
  %v1185 = vmul.f32 %v929, %v929
  %v1186 = vmul.f32 %v930, %v930
  %v1187 = vmul.f32 %v931, %v931
  %v1188 = vmul.f32 %v932, %v932
  %v1189 = vmul.f32 %v933, %v933
  %v1190 = vmul.f32 %v934, %v934
  %v1191 = vmul.f32 %v935, %v935
  %v1192 = vmul.f32 %v936, %v936
  %v1193 = vmul.f32 %v937, %v937
  %v1194 = vmul.f32 %v938, %v938
  %v1195 = vmul.f32 %v939, %v939
  %v1196 = vmul.f32 %v940, %v940
  %v1197 = vmul.f32 %v941, %v941
  %v1198 = vmul.f32 %v942, %v942
  %v1199 = vmul.f32 %v943, %v943
  %v1200 = vmul.f32 %v944, %v944
  %v1201 = vmul.f32 %v945, %v945
  %v1202 = vmul.f32 %v946, %v946
  %v1203 = vmul.f32 %v947, %v947
  %v1204 = vmul.f32 %v948, %v948
  %v1205 = vmul.f32 %v949, %v949
  %v1206 = vmul.f32 %v950, %v950
  %v1207 = vmul.f32 %v951, %v951
  %v1208 = vmul.f32 %v952, %v952
  %v1209 = vmul.f32 %v953, %v953
  %v1210 = vmul.f32 %v954, %v954
  %v1211 = vmul.f32 %v955, %v955
  %v1212 = vmul.f32 %v956, %v956
  %v1213 = vmul.f32 %v957, %v957
  %v1214 = vmul.f32 %v958, %v958
  %v1215 = vmul.f32 %v959, %v959
  %v1216 = vmul.f32 %v960, %v960
  %v1217 = vmul.f32 %v961, %v961
  %v1218 = vmul.f32 %v962, %v962
  %v1219 = vmul.f32 %v963, %v963
  %v1220 = vmul.f32 %v964, %v964
  %v1221 = vmul.f32 %v965, %v965
  %v1222 = vmul.f32 %v966, %v966
  %v1223 = vmul.f32 %v967, %v967
  %v1224 = vmul.f32 %v968, %v968
  %v1225 = vmul.f32 %v969, %v969
  %v1226 = vmul.f32 %v970, %v970
  %v1227 = vmul.f32 %v971, %v971
  %v1228 = vmul.f32 %v972, %v972
  %v1229 = vmul.f32 %v973, %v973
  %v1230 = vmul.f32 %v974, %v974
  %v1231 = vmul.f32 %v975, %v975
  %v1232 = vmul.f32 %v976, %v976
  %v1233 = vmul.f32 %v977, %v977
  %v1234 = vmul.f32 %v978, %v978
  %v1235 = vmul.f32 %v979, %v979
  %v1236 = vmul.f32 %v980, %v980
  %v1237 = vmul.f32 %v981, %v981
  %v1238 = vmul.f32 %v982, %v982
  %v1239 = vmul.f32 %v983, %v983
  %v1240 = vmul.f32 %v984, %v984
  %v1241 = vmul.f32 %v985, %v985
  %v1242 = vmul.f32 %v986, %v986
  %v1243 = vmul.f32 %v987, %v987
  %v1244 = vmul.f32 %v988, %v988
  %v1245 = vmul.f32 %v989, %v989
  %v1246 = vmul.f32 %v990, %v990
  %v1247 = vmul.f32 %v991, %v991
  %v1248 = vmul.f32 %v992, %v992
  %v1249 = vmul.f32 %v993, %v993
  %v1250 = vmul.f32 %v994, %v994
  %v1251 = vmul.f32 %v995, %v995
  %v1252 = vmul.f32 %v996, %v996
  %v1253 = vmul.f32 %v997, %v997
  %v1254 = vmul.f32 %v998, %v998
  %v1255 = vmul.f32 %v999, %v999
  %v1256 = vmul.f32 %v1000, %v1000
  %v1257 = vmul.f32 %v1001, %v1001
  %v1258 = vmul.f32 %v1002, %v1002
  %v1259 = vmul.f32 %v1003, %v1003
  %v1260 = vmul.f32 %v1004, %v1004
  %v1261 = vmul.f32 %v1005, %v1005
  %v1262 = vmul.f32 %v1006, %v1006
  %v1263 = vmul.f32 %v1007, %v1007
  %v1264 = vmul.f32 %v1008, %v1008
  %v1265 = vmul.f32 %v1009, %v1009
  %v1266 = vmul.f32 %v1010, %v1010
  %v1267 = vmul.f32 %v1011, %v1011
  %v1268 = vmul.f32 %v1012, %v1012
  %v1269 = vmul.f32 %v1013, %v1013
  %v1270 = vmul.f32 %v1014, %v1014
  %v1271 = vmul.f32 %v1015, %v1015
  %v1272 = vmul.f32 %v1016, %v1016
  %v1273 = vmul.f32 %v1017, %v1017
  %v1274 = vmul.f32 %v1018, %v1018
  %v1275 = vmul.f32 %v1019, %v1019
  %v1276 = vmul.f32 %v1020, %v1020
  %v1277 = vmul.f32 %v1021, %v1021
  %v1278 = vmul.f32 %v1022, %v1022
  %v1279 = vmul.f32 %v1023, %v1023
  %v1280 = vmul.f32 %v1024, %v1024
  %v1281 = vmul.f32 %v1025, %v1025
  %v1282 = vmul.f32 %v1026, %v1026
  %v1283 = vmul.f32 %v1027, %v1027
  %v1284 = vmul.f32 %v1028, %v1028
  %v1285 = vmul.f32 %v1029, %v1029
  %v1286 = vmul.f32 %v1030, %v1030
  %v1287 = vmul.f32 %v1031, %v1031
  %v1288 = vmul.f32 %v1032, %v1032
  %v1289 = vmul.f32 %v1033, %v1033
  %v1290 = vmul.f32 %v1034, %v1034
  %v1291 = vmul.f32 %v1035, %v1035
  %v1292 = vmul.f32 %v1036, %v1036
  %v1293 = vmul.f32 %v1037, %v1037
  %v1294 = vmul.f32 %v1038, %v1038
  %v1295 = vmul.f32 %v1039, %v1039
  %v1296 = vsel %vm264, %v1040, 0.0
  %v1297 = vsel %vm264, %v1041, 0.0
  %v1298 = vadd.f32 %v1296, %v1297
  %v1299 = vsel %vm264, %v1042, 0.0
  %v1300 = vadd.f32 %v1298, %v1299
  %v1301 = vsel %vm264, %v1043, 0.0
  %v1302 = vadd.f32 %v1300, %v1301
  %v1303 = vsel %vm264, %v1044, 0.0
  %v1304 = vadd.f32 %v1302, %v1303
  %v1305 = vsel %vm264, %v1045, 0.0
  %v1306 = vadd.f32 %v1304, %v1305
  %v1307 = vsel %vm264, %v1046, 0.0
  %v1308 = vadd.f32 %v1306, %v1307
  %v1309 = vsel %vm264, %v1047, 0.0
  %v1310 = vadd.f32 %v1308, %v1309
  %v1311 = vsel %vm264, %v1048, 0.0
  %v1312 = vadd.f32 %v1310, %v1311
  %v1313 = vsel %vm264, %v1049, 0.0
  %v1314 = vadd.f32 %v1312, %v1313
  %v1315 = vsel %vm264, %v1050, 0.0
  %v1316 = vadd.f32 %v1314, %v1315
  %v1317 = vsel %vm264, %v1051, 0.0
  %v1318 = vadd.f32 %v1316, %v1317
  %v1319 = vsel %vm264, %v1052, 0.0
  %v1320 = vadd.f32 %v1318, %v1319
  %v1321 = vsel %vm264, %v1053, 0.0
  %v1322 = vadd.f32 %v1320, %v1321
  %v1323 = vsel %vm264, %v1054, 0.0
  %v1324 = vadd.f32 %v1322, %v1323
  %v1325 = vsel %vm264, %v1055, 0.0
  %v1326 = vadd.f32 %v1324, %v1325
  %v1327 = vsel %vm264, %v1056, 0.0
  %v1328 = vadd.f32 %v1326, %v1327
  %v1329 = vsel %vm264, %v1057, 0.0
  %v1330 = vadd.f32 %v1328, %v1329
  %v1331 = vsel %vm264, %v1058, 0.0
  %v1332 = vadd.f32 %v1330, %v1331
  %v1333 = vsel %vm264, %v1059, 0.0
  %v1334 = vadd.f32 %v1332, %v1333
  %v1335 = vsel %vm264, %v1060, 0.0
  %v1336 = vadd.f32 %v1334, %v1335
  %v1337 = vsel %vm264, %v1061, 0.0
  %v1338 = vadd.f32 %v1336, %v1337
  %v1339 = vsel %vm264, %v1062, 0.0
  %v1340 = vadd.f32 %v1338, %v1339
  %v1341 = vsel %vm264, %v1063, 0.0
  %v1342 = vadd.f32 %v1340, %v1341
  %v1343 = vsel %vm264, %v1064, 0.0
  %v1344 = vadd.f32 %v1342, %v1343
  %v1345 = vsel %vm264, %v1065, 0.0
  %v1346 = vadd.f32 %v1344, %v1345
  %v1347 = vsel %vm264, %v1066, 0.0
  %v1348 = vadd.f32 %v1346, %v1347
  %v1349 = vsel %vm264, %v1067, 0.0
  %v1350 = vadd.f32 %v1348, %v1349
  %v1351 = vsel %vm264, %v1068, 0.0
  %v1352 = vadd.f32 %v1350, %v1351
  %v1353 = vsel %vm264, %v1069, 0.0
  %v1354 = vadd.f32 %v1352, %v1353
  %v1355 = vsel %vm264, %v1070, 0.0
  %v1356 = vadd.f32 %v1354, %v1355
  %v1357 = vsel %vm264, %v1071, 0.0
  %v1358 = vadd.f32 %v1356, %v1357
  %v1359 = vsel %vm264, %v1072, 0.0
  %v1360 = vadd.f32 %v1358, %v1359
  %v1361 = vsel %vm264, %v1073, 0.0
  %v1362 = vadd.f32 %v1360, %v1361
  %v1363 = vsel %vm264, %v1074, 0.0
  %v1364 = vadd.f32 %v1362, %v1363
  %v1365 = vsel %vm264, %v1075, 0.0
  %v1366 = vadd.f32 %v1364, %v1365
  %v1367 = vsel %vm264, %v1076, 0.0
  %v1368 = vadd.f32 %v1366, %v1367
  %v1369 = vsel %vm264, %v1077, 0.0
  %v1370 = vadd.f32 %v1368, %v1369
  %v1371 = vsel %vm264, %v1078, 0.0
  %v1372 = vadd.f32 %v1370, %v1371
  %v1373 = vsel %vm264, %v1079, 0.0
  %v1374 = vadd.f32 %v1372, %v1373
  %v1375 = vsel %vm264, %v1080, 0.0
  %v1376 = vadd.f32 %v1374, %v1375
  %v1377 = vsel %vm264, %v1081, 0.0
  %v1378 = vadd.f32 %v1376, %v1377
  %v1379 = vsel %vm264, %v1082, 0.0
  %v1380 = vadd.f32 %v1378, %v1379
  %v1381 = vsel %vm264, %v1083, 0.0
  %v1382 = vadd.f32 %v1380, %v1381
  %v1383 = vsel %vm264, %v1084, 0.0
  %v1384 = vadd.f32 %v1382, %v1383
  %v1385 = vsel %vm264, %v1085, 0.0
  %v1386 = vadd.f32 %v1384, %v1385
  %v1387 = vsel %vm264, %v1086, 0.0
  %v1388 = vadd.f32 %v1386, %v1387
  %v1389 = vsel %vm264, %v1087, 0.0
  %v1390 = vadd.f32 %v1388, %v1389
  %v1391 = vsel %vm264, %v1088, 0.0
  %v1392 = vadd.f32 %v1390, %v1391
  %v1393 = vsel %vm264, %v1089, 0.0
  %v1394 = vadd.f32 %v1392, %v1393
  %v1395 = vsel %vm264, %v1090, 0.0
  %v1396 = vadd.f32 %v1394, %v1395
  %v1397 = vsel %vm264, %v1091, 0.0
  %v1398 = vadd.f32 %v1396, %v1397
  %v1399 = vsel %vm264, %v1092, 0.0
  %v1400 = vadd.f32 %v1398, %v1399
  %v1401 = vsel %vm264, %v1093, 0.0
  %v1402 = vadd.f32 %v1400, %v1401
  %v1403 = vsel %vm264, %v1094, 0.0
  %v1404 = vadd.f32 %v1402, %v1403
  %v1405 = vsel %vm264, %v1095, 0.0
  %v1406 = vadd.f32 %v1404, %v1405
  %v1407 = vsel %vm264, %v1096, 0.0
  %v1408 = vadd.f32 %v1406, %v1407
  %v1409 = vsel %vm264, %v1097, 0.0
  %v1410 = vadd.f32 %v1408, %v1409
  %v1411 = vsel %vm264, %v1098, 0.0
  %v1412 = vadd.f32 %v1410, %v1411
  %v1413 = vsel %vm264, %v1099, 0.0
  %v1414 = vadd.f32 %v1412, %v1413
  %v1415 = vsel %vm264, %v1100, 0.0
  %v1416 = vadd.f32 %v1414, %v1415
  %v1417 = vsel %vm264, %v1101, 0.0
  %v1418 = vadd.f32 %v1416, %v1417
  %v1419 = vsel %vm264, %v1102, 0.0
  %v1420 = vadd.f32 %v1418, %v1419
  %v1421 = vsel %vm264, %v1103, 0.0
  %v1422 = vadd.f32 %v1420, %v1421
  %v1423 = vsel %vm264, %v1104, 0.0
  %v1424 = vadd.f32 %v1422, %v1423
  %v1425 = vsel %vm264, %v1105, 0.0
  %v1426 = vadd.f32 %v1424, %v1425
  %v1427 = vsel %vm264, %v1106, 0.0
  %v1428 = vadd.f32 %v1426, %v1427
  %v1429 = vsel %vm264, %v1107, 0.0
  %v1430 = vadd.f32 %v1428, %v1429
  %v1431 = vsel %vm264, %v1108, 0.0
  %v1432 = vadd.f32 %v1430, %v1431
  %v1433 = vsel %vm264, %v1109, 0.0
  %v1434 = vadd.f32 %v1432, %v1433
  %v1435 = vsel %vm264, %v1110, 0.0
  %v1436 = vadd.f32 %v1434, %v1435
  %v1437 = vsel %vm264, %v1111, 0.0
  %v1438 = vadd.f32 %v1436, %v1437
  %v1439 = vsel %vm264, %v1112, 0.0
  %v1440 = vadd.f32 %v1438, %v1439
  %v1441 = vsel %vm264, %v1113, 0.0
  %v1442 = vadd.f32 %v1440, %v1441
  %v1443 = vsel %vm264, %v1114, 0.0
  %v1444 = vadd.f32 %v1442, %v1443
  %v1445 = vsel %vm264, %v1115, 0.0
  %v1446 = vadd.f32 %v1444, %v1445
  %v1447 = vsel %vm264, %v1116, 0.0
  %v1448 = vadd.f32 %v1446, %v1447
  %v1449 = vsel %vm264, %v1117, 0.0
  %v1450 = vadd.f32 %v1448, %v1449
  %v1451 = vsel %vm264, %v1118, 0.0
  %v1452 = vadd.f32 %v1450, %v1451
  %v1453 = vsel %vm264, %v1119, 0.0
  %v1454 = vadd.f32 %v1452, %v1453
  %v1455 = vsel %vm264, %v1120, 0.0
  %v1456 = vadd.f32 %v1454, %v1455
  %v1457 = vsel %vm264, %v1121, 0.0
  %v1458 = vadd.f32 %v1456, %v1457
  %v1459 = vsel %vm264, %v1122, 0.0
  %v1460 = vadd.f32 %v1458, %v1459
  %v1461 = vsel %vm264, %v1123, 0.0
  %v1462 = vadd.f32 %v1460, %v1461
  %v1463 = vsel %vm264, %v1124, 0.0
  %v1464 = vadd.f32 %v1462, %v1463
  %v1465 = vsel %vm264, %v1125, 0.0
  %v1466 = vadd.f32 %v1464, %v1465
  %v1467 = vsel %vm264, %v1126, 0.0
  %v1468 = vadd.f32 %v1466, %v1467
  %v1469 = vsel %vm264, %v1127, 0.0
  %v1470 = vadd.f32 %v1468, %v1469
  %v1471 = vsel %vm264, %v1128, 0.0
  %v1472 = vadd.f32 %v1470, %v1471
  %v1473 = vsel %vm264, %v1129, 0.0
  %v1474 = vadd.f32 %v1472, %v1473
  %v1475 = vsel %vm264, %v1130, 0.0
  %v1476 = vadd.f32 %v1474, %v1475
  %v1477 = vsel %vm264, %v1131, 0.0
  %v1478 = vadd.f32 %v1476, %v1477
  %v1479 = vsel %vm264, %v1132, 0.0
  %v1480 = vadd.f32 %v1478, %v1479
  %v1481 = vsel %vm264, %v1133, 0.0
  %v1482 = vadd.f32 %v1480, %v1481
  %v1483 = vsel %vm264, %v1134, 0.0
  %v1484 = vadd.f32 %v1482, %v1483
  %v1485 = vsel %vm264, %v1135, 0.0
  %v1486 = vadd.f32 %v1484, %v1485
  %v1487 = vsel %vm264, %v1136, 0.0
  %v1488 = vadd.f32 %v1486, %v1487
  %v1489 = vsel %vm264, %v1137, 0.0
  %v1490 = vadd.f32 %v1488, %v1489
  %v1491 = vsel %vm264, %v1138, 0.0
  %v1492 = vadd.f32 %v1490, %v1491
  %v1493 = vsel %vm264, %v1139, 0.0
  %v1494 = vadd.f32 %v1492, %v1493
  %v1495 = vsel %vm264, %v1140, 0.0
  %v1496 = vadd.f32 %v1494, %v1495
  %v1497 = vsel %vm264, %v1141, 0.0
  %v1498 = vadd.f32 %v1496, %v1497
  %v1499 = vsel %vm264, %v1142, 0.0
  %v1500 = vadd.f32 %v1498, %v1499
  %v1501 = vsel %vm264, %v1143, 0.0
  %v1502 = vadd.f32 %v1500, %v1501
  %v1503 = vsel %vm264, %v1144, 0.0
  %v1504 = vadd.f32 %v1502, %v1503
  %v1505 = vsel %vm264, %v1145, 0.0
  %v1506 = vadd.f32 %v1504, %v1505
  %v1507 = vsel %vm264, %v1146, 0.0
  %v1508 = vadd.f32 %v1506, %v1507
  %v1509 = vsel %vm264, %v1147, 0.0
  %v1510 = vadd.f32 %v1508, %v1509
  %v1511 = vsel %vm264, %v1148, 0.0
  %v1512 = vadd.f32 %v1510, %v1511
  %v1513 = vsel %vm264, %v1149, 0.0
  %v1514 = vadd.f32 %v1512, %v1513
  %v1515 = vsel %vm264, %v1150, 0.0
  %v1516 = vadd.f32 %v1514, %v1515
  %v1517 = vsel %vm264, %v1151, 0.0
  %v1518 = vadd.f32 %v1516, %v1517
  %v1519 = vsel %vm264, %v1152, 0.0
  %v1520 = vadd.f32 %v1518, %v1519
  %v1521 = vsel %vm264, %v1153, 0.0
  %v1522 = vadd.f32 %v1520, %v1521
  %v1523 = vsel %vm264, %v1154, 0.0
  %v1524 = vadd.f32 %v1522, %v1523
  %v1525 = vsel %vm264, %v1155, 0.0
  %v1526 = vadd.f32 %v1524, %v1525
  %v1527 = vsel %vm264, %v1156, 0.0
  %v1528 = vadd.f32 %v1526, %v1527
  %v1529 = vsel %vm264, %v1157, 0.0
  %v1530 = vadd.f32 %v1528, %v1529
  %v1531 = vsel %vm264, %v1158, 0.0
  %v1532 = vadd.f32 %v1530, %v1531
  %v1533 = vsel %vm264, %v1159, 0.0
  %v1534 = vadd.f32 %v1532, %v1533
  %v1535 = vsel %vm264, %v1160, 0.0
  %v1536 = vadd.f32 %v1534, %v1535
  %v1537 = vsel %vm264, %v1161, 0.0
  %v1538 = vadd.f32 %v1536, %v1537
  %v1539 = vsel %vm264, %v1162, 0.0
  %v1540 = vadd.f32 %v1538, %v1539
  %v1541 = vsel %vm264, %v1163, 0.0
  %v1542 = vadd.f32 %v1540, %v1541
  %v1543 = vsel %vm264, %v1164, 0.0
  %v1544 = vadd.f32 %v1542, %v1543
  %v1545 = vsel %vm264, %v1165, 0.0
  %v1546 = vadd.f32 %v1544, %v1545
  %v1547 = vsel %vm264, %v1166, 0.0
  %v1548 = vadd.f32 %v1546, %v1547
  %v1549 = vsel %vm264, %v1167, 0.0
  %v1550 = vadd.f32 %v1548, %v1549
  %v1551 = vsel %vm264, %v1168, 0.0
  %v1552 = vadd.f32 %v1550, %v1551
  %v1553 = vsel %vm264, %v1169, 0.0
  %v1554 = vadd.f32 %v1552, %v1553
  %v1555 = vsel %vm264, %v1170, 0.0
  %v1556 = vadd.f32 %v1554, %v1555
  %v1557 = vsel %vm264, %v1171, 0.0
  %v1558 = vadd.f32 %v1556, %v1557
  %v1559 = vsel %vm264, %v1172, 0.0
  %v1560 = vadd.f32 %v1558, %v1559
  %v1561 = vsel %vm264, %v1173, 0.0
  %v1562 = vadd.f32 %v1560, %v1561
  %v1563 = vsel %vm264, %v1174, 0.0
  %v1564 = vadd.f32 %v1562, %v1563
  %v1565 = vsel %vm264, %v1175, 0.0
  %v1566 = vadd.f32 %v1564, %v1565
  %v1567 = vsel %vm264, %v1176, 0.0
  %v1568 = vadd.f32 %v1566, %v1567
  %v1569 = vsel %vm264, %v1177, 0.0
  %v1570 = vadd.f32 %v1568, %v1569
  %v1571 = vsel %vm264, %v1178, 0.0
  %v1572 = vadd.f32 %v1570, %v1571
  %v1573 = vsel %vm264, %v1179, 0.0
  %v1574 = vadd.f32 %v1572, %v1573
  %v1575 = vsel %vm264, %v1180, 0.0
  %v1576 = vadd.f32 %v1574, %v1575
  %v1577 = vsel %vm264, %v1181, 0.0
  %v1578 = vadd.f32 %v1576, %v1577
  %v1579 = vsel %vm264, %v1182, 0.0
  %v1580 = vadd.f32 %v1578, %v1579
  %v1581 = vsel %vm264, %v1183, 0.0
  %v1582 = vadd.f32 %v1580, %v1581
  %v1583 = vsel %vm264, %v1184, 0.0
  %v1584 = vadd.f32 %v1582, %v1583
  %v1585 = vsel %vm264, %v1185, 0.0
  %v1586 = vadd.f32 %v1584, %v1585
  %v1587 = vsel %vm264, %v1186, 0.0
  %v1588 = vadd.f32 %v1586, %v1587
  %v1589 = vsel %vm264, %v1187, 0.0
  %v1590 = vadd.f32 %v1588, %v1589
  %v1591 = vsel %vm264, %v1188, 0.0
  %v1592 = vadd.f32 %v1590, %v1591
  %v1593 = vsel %vm264, %v1189, 0.0
  %v1594 = vadd.f32 %v1592, %v1593
  %v1595 = vsel %vm264, %v1190, 0.0
  %v1596 = vadd.f32 %v1594, %v1595
  %v1597 = vsel %vm264, %v1191, 0.0
  %v1598 = vadd.f32 %v1596, %v1597
  %v1599 = vsel %vm264, %v1192, 0.0
  %v1600 = vadd.f32 %v1598, %v1599
  %v1601 = vsel %vm264, %v1193, 0.0
  %v1602 = vadd.f32 %v1600, %v1601
  %v1603 = vsel %vm264, %v1194, 0.0
  %v1604 = vadd.f32 %v1602, %v1603
  %v1605 = vsel %vm264, %v1195, 0.0
  %v1606 = vadd.f32 %v1604, %v1605
  %v1607 = vsel %vm264, %v1196, 0.0
  %v1608 = vadd.f32 %v1606, %v1607
  %v1609 = vsel %vm264, %v1197, 0.0
  %v1610 = vadd.f32 %v1608, %v1609
  %v1611 = vsel %vm264, %v1198, 0.0
  %v1612 = vadd.f32 %v1610, %v1611
  %v1613 = vsel %vm264, %v1199, 0.0
  %v1614 = vadd.f32 %v1612, %v1613
  %v1615 = vsel %vm264, %v1200, 0.0
  %v1616 = vadd.f32 %v1614, %v1615
  %v1617 = vsel %vm264, %v1201, 0.0
  %v1618 = vadd.f32 %v1616, %v1617
  %v1619 = vsel %vm264, %v1202, 0.0
  %v1620 = vadd.f32 %v1618, %v1619
  %v1621 = vsel %vm264, %v1203, 0.0
  %v1622 = vadd.f32 %v1620, %v1621
  %v1623 = vsel %vm264, %v1204, 0.0
  %v1624 = vadd.f32 %v1622, %v1623
  %v1625 = vsel %vm264, %v1205, 0.0
  %v1626 = vadd.f32 %v1624, %v1625
  %v1627 = vsel %vm264, %v1206, 0.0
  %v1628 = vadd.f32 %v1626, %v1627
  %v1629 = vsel %vm264, %v1207, 0.0
  %v1630 = vadd.f32 %v1628, %v1629
  %v1631 = vsel %vm264, %v1208, 0.0
  %v1632 = vadd.f32 %v1630, %v1631
  %v1633 = vsel %vm264, %v1209, 0.0
  %v1634 = vadd.f32 %v1632, %v1633
  %v1635 = vsel %vm264, %v1210, 0.0
  %v1636 = vadd.f32 %v1634, %v1635
  %v1637 = vsel %vm264, %v1211, 0.0
  %v1638 = vadd.f32 %v1636, %v1637
  %v1639 = vsel %vm264, %v1212, 0.0
  %v1640 = vadd.f32 %v1638, %v1639
  %v1641 = vsel %vm264, %v1213, 0.0
  %v1642 = vadd.f32 %v1640, %v1641
  %v1643 = vsel %vm264, %v1214, 0.0
  %v1644 = vadd.f32 %v1642, %v1643
  %v1645 = vsel %vm264, %v1215, 0.0
  %v1646 = vadd.f32 %v1644, %v1645
  %v1647 = vsel %vm264, %v1216, 0.0
  %v1648 = vadd.f32 %v1646, %v1647
  %v1649 = vsel %vm264, %v1217, 0.0
  %v1650 = vadd.f32 %v1648, %v1649
  %v1651 = vsel %vm264, %v1218, 0.0
  %v1652 = vadd.f32 %v1650, %v1651
  %v1653 = vsel %vm264, %v1219, 0.0
  %v1654 = vadd.f32 %v1652, %v1653
  %v1655 = vsel %vm264, %v1220, 0.0
  %v1656 = vadd.f32 %v1654, %v1655
  %v1657 = vsel %vm264, %v1221, 0.0
  %v1658 = vadd.f32 %v1656, %v1657
  %v1659 = vsel %vm264, %v1222, 0.0
  %v1660 = vadd.f32 %v1658, %v1659
  %v1661 = vsel %vm264, %v1223, 0.0
  %v1662 = vadd.f32 %v1660, %v1661
  %v1663 = vsel %vm264, %v1224, 0.0
  %v1664 = vadd.f32 %v1662, %v1663
  %v1665 = vsel %vm264, %v1225, 0.0
  %v1666 = vadd.f32 %v1664, %v1665
  %v1667 = vsel %vm264, %v1226, 0.0
  %v1668 = vadd.f32 %v1666, %v1667
  %v1669 = vsel %vm264, %v1227, 0.0
  %v1670 = vadd.f32 %v1668, %v1669
  %v1671 = vsel %vm264, %v1228, 0.0
  %v1672 = vadd.f32 %v1670, %v1671
  %v1673 = vsel %vm264, %v1229, 0.0
  %v1674 = vadd.f32 %v1672, %v1673
  %v1675 = vsel %vm264, %v1230, 0.0
  %v1676 = vadd.f32 %v1674, %v1675
  %v1677 = vsel %vm264, %v1231, 0.0
  %v1678 = vadd.f32 %v1676, %v1677
  %v1679 = vsel %vm264, %v1232, 0.0
  %v1680 = vadd.f32 %v1678, %v1679
  %v1681 = vsel %vm264, %v1233, 0.0
  %v1682 = vadd.f32 %v1680, %v1681
  %v1683 = vsel %vm264, %v1234, 0.0
  %v1684 = vadd.f32 %v1682, %v1683
  %v1685 = vsel %vm264, %v1235, 0.0
  %v1686 = vadd.f32 %v1684, %v1685
  %v1687 = vsel %vm264, %v1236, 0.0
  %v1688 = vadd.f32 %v1686, %v1687
  %v1689 = vsel %vm264, %v1237, 0.0
  %v1690 = vadd.f32 %v1688, %v1689
  %v1691 = vsel %vm264, %v1238, 0.0
  %v1692 = vadd.f32 %v1690, %v1691
  %v1693 = vsel %vm264, %v1239, 0.0
  %v1694 = vadd.f32 %v1692, %v1693
  %v1695 = vsel %vm264, %v1240, 0.0
  %v1696 = vadd.f32 %v1694, %v1695
  %v1697 = vsel %vm264, %v1241, 0.0
  %v1698 = vadd.f32 %v1696, %v1697
  %v1699 = vsel %vm264, %v1242, 0.0
  %v1700 = vadd.f32 %v1698, %v1699
  %v1701 = vsel %vm264, %v1243, 0.0
  %v1702 = vadd.f32 %v1700, %v1701
  %v1703 = vsel %vm264, %v1244, 0.0
  %v1704 = vadd.f32 %v1702, %v1703
  %v1705 = vsel %vm264, %v1245, 0.0
  %v1706 = vadd.f32 %v1704, %v1705
  %v1707 = vsel %vm264, %v1246, 0.0
  %v1708 = vadd.f32 %v1706, %v1707
  %v1709 = vsel %vm264, %v1247, 0.0
  %v1710 = vadd.f32 %v1708, %v1709
  %v1711 = vsel %vm264, %v1248, 0.0
  %v1712 = vadd.f32 %v1710, %v1711
  %v1713 = vsel %vm264, %v1249, 0.0
  %v1714 = vadd.f32 %v1712, %v1713
  %v1715 = vsel %vm264, %v1250, 0.0
  %v1716 = vadd.f32 %v1714, %v1715
  %v1717 = vsel %vm264, %v1251, 0.0
  %v1718 = vadd.f32 %v1716, %v1717
  %v1719 = vsel %vm264, %v1252, 0.0
  %v1720 = vadd.f32 %v1718, %v1719
  %v1721 = vsel %vm264, %v1253, 0.0
  %v1722 = vadd.f32 %v1720, %v1721
  %v1723 = vsel %vm264, %v1254, 0.0
  %v1724 = vadd.f32 %v1722, %v1723
  %v1725 = vsel %vm264, %v1255, 0.0
  %v1726 = vadd.f32 %v1724, %v1725
  %v1727 = vsel %vm264, %v1256, 0.0
  %v1728 = vadd.f32 %v1726, %v1727
  %v1729 = vsel %vm264, %v1257, 0.0
  %v1730 = vadd.f32 %v1728, %v1729
  %v1731 = vsel %vm264, %v1258, 0.0
  %v1732 = vadd.f32 %v1730, %v1731
  %v1733 = vsel %vm264, %v1259, 0.0
  %v1734 = vadd.f32 %v1732, %v1733
  %v1735 = vsel %vm264, %v1260, 0.0
  %v1736 = vadd.f32 %v1734, %v1735
  %v1737 = vsel %vm264, %v1261, 0.0
  %v1738 = vadd.f32 %v1736, %v1737
  %v1739 = vsel %vm264, %v1262, 0.0
  %v1740 = vadd.f32 %v1738, %v1739
  %v1741 = vsel %vm264, %v1263, 0.0
  %v1742 = vadd.f32 %v1740, %v1741
  %v1743 = vsel %vm264, %v1264, 0.0
  %v1744 = vadd.f32 %v1742, %v1743
  %v1745 = vsel %vm264, %v1265, 0.0
  %v1746 = vadd.f32 %v1744, %v1745
  %v1747 = vsel %vm264, %v1266, 0.0
  %v1748 = vadd.f32 %v1746, %v1747
  %v1749 = vsel %vm264, %v1267, 0.0
  %v1750 = vadd.f32 %v1748, %v1749
  %v1751 = vsel %vm264, %v1268, 0.0
  %v1752 = vadd.f32 %v1750, %v1751
  %v1753 = vsel %vm264, %v1269, 0.0
  %v1754 = vadd.f32 %v1752, %v1753
  %v1755 = vsel %vm264, %v1270, 0.0
  %v1756 = vadd.f32 %v1754, %v1755
  %v1757 = vsel %vm264, %v1271, 0.0
  %v1758 = vadd.f32 %v1756, %v1757
  %v1759 = vsel %vm264, %v1272, 0.0
  %v1760 = vadd.f32 %v1758, %v1759
  %v1761 = vsel %vm264, %v1273, 0.0
  %v1762 = vadd.f32 %v1760, %v1761
  %v1763 = vsel %vm264, %v1274, 0.0
  %v1764 = vadd.f32 %v1762, %v1763
  %v1765 = vsel %vm264, %v1275, 0.0
  %v1766 = vadd.f32 %v1764, %v1765
  %v1767 = vsel %vm264, %v1276, 0.0
  %v1768 = vadd.f32 %v1766, %v1767
  %v1769 = vsel %vm264, %v1277, 0.0
  %v1770 = vadd.f32 %v1768, %v1769
  %v1771 = vsel %vm264, %v1278, 0.0
  %v1772 = vadd.f32 %v1770, %v1771
  %v1773 = vsel %vm264, %v1279, 0.0
  %v1774 = vadd.f32 %v1772, %v1773
  %v1775 = vsel %vm264, %v1280, 0.0
  %v1776 = vadd.f32 %v1774, %v1775
  %v1777 = vsel %vm264, %v1281, 0.0
  %v1778 = vadd.f32 %v1776, %v1777
  %v1779 = vsel %vm264, %v1282, 0.0
  %v1780 = vadd.f32 %v1778, %v1779
  %v1781 = vsel %vm264, %v1283, 0.0
  %v1782 = vadd.f32 %v1780, %v1781
  %v1783 = vsel %vm264, %v1284, 0.0
  %v1784 = vadd.f32 %v1782, %v1783
  %v1785 = vsel %vm264, %v1285, 0.0
  %v1786 = vadd.f32 %v1784, %v1785
  %v1787 = vsel %vm264, %v1286, 0.0
  %v1788 = vadd.f32 %v1786, %v1787
  %v1789 = vsel %vm264, %v1287, 0.0
  %v1790 = vadd.f32 %v1788, %v1789
  %v1791 = vsel %vm264, %v1288, 0.0
  %v1792 = vadd.f32 %v1790, %v1791
  %v1793 = vsel %vm264, %v1289, 0.0
  %v1794 = vadd.f32 %v1792, %v1793
  %v1795 = vsel %vm264, %v1290, 0.0
  %v1796 = vadd.f32 %v1794, %v1795
  %v1797 = vsel %vm264, %v1291, 0.0
  %v1798 = vadd.f32 %v1796, %v1797
  %v1799 = vsel %vm264, %v1292, 0.0
  %v1800 = vadd.f32 %v1798, %v1799
  %v1801 = vsel %vm264, %v1293, 0.0
  %v1802 = vadd.f32 %v1800, %v1801
  %v1803 = vsel %vm264, %v1294, 0.0
  %v1804 = vadd.f32 %v1802, %v1803
  %v1805 = vsel %vm264, %v1295, 0.0
  %v1806 = vadd.f32 %v1804, %v1805
  %v1807 = vrot.slane %v1806, 4
  %v1808 = vadd.f32 %v1806, %v1807
  %v1809 = vrot.slane %v1808, 2
  %v1810 = vadd.f32 %v1808, %v1809
  %v1811 = vrot.slane %v1810, 1
  %v1812 = vadd.f32 %v1810, %v1811
  %v1813 = vmul.f32 %v1812, %v782
  %v1814 = vadd.f32 %v1813, 1e-05
  %v1815 = vrsqrt.pop %v1814
  %v1816 = vmul.f32 %v784, %v1815
  %v1817 = vmul.f32 %v785, %v1815
  %v1818 = vmul.f32 %v786, %v1815
  %v1819 = vmul.f32 %v787, %v1815
  %v1820 = vmul.f32 %v788, %v1815
  %v1821 = vmul.f32 %v789, %v1815
  %v1822 = vmul.f32 %v790, %v1815
  %v1823 = vmul.f32 %v791, %v1815
  %v1824 = vmul.f32 %v792, %v1815
  %v1825 = vmul.f32 %v793, %v1815
  %v1826 = vmul.f32 %v794, %v1815
  %v1827 = vmul.f32 %v795, %v1815
  %v1828 = vmul.f32 %v796, %v1815
  %v1829 = vmul.f32 %v797, %v1815
  %v1830 = vmul.f32 %v798, %v1815
  %v1831 = vmul.f32 %v799, %v1815
  %v1832 = vmul.f32 %v800, %v1815
  %v1833 = vmul.f32 %v801, %v1815
  %v1834 = vmul.f32 %v802, %v1815
  %v1835 = vmul.f32 %v803, %v1815
  %v1836 = vmul.f32 %v804, %v1815
  %v1837 = vmul.f32 %v805, %v1815
  %v1838 = vmul.f32 %v806, %v1815
  %v1839 = vmul.f32 %v807, %v1815
  %v1840 = vmul.f32 %v808, %v1815
  %v1841 = vmul.f32 %v809, %v1815
  %v1842 = vmul.f32 %v810, %v1815
  %v1843 = vmul.f32 %v811, %v1815
  %v1844 = vmul.f32 %v812, %v1815
  %v1845 = vmul.f32 %v813, %v1815
  %v1846 = vmul.f32 %v814, %v1815
  %v1847 = vmul.f32 %v815, %v1815
  %v1848 = vmul.f32 %v816, %v1815
  %v1849 = vmul.f32 %v817, %v1815
  %v1850 = vmul.f32 %v818, %v1815
  %v1851 = vmul.f32 %v819, %v1815
  %v1852 = vmul.f32 %v820, %v1815
  %v1853 = vmul.f32 %v821, %v1815
  %v1854 = vmul.f32 %v822, %v1815
  %v1855 = vmul.f32 %v823, %v1815
  %v1856 = vmul.f32 %v824, %v1815
  %v1857 = vmul.f32 %v825, %v1815
  %v1858 = vmul.f32 %v826, %v1815
  %v1859 = vmul.f32 %v827, %v1815
  %v1860 = vmul.f32 %v828, %v1815
  %v1861 = vmul.f32 %v829, %v1815
  %v1862 = vmul.f32 %v830, %v1815
  %v1863 = vmul.f32 %v831, %v1815
  %v1864 = vmul.f32 %v832, %v1815
  %v1865 = vmul.f32 %v833, %v1815
  %v1866 = vmul.f32 %v834, %v1815
  %v1867 = vmul.f32 %v835, %v1815
  %v1868 = vmul.f32 %v836, %v1815
  %v1869 = vmul.f32 %v837, %v1815
  %v1870 = vmul.f32 %v838, %v1815
  %v1871 = vmul.f32 %v839, %v1815
  %v1872 = vmul.f32 %v840, %v1815
  %v1873 = vmul.f32 %v841, %v1815
  %v1874 = vmul.f32 %v842, %v1815
  %v1875 = vmul.f32 %v843, %v1815
  %v1876 = vmul.f32 %v844, %v1815
  %v1877 = vmul.f32 %v845, %v1815
  %v1878 = vmul.f32 %v846, %v1815
  %v1879 = vmul.f32 %v847, %v1815
  %v1880 = vmul.f32 %v848, %v1815
  %v1881 = vmul.f32 %v849, %v1815
  %v1882 = vmul.f32 %v850, %v1815
  %v1883 = vmul.f32 %v851, %v1815
  %v1884 = vmul.f32 %v852, %v1815
  %v1885 = vmul.f32 %v853, %v1815
  %v1886 = vmul.f32 %v854, %v1815
  %v1887 = vmul.f32 %v855, %v1815
  %v1888 = vmul.f32 %v856, %v1815
  %v1889 = vmul.f32 %v857, %v1815
  %v1890 = vmul.f32 %v858, %v1815
  %v1891 = vmul.f32 %v859, %v1815
  %v1892 = vmul.f32 %v860, %v1815
  %v1893 = vmul.f32 %v861, %v1815
  %v1894 = vmul.f32 %v862, %v1815
  %v1895 = vmul.f32 %v863, %v1815
  %v1896 = vmul.f32 %v864, %v1815
  %v1897 = vmul.f32 %v865, %v1815
  %v1898 = vmul.f32 %v866, %v1815
  %v1899 = vmul.f32 %v867, %v1815
  %v1900 = vmul.f32 %v868, %v1815
  %v1901 = vmul.f32 %v869, %v1815
  %v1902 = vmul.f32 %v870, %v1815
  %v1903 = vmul.f32 %v871, %v1815
  %v1904 = vmul.f32 %v872, %v1815
  %v1905 = vmul.f32 %v873, %v1815
  %v1906 = vmul.f32 %v874, %v1815
  %v1907 = vmul.f32 %v875, %v1815
  %v1908 = vmul.f32 %v876, %v1815
  %v1909 = vmul.f32 %v877, %v1815
  %v1910 = vmul.f32 %v878, %v1815
  %v1911 = vmul.f32 %v879, %v1815
  %v1912 = vmul.f32 %v880, %v1815
  %v1913 = vmul.f32 %v881, %v1815
  %v1914 = vmul.f32 %v882, %v1815
  %v1915 = vmul.f32 %v883, %v1815
  %v1916 = vmul.f32 %v884, %v1815
  %v1917 = vmul.f32 %v885, %v1815
  %v1918 = vmul.f32 %v886, %v1815
  %v1919 = vmul.f32 %v887, %v1815
  %v1920 = vmul.f32 %v888, %v1815
  %v1921 = vmul.f32 %v889, %v1815
  %v1922 = vmul.f32 %v890, %v1815
  %v1923 = vmul.f32 %v891, %v1815
  %v1924 = vmul.f32 %v892, %v1815
  %v1925 = vmul.f32 %v893, %v1815
  %v1926 = vmul.f32 %v894, %v1815
  %v1927 = vmul.f32 %v895, %v1815
  %v1928 = vmul.f32 %v896, %v1815
  %v1929 = vmul.f32 %v897, %v1815
  %v1930 = vmul.f32 %v898, %v1815
  %v1931 = vmul.f32 %v899, %v1815
  %v1932 = vmul.f32 %v900, %v1815
  %v1933 = vmul.f32 %v901, %v1815
  %v1934 = vmul.f32 %v902, %v1815
  %v1935 = vmul.f32 %v903, %v1815
  %v1936 = vmul.f32 %v904, %v1815
  %v1937 = vmul.f32 %v905, %v1815
  %v1938 = vmul.f32 %v906, %v1815
  %v1939 = vmul.f32 %v907, %v1815
  %v1940 = vmul.f32 %v908, %v1815
  %v1941 = vmul.f32 %v909, %v1815
  %v1942 = vmul.f32 %v910, %v1815
  %v1943 = vmul.f32 %v911, %v1815
  %v1944 = vmul.f32 %v912, %v1815
  %v1945 = vmul.f32 %v913, %v1815
  %v1946 = vmul.f32 %v914, %v1815
  %v1947 = vmul.f32 %v915, %v1815
  %v1948 = vmul.f32 %v916, %v1815
  %v1949 = vmul.f32 %v917, %v1815
  %v1950 = vmul.f32 %v918, %v1815
  %v1951 = vmul.f32 %v919, %v1815
  %v1952 = vmul.f32 %v920, %v1815
  %v1953 = vmul.f32 %v921, %v1815
  %v1954 = vmul.f32 %v922, %v1815
  %v1955 = vmul.f32 %v923, %v1815
  %v1956 = vmul.f32 %v924, %v1815
  %v1957 = vmul.f32 %v925, %v1815
  %v1958 = vmul.f32 %v926, %v1815
  %v1959 = vmul.f32 %v927, %v1815
  %v1960 = vmul.f32 %v928, %v1815
  %v1961 = vmul.f32 %v929, %v1815
  %v1962 = vmul.f32 %v930, %v1815
  %v1963 = vmul.f32 %v931, %v1815
  %v1964 = vmul.f32 %v932, %v1815
  %v1965 = vmul.f32 %v933, %v1815
  %v1966 = vmul.f32 %v934, %v1815
  %v1967 = vmul.f32 %v935, %v1815
  %v1968 = vmul.f32 %v936, %v1815
  %v1969 = vmul.f32 %v937, %v1815
  %v1970 = vmul.f32 %v938, %v1815
  %v1971 = vmul.f32 %v939, %v1815
  %v1972 = vmul.f32 %v940, %v1815
  %v1973 = vmul.f32 %v941, %v1815
  %v1974 = vmul.f32 %v942, %v1815
  %v1975 = vmul.f32 %v943, %v1815
  %v1976 = vmul.f32 %v944, %v1815
  %v1977 = vmul.f32 %v945, %v1815
  %v1978 = vmul.f32 %v946, %v1815
  %v1979 = vmul.f32 %v947, %v1815
  %v1980 = vmul.f32 %v948, %v1815
  %v1981 = vmul.f32 %v949, %v1815
  %v1982 = vmul.f32 %v950, %v1815
  %v1983 = vmul.f32 %v951, %v1815
  %v1984 = vmul.f32 %v952, %v1815
  %v1985 = vmul.f32 %v953, %v1815
  %v1986 = vmul.f32 %v954, %v1815
  %v1987 = vmul.f32 %v955, %v1815
  %v1988 = vmul.f32 %v956, %v1815
  %v1989 = vmul.f32 %v957, %v1815
  %v1990 = vmul.f32 %v958, %v1815
  %v1991 = vmul.f32 %v959, %v1815
  %v1992 = vmul.f32 %v960, %v1815
  %v1993 = vmul.f32 %v961, %v1815
  %v1994 = vmul.f32 %v962, %v1815
  %v1995 = vmul.f32 %v963, %v1815
  %v1996 = vmul.f32 %v964, %v1815
  %v1997 = vmul.f32 %v965, %v1815
  %v1998 = vmul.f32 %v966, %v1815
  %v1999 = vmul.f32 %v967, %v1815
  %v2000 = vmul.f32 %v968, %v1815
  %v2001 = vmul.f32 %v969, %v1815
  %v2002 = vmul.f32 %v970, %v1815
  %v2003 = vmul.f32 %v971, %v1815
  %v2004 = vmul.f32 %v972, %v1815
  %v2005 = vmul.f32 %v973, %v1815
  %v2006 = vmul.f32 %v974, %v1815
  %v2007 = vmul.f32 %v975, %v1815
  %v2008 = vmul.f32 %v976, %v1815
  %v2009 = vmul.f32 %v977, %v1815
  %v2010 = vmul.f32 %v978, %v1815
  %v2011 = vmul.f32 %v979, %v1815
  %v2012 = vmul.f32 %v980, %v1815
  %v2013 = vmul.f32 %v981, %v1815
  %v2014 = vmul.f32 %v982, %v1815
  %v2015 = vmul.f32 %v983, %v1815
  %v2016 = vmul.f32 %v984, %v1815
  %v2017 = vmul.f32 %v985, %v1815
  %v2018 = vmul.f32 %v986, %v1815
  %v2019 = vmul.f32 %v987, %v1815
  %v2020 = vmul.f32 %v988, %v1815
  %v2021 = vmul.f32 %v989, %v1815
  %v2022 = vmul.f32 %v990, %v1815
  %v2023 = vmul.f32 %v991, %v1815
  %v2024 = vmul.f32 %v992, %v1815
  %v2025 = vmul.f32 %v993, %v1815
  %v2026 = vmul.f32 %v994, %v1815
  %v2027 = vmul.f32 %v995, %v1815
  %v2028 = vmul.f32 %v996, %v1815
  %v2029 = vmul.f32 %v997, %v1815
  %v2030 = vmul.f32 %v998, %v1815
  %v2031 = vmul.f32 %v999, %v1815
  %v2032 = vmul.f32 %v1000, %v1815
  %v2033 = vmul.f32 %v1001, %v1815
  %v2034 = vmul.f32 %v1002, %v1815
  %v2035 = vmul.f32 %v1003, %v1815
  %v2036 = vmul.f32 %v1004, %v1815
  %v2037 = vmul.f32 %v1005, %v1815
  %v2038 = vmul.f32 %v1006, %v1815
  %v2039 = vmul.f32 %v1007, %v1815
  %v2040 = vmul.f32 %v1008, %v1815
  %v2041 = vmul.f32 %v1009, %v1815
  %v2042 = vmul.f32 %v1010, %v1815
  %v2043 = vmul.f32 %v1011, %v1815
  %v2044 = vmul.f32 %v1012, %v1815
  %v2045 = vmul.f32 %v1013, %v1815
  %v2046 = vmul.f32 %v1014, %v1815
  %v2047 = vmul.f32 %v1015, %v1815
  %v2048 = vmul.f32 %v1016, %v1815
  %v2049 = vmul.f32 %v1017, %v1815
  %v2050 = vmul.f32 %v1018, %v1815
  %v2051 = vmul.f32 %v1019, %v1815
  %v2052 = vmul.f32 %v1020, %v1815
  %v2053 = vmul.f32 %v1021, %v1815
  %v2054 = vmul.f32 %v1022, %v1815
  %v2055 = vmul.f32 %v1023, %v1815
  %v2056 = vmul.f32 %v1024, %v1815
  %v2057 = vmul.f32 %v1025, %v1815
  %v2058 = vmul.f32 %v1026, %v1815
  %v2059 = vmul.f32 %v1027, %v1815
  %v2060 = vmul.f32 %v1028, %v1815
  %v2061 = vmul.f32 %v1029, %v1815
  %v2062 = vmul.f32 %v1030, %v1815
  %v2063 = vmul.f32 %v1031, %v1815
  %v2064 = vmul.f32 %v1032, %v1815
  %v2065 = vmul.f32 %v1033, %v1815
  %v2066 = vmul.f32 %v1034, %v1815
  %v2067 = vmul.f32 %v1035, %v1815
  %v2068 = vmul.f32 %v1036, %v1815
  %v2069 = vmul.f32 %v1037, %v1815
  %v2070 = vmul.f32 %v1038, %v1815
  %v2071 = vmul.f32 %v1039, %v1815
  %2072 = vst.msk [vmem:[%s1] sm:$0xff] %vm264, %v1816
  %2073 = vst.msk [vmem:[%s1 + $0x8] sm:$0xff] %vm264, %v1817
  %2074 = vst.msk [vmem:[%s1 + $0x10] sm:$0xff] %vm264, %v1818
  %2075 = vst.msk [vmem:[%s1 + $0x18] sm:$0xff] %vm264, %v1819
  %2076 = vst.msk [vmem:[%s1 + $0x20] sm:$0xff] %vm264, %v1820
  %2077 = vst.msk [vmem:[%s1 + $0x28] sm:$0xff] %vm264, %v1821
  %2078 = vst.msk [vmem:[%s1 + $0x30] sm:$0xff] %vm264, %v1822
  %2079 = vst.msk [vmem:[%s1 + $0x38] sm:$0xff] %vm264, %v1823
  %2080 = vst.msk [vmem:[%s1 + $0x40] sm:$0xff] %vm264, %v1824
  %2081 = vst.msk [vmem:[%s1 + $0x48] sm:$0xff] %vm264, %v1825
  %2082 = vst.msk [vmem:[%s1 + $0x50] sm:$0xff] %vm264, %v1826
  %2083 = vst.msk [vmem:[%s1 + $0x58] sm:$0xff] %vm264, %v1827
  %2084 = vst.msk [vmem:[%s1 + $0x60] sm:$0xff] %vm264, %v1828
  %2085 = vst.msk [vmem:[%s1 + $0x68] sm:$0xff] %vm264, %v1829
  %2086 = vst.msk [vmem:[%s1 + $0x70] sm:$0xff] %vm264, %v1830
  %2087 = vst.msk [vmem:[%s1 + $0x78] sm:$0xff] %vm264, %v1831
  %2088 = vst.msk [vmem:[%s1 + $0x80] sm:$0xff] %vm264, %v1832
  %2089 = vst.msk [vmem:[%s1 + $0x88] sm:$0xff] %vm264, %v1833
  %2090 = vst.msk [vmem:[%s1 + $0x90] sm:$0xff] %vm264, %v1834
  %2091 = vst.msk [vmem:[%s1 + $0x98] sm:$0xff] %vm264, %v1835
  %2092 = vst.msk [vmem:[%s1 + $0xa0] sm:$0xff] %vm264, %v1836
  %2093 = vst.msk [vmem:[%s1 + $0xa8] sm:$0xff] %vm264, %v1837
  %2094 = vst.msk [vmem:[%s1 + $0xb0] sm:$0xff] %vm264, %v1838
  %2095 = vst.msk [vmem:[%s1 + $0xb8] sm:$0xff] %vm264, %v1839
  %2096 = vst.msk [vmem:[%s1 + $0xc0] sm:$0xff] %vm264, %v1840
  %2097 = vst.msk [vmem:[%s1 + $0xc8] sm:$0xff] %vm264, %v1841
  %2098 = vst.msk [vmem:[%s1 + $0xd0] sm:$0xff] %vm264, %v1842
  %2099 = vst.msk [vmem:[%s1 + $0xd8] sm:$0xff] %vm264, %v1843
  %2100 = vst.msk [vmem:[%s1 + $0xe0] sm:$0xff] %vm264, %v1844
  %2101 = vst.msk [vmem:[%s1 + $0xe8] sm:$0xff] %vm264, %v1845
  %2102 = vst.msk [vmem:[%s1 + $0xf0] sm:$0xff] %vm264, %v1846
  %2103 = vst.msk [vmem:[%s1 + $0xf8] sm:$0xff] %vm264, %v1847
  %2104 = vst.msk [vmem:[%s1 + $0x100] sm:$0xff] %vm264, %v1848
  %2105 = vst.msk [vmem:[%s1 + $0x108] sm:$0xff] %vm264, %v1849
  %2106 = vst.msk [vmem:[%s1 + $0x110] sm:$0xff] %vm264, %v1850
  %2107 = vst.msk [vmem:[%s1 + $0x118] sm:$0xff] %vm264, %v1851
  %2108 = vst.msk [vmem:[%s1 + $0x120] sm:$0xff] %vm264, %v1852
  %2109 = vst.msk [vmem:[%s1 + $0x128] sm:$0xff] %vm264, %v1853
  %2110 = vst.msk [vmem:[%s1 + $0x130] sm:$0xff] %vm264, %v1854
  %2111 = vst.msk [vmem:[%s1 + $0x138] sm:$0xff] %vm264, %v1855
  %2112 = vst.msk [vmem:[%s1 + $0x140] sm:$0xff] %vm264, %v1856
  %2113 = vst.msk [vmem:[%s1 + $0x148] sm:$0xff] %vm264, %v1857
  %2114 = vst.msk [vmem:[%s1 + $0x150] sm:$0xff] %vm264, %v1858
  %2115 = vst.msk [vmem:[%s1 + $0x158] sm:$0xff] %vm264, %v1859
  %2116 = vst.msk [vmem:[%s1 + $0x160] sm:$0xff] %vm264, %v1860
  %2117 = vst.msk [vmem:[%s1 + $0x168] sm:$0xff] %vm264, %v1861
  %2118 = vst.msk [vmem:[%s1 + $0x170] sm:$0xff] %vm264, %v1862
  %2119 = vst.msk [vmem:[%s1 + $0x178] sm:$0xff] %vm264, %v1863
  %2120 = vst.msk [vmem:[%s1 + $0x180] sm:$0xff] %vm264, %v1864
  %2121 = vst.msk [vmem:[%s1 + $0x188] sm:$0xff] %vm264, %v1865
  %2122 = vst.msk [vmem:[%s1 + $0x190] sm:$0xff] %vm264, %v1866
  %2123 = vst.msk [vmem:[%s1 + $0x198] sm:$0xff] %vm264, %v1867
  %2124 = vst.msk [vmem:[%s1 + $0x1a0] sm:$0xff] %vm264, %v1868
  %2125 = vst.msk [vmem:[%s1 + $0x1a8] sm:$0xff] %vm264, %v1869
  %2126 = vst.msk [vmem:[%s1 + $0x1b0] sm:$0xff] %vm264, %v1870
  %2127 = vst.msk [vmem:[%s1 + $0x1b8] sm:$0xff] %vm264, %v1871
  %2128 = vst.msk [vmem:[%s1 + $0x1c0] sm:$0xff] %vm264, %v1872
  %2129 = vst.msk [vmem:[%s1 + $0x1c8] sm:$0xff] %vm264, %v1873
  %2130 = vst.msk [vmem:[%s1 + $0x1d0] sm:$0xff] %vm264, %v1874
  %2131 = vst.msk [vmem:[%s1 + $0x1d8] sm:$0xff] %vm264, %v1875
  %2132 = vst.msk [vmem:[%s1 + $0x1e0] sm:$0xff] %vm264, %v1876
  %2133 = vst.msk [vmem:[%s1 + $0x1e8] sm:$0xff] %vm264, %v1877
  %2134 = vst.msk [vmem:[%s1 + $0x1f0] sm:$0xff] %vm264, %v1878
  %2135 = vst.msk [vmem:[%s1 + $0x1f8] sm:$0xff] %vm264, %v1879
  %2136 = vst.msk [vmem:[%s1 + $0x200] sm:$0xff] %vm264, %v1880
  %2137 = vst.msk [vmem:[%s1 + $0x208] sm:$0xff] %vm264, %v1881
  %2138 = vst.msk [vmem:[%s1 + $0x210] sm:$0xff] %vm264, %v1882
  %2139 = vst.msk [vmem:[%s1 + $0x218] sm:$0xff] %vm264, %v1883
  %2140 = vst.msk [vmem:[%s1 + $0x220] sm:$0xff] %vm264, %v1884
  %2141 = vst.msk [vmem:[%s1 + $0x228] sm:$0xff] %vm264, %v1885
  %2142 = vst.msk [vmem:[%s1 + $0x230] sm:$0xff] %vm264, %v1886
  %2143 = vst.msk [vmem:[%s1 + $0x238] sm:$0xff] %vm264, %v1887
  %2144 = vst.msk [vmem:[%s1 + $0x240] sm:$0xff] %vm264, %v1888
  %2145 = vst.msk [vmem:[%s1 + $0x248] sm:$0xff] %vm264, %v1889
  %2146 = vst.msk [vmem:[%s1 + $0x250] sm:$0xff] %vm264, %v1890
  %2147 = vst.msk [vmem:[%s1 + $0x258] sm:$0xff] %vm264, %v1891
  %2148 = vst.msk [vmem:[%s1 + $0x260] sm:$0xff] %vm264, %v1892
  %2149 = vst.msk [vmem:[%s1 + $0x268] sm:$0xff] %vm264, %v1893
  %2150 = vst.msk [vmem:[%s1 + $0x270] sm:$0xff] %vm264, %v1894
  %2151 = vst.msk [vmem:[%s1 + $0x278] sm:$0xff] %vm264, %v1895
  %2152 = vst.msk [vmem:[%s1 + $0x280] sm:$0xff] %vm264, %v1896
  %2153 = vst.msk [vmem:[%s1 + $0x288] sm:$0xff] %vm264, %v1897
  %2154 = vst.msk [vmem:[%s1 + $0x290] sm:$0xff] %vm264, %v1898
  %2155 = vst.msk [vmem:[%s1 + $0x298] sm:$0xff] %vm264, %v1899
  %2156 = vst.msk [vmem:[%s1 + $0x2a0] sm:$0xff] %vm264, %v1900
  %2157 = vst.msk [vmem:[%s1 + $0x2a8] sm:$0xff] %vm264, %v1901
  %2158 = vst.msk [vmem:[%s1 + $0x2b0] sm:$0xff] %vm264, %v1902
  %2159 = vst.msk [vmem:[%s1 + $0x2b8] sm:$0xff] %vm264, %v1903
  %2160 = vst.msk [vmem:[%s1 + $0x2c0] sm:$0xff] %vm264, %v1904
  %2161 = vst.msk [vmem:[%s1 + $0x2c8] sm:$0xff] %vm264, %v1905
  %2162 = vst.msk [vmem:[%s1 + $0x2d0] sm:$0xff] %vm264, %v1906
  %2163 = vst.msk [vmem:[%s1 + $0x2d8] sm:$0xff] %vm264, %v1907
  %2164 = vst.msk [vmem:[%s1 + $0x2e0] sm:$0xff] %vm264, %v1908
  %2165 = vst.msk [vmem:[%s1 + $0x2e8] sm:$0xff] %vm264, %v1909
  %2166 = vst.msk [vmem:[%s1 + $0x2f0] sm:$0xff] %vm264, %v1910
  %2167 = vst.msk [vmem:[%s1 + $0x2f8] sm:$0xff] %vm264, %v1911
  %2168 = vst.msk [vmem:[%s1 + $0x300] sm:$0xff] %vm264, %v1912
  %2169 = vst.msk [vmem:[%s1 + $0x308] sm:$0xff] %vm264, %v1913
  %2170 = vst.msk [vmem:[%s1 + $0x310] sm:$0xff] %vm264, %v1914
  %2171 = vst.msk [vmem:[%s1 + $0x318] sm:$0xff] %vm264, %v1915
  %2172 = vst.msk [vmem:[%s1 + $0x320] sm:$0xff] %vm264, %v1916
  %2173 = vst.msk [vmem:[%s1 + $0x328] sm:$0xff] %vm264, %v1917
  %2174 = vst.msk [vmem:[%s1 + $0x330] sm:$0xff] %vm264, %v1918
  %2175 = vst.msk [vmem:[%s1 + $0x338] sm:$0xff] %vm264, %v1919
  %2176 = vst.msk [vmem:[%s1 + $0x340] sm:$0xff] %vm264, %v1920
  %2177 = vst.msk [vmem:[%s1 + $0x348] sm:$0xff] %vm264, %v1921
  %2178 = vst.msk [vmem:[%s1 + $0x350] sm:$0xff] %vm264, %v1922
  %2179 = vst.msk [vmem:[%s1 + $0x358] sm:$0xff] %vm264, %v1923
  %2180 = vst.msk [vmem:[%s1 + $0x360] sm:$0xff] %vm264, %v1924
  %2181 = vst.msk [vmem:[%s1 + $0x368] sm:$0xff] %vm264, %v1925
  %2182 = vst.msk [vmem:[%s1 + $0x370] sm:$0xff] %vm264, %v1926
  %2183 = vst.msk [vmem:[%s1 + $0x378] sm:$0xff] %vm264, %v1927
  %2184 = vst.msk [vmem:[%s1 + $0x380] sm:$0xff] %vm264, %v1928
  %2185 = vst.msk [vmem:[%s1 + $0x388] sm:$0xff] %vm264, %v1929
  %2186 = vst.msk [vmem:[%s1 + $0x390] sm:$0xff] %vm264, %v1930
  %2187 = vst.msk [vmem:[%s1 + $0x398] sm:$0xff] %vm264, %v1931
  %2188 = vst.msk [vmem:[%s1 + $0x3a0] sm:$0xff] %vm264, %v1932
  %2189 = vst.msk [vmem:[%s1 + $0x3a8] sm:$0xff] %vm264, %v1933
  %2190 = vst.msk [vmem:[%s1 + $0x3b0] sm:$0xff] %vm264, %v1934
  %2191 = vst.msk [vmem:[%s1 + $0x3b8] sm:$0xff] %vm264, %v1935
  %2192 = vst.msk [vmem:[%s1 + $0x3c0] sm:$0xff] %vm264, %v1936
  %2193 = vst.msk [vmem:[%s1 + $0x3c8] sm:$0xff] %vm264, %v1937
  %2194 = vst.msk [vmem:[%s1 + $0x3d0] sm:$0xff] %vm264, %v1938
  %2195 = vst.msk [vmem:[%s1 + $0x3d8] sm:$0xff] %vm264, %v1939
  %2196 = vst.msk [vmem:[%s1 + $0x3e0] sm:$0xff] %vm264, %v1940
  %2197 = vst.msk [vmem:[%s1 + $0x3e8] sm:$0xff] %vm264, %v1941
  %2198 = vst.msk [vmem:[%s1 + $0x3f0] sm:$0xff] %vm264, %v1942
  %2199 = vst.msk [vmem:[%s1 + $0x3f8] sm:$0xff] %vm264, %v1943
  %2200 = vst.msk [vmem:[%s1 + $0x400] sm:$0xff] %vm264, %v1944
  %2201 = vst.msk [vmem:[%s1 + $0x408] sm:$0xff] %vm264, %v1945
  %2202 = vst.msk [vmem:[%s1 + $0x410] sm:$0xff] %vm264, %v1946
  %2203 = vst.msk [vmem:[%s1 + $0x418] sm:$0xff] %vm264, %v1947
  %2204 = vst.msk [vmem:[%s1 + $0x420] sm:$0xff] %vm264, %v1948
  %2205 = vst.msk [vmem:[%s1 + $0x428] sm:$0xff] %vm264, %v1949
  %2206 = vst.msk [vmem:[%s1 + $0x430] sm:$0xff] %vm264, %v1950
  %2207 = vst.msk [vmem:[%s1 + $0x438] sm:$0xff] %vm264, %v1951
  %2208 = vst.msk [vmem:[%s1 + $0x440] sm:$0xff] %vm264, %v1952
  %2209 = vst.msk [vmem:[%s1 + $0x448] sm:$0xff] %vm264, %v1953
  %2210 = vst.msk [vmem:[%s1 + $0x450] sm:$0xff] %vm264, %v1954
  %2211 = vst.msk [vmem:[%s1 + $0x458] sm:$0xff] %vm264, %v1955
  %2212 = vst.msk [vmem:[%s1 + $0x460] sm:$0xff] %vm264, %v1956
  %2213 = vst.msk [vmem:[%s1 + $0x468] sm:$0xff] %vm264, %v1957
  %2214 = vst.msk [vmem:[%s1 + $0x470] sm:$0xff] %vm264, %v1958
  %2215 = vst.msk [vmem:[%s1 + $0x478] sm:$0xff] %vm264, %v1959
  %2216 = vst.msk [vmem:[%s1 + $0x480] sm:$0xff] %vm264, %v1960
  %2217 = vst.msk [vmem:[%s1 + $0x488] sm:$0xff] %vm264, %v1961
  %2218 = vst.msk [vmem:[%s1 + $0x490] sm:$0xff] %vm264, %v1962
  %2219 = vst.msk [vmem:[%s1 + $0x498] sm:$0xff] %vm264, %v1963
  %2220 = vst.msk [vmem:[%s1 + $0x4a0] sm:$0xff] %vm264, %v1964
  %2221 = vst.msk [vmem:[%s1 + $0x4a8] sm:$0xff] %vm264, %v1965
  %2222 = vst.msk [vmem:[%s1 + $0x4b0] sm:$0xff] %vm264, %v1966
  %2223 = vst.msk [vmem:[%s1 + $0x4b8] sm:$0xff] %vm264, %v1967
  %2224 = vst.msk [vmem:[%s1 + $0x4c0] sm:$0xff] %vm264, %v1968
  %2225 = vst.msk [vmem:[%s1 + $0x4c8] sm:$0xff] %vm264, %v1969
  %2226 = vst.msk [vmem:[%s1 + $0x4d0] sm:$0xff] %vm264, %v1970
  %2227 = vst.msk [vmem:[%s1 + $0x4d8] sm:$0xff] %vm264, %v1971
  %2228 = vst.msk [vmem:[%s1 + $0x4e0] sm:$0xff] %vm264, %v1972
  %2229 = vst.msk [vmem:[%s1 + $0x4e8] sm:$0xff] %vm264, %v1973
  %2230 = vst.msk [vmem:[%s1 + $0x4f0] sm:$0xff] %vm264, %v1974
  %2231 = vst.msk [vmem:[%s1 + $0x4f8] sm:$0xff] %vm264, %v1975
  %2232 = vst.msk [vmem:[%s1 + $0x500] sm:$0xff] %vm264, %v1976
  %2233 = vst.msk [vmem:[%s1 + $0x508] sm:$0xff] %vm264, %v1977
  %2234 = vst.msk [vmem:[%s1 + $0x510] sm:$0xff] %vm264, %v1978
  %2235 = vst.msk [vmem:[%s1 + $0x518] sm:$0xff] %vm264, %v1979
  %2236 = vst.msk [vmem:[%s1 + $0x520] sm:$0xff] %vm264, %v1980
  %2237 = vst.msk [vmem:[%s1 + $0x528] sm:$0xff] %vm264, %v1981
  %2238 = vst.msk [vmem:[%s1 + $0x530] sm:$0xff] %vm264, %v1982
  %2239 = vst.msk [vmem:[%s1 + $0x538] sm:$0xff] %vm264, %v1983
  %2240 = vst.msk [vmem:[%s1 + $0x540] sm:$0xff] %vm264, %v1984
  %2241 = vst.msk [vmem:[%s1 + $0x548] sm:$0xff] %vm264, %v1985
  %2242 = vst.msk [vmem:[%s1 + $0x550] sm:$0xff] %vm264, %v1986
  %2243 = vst.msk [vmem:[%s1 + $0x558] sm:$0xff] %vm264, %v1987
  %2244 = vst.msk [vmem:[%s1 + $0x560] sm:$0xff] %vm264, %v1988
  %2245 = vst.msk [vmem:[%s1 + $0x568] sm:$0xff] %vm264, %v1989
  %2246 = vst.msk [vmem:[%s1 + $0x570] sm:$0xff] %vm264, %v1990
  %2247 = vst.msk [vmem:[%s1 + $0x578] sm:$0xff] %vm264, %v1991
  %2248 = vst.msk [vmem:[%s1 + $0x580] sm:$0xff] %vm264, %v1992
  %2249 = vst.msk [vmem:[%s1 + $0x588] sm:$0xff] %vm264, %v1993
  %2250 = vst.msk [vmem:[%s1 + $0x590] sm:$0xff] %vm264, %v1994
  %2251 = vst.msk [vmem:[%s1 + $0x598] sm:$0xff] %vm264, %v1995
  %2252 = vst.msk [vmem:[%s1 + $0x5a0] sm:$0xff] %vm264, %v1996
  %2253 = vst.msk [vmem:[%s1 + $0x5a8] sm:$0xff] %vm264, %v1997
  %2254 = vst.msk [vmem:[%s1 + $0x5b0] sm:$0xff] %vm264, %v1998
  %2255 = vst.msk [vmem:[%s1 + $0x5b8] sm:$0xff] %vm264, %v1999
  %2256 = vst.msk [vmem:[%s1 + $0x5c0] sm:$0xff] %vm264, %v2000
  %2257 = vst.msk [vmem:[%s1 + $0x5c8] sm:$0xff] %vm264, %v2001
  %2258 = vst.msk [vmem:[%s1 + $0x5d0] sm:$0xff] %vm264, %v2002
  %2259 = vst.msk [vmem:[%s1 + $0x5d8] sm:$0xff] %vm264, %v2003
  %2260 = vst.msk [vmem:[%s1 + $0x5e0] sm:$0xff] %vm264, %v2004
  %2261 = vst.msk [vmem:[%s1 + $0x5e8] sm:$0xff] %vm264, %v2005
  %2262 = vst.msk [vmem:[%s1 + $0x5f0] sm:$0xff] %vm264, %v2006
  %2263 = vst.msk [vmem:[%s1 + $0x5f8] sm:$0xff] %vm264, %v2007
  %2264 = vst.msk [vmem:[%s1 + $0x600] sm:$0xff] %vm264, %v2008
  %2265 = vst.msk [vmem:[%s1 + $0x608] sm:$0xff] %vm264, %v2009
  %2266 = vst.msk [vmem:[%s1 + $0x610] sm:$0xff] %vm264, %v2010
  %2267 = vst.msk [vmem:[%s1 + $0x618] sm:$0xff] %vm264, %v2011
  %2268 = vst.msk [vmem:[%s1 + $0x620] sm:$0xff] %vm264, %v2012
  %2269 = vst.msk [vmem:[%s1 + $0x628] sm:$0xff] %vm264, %v2013
  %2270 = vst.msk [vmem:[%s1 + $0x630] sm:$0xff] %vm264, %v2014
  %2271 = vst.msk [vmem:[%s1 + $0x638] sm:$0xff] %vm264, %v2015
  %2272 = vst.msk [vmem:[%s1 + $0x640] sm:$0xff] %vm264, %v2016
  %2273 = vst.msk [vmem:[%s1 + $0x648] sm:$0xff] %vm264, %v2017
  %2274 = vst.msk [vmem:[%s1 + $0x650] sm:$0xff] %vm264, %v2018
  %2275 = vst.msk [vmem:[%s1 + $0x658] sm:$0xff] %vm264, %v2019
  %2276 = vst.msk [vmem:[%s1 + $0x660] sm:$0xff] %vm264, %v2020
  %2277 = vst.msk [vmem:[%s1 + $0x668] sm:$0xff] %vm264, %v2021
  %2278 = vst.msk [vmem:[%s1 + $0x670] sm:$0xff] %vm264, %v2022
  %2279 = vst.msk [vmem:[%s1 + $0x678] sm:$0xff] %vm264, %v2023
  %2280 = vst.msk [vmem:[%s1 + $0x680] sm:$0xff] %vm264, %v2024
  %2281 = vst.msk [vmem:[%s1 + $0x688] sm:$0xff] %vm264, %v2025
  %2282 = vst.msk [vmem:[%s1 + $0x690] sm:$0xff] %vm264, %v2026
  %2283 = vst.msk [vmem:[%s1 + $0x698] sm:$0xff] %vm264, %v2027
  %2284 = vst.msk [vmem:[%s1 + $0x6a0] sm:$0xff] %vm264, %v2028
  %2285 = vst.msk [vmem:[%s1 + $0x6a8] sm:$0xff] %vm264, %v2029
  %2286 = vst.msk [vmem:[%s1 + $0x6b0] sm:$0xff] %vm264, %v2030
  %2287 = vst.msk [vmem:[%s1 + $0x6b8] sm:$0xff] %vm264, %v2031
  %2288 = vst.msk [vmem:[%s1 + $0x6c0] sm:$0xff] %vm264, %v2032
  %2289 = vst.msk [vmem:[%s1 + $0x6c8] sm:$0xff] %vm264, %v2033
  %2290 = vst.msk [vmem:[%s1 + $0x6d0] sm:$0xff] %vm264, %v2034
  %2291 = vst.msk [vmem:[%s1 + $0x6d8] sm:$0xff] %vm264, %v2035
  %2292 = vst.msk [vmem:[%s1 + $0x6e0] sm:$0xff] %vm264, %v2036
  %2293 = vst.msk [vmem:[%s1 + $0x6e8] sm:$0xff] %vm264, %v2037
  %2294 = vst.msk [vmem:[%s1 + $0x6f0] sm:$0xff] %vm264, %v2038
  %2295 = vst.msk [vmem:[%s1 + $0x6f8] sm:$0xff] %vm264, %v2039
  %2296 = vst.msk [vmem:[%s1 + $0x700] sm:$0xff] %vm264, %v2040
  %2297 = vst.msk [vmem:[%s1 + $0x708] sm:$0xff] %vm264, %v2041
  %2298 = vst.msk [vmem:[%s1 + $0x710] sm:$0xff] %vm264, %v2042
  %2299 = vst.msk [vmem:[%s1 + $0x718] sm:$0xff] %vm264, %v2043
  %2300 = vst.msk [vmem:[%s1 + $0x720] sm:$0xff] %vm264, %v2044
  %2301 = vst.msk [vmem:[%s1 + $0x728] sm:$0xff] %vm264, %v2045
  %2302 = vst.msk [vmem:[%s1 + $0x730] sm:$0xff] %vm264, %v2046
  %2303 = vst.msk [vmem:[%s1 + $0x738] sm:$0xff] %vm264, %v2047
  %2304 = vst.msk [vmem:[%s1 + $0x740] sm:$0xff] %vm264, %v2048
  %2305 = vst.msk [vmem:[%s1 + $0x748] sm:$0xff] %vm264, %v2049
  %2306 = vst.msk [vmem:[%s1 + $0x750] sm:$0xff] %vm264, %v2050
  %2307 = vst.msk [vmem:[%s1 + $0x758] sm:$0xff] %vm264, %v2051
  %2308 = vst.msk [vmem:[%s1 + $0x760] sm:$0xff] %vm264, %v2052
  %2309 = vst.msk [vmem:[%s1 + $0x768] sm:$0xff] %vm264, %v2053
  %2310 = vst.msk [vmem:[%s1 + $0x770] sm:$0xff] %vm264, %v2054
  %2311 = vst.msk [vmem:[%s1 + $0x778] sm:$0xff] %vm264, %v2055
  %2312 = vst.msk [vmem:[%s1 + $0x780] sm:$0xff] %vm264, %v2056
  %2313 = vst.msk [vmem:[%s1 + $0x788] sm:$0xff] %vm264, %v2057
  %2314 = vst.msk [vmem:[%s1 + $0x790] sm:$0xff] %vm264, %v2058
  %2315 = vst.msk [vmem:[%s1 + $0x798] sm:$0xff] %vm264, %v2059
  %2316 = vst.msk [vmem:[%s1 + $0x7a0] sm:$0xff] %vm264, %v2060
  %2317 = vst.msk [vmem:[%s1 + $0x7a8] sm:$0xff] %vm264, %v2061
  %2318 = vst.msk [vmem:[%s1 + $0x7b0] sm:$0xff] %vm264, %v2062
  %2319 = vst.msk [vmem:[%s1 + $0x7b8] sm:$0xff] %vm264, %v2063
  %2320 = vst.msk [vmem:[%s1 + $0x7c0] sm:$0xff] %vm264, %v2064
  %2321 = vst.msk [vmem:[%s1 + $0x7c8] sm:$0xff] %vm264, %v2065
  %2322 = vst.msk [vmem:[%s1 + $0x7d0] sm:$0xff] %vm264, %v2066
  %2323 = vst.msk [vmem:[%s1 + $0x7d8] sm:$0xff] %vm264, %v2067
  %2324 = vst.msk [vmem:[%s1 + $0x7e0] sm:$0xff] %vm264, %v2068
  %2325 = vst.msk [vmem:[%s1 + $0x7e8] sm:$0xff] %vm264, %v2069
  %2326 = vst.msk [vmem:[%s1 + $0x7f0] sm:$0xff] %vm264, %v2070
  %2327 = vst.msk [vmem:[%s1 + $0x7f8] sm:$0xff] %vm264, %v2071
  // Predicated region
  $region6: #{hessian_layer_u_fwd.7} parent=0 // pred_check
    _
  $region7: #{hessian_layer_u_fwd.7} parent=0 // pred_check_branch
    %2329 = sbr.rel (0) target = $region9
  $region8: #{hessian_layer_u_fwd.7} parent=0 // pred_region
    _
  $region9: #{hessian_layer_u_fwd.7} parent=0 // pred_fallthru
    _
  // Predicated region
  $region10: #{hessian_layer_u_fwd.7} parent=0 // pred_check
    _
  $region11: #{hessian_layer_u_fwd.7} parent=0 // pred_check_branch
    %2331 = sbr.rel (0) target = $region13
  $region12: #{hessian_layer_u_fwd.7} parent=0 // pred_region
    _
  $region13: #{hessian_layer_u_fwd.7} parent=0 // pred_fallthru
    _

// kernel: hessian_layer_u_fwd.8
$region0: #{hessian_layer_u_fwd.8}
  #allocation0 [shape = 'u32[]', space=smem, size = 0x4, offset = 0x4, fixed_abs, tag = 'smem constant byte address 0x4 - core index']
  #allocation1 [shape = 'u32[144,128]{1,0:T(1,128)}', space=vmem, size = 0x12000, scoped, tag = 'internal scratch']
  %s0 = inlined_call_operand.vmem [shape: bf16[2048,256], index: 0, kind: input, shape index: {}]
  %s1 = inlined_call_operand.vmem [shape: bf16[256,128], index: 1, kind: input, shape index: {}]
  %s2 = inlined_call_operand.vmem [shape: f32[2048,128], index: 2, kind: output, shape index: {}]
  %s3 = sld [smem:[#allocation0]]
  $region45: #{hessian_layer_u_fwd.8} parent=0
    _
  %s5 = ssub.s32 1, %s3
  %s6 = scalar_select 0, %s5, %s3
  loop: start=0, step=1, limit=10
  $region2: #{hessian_layer_u_fwd.8} parent=0 // loop_pre_header
    _
  $region3: #{hessian_layer_u_fwd.8} parent=0 // loop_header
    %s8 = sphi 0, %s12
    %p9 = scmp.ge.s32.totalorder %s8, 10
    %s15 = sphi 0, %s27
    %s16 = sphi 0, %s23
    %s17 = sphi 0, %s15
    %s18 = sphi 0, %s16
    %s19 = sphi 0, %s17
    %s20 = sphi 0, %s18
    %s32 = sphi 0, %s34
    %s35 = sphi 0, %s32
    %s36 = sphi 0, %s35
    %s52 = sphi 0, %s36
    %s58 = sphi 0, %s60
    %s61 = sphi 0, %s58
    %s62 = sphi 0, %s61
    %s78 = sphi 0, %s62
    %s84 = sphi 0, %s86
    %s87 = sphi 0, %s84
    %s88 = sphi 0, %s87
    %s104 = sphi 0, %s88
  $region4: #{hessian_layer_u_fwd.8} parent=0 // loop_header_branch
    %11 = sbr.rel (%p9) target = $region8
  $region5: #{hessian_layer_u_fwd.8} parent=0 // loop_body
    %s13 = ssub.s32 %s8, 1
    %s14 = ssub.s32 %s8, 2
    %s21 = sadd.s32 1, %s16
    %p22 = scmp.ge.s32.totalorder %s21, 1
    %s23 = scalar_select %p22, 0, %s21
    %s24 = sadd.s32 1, %s15
    %s25 = scalar_select %p22, %s24, %s15
    %p26 = scmp.ge.s32.totalorder %s25, 8
    %s27 = scalar_select %p26, 0, %s25
    %s28 = ssub.s32 %s15, %s27
    %s29 = ssub.s32 %s16, %s23
    %s30 = sor.u32 %s28, %s29
    %p31 = scmp.eq.s32.totalorder %s30, 0
    %s33 = sadd.s32 %s32, 1
    %s34 = scalar_select %p31, %s32, %s33
    %p37 = pneg %p31
    %p38 = scmp.eq.s32.totalorder %s8, 7
    %p39 = por %p37, %p38
    %p40 = scmp.ne.s32.totalorder %s32, %s35
    %p41 = scmp.eq.s32.totalorder %s8, 0
    %p42 = por %p40, %p41
    %p43 = scmp.ne.s32.totalorder %s32, %s35
    %p44 = scmp.eq.s32.totalorder %s13, 7
    %p45 = por %p43, %p44
    %p46 = scmp.ne.s32.totalorder %s35, %s36
    %p47 = scmp.eq.s32.totalorder %s13, 0
    %p48 = por %p46, %p47
    %p49 = scmp.ne.s32.totalorder %s35, %s36
    %p50 = scmp.eq.s32.totalorder %s14, 7
    %p51 = por %p49, %p50
    %p53 = scmp.ne.s32.totalorder %s36, %s52
    %p54 = scmp.eq.s32.totalorder %s14, 0
    %p55 = por %p53, %p54
    %s56 = ssub.s32 %s16, %s23
    %p57 = scmp.eq.s32.totalorder %s56, 0
    %s59 = sadd.s32 %s58, 1
    %s60 = scalar_select %p57, %s58, %s59
    %p63 = pneg %p57
    %p64 = scmp.eq.s32.totalorder %s8, 7
    %p65 = por %p63, %p64
    %p66 = scmp.ne.s32.totalorder %s58, %s61
    %p67 = scmp.eq.s32.totalorder %s8, 0
    %p68 = por %p66, %p67
    %p69 = scmp.ne.s32.totalorder %s58, %s61
    %p70 = scmp.eq.s32.totalorder %s13, 7
    %p71 = por %p69, %p70
    %p72 = scmp.ne.s32.totalorder %s61, %s62
    %p73 = scmp.eq.s32.totalorder %s13, 0
    %p74 = por %p72, %p73
    %p75 = scmp.ne.s32.totalorder %s61, %s62
    %p76 = scmp.eq.s32.totalorder %s14, 7
    %p77 = por %p75, %p76
    %p79 = scmp.ne.s32.totalorder %s62, %s78
    %p80 = scmp.eq.s32.totalorder %s14, 0
    %p81 = por %p79, %p80
    %s82 = ssub.s32 %s15, %s27
    %p83 = scmp.eq.s32.totalorder %s82, 0
    %s85 = sadd.s32 %s84, 1
    %s86 = scalar_select %p83, %s84, %s85
    %p89 = pneg %p83
    %p90 = scmp.eq.s32.totalorder %s8, 7
    %p91 = por %p89, %p90
    %p92 = scmp.ne.s32.totalorder %s84, %s87
    %p93 = scmp.eq.s32.totalorder %s8, 0
    %p94 = por %p92, %p93
    %p95 = scmp.ne.s32.totalorder %s84, %s87
    %p96 = scmp.eq.s32.totalorder %s13, 7
    %p97 = por %p95, %p96
    %p98 = scmp.ne.s32.totalorder %s87, %s88
    %p99 = scmp.eq.s32.totalorder %s13, 0
    %p100 = por %p98, %p99
    %p101 = scmp.ne.s32.totalorder %s87, %s88
    %p102 = scmp.eq.s32.totalorder %s14, 7
    %p103 = por %p101, %p102
    %p105 = scmp.ne.s32.totalorder %s88, %s104
    %p106 = scmp.eq.s32.totalorder %s14, 0
    %p107 = por %p105, %p106
    %p108 = scmp.le.s32.totalorder 1, %s8
    %p109 = scmp.lt.s32.totalorder %s8, 9
    %p110 = pnand %p108, %p109
    %p111 = pneg %p110
    // Predicated region
    $region9: #{hessian_layer_u_fwd.8} parent=5 // pred_check
      _
    $region10: #{hessian_layer_u_fwd.8} parent=5 // pred_check_branch
      %113 = sbr.rel (%p110) target = $region12
    $region11: #{hessian_layer_u_fwd.8} parent=5 // pred_region
      %s114 = ssub.s32 %s8, 1
      // Predicated region
      $region13: #{hessian_layer_u_fwd.8} parent=11 // pred_check
        %p115 = pneg %p74
      $region14: #{hessian_layer_u_fwd.8} parent=11 // pred_check_branch
        %117 = sbr.rel (%p115) target = $region16
      $region15: #{hessian_layer_u_fwd.8} parent=11 // pred_region
        %s118 = smul.u32 32, %s18
        %p119 = scmp.lt.s32.totalorder %s118, 31
        %s120 = scalar_select %p119, %s118, 31
        %s121 = smul.addr %s120, 4
        %s122 = scalar_lea.vmem %s1, %s121
        %s123 = smul.u32 32, %s18
      $region16: #{hessian_layer_u_fwd.8} parent=11 // pred_fallthru
        _
    $region12: #{hessian_layer_u_fwd.8} parent=5 // pred_fallthru
      _
    %p124 = scmp.lt.s32.totalorder %s8, 8
    // Predicated region
    $region17: #{hessian_layer_u_fwd.8} parent=5 // pred_check
      %p125 = pneg %p124
    $region18: #{hessian_layer_u_fwd.8} parent=5 // pred_check_branch
      %127 = sbr.rel (%p125) target = $region20
    $region19: #{hessian_layer_u_fwd.8} parent=5 // pred_region
      // Predicated region
      $region21: #{hessian_layer_u_fwd.8} parent=19 // pred_check
        %p128 = pneg %p42
      $region22: #{hessian_layer_u_fwd.8} parent=19 // pred_check_branch
        %130 = sbr.rel (%p128) target = $region24
      $region23: #{hessian_layer_u_fwd.8} parent=19 // pred_region
        %s131 = smul.u32 32, %s15
        %s132 = smul.u32 2, %s16
        %p133 = scmp.lt.s32.totalorder %s131, 255
        %s134 = scalar_select %p133, %s131, 255
        %p135 = scmp.lt.s32.totalorder %s132, 1
        %s136 = scalar_select %p135, %s132, 1
        %s137 = smul.addr %s134, 2
        %s138 = sadd.s32 %s136, %s137
        %s139 = smul.addr %s138, 4
        %s140 = scalar_lea.vmem %s0, %s139
        %s141 = smul.u32 32, %s15
        %s142 = smul.u32 2, %s16
      $region24: #{hessian_layer_u_fwd.8} parent=19 // pred_fallthru
        _
    $region20: #{hessian_layer_u_fwd.8} parent=5 // pred_fallthru
      _
    %p143 = scmp.le.s32.totalorder 1, %s8
    %p144 = scmp.lt.s32.totalorder %s8, 9
    %p145 = pnand %p143, %p144
    %p146 = pneg %p145
    // Predicated region
    $region25: #{hessian_layer_u_fwd.8} parent=5 // pred_check
      _
    $region26: #{hessian_layer_u_fwd.8} parent=5 // pred_check_branch
      %148 = sbr.rel (%p145) target = $region28
    $region27: #{hessian_layer_u_fwd.8} parent=5 // pred_region
      %s149 = ssub.s32 %s8, 1
      %s150 = smul.u32 32, %s17
      %s151 = smul.u32 2, %s18
      %p152 = scmp.lt.s32.totalorder %s150, 255
      %s153 = scalar_select %p152, %s150, 255
      %p154 = scmp.lt.s32.totalorder %s151, 1
      %s155 = scalar_select %p154, %s151, 1
      %s156 = smul.addr %s153, 2
      %s157 = sadd.s32 %s155, %s156
      %s158 = smul.addr %s157, 4
      %s159 = scalar_lea.vmem %s0, %s158
      %p160 = pneg %p48
      %p161 = pneg %p45
      %s162 = smul.u32 32, %s18
      %p163 = scmp.lt.s32.totalorder %s162, 31
      %s164 = scalar_select %p163, %s162, 31
      %s165 = smul.addr %s164, 4
      %s166 = scalar_lea.vmem %s1, %s165
      %p167 = pneg %p74
      %p168 = pneg %p71
      %p169 = pneg %p100
      %p170 = pneg %p97
      %s171 = smul.u32 32, %s17
      %p172 = scmp.lt.s32.totalorder %s171, 255
      %s173 = scalar_select %p172, %s171, 255
      %s174 = smul.addr %s173, 8
      %s175 = scalar_lea.vmem %s2, %s174
      %s176 = smul.u32 32, %s17
      %s177 = smul.u32 2, %s18
      %p178 = scmp.lt.s32.totalorder %s176, 255
      %s179 = scalar_select %p178, %s176, 255
      %p180 = scmp.lt.s32.totalorder %s177, 1
      %s181 = scalar_select %p180, %s177, 1
      %s182 = smul.addr %s179, 2
      %s183 = sadd.s32 %s181, %s182
      %s184 = smul.addr %s183, 4
      %s185 = scalar_lea.vmem %s0, %s184
      %s186 = smul.u32 32, %s17
      %s187 = smul.u32 2, %s18
      %s188 = smul.u32 32, %s18
      %p189 = scmp.lt.s32.totalorder %s188, 31
      %s190 = scalar_select %p189, %s188, 31
      %s191 = smul.addr %s190, 4
      %s192 = scalar_lea.vmem %s1, %s191
      %s193 = smul.u32 32, %s18
      %s194 = smul.u32 32, %s17
      %p195 = scmp.lt.s32.totalorder %s194, 255
      %s196 = scalar_select %p195, %s194, 255
      %s197 = smul.addr %s196, 8
      %s198 = scalar_lea.vmem %s2, %s197
      %s199 = smul.u32 32, %s17
      %p201 = scmp.eq.s32.totalorder %s18, 0
      // Predicated region
      $region29: #{hessian_layer_u_fwd.8} parent=27 // pred_check
        %p202 = pneg %p201
      $region30: #{hessian_layer_u_fwd.8} parent=27 // pred_check_branch
        %204 = sbr.rel (%p202) target = $region32
      $region31: #{hessian_layer_u_fwd.8} parent=27 // pred_region
        %205 = vst [vmem:[%s198] sm:$0xff] 0.0
        %206 = vst [vmem:[%s198 + $0x8] sm:$0xff] 0.0
        %207 = vst [vmem:[%s198 + $0x10] sm:$0xff] 0.0
        %208 = vst [vmem:[%s198 + $0x18] sm:$0xff] 0.0
        %209 = vst [vmem:[%s198 + $0x20] sm:$0xff] 0.0
        %210 = vst [vmem:[%s198 + $0x28] sm:$0xff] 0.0
        %211 = vst [vmem:[%s198 + $0x30] sm:$0xff] 0.0
        %212 = vst [vmem:[%s198 + $0x38] sm:$0xff] 0.0
        %213 = vst [vmem:[%s198 + $0x40] sm:$0xff] 0.0
        %214 = vst [vmem:[%s198 + $0x48] sm:$0xff] 0.0
        %215 = vst [vmem:[%s198 + $0x50] sm:$0xff] 0.0
        %216 = vst [vmem:[%s198 + $0x58] sm:$0xff] 0.0
        %217 = vst [vmem:[%s198 + $0x60] sm:$0xff] 0.0
        %218 = vst [vmem:[%s198 + $0x68] sm:$0xff] 0.0
        %219 = vst [vmem:[%s198 + $0x70] sm:$0xff] 0.0
        %220 = vst [vmem:[%s198 + $0x78] sm:$0xff] 0.0
        %221 = vst [vmem:[%s198 + $0x80] sm:$0xff] 0.0
        %222 = vst [vmem:[%s198 + $0x88] sm:$0xff] 0.0
        %223 = vst [vmem:[%s198 + $0x90] sm:$0xff] 0.0
        %224 = vst [vmem:[%s198 + $0x98] sm:$0xff] 0.0
        %225 = vst [vmem:[%s198 + $0xa0] sm:$0xff] 0.0
        %226 = vst [vmem:[%s198 + $0xa8] sm:$0xff] 0.0
        %227 = vst [vmem:[%s198 + $0xb0] sm:$0xff] 0.0
        %228 = vst [vmem:[%s198 + $0xb8] sm:$0xff] 0.0
        %229 = vst [vmem:[%s198 + $0xc0] sm:$0xff] 0.0
        %230 = vst [vmem:[%s198 + $0xc8] sm:$0xff] 0.0
        %231 = vst [vmem:[%s198 + $0xd0] sm:$0xff] 0.0
        %232 = vst [vmem:[%s198 + $0xd8] sm:$0xff] 0.0
        %233 = vst [vmem:[%s198 + $0xe0] sm:$0xff] 0.0
        %234 = vst [vmem:[%s198 + $0xe8] sm:$0xff] 0.0
        %235 = vst [vmem:[%s198 + $0xf0] sm:$0xff] 0.0
        %236 = vst [vmem:[%s198 + $0xf8] sm:$0xff] 0.0
      $region32: #{hessian_layer_u_fwd.8} parent=27 // pred_fallthru
        _
      %v237 = vld [vmem:[%s198] sm:$0xff]
      %v238 = vld [vmem:[%s198 + $0x8] sm:$0xff]
      %v239 = vld [vmem:[%s198 + $0x10] sm:$0xff]
      %v240 = vld [vmem:[%s198 + $0x18] sm:$0xff]
      %v241 = vld [vmem:[%s198 + $0x20] sm:$0xff]
      %v242 = vld [vmem:[%s198 + $0x28] sm:$0xff]
      %v243 = vld [vmem:[%s198 + $0x30] sm:$0xff]
      %v244 = vld [vmem:[%s198 + $0x38] sm:$0xff]
      %v245 = vld [vmem:[%s198 + $0x40] sm:$0xff]
      %v246 = vld [vmem:[%s198 + $0x48] sm:$0xff]
      %v247 = vld [vmem:[%s198 + $0x50] sm:$0xff]
      %v248 = vld [vmem:[%s198 + $0x58] sm:$0xff]
      %v249 = vld [vmem:[%s198 + $0x60] sm:$0xff]
      %v250 = vld [vmem:[%s198 + $0x68] sm:$0xff]
      %v251 = vld [vmem:[%s198 + $0x70] sm:$0xff]
      %v252 = vld [vmem:[%s198 + $0x78] sm:$0xff]
      %v253 = vld [vmem:[%s198 + $0x80] sm:$0xff]
      %v254 = vld [vmem:[%s198 + $0x88] sm:$0xff]
      %v255 = vld [vmem:[%s198 + $0x90] sm:$0xff]
      %v256 = vld [vmem:[%s198 + $0x98] sm:$0xff]
      %v257 = vld [vmem:[%s198 + $0xa0] sm:$0xff]
      %v258 = vld [vmem:[%s198 + $0xa8] sm:$0xff]
      %v259 = vld [vmem:[%s198 + $0xb0] sm:$0xff]
      %v260 = vld [vmem:[%s198 + $0xb8] sm:$0xff]
      %v261 = vld [vmem:[%s198 + $0xc0] sm:$0xff]
      %v262 = vld [vmem:[%s198 + $0xc8] sm:$0xff]
      %v263 = vld [vmem:[%s198 + $0xd0] sm:$0xff]
      %v264 = vld [vmem:[%s198 + $0xd8] sm:$0xff]
      %v265 = vld [vmem:[%s198 + $0xe0] sm:$0xff]
      %v266 = vld [vmem:[%s198 + $0xe8] sm:$0xff]
      %v267 = vld [vmem:[%s198 + $0xf0] sm:$0xff]
      %v268 = vld [vmem:[%s198 + $0xf8] sm:$0xff]
      %v269 = vld [vmem:[%s185] sm:$0xff]
      %v270 = vld [vmem:[%s185 + $0x8] sm:$0xff]
      %v271 = vld [vmem:[%s185 + $0x10] sm:$0xff]
      %v272 = vld [vmem:[%s185 + $0x18] sm:$0xff]
      %v273 = vld [vmem:[%s185 + $0x20] sm:$0xff]
      %v274 = vld [vmem:[%s185 + $0x28] sm:$0xff]
      %v275 = vld [vmem:[%s185 + $0x30] sm:$0xff]
      %v276 = vld [vmem:[%s185 + $0x38] sm:$0xff]
      %v277 = vld [vmem:[%s185 + $0x40] sm:$0xff]
      %v278 = vld [vmem:[%s185 + $0x48] sm:$0xff]
      %v279 = vld [vmem:[%s185 + $0x50] sm:$0xff]
      %v280 = vld [vmem:[%s185 + $0x58] sm:$0xff]
      %v281 = vld [vmem:[%s185 + $0x60] sm:$0xff]
      %v282 = vld [vmem:[%s185 + $0x68] sm:$0xff]
      %v283 = vld [vmem:[%s185 + $0x70] sm:$0xff]
      %v284 = vld [vmem:[%s185 + $0x78] sm:$0xff]
      %v285 = vld [vmem:[%s185 + $0x80] sm:$0xff]
      %v286 = vld [vmem:[%s185 + $0x88] sm:$0xff]
      %v287 = vld [vmem:[%s185 + $0x90] sm:$0xff]
      %v288 = vld [vmem:[%s185 + $0x98] sm:$0xff]
      %v289 = vld [vmem:[%s185 + $0xa0] sm:$0xff]
      %v290 = vld [vmem:[%s185 + $0xa8] sm:$0xff]
      %v291 = vld [vmem:[%s185 + $0xb0] sm:$0xff]
      %v292 = vld [vmem:[%s185 + $0xb8] sm:$0xff]
      %v293 = vld [vmem:[%s185 + $0xc0] sm:$0xff]
      %v294 = vld [vmem:[%s185 + $0xc8] sm:$0xff]
      %v295 = vld [vmem:[%s185 + $0xd0] sm:$0xff]
      %v296 = vld [vmem:[%s185 + $0xd8] sm:$0xff]
      %v297 = vld [vmem:[%s185 + $0xe0] sm:$0xff]
      %v298 = vld [vmem:[%s185 + $0xe8] sm:$0xff]
      %v299 = vld [vmem:[%s185 + $0xf0] sm:$0xff]
      %v300 = vld [vmem:[%s185 + $0xf8] sm:$0xff]
      %v301 = vld [vmem:[%s192] sm:$0xf]
      %v302 = vld [vmem:[%s192 + $0x4] sm:$0xf]
      %v303 = vld [vmem:[%s192 + $0x8] sm:$0xf]
      %v304 = vld [vmem:[%s192 + $0xc] sm:$0xf]
      %v305 = vld [vmem:[%s192 + $0x10] sm:$0xf]
      %v306 = vld [vmem:[%s192 + $0x14] sm:$0xf]
      %v307 = vld [vmem:[%s192 + $0x18] sm:$0xf]
      %v308 = vld [vmem:[%s192 + $0x1c] sm:$0xf]
      %v309 = vld [vmem:[%s192 + $0x20] sm:$0xf]
      %v310 = vld [vmem:[%s192 + $0x24] sm:$0xf]
      %v311 = vld [vmem:[%s192 + $0x28] sm:$0xf]
      %v312 = vld [vmem:[%s192 + $0x2c] sm:$0xf]
      %v313 = vld [vmem:[%s192 + $0x30] sm:$0xf]
      %v314 = vld [vmem:[%s192 + $0x34] sm:$0xf]
      %v315 = vld [vmem:[%s192 + $0x38] sm:$0xf]
      %v316 = vld [vmem:[%s192 + $0x3c] sm:$0xf]
      %v317 = vld [vmem:[%s192 + $0x40] sm:$0xf]
      %v318 = vld [vmem:[%s192 + $0x44] sm:$0xf]
      %v319 = vld [vmem:[%s192 + $0x48] sm:$0xf]
      %v320 = vld [vmem:[%s192 + $0x4c] sm:$0xf]
      %v321 = vld [vmem:[%s192 + $0x50] sm:$0xf]
      %v322 = vld [vmem:[%s192 + $0x54] sm:$0xf]
      %v323 = vld [vmem:[%s192 + $0x58] sm:$0xf]
      %v324 = vld [vmem:[%s192 + $0x5c] sm:$0xf]
      %v325 = vld [vmem:[%s192 + $0x60] sm:$0xf]
      %v326 = vld [vmem:[%s192 + $0x64] sm:$0xf]
      %v327 = vld [vmem:[%s192 + $0x68] sm:$0xf]
      %v328 = vld [vmem:[%s192 + $0x6c] sm:$0xf]
      %v329 = vld [vmem:[%s192 + $0x70] sm:$0xf]
      %v330 = vld [vmem:[%s192 + $0x74] sm:$0xf]
      %v331 = vld [vmem:[%s192 + $0x78] sm:$0xf]
      %v332 = vld [vmem:[%s192 + $0x7c] sm:$0xf]
      %v365 = vunpack.c.l.b16 %v269
      %v366 = vunpack.c.h.b16 %v269
      %v367 = vunpack.c.l.b16 %v270
      %v368 = vunpack.c.h.b16 %v270
      %v369 = vunpack.c.l.b16 %v271
      %v370 = vunpack.c.h.b16 %v271
      %v371 = vunpack.c.l.b16 %v272
      %v372 = vunpack.c.h.b16 %v272
      %v373 = vunpack.c.l.b16 %v273
      %v374 = vunpack.c.h.b16 %v273
      %v375 = vunpack.c.l.b16 %v274
      %v376 = vunpack.c.h.b16 %v274
      %v377 = vunpack.c.l.b16 %v275
      %v378 = vunpack.c.h.b16 %v275
      %v379 = vunpack.c.l.b16 %v276
      %v380 = vunpack.c.h.b16 %v276
      %v381 = vunpack.c.l.b16 %v277
      %v382 = vunpack.c.h.b16 %v277
      %v383 = vunpack.c.l.b16 %v278
      %v384 = vunpack.c.h.b16 %v278
      %v385 = vunpack.c.l.b16 %v279
      %v386 = vunpack.c.h.b16 %v279
      %v387 = vunpack.c.l.b16 %v280
      %v388 = vunpack.c.h.b16 %v280
      %v389 = vunpack.c.l.b16 %v281
      %v390 = vunpack.c.h.b16 %v281
      %v391 = vunpack.c.l.b16 %v282
      %v392 = vunpack.c.h.b16 %v282
      %v393 = vunpack.c.l.b16 %v283
      %v394 = vunpack.c.h.b16 %v283
      %v395 = vunpack.c.l.b16 %v284
      %v396 = vunpack.c.h.b16 %v284
      %v397 = vunpack.c.l.b16 %v285
      %v398 = vunpack.c.h.b16 %v285
      %v399 = vunpack.c.l.b16 %v286
      %v400 = vunpack.c.h.b16 %v286
      %v401 = vunpack.c.l.b16 %v287
      %v402 = vunpack.c.h.b16 %v287
      %v403 = vunpack.c.l.b16 %v288
      %v404 = vunpack.c.h.b16 %v288
      %v405 = vunpack.c.l.b16 %v289
      %v406 = vunpack.c.h.b16 %v289
      %v407 = vunpack.c.l.b16 %v290
      %v408 = vunpack.c.h.b16 %v290
      %v409 = vunpack.c.l.b16 %v291
      %v410 = vunpack.c.h.b16 %v291
      %v411 = vunpack.c.l.b16 %v292
      %v412 = vunpack.c.h.b16 %v292
      %v413 = vunpack.c.l.b16 %v293
      %v414 = vunpack.c.h.b16 %v293
      %v415 = vunpack.c.l.b16 %v294
      %v416 = vunpack.c.h.b16 %v294
      %v417 = vunpack.c.l.b16 %v295
      %v418 = vunpack.c.h.b16 %v295
      %v419 = vunpack.c.l.b16 %v296
      %v420 = vunpack.c.h.b16 %v296
      %v421 = vunpack.c.l.b16 %v297
      %v422 = vunpack.c.h.b16 %v297
      %v423 = vunpack.c.l.b16 %v298
      %v424 = vunpack.c.h.b16 %v298
      %v425 = vunpack.c.l.b16 %v299
      %v426 = vunpack.c.h.b16 %v299
      %v427 = vunpack.c.l.b16 %v300
      %v428 = vunpack.c.h.b16 %v300
      %v429 = vpack.c.b16 %v367, %v365
      %v430 = vpack.c.b16 %v368, %v366
      %v431 = vpack.c.b16 %v371, %v369
      %v432 = vpack.c.b16 %v372, %v370
      %v433 = vpack.c.b16 %v375, %v373
      %v434 = vpack.c.b16 %v376, %v374
      %v435 = vpack.c.b16 %v379, %v377
      %v436 = vpack.c.b16 %v380, %v378
      %v437 = vpack.c.b16 %v383, %v381
      %v438 = vpack.c.b16 %v384, %v382
      %v439 = vpack.c.b16 %v387, %v385
      %v440 = vpack.c.b16 %v388, %v386
      %v441 = vpack.c.b16 %v391, %v389
      %v442 = vpack.c.b16 %v392, %v390
      %v443 = vpack.c.b16 %v395, %v393
      %v444 = vpack.c.b16 %v396, %v394
      %v445 = vpack.c.b16 %v399, %v397
      %v446 = vpack.c.b16 %v400, %v398
      %v447 = vpack.c.b16 %v403, %v401
      %v448 = vpack.c.b16 %v404, %v402
      %v449 = vpack.c.b16 %v407, %v405
      %v450 = vpack.c.b16 %v408, %v406
      %v451 = vpack.c.b16 %v411, %v409
      %v452 = vpack.c.b16 %v412, %v410
      %v453 = vpack.c.b16 %v415, %v413
      %v454 = vpack.c.b16 %v416, %v414
      %v455 = vpack.c.b16 %v419, %v417
      %v456 = vpack.c.b16 %v420, %v418
      %v457 = vpack.c.b16 %v423, %v421
      %v458 = vpack.c.b16 %v424, %v422
      %v459 = vpack.c.b16 %v427, %v425
      %v460 = vpack.c.b16 %v428, %v426
      %v525 = vunpack.c.l.b16 %v301
      %v526 = vunpack.c.l.b16 %v302
      %v527 = vunpack.c.l.b16 %v303
      %v528 = vunpack.c.l.b16 %v304
      %v529 = vunpack.c.l.b16 %v305
      %v530 = vunpack.c.l.b16 %v306
      %v531 = vunpack.c.l.b16 %v307
      %v532 = vunpack.c.l.b16 %v308
      %v533 = vunpack.c.l.b16 %v309
      %v534 = vunpack.c.l.b16 %v310
      %v535 = vunpack.c.l.b16 %v311
      %v536 = vunpack.c.l.b16 %v312
      %v537 = vunpack.c.l.b16 %v313
      %v538 = vunpack.c.l.b16 %v314
      %v539 = vunpack.c.l.b16 %v315
      %v540 = vunpack.c.l.b16 %v316
      %v541 = vunpack.c.l.b16 %v317
      %v542 = vunpack.c.l.b16 %v318
      %v543 = vunpack.c.l.b16 %v319
      %v544 = vunpack.c.l.b16 %v320
      %v545 = vunpack.c.l.b16 %v321
      %v546 = vunpack.c.l.b16 %v322
      %v547 = vunpack.c.l.b16 %v323
      %v548 = vunpack.c.l.b16 %v324
      %v549 = vunpack.c.l.b16 %v325
      %v550 = vunpack.c.l.b16 %v326
      %v551 = vunpack.c.l.b16 %v327
      %v552 = vunpack.c.l.b16 %v328
      %v553 = vunpack.c.l.b16 %v329
      %v554 = vunpack.c.l.b16 %v330
      %v555 = vunpack.c.l.b16 %v331
      %v556 = vunpack.c.l.b16 %v332
      %v557 = vpack.c.b16 %v526, %v525
      %v558 = vpack.c.b16 %v528, %v527
      %v559 = vpack.c.b16 %v530, %v529
      %v560 = vpack.c.b16 %v532, %v531
      %v561 = vpack.c.b16 %v534, %v533
      %v562 = vpack.c.b16 %v536, %v535
      %v563 = vpack.c.b16 %v538, %v537
      %v564 = vpack.c.b16 %v540, %v539
      %v565 = vpack.c.b16 %v542, %v541
      %v566 = vpack.c.b16 %v544, %v543
      %v567 = vpack.c.b16 %v546, %v545
      %v568 = vpack.c.b16 %v548, %v547
      %v569 = vpack.c.b16 %v550, %v549
      %v570 = vpack.c.b16 %v552, %v551
      %v571 = vpack.c.b16 %v554, %v553
      %v572 = vpack.c.b16 %v556, %v555
      %589 = vmatprep.subr.bf16.mxu0 0
      %590 = vmatpush1.bf16.msra.mxu0 %v557
      %591 = vmatprep.subr.bf16.mxu0 0
      %592 = vmatpush1.bf16.msra.mxu0 %v558
      %593 = vmatprep.subr.bf16.mxu0 0
      %594 = vmatpush1.bf16.msra.mxu0 %v559
      %595 = vmatprep.subr.bf16.mxu0 0
      %596 = vmatpush1.bf16.msra.mxu0 %v560
      %597 = vmatprep.subr.bf16.mxu0 0
      %598 = vmatpush1.bf16.msra.mxu0 %v561
      %599 = vmatprep.subr.bf16.mxu0 0
      %600 = vmatpush1.bf16.msra.mxu0 %v562
      %601 = vmatprep.subr.bf16.mxu0 0
      %602 = vmatpush1.bf16.msra.mxu0 %v563
      %603 = vmatprep.subr.bf16.mxu0 0
      %604 = vmatpush1.bf16.msra.mxu0 %v564
      %605 = vmatprep.subr.bf16.mxu0 0
      %606 = vmatpush1.bf16.msra.mxu0 %v565
      %607 = vmatprep.subr.bf16.mxu0 0
      %608 = vmatpush1.bf16.msra.mxu0 %v566
      %609 = vmatprep.subr.bf16.mxu0 0
      %610 = vmatpush1.bf16.msra.mxu0 %v567
      %611 = vmatprep.subr.bf16.mxu0 0
      %612 = vmatpush1.bf16.msra.mxu0 %v568
      %613 = vmatprep.subr.bf16.mxu0 0
      %614 = vmatpush1.bf16.msra.mxu0 %v569
      %615 = vmatprep.subr.bf16.mxu0 0
      %616 = vmatpush1.bf16.msra.mxu0 %v570
      %617 = vmatprep.subr.bf16.mxu0 0
      %618 = vmatpush1.bf16.msra.mxu0 %v571
      %619 = vmatprep.subr.bf16.mxu0 0
      %620 = vmatpush1.bf16.msra.mxu0 %v572
      %621 = vmatprep.mubr.bf16.mxu0 %v430
      %622 = vmatmul.mubr.bf16.gmra.mrb[0].mxu0 %v429
      %v623 = vpop.f32.mrb[0].mxu0
      %v624 = vadd.f32 0.0, %v623
      %v625 = vpop.f32.mrb[0].mxu0
      %v626 = vpop.f32.mrb[0].mxu0
      %v627 = vadd.f32 0.0, %v626
      %v628 = vpop.f32.mrb[0].mxu0
      %629 = vmatprep.mubr.bf16.mxu0 %v432
      %630 = vmatmul.mubr.bf16.gmra.mrb[0].mxu0 %v431
      %v631 = vpop.f32.mrb[0].mxu0
      %v632 = vadd.f32 0.0, %v631
      %v633 = vpop.f32.mrb[0].mxu0
      %v634 = vpop.f32.mrb[0].mxu0
      %v635 = vadd.f32 0.0, %v634
      %v636 = vpop.f32.mrb[0].mxu0
      %637 = vmatprep.mubr.bf16.mxu0 %v434
      %638 = vmatmul.mubr.bf16.gmra.mrb[0].mxu0 %v433
      %v639 = vpop.f32.mrb[0].mxu0
      %v640 = vadd.f32 0.0, %v639
      %v641 = vpop.f32.mrb[0].mxu0
      %v642 = vpop.f32.mrb[0].mxu0
      %v643 = vadd.f32 0.0, %v642
      %v644 = vpop.f32.mrb[0].mxu0
      %645 = vmatprep.mubr.bf16.mxu0 %v436
      %646 = vmatmul.mubr.bf16.gmra.mrb[0].mxu0 %v435
      %v647 = vpop.f32.mrb[0].mxu0
      %v648 = vadd.f32 0.0, %v647
      %v649 = vpop.f32.mrb[0].mxu0
      %v650 = vpop.f32.mrb[0].mxu0
      %v651 = vadd.f32 0.0, %v650
      %v652 = vpop.f32.mrb[0].mxu0
      %653 = vmatprep.mubr.bf16.mxu0 %v438
      %654 = vmatmul.mubr.bf16.gmra.mrb[0].mxu0 %v437
      %v655 = vpop.f32.mrb[0].mxu0
      %v656 = vadd.f32 0.0, %v655
      %v657 = vpop.f32.mrb[0].mxu0
      %v658 = vpop.f32.mrb[0].mxu0
      %v659 = vadd.f32 0.0, %v658
      %v660 = vpop.f32.mrb[0].mxu0
      %661 = vmatprep.mubr.bf16.mxu0 %v440
      %662 = vmatmul.mubr.bf16.gmra.mrb[0].mxu0 %v439
      %v663 = vpop.f32.mrb[0].mxu0
      %v664 = vadd.f32 0.0, %v663
      %v665 = vpop.f32.mrb[0].mxu0
      %v666 = vpop.f32.mrb[0].mxu0
      %v667 = vadd.f32 0.0, %v666
      %v668 = vpop.f32.mrb[0].mxu0
      %669 = vmatprep.mubr.bf16.mxu0 %v442
      %670 = vmatmul.mubr.bf16.gmra.mrb[0].mxu0 %v441
      %v671 = vpop.f32.mrb[0].mxu0
      %v672 = vadd.f32 0.0, %v671
      %v673 = vpop.f32.mrb[0].mxu0
      %v674 = vpop.f32.mrb[0].mxu0
      %v675 = vadd.f32 0.0, %v674
      %v676 = vpop.f32.mrb[0].mxu0
      %677 = vmatprep.mubr.bf16.mxu0 %v444
      %678 = vmatmul.mubr.bf16.gmra.mrb[0].mxu0 %v443
      %v679 = vpop.f32.mrb[0].mxu0
      %v680 = vadd.f32 0.0, %v679
      %v681 = vpop.f32.mrb[0].mxu0
      %v682 = vpop.f32.mrb[0].mxu0
      %v683 = vadd.f32 0.0, %v682
      %v684 = vpop.f32.mrb[0].mxu0
      %685 = vmatprep.mubr.bf16.mxu0 %v446
      %686 = vmatmul.mubr.bf16.gmra.mrb[0].mxu0 %v445
      %v687 = vpop.f32.mrb[0].mxu0
      %v688 = vadd.f32 0.0, %v687
      %v689 = vpop.f32.mrb[0].mxu0
      %v690 = vpop.f32.mrb[0].mxu0
      %v691 = vadd.f32 0.0, %v690
      %v692 = vpop.f32.mrb[0].mxu0
      %693 = vmatprep.mubr.bf16.mxu0 %v448
      %694 = vmatmul.mubr.bf16.gmra.mrb[0].mxu0 %v447
      %v695 = vpop.f32.mrb[0].mxu0
      %v696 = vadd.f32 0.0, %v695
      %v697 = vpop.f32.mrb[0].mxu0
      %v698 = vpop.f32.mrb[0].mxu0
      %v699 = vadd.f32 0.0, %v698
      %v700 = vpop.f32.mrb[0].mxu0
      %701 = vmatprep.mubr.bf16.mxu0 %v450
      %702 = vmatmul.mubr.bf16.gmra.mrb[0].mxu0 %v449
      %v703 = vpop.f32.mrb[0].mxu0
      %v704 = vadd.f32 0.0, %v703
      %v705 = vpop.f32.mrb[0].mxu0
      %v706 = vpop.f32.mrb[0].mxu0
      %v707 = vadd.f32 0.0, %v706
      %v708 = vpop.f32.mrb[0].mxu0
      %709 = vmatprep.mubr.bf16.mxu0 %v452
      %710 = vmatmul.mubr.bf16.gmra.mrb[0].mxu0 %v451
      %v711 = vpop.f32.mrb[0].mxu0
      %v712 = vadd.f32 0.0, %v711
      %v713 = vpop.f32.mrb[0].mxu0
      %v714 = vpop.f32.mrb[0].mxu0
      %v715 = vadd.f32 0.0, %v714
      %v716 = vpop.f32.mrb[0].mxu0
      %717 = vmatprep.mubr.bf16.mxu0 %v454
      %718 = vmatmul.mubr.bf16.gmra.mrb[0].mxu0 %v453
      %v719 = vpop.f32.mrb[0].mxu0
      %v720 = vadd.f32 0.0, %v719
      %v721 = vpop.f32.mrb[0].mxu0
      %v722 = vpop.f32.mrb[0].mxu0
      %v723 = vadd.f32 0.0, %v722
      %v724 = vpop.f32.mrb[0].mxu0
      %725 = vmatprep.mubr.bf16.mxu0 %v456
      %726 = vmatmul.mubr.bf16.gmra.mrb[0].mxu0 %v455
      %v727 = vpop.f32.mrb[0].mxu0
      %v728 = vadd.f32 0.0, %v727
      %v729 = vpop.f32.mrb[0].mxu0
      %v730 = vpop.f32.mrb[0].mxu0
      %v731 = vadd.f32 0.0, %v730
      %v732 = vpop.f32.mrb[0].mxu0
      %733 = vmatprep.mubr.bf16.mxu0 %v458
      %734 = vmatmul.mubr.bf16.gmra.mrb[0].mxu0 %v457
      %v735 = vpop.f32.mrb[0].mxu0
      %v736 = vadd.f32 0.0, %v735
      %v737 = vpop.f32.mrb[0].mxu0
      %v738 = vpop.f32.mrb[0].mxu0
      %v739 = vadd.f32 0.0, %v738
      %v740 = vpop.f32.mrb[0].mxu0
      %741 = vmatprep.mubr.bf16.mxu0 %v460
      %742 = vmatmul.mubr.bf16.gmra.mrb[0].mxu0 %v459
      %v743 = vpop.f32.mrb[0].mxu0
      %v744 = vadd.f32 0.0, %v743
      %v745 = vpop.f32.mrb[0].mxu0
      %v746 = vpop.f32.mrb[0].mxu0
      %v747 = vadd.f32 0.0, %v746
      %v748 = vpop.f32.mrb[0].mxu0
      %749 = vdwg.mxu0
      %v750 = vadd.f32 %v237, %v624
      %v751 = vadd.f32 %v238, %v627
      %v752 = vadd.f32 %v239, %v632
      %v753 = vadd.f32 %v240, %v635
      %v754 = vadd.f32 %v241, %v640
      %v755 = vadd.f32 %v242, %v643
      %v756 = vadd.f32 %v243, %v648
      %v757 = vadd.f32 %v244, %v651
      %v758 = vadd.f32 %v245, %v656
      %v759 = vadd.f32 %v246, %v659
      %v760 = vadd.f32 %v247, %v664
      %v761 = vadd.f32 %v248, %v667
      %v762 = vadd.f32 %v249, %v672
      %v763 = vadd.f32 %v250, %v675
      %v764 = vadd.f32 %v251, %v680
      %v765 = vadd.f32 %v252, %v683
      %v766 = vadd.f32 %v253, %v688
      %v767 = vadd.f32 %v254, %v691
      %v768 = vadd.f32 %v255, %v696
      %v769 = vadd.f32 %v256, %v699
      %v770 = vadd.f32 %v257, %v704
      %v771 = vadd.f32 %v258, %v707
      %v772 = vadd.f32 %v259, %v712
      %v773 = vadd.f32 %v260, %v715
      %v774 = vadd.f32 %v261, %v720
      %v775 = vadd.f32 %v262, %v723
      %v776 = vadd.f32 %v263, %v728
      %v777 = vadd.f32 %v264, %v731
      %v778 = vadd.f32 %v265, %v736
      %v779 = vadd.f32 %v266, %v739
      %v780 = vadd.f32 %v267, %v744
      %v781 = vadd.f32 %v268, %v747
      %782 = vst [vmem:[%s198] sm:$0xff] %v750
      %783 = vst [vmem:[%s198 + $0x8] sm:$0xff] %v751
      %784 = vst [vmem:[%s198 + $0x10] sm:$0xff] %v752
      %785 = vst [vmem:[%s198 + $0x18] sm:$0xff] %v753
      %786 = vst [vmem:[%s198 + $0x20] sm:$0xff] %v754
      %787 = vst [vmem:[%s198 + $0x28] sm:$0xff] %v755
      %788 = vst [vmem:[%s198 + $0x30] sm:$0xff] %v756
      %789 = vst [vmem:[%s198 + $0x38] sm:$0xff] %v757
      %790 = vst [vmem:[%s198 + $0x40] sm:$0xff] %v758
      %791 = vst [vmem:[%s198 + $0x48] sm:$0xff] %v759
      %792 = vst [vmem:[%s198 + $0x50] sm:$0xff] %v760
      %793 = vst [vmem:[%s198 + $0x58] sm:$0xff] %v761
      %794 = vst [vmem:[%s198 + $0x60] sm:$0xff] %v762
      %795 = vst [vmem:[%s198 + $0x68] sm:$0xff] %v763
      %796 = vst [vmem:[%s198 + $0x70] sm:$0xff] %v764
      %797 = vst [vmem:[%s198 + $0x78] sm:$0xff] %v765
      %798 = vst [vmem:[%s198 + $0x80] sm:$0xff] %v766
      %799 = vst [vmem:[%s198 + $0x88] sm:$0xff] %v767
      %800 = vst [vmem:[%s198 + $0x90] sm:$0xff] %v768
      %801 = vst [vmem:[%s198 + $0x98] sm:$0xff] %v769
      %802 = vst [vmem:[%s198 + $0xa0] sm:$0xff] %v770
      %803 = vst [vmem:[%s198 + $0xa8] sm:$0xff] %v771
      %804 = vst [vmem:[%s198 + $0xb0] sm:$0xff] %v772
      %805 = vst [vmem:[%s198 + $0xb8] sm:$0xff] %v773
      %806 = vst [vmem:[%s198 + $0xc0] sm:$0xff] %v774
      %807 = vst [vmem:[%s198 + $0xc8] sm:$0xff] %v775
      %808 = vst [vmem:[%s198 + $0xd0] sm:$0xff] %v776
      %809 = vst [vmem:[%s198 + $0xd8] sm:$0xff] %v777
      %810 = vst [vmem:[%s198 + $0xe0] sm:$0xff] %v778
      %811 = vst [vmem:[%s198 + $0xe8] sm:$0xff] %v779
      %812 = vst [vmem:[%s198 + $0xf0] sm:$0xff] %v780
      %813 = vst [vmem:[%s198 + $0xf8] sm:$0xff] %v781
      %s814 = smul.u32 32, %s17
      %p815 = scmp.lt.s32.totalorder %s814, 255
      %s816 = scalar_select %p815, %s814, 255
      %s817 = smul.addr %s816, 8
      %s818 = scalar_lea.vmem %s2, %s817
      // Predicated region
      $region33: #{hessian_layer_u_fwd.8} parent=27 // pred_check
        %p819 = pneg %p97
      $region34: #{hessian_layer_u_fwd.8} parent=27 // pred_check_branch
        %821 = sbr.rel (%p819) target = $region36
      $region35: #{hessian_layer_u_fwd.8} parent=27 // pred_region
        %s822 = smul.u32 32, %s17
      $region36: #{hessian_layer_u_fwd.8} parent=27 // pred_fallthru
        _
    $region28: #{hessian_layer_u_fwd.8} parent=5 // pred_fallthru
      _
    %p823 = scmp.le.s32.totalorder 2, %s8
    // Predicated region
    $region37: #{hessian_layer_u_fwd.8} parent=5 // pred_check
      %p824 = pneg %p823
    $region38: #{hessian_layer_u_fwd.8} parent=5 // pred_check_branch
      %826 = sbr.rel (%p824) target = $region40
    $region39: #{hessian_layer_u_fwd.8} parent=5 // pred_region
      %s827 = ssub.s32 %s8, 2
      // Predicated region
      $region41: #{hessian_layer_u_fwd.8} parent=39 // pred_check
        %p828 = pneg %p103
      $region42: #{hessian_layer_u_fwd.8} parent=39 // pred_check_branch
        %830 = sbr.rel (%p828) target = $region44
      $region43: #{hessian_layer_u_fwd.8} parent=39 // pred_region
        %s831 = smul.u32 32, %s19
        %p832 = scmp.lt.s32.totalorder %s831, 255
        %s833 = scalar_select %p832, %s831, 255
        %s834 = smul.addr %s833, 8
        %s835 = scalar_lea.vmem %s2, %s834
      $region44: #{hessian_layer_u_fwd.8} parent=39 // pred_fallthru
        _
    $region40: #{hessian_layer_u_fwd.8} parent=5 // pred_fallthru
      _
  $region6: #{hessian_layer_u_fwd.8} parent=0 // loop_footer
    %s12 = sadd.s32 1, %s8
  $region7: #{hessian_layer_u_fwd.8} parent=0 // loop_footer_branch
    %7 = sbr.rel target = $region3
  $region8: #{hessian_layer_u_fwd.8} parent=0 // loop_exit
    _

// kernel: hessian_layer_u_fwd.9
$region0: #{hessian_layer_u_fwd.9}
  #allocation0 [shape = 'u32[]', space=smem, size = 0x4, offset = 0x4, fixed_abs, tag = 'smem constant byte address 0x4 - core index']
  #allocation1 [shape = 'u32[144,128]{1,0:T(1,128)}', space=vmem, size = 0x12000, scoped, tag = 'internal scratch']
  %s0 = inlined_call_operand.vmem [shape: f32[2048,8], index: 0, kind: input, shape index: {}]
  %s1 = inlined_call_operand.vmem [shape: f32[2048,8], index: 1, kind: output, shape index: {}]
  %s2 = sld [smem:[#allocation0]]
  $region14: #{hessian_layer_u_fwd.9} parent=0
    _
  %s4 = ssub.s32 1, %s2
  %s5 = scalar_select 0, %s4, %s2
  // Predicated region
  $region2: #{hessian_layer_u_fwd.9} parent=0 // pred_check
    _
  $region3: #{hessian_layer_u_fwd.9} parent=0 // pred_check_branch
    %7 = sbr.rel (0) target = $region5
  $region4: #{hessian_layer_u_fwd.9} parent=0 // pred_region
    _
  $region5: #{hessian_layer_u_fwd.9} parent=0 // pred_fallthru
    _
  %v8 = vld [vmem:[%s0] sm:$0xff]
  %v9 = vld [vmem:[%s0 + $0x8] sm:$0xff]
  %v10 = vld [vmem:[%s0 + $0x10] sm:$0xff]
  %v11 = vld [vmem:[%s0 + $0x18] sm:$0xff]
  %v12 = vld [vmem:[%s0 + $0x20] sm:$0xff]
  %v13 = vld [vmem:[%s0 + $0x28] sm:$0xff]
  %v14 = vld [vmem:[%s0 + $0x30] sm:$0xff]
  %v15 = vld [vmem:[%s0 + $0x38] sm:$0xff]
  %v16 = vld [vmem:[%s0 + $0x40] sm:$0xff]
  %v17 = vld [vmem:[%s0 + $0x48] sm:$0xff]
  %v18 = vld [vmem:[%s0 + $0x50] sm:$0xff]
  %v19 = vld [vmem:[%s0 + $0x58] sm:$0xff]
  %v20 = vld [vmem:[%s0 + $0x60] sm:$0xff]
  %v21 = vld [vmem:[%s0 + $0x68] sm:$0xff]
  %v22 = vld [vmem:[%s0 + $0x70] sm:$0xff]
  %v23 = vld [vmem:[%s0 + $0x78] sm:$0xff]
  %v24 = vld [vmem:[%s0 + $0x80] sm:$0xff]
  %v25 = vld [vmem:[%s0 + $0x88] sm:$0xff]
  %v26 = vld [vmem:[%s0 + $0x90] sm:$0xff]
  %v27 = vld [vmem:[%s0 + $0x98] sm:$0xff]
  %v28 = vld [vmem:[%s0 + $0xa0] sm:$0xff]
  %v29 = vld [vmem:[%s0 + $0xa8] sm:$0xff]
  %v30 = vld [vmem:[%s0 + $0xb0] sm:$0xff]
  %v31 = vld [vmem:[%s0 + $0xb8] sm:$0xff]
  %v32 = vld [vmem:[%s0 + $0xc0] sm:$0xff]
  %v33 = vld [vmem:[%s0 + $0xc8] sm:$0xff]
  %v34 = vld [vmem:[%s0 + $0xd0] sm:$0xff]
  %v35 = vld [vmem:[%s0 + $0xd8] sm:$0xff]
  %v36 = vld [vmem:[%s0 + $0xe0] sm:$0xff]
  %v37 = vld [vmem:[%s0 + $0xe8] sm:$0xff]
  %v38 = vld [vmem:[%s0 + $0xf0] sm:$0xff]
  %v39 = vld [vmem:[%s0 + $0xf8] sm:$0xff]
  %v40 = vld [vmem:[%s0 + $0x100] sm:$0xff]
  %v41 = vld [vmem:[%s0 + $0x108] sm:$0xff]
  %v42 = vld [vmem:[%s0 + $0x110] sm:$0xff]
  %v43 = vld [vmem:[%s0 + $0x118] sm:$0xff]
  %v44 = vld [vmem:[%s0 + $0x120] sm:$0xff]
  %v45 = vld [vmem:[%s0 + $0x128] sm:$0xff]
  %v46 = vld [vmem:[%s0 + $0x130] sm:$0xff]
  %v47 = vld [vmem:[%s0 + $0x138] sm:$0xff]
  %v48 = vld [vmem:[%s0 + $0x140] sm:$0xff]
  %v49 = vld [vmem:[%s0 + $0x148] sm:$0xff]
  %v50 = vld [vmem:[%s0 + $0x150] sm:$0xff]
  %v51 = vld [vmem:[%s0 + $0x158] sm:$0xff]
  %v52 = vld [vmem:[%s0 + $0x160] sm:$0xff]
  %v53 = vld [vmem:[%s0 + $0x168] sm:$0xff]
  %v54 = vld [vmem:[%s0 + $0x170] sm:$0xff]
  %v55 = vld [vmem:[%s0 + $0x178] sm:$0xff]
  %v56 = vld [vmem:[%s0 + $0x180] sm:$0xff]
  %v57 = vld [vmem:[%s0 + $0x188] sm:$0xff]
  %v58 = vld [vmem:[%s0 + $0x190] sm:$0xff]
  %v59 = vld [vmem:[%s0 + $0x198] sm:$0xff]
  %v60 = vld [vmem:[%s0 + $0x1a0] sm:$0xff]
  %v61 = vld [vmem:[%s0 + $0x1a8] sm:$0xff]
  %v62 = vld [vmem:[%s0 + $0x1b0] sm:$0xff]
  %v63 = vld [vmem:[%s0 + $0x1b8] sm:$0xff]
  %v64 = vld [vmem:[%s0 + $0x1c0] sm:$0xff]
  %v65 = vld [vmem:[%s0 + $0x1c8] sm:$0xff]
  %v66 = vld [vmem:[%s0 + $0x1d0] sm:$0xff]
  %v67 = vld [vmem:[%s0 + $0x1d8] sm:$0xff]
  %v68 = vld [vmem:[%s0 + $0x1e0] sm:$0xff]
  %v69 = vld [vmem:[%s0 + $0x1e8] sm:$0xff]
  %v70 = vld [vmem:[%s0 + $0x1f0] sm:$0xff]
  %v71 = vld [vmem:[%s0 + $0x1f8] sm:$0xff]
  %v72 = vld [vmem:[%s0 + $0x200] sm:$0xff]
  %v73 = vld [vmem:[%s0 + $0x208] sm:$0xff]
  %v74 = vld [vmem:[%s0 + $0x210] sm:$0xff]
  %v75 = vld [vmem:[%s0 + $0x218] sm:$0xff]
  %v76 = vld [vmem:[%s0 + $0x220] sm:$0xff]
  %v77 = vld [vmem:[%s0 + $0x228] sm:$0xff]
  %v78 = vld [vmem:[%s0 + $0x230] sm:$0xff]
  %v79 = vld [vmem:[%s0 + $0x238] sm:$0xff]
  %v80 = vld [vmem:[%s0 + $0x240] sm:$0xff]
  %v81 = vld [vmem:[%s0 + $0x248] sm:$0xff]
  %v82 = vld [vmem:[%s0 + $0x250] sm:$0xff]
  %v83 = vld [vmem:[%s0 + $0x258] sm:$0xff]
  %v84 = vld [vmem:[%s0 + $0x260] sm:$0xff]
  %v85 = vld [vmem:[%s0 + $0x268] sm:$0xff]
  %v86 = vld [vmem:[%s0 + $0x270] sm:$0xff]
  %v87 = vld [vmem:[%s0 + $0x278] sm:$0xff]
  %v88 = vld [vmem:[%s0 + $0x280] sm:$0xff]
  %v89 = vld [vmem:[%s0 + $0x288] sm:$0xff]
  %v90 = vld [vmem:[%s0 + $0x290] sm:$0xff]
  %v91 = vld [vmem:[%s0 + $0x298] sm:$0xff]
  %v92 = vld [vmem:[%s0 + $0x2a0] sm:$0xff]
  %v93 = vld [vmem:[%s0 + $0x2a8] sm:$0xff]
  %v94 = vld [vmem:[%s0 + $0x2b0] sm:$0xff]
  %v95 = vld [vmem:[%s0 + $0x2b8] sm:$0xff]
  %v96 = vld [vmem:[%s0 + $0x2c0] sm:$0xff]
  %v97 = vld [vmem:[%s0 + $0x2c8] sm:$0xff]
  %v98 = vld [vmem:[%s0 + $0x2d0] sm:$0xff]
  %v99 = vld [vmem:[%s0 + $0x2d8] sm:$0xff]
  %v100 = vld [vmem:[%s0 + $0x2e0] sm:$0xff]
  %v101 = vld [vmem:[%s0 + $0x2e8] sm:$0xff]
  %v102 = vld [vmem:[%s0 + $0x2f0] sm:$0xff]
  %v103 = vld [vmem:[%s0 + $0x2f8] sm:$0xff]
  %v104 = vld [vmem:[%s0 + $0x300] sm:$0xff]
  %v105 = vld [vmem:[%s0 + $0x308] sm:$0xff]
  %v106 = vld [vmem:[%s0 + $0x310] sm:$0xff]
  %v107 = vld [vmem:[%s0 + $0x318] sm:$0xff]
  %v108 = vld [vmem:[%s0 + $0x320] sm:$0xff]
  %v109 = vld [vmem:[%s0 + $0x328] sm:$0xff]
  %v110 = vld [vmem:[%s0 + $0x330] sm:$0xff]
  %v111 = vld [vmem:[%s0 + $0x338] sm:$0xff]
  %v112 = vld [vmem:[%s0 + $0x340] sm:$0xff]
  %v113 = vld [vmem:[%s0 + $0x348] sm:$0xff]
  %v114 = vld [vmem:[%s0 + $0x350] sm:$0xff]
  %v115 = vld [vmem:[%s0 + $0x358] sm:$0xff]
  %v116 = vld [vmem:[%s0 + $0x360] sm:$0xff]
  %v117 = vld [vmem:[%s0 + $0x368] sm:$0xff]
  %v118 = vld [vmem:[%s0 + $0x370] sm:$0xff]
  %v119 = vld [vmem:[%s0 + $0x378] sm:$0xff]
  %v120 = vld [vmem:[%s0 + $0x380] sm:$0xff]
  %v121 = vld [vmem:[%s0 + $0x388] sm:$0xff]
  %v122 = vld [vmem:[%s0 + $0x390] sm:$0xff]
  %v123 = vld [vmem:[%s0 + $0x398] sm:$0xff]
  %v124 = vld [vmem:[%s0 + $0x3a0] sm:$0xff]
  %v125 = vld [vmem:[%s0 + $0x3a8] sm:$0xff]
  %v126 = vld [vmem:[%s0 + $0x3b0] sm:$0xff]
  %v127 = vld [vmem:[%s0 + $0x3b8] sm:$0xff]
  %v128 = vld [vmem:[%s0 + $0x3c0] sm:$0xff]
  %v129 = vld [vmem:[%s0 + $0x3c8] sm:$0xff]
  %v130 = vld [vmem:[%s0 + $0x3d0] sm:$0xff]
  %v131 = vld [vmem:[%s0 + $0x3d8] sm:$0xff]
  %v132 = vld [vmem:[%s0 + $0x3e0] sm:$0xff]
  %v133 = vld [vmem:[%s0 + $0x3e8] sm:$0xff]
  %v134 = vld [vmem:[%s0 + $0x3f0] sm:$0xff]
  %v135 = vld [vmem:[%s0 + $0x3f8] sm:$0xff]
  %v136 = vld [vmem:[%s0 + $0x400] sm:$0xff]
  %v137 = vld [vmem:[%s0 + $0x408] sm:$0xff]
  %v138 = vld [vmem:[%s0 + $0x410] sm:$0xff]
  %v139 = vld [vmem:[%s0 + $0x418] sm:$0xff]
  %v140 = vld [vmem:[%s0 + $0x420] sm:$0xff]
  %v141 = vld [vmem:[%s0 + $0x428] sm:$0xff]
  %v142 = vld [vmem:[%s0 + $0x430] sm:$0xff]
  %v143 = vld [vmem:[%s0 + $0x438] sm:$0xff]
  %v144 = vld [vmem:[%s0 + $0x440] sm:$0xff]
  %v145 = vld [vmem:[%s0 + $0x448] sm:$0xff]
  %v146 = vld [vmem:[%s0 + $0x450] sm:$0xff]
  %v147 = vld [vmem:[%s0 + $0x458] sm:$0xff]
  %v148 = vld [vmem:[%s0 + $0x460] sm:$0xff]
  %v149 = vld [vmem:[%s0 + $0x468] sm:$0xff]
  %v150 = vld [vmem:[%s0 + $0x470] sm:$0xff]
  %v151 = vld [vmem:[%s0 + $0x478] sm:$0xff]
  %v152 = vld [vmem:[%s0 + $0x480] sm:$0xff]
  %v153 = vld [vmem:[%s0 + $0x488] sm:$0xff]
  %v154 = vld [vmem:[%s0 + $0x490] sm:$0xff]
  %v155 = vld [vmem:[%s0 + $0x498] sm:$0xff]
  %v156 = vld [vmem:[%s0 + $0x4a0] sm:$0xff]
  %v157 = vld [vmem:[%s0 + $0x4a8] sm:$0xff]
  %v158 = vld [vmem:[%s0 + $0x4b0] sm:$0xff]
  %v159 = vld [vmem:[%s0 + $0x4b8] sm:$0xff]
  %v160 = vld [vmem:[%s0 + $0x4c0] sm:$0xff]
  %v161 = vld [vmem:[%s0 + $0x4c8] sm:$0xff]
  %v162 = vld [vmem:[%s0 + $0x4d0] sm:$0xff]
  %v163 = vld [vmem:[%s0 + $0x4d8] sm:$0xff]
  %v164 = vld [vmem:[%s0 + $0x4e0] sm:$0xff]
  %v165 = vld [vmem:[%s0 + $0x4e8] sm:$0xff]
  %v166 = vld [vmem:[%s0 + $0x4f0] sm:$0xff]
  %v167 = vld [vmem:[%s0 + $0x4f8] sm:$0xff]
  %v168 = vld [vmem:[%s0 + $0x500] sm:$0xff]
  %v169 = vld [vmem:[%s0 + $0x508] sm:$0xff]
  %v170 = vld [vmem:[%s0 + $0x510] sm:$0xff]
  %v171 = vld [vmem:[%s0 + $0x518] sm:$0xff]
  %v172 = vld [vmem:[%s0 + $0x520] sm:$0xff]
  %v173 = vld [vmem:[%s0 + $0x528] sm:$0xff]
  %v174 = vld [vmem:[%s0 + $0x530] sm:$0xff]
  %v175 = vld [vmem:[%s0 + $0x538] sm:$0xff]
  %v176 = vld [vmem:[%s0 + $0x540] sm:$0xff]
  %v177 = vld [vmem:[%s0 + $0x548] sm:$0xff]
  %v178 = vld [vmem:[%s0 + $0x550] sm:$0xff]
  %v179 = vld [vmem:[%s0 + $0x558] sm:$0xff]
  %v180 = vld [vmem:[%s0 + $0x560] sm:$0xff]
  %v181 = vld [vmem:[%s0 + $0x568] sm:$0xff]
  %v182 = vld [vmem:[%s0 + $0x570] sm:$0xff]
  %v183 = vld [vmem:[%s0 + $0x578] sm:$0xff]
  %v184 = vld [vmem:[%s0 + $0x580] sm:$0xff]
  %v185 = vld [vmem:[%s0 + $0x588] sm:$0xff]
  %v186 = vld [vmem:[%s0 + $0x590] sm:$0xff]
  %v187 = vld [vmem:[%s0 + $0x598] sm:$0xff]
  %v188 = vld [vmem:[%s0 + $0x5a0] sm:$0xff]
  %v189 = vld [vmem:[%s0 + $0x5a8] sm:$0xff]
  %v190 = vld [vmem:[%s0 + $0x5b0] sm:$0xff]
  %v191 = vld [vmem:[%s0 + $0x5b8] sm:$0xff]
  %v192 = vld [vmem:[%s0 + $0x5c0] sm:$0xff]
  %v193 = vld [vmem:[%s0 + $0x5c8] sm:$0xff]
  %v194 = vld [vmem:[%s0 + $0x5d0] sm:$0xff]
  %v195 = vld [vmem:[%s0 + $0x5d8] sm:$0xff]
  %v196 = vld [vmem:[%s0 + $0x5e0] sm:$0xff]
  %v197 = vld [vmem:[%s0 + $0x5e8] sm:$0xff]
  %v198 = vld [vmem:[%s0 + $0x5f0] sm:$0xff]
  %v199 = vld [vmem:[%s0 + $0x5f8] sm:$0xff]
  %v200 = vld [vmem:[%s0 + $0x600] sm:$0xff]
  %v201 = vld [vmem:[%s0 + $0x608] sm:$0xff]
  %v202 = vld [vmem:[%s0 + $0x610] sm:$0xff]
  %v203 = vld [vmem:[%s0 + $0x618] sm:$0xff]
  %v204 = vld [vmem:[%s0 + $0x620] sm:$0xff]
  %v205 = vld [vmem:[%s0 + $0x628] sm:$0xff]
  %v206 = vld [vmem:[%s0 + $0x630] sm:$0xff]
  %v207 = vld [vmem:[%s0 + $0x638] sm:$0xff]
  %v208 = vld [vmem:[%s0 + $0x640] sm:$0xff]
  %v209 = vld [vmem:[%s0 + $0x648] sm:$0xff]
  %v210 = vld [vmem:[%s0 + $0x650] sm:$0xff]
  %v211 = vld [vmem:[%s0 + $0x658] sm:$0xff]
  %v212 = vld [vmem:[%s0 + $0x660] sm:$0xff]
  %v213 = vld [vmem:[%s0 + $0x668] sm:$0xff]
  %v214 = vld [vmem:[%s0 + $0x670] sm:$0xff]
  %v215 = vld [vmem:[%s0 + $0x678] sm:$0xff]
  %v216 = vld [vmem:[%s0 + $0x680] sm:$0xff]
  %v217 = vld [vmem:[%s0 + $0x688] sm:$0xff]
  %v218 = vld [vmem:[%s0 + $0x690] sm:$0xff]
  %v219 = vld [vmem:[%s0 + $0x698] sm:$0xff]
  %v220 = vld [vmem:[%s0 + $0x6a0] sm:$0xff]
  %v221 = vld [vmem:[%s0 + $0x6a8] sm:$0xff]
  %v222 = vld [vmem:[%s0 + $0x6b0] sm:$0xff]
  %v223 = vld [vmem:[%s0 + $0x6b8] sm:$0xff]
  %v224 = vld [vmem:[%s0 + $0x6c0] sm:$0xff]
  %v225 = vld [vmem:[%s0 + $0x6c8] sm:$0xff]
  %v226 = vld [vmem:[%s0 + $0x6d0] sm:$0xff]
  %v227 = vld [vmem:[%s0 + $0x6d8] sm:$0xff]
  %v228 = vld [vmem:[%s0 + $0x6e0] sm:$0xff]
  %v229 = vld [vmem:[%s0 + $0x6e8] sm:$0xff]
  %v230 = vld [vmem:[%s0 + $0x6f0] sm:$0xff]
  %v231 = vld [vmem:[%s0 + $0x6f8] sm:$0xff]
  %v232 = vld [vmem:[%s0 + $0x700] sm:$0xff]
  %v233 = vld [vmem:[%s0 + $0x708] sm:$0xff]
  %v234 = vld [vmem:[%s0 + $0x710] sm:$0xff]
  %v235 = vld [vmem:[%s0 + $0x718] sm:$0xff]
  %v236 = vld [vmem:[%s0 + $0x720] sm:$0xff]
  %v237 = vld [vmem:[%s0 + $0x728] sm:$0xff]
  %v238 = vld [vmem:[%s0 + $0x730] sm:$0xff]
  %v239 = vld [vmem:[%s0 + $0x738] sm:$0xff]
  %v240 = vld [vmem:[%s0 + $0x740] sm:$0xff]
  %v241 = vld [vmem:[%s0 + $0x748] sm:$0xff]
  %v242 = vld [vmem:[%s0 + $0x750] sm:$0xff]
  %v243 = vld [vmem:[%s0 + $0x758] sm:$0xff]
  %v244 = vld [vmem:[%s0 + $0x760] sm:$0xff]
  %v245 = vld [vmem:[%s0 + $0x768] sm:$0xff]
  %v246 = vld [vmem:[%s0 + $0x770] sm:$0xff]
  %v247 = vld [vmem:[%s0 + $0x778] sm:$0xff]
  %v248 = vld [vmem:[%s0 + $0x780] sm:$0xff]
  %v249 = vld [vmem:[%s0 + $0x788] sm:$0xff]
  %v250 = vld [vmem:[%s0 + $0x790] sm:$0xff]
  %v251 = vld [vmem:[%s0 + $0x798] sm:$0xff]
  %v252 = vld [vmem:[%s0 + $0x7a0] sm:$0xff]
  %v253 = vld [vmem:[%s0 + $0x7a8] sm:$0xff]
  %v254 = vld [vmem:[%s0 + $0x7b0] sm:$0xff]
  %v255 = vld [vmem:[%s0 + $0x7b8] sm:$0xff]
  %v256 = vld [vmem:[%s0 + $0x7c0] sm:$0xff]
  %v257 = vld [vmem:[%s0 + $0x7c8] sm:$0xff]
  %v258 = vld [vmem:[%s0 + $0x7d0] sm:$0xff]
  %v259 = vld [vmem:[%s0 + $0x7d8] sm:$0xff]
  %v260 = vld [vmem:[%s0 + $0x7e0] sm:$0xff]
  %v261 = vld [vmem:[%s0 + $0x7e8] sm:$0xff]
  %v262 = vld [vmem:[%s0 + $0x7f0] sm:$0xff]
  %v263 = vld [vmem:[%s0 + $0x7f8] sm:$0xff]
  %vm264 = vcmask 64512
  %v265 = vsel %vm264, %v8, 0.0
  %v266 = vsel %vm264, %v9, 0.0
  %v267 = vadd.f32 %v265, %v266
  %v268 = vsel %vm264, %v10, 0.0
  %v269 = vadd.f32 %v267, %v268
  %v270 = vsel %vm264, %v11, 0.0
  %v271 = vadd.f32 %v269, %v270
  %v272 = vsel %vm264, %v12, 0.0
  %v273 = vadd.f32 %v271, %v272
  %v274 = vsel %vm264, %v13, 0.0
  %v275 = vadd.f32 %v273, %v274
  %v276 = vsel %vm264, %v14, 0.0
  %v277 = vadd.f32 %v275, %v276
  %v278 = vsel %vm264, %v15, 0.0
  %v279 = vadd.f32 %v277, %v278
  %v280 = vsel %vm264, %v16, 0.0
  %v281 = vadd.f32 %v279, %v280
  %v282 = vsel %vm264, %v17, 0.0
  %v283 = vadd.f32 %v281, %v282
  %v284 = vsel %vm264, %v18, 0.0
  %v285 = vadd.f32 %v283, %v284
  %v286 = vsel %vm264, %v19, 0.0
  %v287 = vadd.f32 %v285, %v286
  %v288 = vsel %vm264, %v20, 0.0
  %v289 = vadd.f32 %v287, %v288
  %v290 = vsel %vm264, %v21, 0.0
  %v291 = vadd.f32 %v289, %v290
  %v292 = vsel %vm264, %v22, 0.0
  %v293 = vadd.f32 %v291, %v292
  %v294 = vsel %vm264, %v23, 0.0
  %v295 = vadd.f32 %v293, %v294
  %v296 = vsel %vm264, %v24, 0.0
  %v297 = vadd.f32 %v295, %v296
  %v298 = vsel %vm264, %v25, 0.0
  %v299 = vadd.f32 %v297, %v298
  %v300 = vsel %vm264, %v26, 0.0
  %v301 = vadd.f32 %v299, %v300
  %v302 = vsel %vm264, %v27, 0.0
  %v303 = vadd.f32 %v301, %v302
  %v304 = vsel %vm264, %v28, 0.0
  %v305 = vadd.f32 %v303, %v304
  %v306 = vsel %vm264, %v29, 0.0
  %v307 = vadd.f32 %v305, %v306
  %v308 = vsel %vm264, %v30, 0.0
  %v309 = vadd.f32 %v307, %v308
  %v310 = vsel %vm264, %v31, 0.0
  %v311 = vadd.f32 %v309, %v310
  %v312 = vsel %vm264, %v32, 0.0
  %v313 = vadd.f32 %v311, %v312
  %v314 = vsel %vm264, %v33, 0.0
  %v315 = vadd.f32 %v313, %v314
  %v316 = vsel %vm264, %v34, 0.0
  %v317 = vadd.f32 %v315, %v316
  %v318 = vsel %vm264, %v35, 0.0
  %v319 = vadd.f32 %v317, %v318
  %v320 = vsel %vm264, %v36, 0.0
  %v321 = vadd.f32 %v319, %v320
  %v322 = vsel %vm264, %v37, 0.0
  %v323 = vadd.f32 %v321, %v322
  %v324 = vsel %vm264, %v38, 0.0
  %v325 = vadd.f32 %v323, %v324
  %v326 = vsel %vm264, %v39, 0.0
  %v327 = vadd.f32 %v325, %v326
  %v328 = vsel %vm264, %v40, 0.0
  %v329 = vadd.f32 %v327, %v328
  %v330 = vsel %vm264, %v41, 0.0
  %v331 = vadd.f32 %v329, %v330
  %v332 = vsel %vm264, %v42, 0.0
  %v333 = vadd.f32 %v331, %v332
  %v334 = vsel %vm264, %v43, 0.0
  %v335 = vadd.f32 %v333, %v334
  %v336 = vsel %vm264, %v44, 0.0
  %v337 = vadd.f32 %v335, %v336
  %v338 = vsel %vm264, %v45, 0.0
  %v339 = vadd.f32 %v337, %v338
  %v340 = vsel %vm264, %v46, 0.0
  %v341 = vadd.f32 %v339, %v340
  %v342 = vsel %vm264, %v47, 0.0
  %v343 = vadd.f32 %v341, %v342
  %v344 = vsel %vm264, %v48, 0.0
  %v345 = vadd.f32 %v343, %v344
  %v346 = vsel %vm264, %v49, 0.0
  %v347 = vadd.f32 %v345, %v346
  %v348 = vsel %vm264, %v50, 0.0
  %v349 = vadd.f32 %v347, %v348
  %v350 = vsel %vm264, %v51, 0.0
  %v351 = vadd.f32 %v349, %v350
  %v352 = vsel %vm264, %v52, 0.0
  %v353 = vadd.f32 %v351, %v352
  %v354 = vsel %vm264, %v53, 0.0
  %v355 = vadd.f32 %v353, %v354
  %v356 = vsel %vm264, %v54, 0.0
  %v357 = vadd.f32 %v355, %v356
  %v358 = vsel %vm264, %v55, 0.0
  %v359 = vadd.f32 %v357, %v358
  %v360 = vsel %vm264, %v56, 0.0
  %v361 = vadd.f32 %v359, %v360
  %v362 = vsel %vm264, %v57, 0.0
  %v363 = vadd.f32 %v361, %v362
  %v364 = vsel %vm264, %v58, 0.0
  %v365 = vadd.f32 %v363, %v364
  %v366 = vsel %vm264, %v59, 0.0
  %v367 = vadd.f32 %v365, %v366
  %v368 = vsel %vm264, %v60, 0.0
  %v369 = vadd.f32 %v367, %v368
  %v370 = vsel %vm264, %v61, 0.0
  %v371 = vadd.f32 %v369, %v370
  %v372 = vsel %vm264, %v62, 0.0
  %v373 = vadd.f32 %v371, %v372
  %v374 = vsel %vm264, %v63, 0.0
  %v375 = vadd.f32 %v373, %v374
  %v376 = vsel %vm264, %v64, 0.0
  %v377 = vadd.f32 %v375, %v376
  %v378 = vsel %vm264, %v65, 0.0
  %v379 = vadd.f32 %v377, %v378
  %v380 = vsel %vm264, %v66, 0.0
  %v381 = vadd.f32 %v379, %v380
  %v382 = vsel %vm264, %v67, 0.0
  %v383 = vadd.f32 %v381, %v382
  %v384 = vsel %vm264, %v68, 0.0
  %v385 = vadd.f32 %v383, %v384
  %v386 = vsel %vm264, %v69, 0.0
  %v387 = vadd.f32 %v385, %v386
  %v388 = vsel %vm264, %v70, 0.0
  %v389 = vadd.f32 %v387, %v388
  %v390 = vsel %vm264, %v71, 0.0
  %v391 = vadd.f32 %v389, %v390
  %v392 = vsel %vm264, %v72, 0.0
  %v393 = vadd.f32 %v391, %v392
  %v394 = vsel %vm264, %v73, 0.0
  %v395 = vadd.f32 %v393, %v394
  %v396 = vsel %vm264, %v74, 0.0
  %v397 = vadd.f32 %v395, %v396
  %v398 = vsel %vm264, %v75, 0.0
  %v399 = vadd.f32 %v397, %v398
  %v400 = vsel %vm264, %v76, 0.0
  %v401 = vadd.f32 %v399, %v400
  %v402 = vsel %vm264, %v77, 0.0
  %v403 = vadd.f32 %v401, %v402
  %v404 = vsel %vm264, %v78, 0.0
  %v405 = vadd.f32 %v403, %v404
  %v406 = vsel %vm264, %v79, 0.0
  %v407 = vadd.f32 %v405, %v406
  %v408 = vsel %vm264, %v80, 0.0
  %v409 = vadd.f32 %v407, %v408
  %v410 = vsel %vm264, %v81, 0.0
  %v411 = vadd.f32 %v409, %v410
  %v412 = vsel %vm264, %v82, 0.0
  %v413 = vadd.f32 %v411, %v412
  %v414 = vsel %vm264, %v83, 0.0
  %v415 = vadd.f32 %v413, %v414
  %v416 = vsel %vm264, %v84, 0.0
  %v417 = vadd.f32 %v415, %v416
  %v418 = vsel %vm264, %v85, 0.0
  %v419 = vadd.f32 %v417, %v418
  %v420 = vsel %vm264, %v86, 0.0
  %v421 = vadd.f32 %v419, %v420
  %v422 = vsel %vm264, %v87, 0.0
  %v423 = vadd.f32 %v421, %v422
  %v424 = vsel %vm264, %v88, 0.0
  %v425 = vadd.f32 %v423, %v424
  %v426 = vsel %vm264, %v89, 0.0
  %v427 = vadd.f32 %v425, %v426
  %v428 = vsel %vm264, %v90, 0.0
  %v429 = vadd.f32 %v427, %v428
  %v430 = vsel %vm264, %v91, 0.0
  %v431 = vadd.f32 %v429, %v430
  %v432 = vsel %vm264, %v92, 0.0
  %v433 = vadd.f32 %v431, %v432
  %v434 = vsel %vm264, %v93, 0.0
  %v435 = vadd.f32 %v433, %v434
  %v436 = vsel %vm264, %v94, 0.0
  %v437 = vadd.f32 %v435, %v436
  %v438 = vsel %vm264, %v95, 0.0
  %v439 = vadd.f32 %v437, %v438
  %v440 = vsel %vm264, %v96, 0.0
  %v441 = vadd.f32 %v439, %v440
  %v442 = vsel %vm264, %v97, 0.0
  %v443 = vadd.f32 %v441, %v442
  %v444 = vsel %vm264, %v98, 0.0
  %v445 = vadd.f32 %v443, %v444
  %v446 = vsel %vm264, %v99, 0.0
  %v447 = vadd.f32 %v445, %v446
  %v448 = vsel %vm264, %v100, 0.0
  %v449 = vadd.f32 %v447, %v448
  %v450 = vsel %vm264, %v101, 0.0
  %v451 = vadd.f32 %v449, %v450
  %v452 = vsel %vm264, %v102, 0.0
  %v453 = vadd.f32 %v451, %v452
  %v454 = vsel %vm264, %v103, 0.0
  %v455 = vadd.f32 %v453, %v454
  %v456 = vsel %vm264, %v104, 0.0
  %v457 = vadd.f32 %v455, %v456
  %v458 = vsel %vm264, %v105, 0.0
  %v459 = vadd.f32 %v457, %v458
  %v460 = vsel %vm264, %v106, 0.0
  %v461 = vadd.f32 %v459, %v460
  %v462 = vsel %vm264, %v107, 0.0
  %v463 = vadd.f32 %v461, %v462
  %v464 = vsel %vm264, %v108, 0.0
  %v465 = vadd.f32 %v463, %v464
  %v466 = vsel %vm264, %v109, 0.0
  %v467 = vadd.f32 %v465, %v466
  %v468 = vsel %vm264, %v110, 0.0
  %v469 = vadd.f32 %v467, %v468
  %v470 = vsel %vm264, %v111, 0.0
  %v471 = vadd.f32 %v469, %v470
  %v472 = vsel %vm264, %v112, 0.0
  %v473 = vadd.f32 %v471, %v472
  %v474 = vsel %vm264, %v113, 0.0
  %v475 = vadd.f32 %v473, %v474
  %v476 = vsel %vm264, %v114, 0.0
  %v477 = vadd.f32 %v475, %v476
  %v478 = vsel %vm264, %v115, 0.0
  %v479 = vadd.f32 %v477, %v478
  %v480 = vsel %vm264, %v116, 0.0
  %v481 = vadd.f32 %v479, %v480
  %v482 = vsel %vm264, %v117, 0.0
  %v483 = vadd.f32 %v481, %v482
  %v484 = vsel %vm264, %v118, 0.0
  %v485 = vadd.f32 %v483, %v484
  %v486 = vsel %vm264, %v119, 0.0
  %v487 = vadd.f32 %v485, %v486
  %v488 = vsel %vm264, %v120, 0.0
  %v489 = vadd.f32 %v487, %v488
  %v490 = vsel %vm264, %v121, 0.0
  %v491 = vadd.f32 %v489, %v490
  %v492 = vsel %vm264, %v122, 0.0
  %v493 = vadd.f32 %v491, %v492
  %v494 = vsel %vm264, %v123, 0.0
  %v495 = vadd.f32 %v493, %v494
  %v496 = vsel %vm264, %v124, 0.0
  %v497 = vadd.f32 %v495, %v496
  %v498 = vsel %vm264, %v125, 0.0
  %v499 = vadd.f32 %v497, %v498
  %v500 = vsel %vm264, %v126, 0.0
  %v501 = vadd.f32 %v499, %v500
  %v502 = vsel %vm264, %v127, 0.0
  %v503 = vadd.f32 %v501, %v502
  %v504 = vsel %vm264, %v128, 0.0
  %v505 = vadd.f32 %v503, %v504
  %v506 = vsel %vm264, %v129, 0.0
  %v507 = vadd.f32 %v505, %v506
  %v508 = vsel %vm264, %v130, 0.0
  %v509 = vadd.f32 %v507, %v508
  %v510 = vsel %vm264, %v131, 0.0
  %v511 = vadd.f32 %v509, %v510
  %v512 = vsel %vm264, %v132, 0.0
  %v513 = vadd.f32 %v511, %v512
  %v514 = vsel %vm264, %v133, 0.0
  %v515 = vadd.f32 %v513, %v514
  %v516 = vsel %vm264, %v134, 0.0
  %v517 = vadd.f32 %v515, %v516
  %v518 = vsel %vm264, %v135, 0.0
  %v519 = vadd.f32 %v517, %v518
  %v520 = vsel %vm264, %v136, 0.0
  %v521 = vadd.f32 %v519, %v520
  %v522 = vsel %vm264, %v137, 0.0
  %v523 = vadd.f32 %v521, %v522
  %v524 = vsel %vm264, %v138, 0.0
  %v525 = vadd.f32 %v523, %v524
  %v526 = vsel %vm264, %v139, 0.0
  %v527 = vadd.f32 %v525, %v526
  %v528 = vsel %vm264, %v140, 0.0
  %v529 = vadd.f32 %v527, %v528
  %v530 = vsel %vm264, %v141, 0.0
  %v531 = vadd.f32 %v529, %v530
  %v532 = vsel %vm264, %v142, 0.0
  %v533 = vadd.f32 %v531, %v532
  %v534 = vsel %vm264, %v143, 0.0
  %v535 = vadd.f32 %v533, %v534
  %v536 = vsel %vm264, %v144, 0.0
  %v537 = vadd.f32 %v535, %v536
  %v538 = vsel %vm264, %v145, 0.0
  %v539 = vadd.f32 %v537, %v538
  %v540 = vsel %vm264, %v146, 0.0
  %v541 = vadd.f32 %v539, %v540
  %v542 = vsel %vm264, %v147, 0.0
  %v543 = vadd.f32 %v541, %v542
  %v544 = vsel %vm264, %v148, 0.0
  %v545 = vadd.f32 %v543, %v544
  %v546 = vsel %vm264, %v149, 0.0
  %v547 = vadd.f32 %v545, %v546
  %v548 = vsel %vm264, %v150, 0.0
  %v549 = vadd.f32 %v547, %v548
  %v550 = vsel %vm264, %v151, 0.0
  %v551 = vadd.f32 %v549, %v550
  %v552 = vsel %vm264, %v152, 0.0
  %v553 = vadd.f32 %v551, %v552
  %v554 = vsel %vm264, %v153, 0.0
  %v555 = vadd.f32 %v553, %v554
  %v556 = vsel %vm264, %v154, 0.0
  %v557 = vadd.f32 %v555, %v556
  %v558 = vsel %vm264, %v155, 0.0
  %v559 = vadd.f32 %v557, %v558
  %v560 = vsel %vm264, %v156, 0.0
  %v561 = vadd.f32 %v559, %v560
  %v562 = vsel %vm264, %v157, 0.0
  %v563 = vadd.f32 %v561, %v562
  %v564 = vsel %vm264, %v158, 0.0
  %v565 = vadd.f32 %v563, %v564
  %v566 = vsel %vm264, %v159, 0.0
  %v567 = vadd.f32 %v565, %v566
  %v568 = vsel %vm264, %v160, 0.0
  %v569 = vadd.f32 %v567, %v568
  %v570 = vsel %vm264, %v161, 0.0
  %v571 = vadd.f32 %v569, %v570
  %v572 = vsel %vm264, %v162, 0.0
  %v573 = vadd.f32 %v571, %v572
  %v574 = vsel %vm264, %v163, 0.0
  %v575 = vadd.f32 %v573, %v574
  %v576 = vsel %vm264, %v164, 0.0
  %v577 = vadd.f32 %v575, %v576
  %v578 = vsel %vm264, %v165, 0.0
  %v579 = vadd.f32 %v577, %v578
  %v580 = vsel %vm264, %v166, 0.0
  %v581 = vadd.f32 %v579, %v580
  %v582 = vsel %vm264, %v167, 0.0
  %v583 = vadd.f32 %v581, %v582
  %v584 = vsel %vm264, %v168, 0.0
  %v585 = vadd.f32 %v583, %v584
  %v586 = vsel %vm264, %v169, 0.0
  %v587 = vadd.f32 %v585, %v586
  %v588 = vsel %vm264, %v170, 0.0
  %v589 = vadd.f32 %v587, %v588
  %v590 = vsel %vm264, %v171, 0.0
  %v591 = vadd.f32 %v589, %v590
  %v592 = vsel %vm264, %v172, 0.0
  %v593 = vadd.f32 %v591, %v592
  %v594 = vsel %vm264, %v173, 0.0
  %v595 = vadd.f32 %v593, %v594
  %v596 = vsel %vm264, %v174, 0.0
  %v597 = vadd.f32 %v595, %v596
  %v598 = vsel %vm264, %v175, 0.0
  %v599 = vadd.f32 %v597, %v598
  %v600 = vsel %vm264, %v176, 0.0
  %v601 = vadd.f32 %v599, %v600
  %v602 = vsel %vm264, %v177, 0.0
  %v603 = vadd.f32 %v601, %v602
  %v604 = vsel %vm264, %v178, 0.0
  %v605 = vadd.f32 %v603, %v604
  %v606 = vsel %vm264, %v179, 0.0
  %v607 = vadd.f32 %v605, %v606
  %v608 = vsel %vm264, %v180, 0.0
  %v609 = vadd.f32 %v607, %v608
  %v610 = vsel %vm264, %v181, 0.0
  %v611 = vadd.f32 %v609, %v610
  %v612 = vsel %vm264, %v182, 0.0
  %v613 = vadd.f32 %v611, %v612
  %v614 = vsel %vm264, %v183, 0.0
  %v615 = vadd.f32 %v613, %v614
  %v616 = vsel %vm264, %v184, 0.0
  %v617 = vadd.f32 %v615, %v616
  %v618 = vsel %vm264, %v185, 0.0
  %v619 = vadd.f32 %v617, %v618
  %v620 = vsel %vm264, %v186, 0.0
  %v621 = vadd.f32 %v619, %v620
  %v622 = vsel %vm264, %v187, 0.0
  %v623 = vadd.f32 %v621, %v622
  %v624 = vsel %vm264, %v188, 0.0
  %v625 = vadd.f32 %v623, %v624
  %v626 = vsel %vm264, %v189, 0.0
  %v627 = vadd.f32 %v625, %v626
  %v628 = vsel %vm264, %v190, 0.0
  %v629 = vadd.f32 %v627, %v628
  %v630 = vsel %vm264, %v191, 0.0
  %v631 = vadd.f32 %v629, %v630
  %v632 = vsel %vm264, %v192, 0.0
  %v633 = vadd.f32 %v631, %v632
  %v634 = vsel %vm264, %v193, 0.0
  %v635 = vadd.f32 %v633, %v634
  %v636 = vsel %vm264, %v194, 0.0
  %v637 = vadd.f32 %v635, %v636
  %v638 = vsel %vm264, %v195, 0.0
  %v639 = vadd.f32 %v637, %v638
  %v640 = vsel %vm264, %v196, 0.0
  %v641 = vadd.f32 %v639, %v640
  %v642 = vsel %vm264, %v197, 0.0
  %v643 = vadd.f32 %v641, %v642
  %v644 = vsel %vm264, %v198, 0.0
  %v645 = vadd.f32 %v643, %v644
  %v646 = vsel %vm264, %v199, 0.0
  %v647 = vadd.f32 %v645, %v646
  %v648 = vsel %vm264, %v200, 0.0
  %v649 = vadd.f32 %v647, %v648
  %v650 = vsel %vm264, %v201, 0.0
  %v651 = vadd.f32 %v649, %v650
  %v652 = vsel %vm264, %v202, 0.0
  %v653 = vadd.f32 %v651, %v652
  %v654 = vsel %vm264, %v203, 0.0
  %v655 = vadd.f32 %v653, %v654
  %v656 = vsel %vm264, %v204, 0.0
  %v657 = vadd.f32 %v655, %v656
  %v658 = vsel %vm264, %v205, 0.0
  %v659 = vadd.f32 %v657, %v658
  %v660 = vsel %vm264, %v206, 0.0
  %v661 = vadd.f32 %v659, %v660
  %v662 = vsel %vm264, %v207, 0.0
  %v663 = vadd.f32 %v661, %v662
  %v664 = vsel %vm264, %v208, 0.0
  %v665 = vadd.f32 %v663, %v664
  %v666 = vsel %vm264, %v209, 0.0
  %v667 = vadd.f32 %v665, %v666
  %v668 = vsel %vm264, %v210, 0.0
  %v669 = vadd.f32 %v667, %v668
  %v670 = vsel %vm264, %v211, 0.0
  %v671 = vadd.f32 %v669, %v670
  %v672 = vsel %vm264, %v212, 0.0
  %v673 = vadd.f32 %v671, %v672
  %v674 = vsel %vm264, %v213, 0.0
  %v675 = vadd.f32 %v673, %v674
  %v676 = vsel %vm264, %v214, 0.0
  %v677 = vadd.f32 %v675, %v676
  %v678 = vsel %vm264, %v215, 0.0
  %v679 = vadd.f32 %v677, %v678
  %v680 = vsel %vm264, %v216, 0.0
  %v681 = vadd.f32 %v679, %v680
  %v682 = vsel %vm264, %v217, 0.0
  %v683 = vadd.f32 %v681, %v682
  %v684 = vsel %vm264, %v218, 0.0
  %v685 = vadd.f32 %v683, %v684
  %v686 = vsel %vm264, %v219, 0.0
  %v687 = vadd.f32 %v685, %v686
  %v688 = vsel %vm264, %v220, 0.0
  %v689 = vadd.f32 %v687, %v688
  %v690 = vsel %vm264, %v221, 0.0
  %v691 = vadd.f32 %v689, %v690
  %v692 = vsel %vm264, %v222, 0.0
  %v693 = vadd.f32 %v691, %v692
  %v694 = vsel %vm264, %v223, 0.0
  %v695 = vadd.f32 %v693, %v694
  %v696 = vsel %vm264, %v224, 0.0
  %v697 = vadd.f32 %v695, %v696
  %v698 = vsel %vm264, %v225, 0.0
  %v699 = vadd.f32 %v697, %v698
  %v700 = vsel %vm264, %v226, 0.0
  %v701 = vadd.f32 %v699, %v700
  %v702 = vsel %vm264, %v227, 0.0
  %v703 = vadd.f32 %v701, %v702
  %v704 = vsel %vm264, %v228, 0.0
  %v705 = vadd.f32 %v703, %v704
  %v706 = vsel %vm264, %v229, 0.0
  %v707 = vadd.f32 %v705, %v706
  %v708 = vsel %vm264, %v230, 0.0
  %v709 = vadd.f32 %v707, %v708
  %v710 = vsel %vm264, %v231, 0.0
  %v711 = vadd.f32 %v709, %v710
  %v712 = vsel %vm264, %v232, 0.0
  %v713 = vadd.f32 %v711, %v712
  %v714 = vsel %vm264, %v233, 0.0
  %v715 = vadd.f32 %v713, %v714
  %v716 = vsel %vm264, %v234, 0.0
  %v717 = vadd.f32 %v715, %v716
  %v718 = vsel %vm264, %v235, 0.0
  %v719 = vadd.f32 %v717, %v718
  %v720 = vsel %vm264, %v236, 0.0
  %v721 = vadd.f32 %v719, %v720
  %v722 = vsel %vm264, %v237, 0.0
  %v723 = vadd.f32 %v721, %v722
  %v724 = vsel %vm264, %v238, 0.0
  %v725 = vadd.f32 %v723, %v724
  %v726 = vsel %vm264, %v239, 0.0
  %v727 = vadd.f32 %v725, %v726
  %v728 = vsel %vm264, %v240, 0.0
  %v729 = vadd.f32 %v727, %v728
  %v730 = vsel %vm264, %v241, 0.0
  %v731 = vadd.f32 %v729, %v730
  %v732 = vsel %vm264, %v242, 0.0
  %v733 = vadd.f32 %v731, %v732
  %v734 = vsel %vm264, %v243, 0.0
  %v735 = vadd.f32 %v733, %v734
  %v736 = vsel %vm264, %v244, 0.0
  %v737 = vadd.f32 %v735, %v736
  %v738 = vsel %vm264, %v245, 0.0
  %v739 = vadd.f32 %v737, %v738
  %v740 = vsel %vm264, %v246, 0.0
  %v741 = vadd.f32 %v739, %v740
  %v742 = vsel %vm264, %v247, 0.0
  %v743 = vadd.f32 %v741, %v742
  %v744 = vsel %vm264, %v248, 0.0
  %v745 = vadd.f32 %v743, %v744
  %v746 = vsel %vm264, %v249, 0.0
  %v747 = vadd.f32 %v745, %v746
  %v748 = vsel %vm264, %v250, 0.0
  %v749 = vadd.f32 %v747, %v748
  %v750 = vsel %vm264, %v251, 0.0
  %v751 = vadd.f32 %v749, %v750
  %v752 = vsel %vm264, %v252, 0.0
  %v753 = vadd.f32 %v751, %v752
  %v754 = vsel %vm264, %v253, 0.0
  %v755 = vadd.f32 %v753, %v754
  %v756 = vsel %vm264, %v254, 0.0
  %v757 = vadd.f32 %v755, %v756
  %v758 = vsel %vm264, %v255, 0.0
  %v759 = vadd.f32 %v757, %v758
  %v760 = vsel %vm264, %v256, 0.0
  %v761 = vadd.f32 %v759, %v760
  %v762 = vsel %vm264, %v257, 0.0
  %v763 = vadd.f32 %v761, %v762
  %v764 = vsel %vm264, %v258, 0.0
  %v765 = vadd.f32 %v763, %v764
  %v766 = vsel %vm264, %v259, 0.0
  %v767 = vadd.f32 %v765, %v766
  %v768 = vsel %vm264, %v260, 0.0
  %v769 = vadd.f32 %v767, %v768
  %v770 = vsel %vm264, %v261, 0.0
  %v771 = vadd.f32 %v769, %v770
  %v772 = vsel %vm264, %v262, 0.0
  %v773 = vadd.f32 %v771, %v772
  %v774 = vsel %vm264, %v263, 0.0
  %v775 = vadd.f32 %v773, %v774
  %v776 = vrot.slane %v775, 4
  %v777 = vadd.f32 %v775, %v776
  %v778 = vrot.slane %v777, 2
  %v779 = vadd.f32 %v777, %v778
  %v780 = vrot.slane %v779, 1
  %v781 = vadd.f32 %v779, %v780
  %v782 = vrcp.pop 2048.0
  %v783 = vmul.f32 %v781, %v782
  %v784 = vsub.f32 %v8, %v783
  %v785 = vsub.f32 %v9, %v783
  %v786 = vsub.f32 %v10, %v783
  %v787 = vsub.f32 %v11, %v783
  %v788 = vsub.f32 %v12, %v783
  %v789 = vsub.f32 %v13, %v783
  %v790 = vsub.f32 %v14, %v783
  %v791 = vsub.f32 %v15, %v783
  %v792 = vsub.f32 %v16, %v783
  %v793 = vsub.f32 %v17, %v783
  %v794 = vsub.f32 %v18, %v783
  %v795 = vsub.f32 %v19, %v783
  %v796 = vsub.f32 %v20, %v783
  %v797 = vsub.f32 %v21, %v783
  %v798 = vsub.f32 %v22, %v783
  %v799 = vsub.f32 %v23, %v783
  %v800 = vsub.f32 %v24, %v783
  %v801 = vsub.f32 %v25, %v783
  %v802 = vsub.f32 %v26, %v783
  %v803 = vsub.f32 %v27, %v783
  %v804 = vsub.f32 %v28, %v783
  %v805 = vsub.f32 %v29, %v783
  %v806 = vsub.f32 %v30, %v783
  %v807 = vsub.f32 %v31, %v783
  %v808 = vsub.f32 %v32, %v783
  %v809 = vsub.f32 %v33, %v783
  %v810 = vsub.f32 %v34, %v783
  %v811 = vsub.f32 %v35, %v783
  %v812 = vsub.f32 %v36, %v783
  %v813 = vsub.f32 %v37, %v783
  %v814 = vsub.f32 %v38, %v783
  %v815 = vsub.f32 %v39, %v783
  %v816 = vsub.f32 %v40, %v783
  %v817 = vsub.f32 %v41, %v783
  %v818 = vsub.f32 %v42, %v783
  %v819 = vsub.f32 %v43, %v783
  %v820 = vsub.f32 %v44, %v783
  %v821 = vsub.f32 %v45, %v783
  %v822 = vsub.f32 %v46, %v783
  %v823 = vsub.f32 %v47, %v783
  %v824 = vsub.f32 %v48, %v783
  %v825 = vsub.f32 %v49, %v783
  %v826 = vsub.f32 %v50, %v783
  %v827 = vsub.f32 %v51, %v783
  %v828 = vsub.f32 %v52, %v783
  %v829 = vsub.f32 %v53, %v783
  %v830 = vsub.f32 %v54, %v783
  %v831 = vsub.f32 %v55, %v783
  %v832 = vsub.f32 %v56, %v783
  %v833 = vsub.f32 %v57, %v783
  %v834 = vsub.f32 %v58, %v783
  %v835 = vsub.f32 %v59, %v783
  %v836 = vsub.f32 %v60, %v783
  %v837 = vsub.f32 %v61, %v783
  %v838 = vsub.f32 %v62, %v783
  %v839 = vsub.f32 %v63, %v783
  %v840 = vsub.f32 %v64, %v783
  %v841 = vsub.f32 %v65, %v783
  %v842 = vsub.f32 %v66, %v783
  %v843 = vsub.f32 %v67, %v783
  %v844 = vsub.f32 %v68, %v783
  %v845 = vsub.f32 %v69, %v783
  %v846 = vsub.f32 %v70, %v783
  %v847 = vsub.f32 %v71, %v783
  %v848 = vsub.f32 %v72, %v783
  %v849 = vsub.f32 %v73, %v783
  %v850 = vsub.f32 %v74, %v783
  %v851 = vsub.f32 %v75, %v783
  %v852 = vsub.f32 %v76, %v783
  %v853 = vsub.f32 %v77, %v783
  %v854 = vsub.f32 %v78, %v783
  %v855 = vsub.f32 %v79, %v783
  %v856 = vsub.f32 %v80, %v783
  %v857 = vsub.f32 %v81, %v783
  %v858 = vsub.f32 %v82, %v783
  %v859 = vsub.f32 %v83, %v783
  %v860 = vsub.f32 %v84, %v783
  %v861 = vsub.f32 %v85, %v783
  %v862 = vsub.f32 %v86, %v783
  %v863 = vsub.f32 %v87, %v783
  %v864 = vsub.f32 %v88, %v783
  %v865 = vsub.f32 %v89, %v783
  %v866 = vsub.f32 %v90, %v783
  %v867 = vsub.f32 %v91, %v783
  %v868 = vsub.f32 %v92, %v783
  %v869 = vsub.f32 %v93, %v783
  %v870 = vsub.f32 %v94, %v783
  %v871 = vsub.f32 %v95, %v783
  %v872 = vsub.f32 %v96, %v783
  %v873 = vsub.f32 %v97, %v783
  %v874 = vsub.f32 %v98, %v783
  %v875 = vsub.f32 %v99, %v783
  %v876 = vsub.f32 %v100, %v783
  %v877 = vsub.f32 %v101, %v783
  %v878 = vsub.f32 %v102, %v783
  %v879 = vsub.f32 %v103, %v783
  %v880 = vsub.f32 %v104, %v783
  %v881 = vsub.f32 %v105, %v783
  %v882 = vsub.f32 %v106, %v783
  %v883 = vsub.f32 %v107, %v783
  %v884 = vsub.f32 %v108, %v783
  %v885 = vsub.f32 %v109, %v783
  %v886 = vsub.f32 %v110, %v783
  %v887 = vsub.f32 %v111, %v783
  %v888 = vsub.f32 %v112, %v783
  %v889 = vsub.f32 %v113, %v783
  %v890 = vsub.f32 %v114, %v783
  %v891 = vsub.f32 %v115, %v783
  %v892 = vsub.f32 %v116, %v783
  %v893 = vsub.f32 %v117, %v783
  %v894 = vsub.f32 %v118, %v783
  %v895 = vsub.f32 %v119, %v783
  %v896 = vsub.f32 %v120, %v783
  %v897 = vsub.f32 %v121, %v783
  %v898 = vsub.f32 %v122, %v783
  %v899 = vsub.f32 %v123, %v783
  %v900 = vsub.f32 %v124, %v783
  %v901 = vsub.f32 %v125, %v783
  %v902 = vsub.f32 %v126, %v783
  %v903 = vsub.f32 %v127, %v783
  %v904 = vsub.f32 %v128, %v783
  %v905 = vsub.f32 %v129, %v783
  %v906 = vsub.f32 %v130, %v783
  %v907 = vsub.f32 %v131, %v783
  %v908 = vsub.f32 %v132, %v783
  %v909 = vsub.f32 %v133, %v783
  %v910 = vsub.f32 %v134, %v783
  %v911 = vsub.f32 %v135, %v783
  %v912 = vsub.f32 %v136, %v783
  %v913 = vsub.f32 %v137, %v783
  %v914 = vsub.f32 %v138, %v783
  %v915 = vsub.f32 %v139, %v783
  %v916 = vsub.f32 %v140, %v783
  %v917 = vsub.f32 %v141, %v783
  %v918 = vsub.f32 %v142, %v783
  %v919 = vsub.f32 %v143, %v783
  %v920 = vsub.f32 %v144, %v783
  %v921 = vsub.f32 %v145, %v783
  %v922 = vsub.f32 %v146, %v783
  %v923 = vsub.f32 %v147, %v783
  %v924 = vsub.f32 %v148, %v783
  %v925 = vsub.f32 %v149, %v783
  %v926 = vsub.f32 %v150, %v783
  %v927 = vsub.f32 %v151, %v783
  %v928 = vsub.f32 %v152, %v783
  %v929 = vsub.f32 %v153, %v783
  %v930 = vsub.f32 %v154, %v783
  %v931 = vsub.f32 %v155, %v783
  %v932 = vsub.f32 %v156, %v783
  %v933 = vsub.f32 %v157, %v783
  %v934 = vsub.f32 %v158, %v783
  %v935 = vsub.f32 %v159, %v783
  %v936 = vsub.f32 %v160, %v783
  %v937 = vsub.f32 %v161, %v783
  %v938 = vsub.f32 %v162, %v783
  %v939 = vsub.f32 %v163, %v783
  %v940 = vsub.f32 %v164, %v783
  %v941 = vsub.f32 %v165, %v783
  %v942 = vsub.f32 %v166, %v783
  %v943 = vsub.f32 %v167, %v783
  %v944 = vsub.f32 %v168, %v783
  %v945 = vsub.f32 %v169, %v783
  %v946 = vsub.f32 %v170, %v783
  %v947 = vsub.f32 %v171, %v783
  %v948 = vsub.f32 %v172, %v783
  %v949 = vsub.f32 %v173, %v783
  %v950 = vsub.f32 %v174, %v783
  %v951 = vsub.f32 %v175, %v783
  %v952 = vsub.f32 %v176, %v783
  %v953 = vsub.f32 %v177, %v783
  %v954 = vsub.f32 %v178, %v783
  %v955 = vsub.f32 %v179, %v783
  %v956 = vsub.f32 %v180, %v783
  %v957 = vsub.f32 %v181, %v783
  %v958 = vsub.f32 %v182, %v783
  %v959 = vsub.f32 %v183, %v783
  %v960 = vsub.f32 %v184, %v783
  %v961 = vsub.f32 %v185, %v783
  %v962 = vsub.f32 %v186, %v783
  %v963 = vsub.f32 %v187, %v783
  %v964 = vsub.f32 %v188, %v783
  %v965 = vsub.f32 %v189, %v783
  %v966 = vsub.f32 %v190, %v783
  %v967 = vsub.f32 %v191, %v783
  %v968 = vsub.f32 %v192, %v783
  %v969 = vsub.f32 %v193, %v783
  %v970 = vsub.f32 %v194, %v783
  %v971 = vsub.f32 %v195, %v783
  %v972 = vsub.f32 %v196, %v783
  %v973 = vsub.f32 %v197, %v783
  %v974 = vsub.f32 %v198, %v783
  %v975 = vsub.f32 %v199, %v783
  %v976 = vsub.f32 %v200, %v783
  %v977 = vsub.f32 %v201, %v783
  %v978 = vsub.f32 %v202, %v783
  %v979 = vsub.f32 %v203, %v783
  %v980 = vsub.f32 %v204, %v783
  %v981 = vsub.f32 %v205, %v783
  %v982 = vsub.f32 %v206, %v783
  %v983 = vsub.f32 %v207, %v783
  %v984 = vsub.f32 %v208, %v783
  %v985 = vsub.f32 %v209, %v783
  %v986 = vsub.f32 %v210, %v783
  %v987 = vsub.f32 %v211, %v783
  %v988 = vsub.f32 %v212, %v783
  %v989 = vsub.f32 %v213, %v783
  %v990 = vsub.f32 %v214, %v783
  %v991 = vsub.f32 %v215, %v783
  %v992 = vsub.f32 %v216, %v783
  %v993 = vsub.f32 %v217, %v783
  %v994 = vsub.f32 %v218, %v783
  %v995 = vsub.f32 %v219, %v783
  %v996 = vsub.f32 %v220, %v783
  %v997 = vsub.f32 %v221, %v783
  %v998 = vsub.f32 %v222, %v783
  %v999 = vsub.f32 %v223, %v783
  %v1000 = vsub.f32 %v224, %v783
  %v1001 = vsub.f32 %v225, %v783
  %v1002 = vsub.f32 %v226, %v783
  %v1003 = vsub.f32 %v227, %v783
  %v1004 = vsub.f32 %v228, %v783
  %v1005 = vsub.f32 %v229, %v783
  %v1006 = vsub.f32 %v230, %v783
  %v1007 = vsub.f32 %v231, %v783
  %v1008 = vsub.f32 %v232, %v783
  %v1009 = vsub.f32 %v233, %v783
  %v1010 = vsub.f32 %v234, %v783
  %v1011 = vsub.f32 %v235, %v783
  %v1012 = vsub.f32 %v236, %v783
  %v1013 = vsub.f32 %v237, %v783
  %v1014 = vsub.f32 %v238, %v783
  %v1015 = vsub.f32 %v239, %v783
  %v1016 = vsub.f32 %v240, %v783
  %v1017 = vsub.f32 %v241, %v783
  %v1018 = vsub.f32 %v242, %v783
  %v1019 = vsub.f32 %v243, %v783
  %v1020 = vsub.f32 %v244, %v783
  %v1021 = vsub.f32 %v245, %v783
  %v1022 = vsub.f32 %v246, %v783
  %v1023 = vsub.f32 %v247, %v783
  %v1024 = vsub.f32 %v248, %v783
  %v1025 = vsub.f32 %v249, %v783
  %v1026 = vsub.f32 %v250, %v783
  %v1027 = vsub.f32 %v251, %v783
  %v1028 = vsub.f32 %v252, %v783
  %v1029 = vsub.f32 %v253, %v783
  %v1030 = vsub.f32 %v254, %v783
  %v1031 = vsub.f32 %v255, %v783
  %v1032 = vsub.f32 %v256, %v783
  %v1033 = vsub.f32 %v257, %v783
  %v1034 = vsub.f32 %v258, %v783
  %v1035 = vsub.f32 %v259, %v783
  %v1036 = vsub.f32 %v260, %v783
  %v1037 = vsub.f32 %v261, %v783
  %v1038 = vsub.f32 %v262, %v783
  %v1039 = vsub.f32 %v263, %v783
  %v1040 = vmul.f32 %v784, %v784
  %v1041 = vmul.f32 %v785, %v785
  %v1042 = vmul.f32 %v786, %v786
  %v1043 = vmul.f32 %v787, %v787
  %v1044 = vmul.f32 %v788, %v788
  %v1045 = vmul.f32 %v789, %v789
  %v1046 = vmul.f32 %v790, %v790
  %v1047 = vmul.f32 %v791, %v791
  %v1048 = vmul.f32 %v792, %v792
  %v1049 = vmul.f32 %v793, %v793
  %v1050 = vmul.f32 %v794, %v794
  %v1051 = vmul.f32 %v795, %v795
  %v1052 = vmul.f32 %v796, %v796
  %v1053 = vmul.f32 %v797, %v797
  %v1054 = vmul.f32 %v798, %v798
  %v1055 = vmul.f32 %v799, %v799
  %v1056 = vmul.f32 %v800, %v800
  %v1057 = vmul.f32 %v801, %v801
  %v1058 = vmul.f32 %v802, %v802
  %v1059 = vmul.f32 %v803, %v803
  %v1060 = vmul.f32 %v804, %v804
  %v1061 = vmul.f32 %v805, %v805
  %v1062 = vmul.f32 %v806, %v806
  %v1063 = vmul.f32 %v807, %v807
  %v1064 = vmul.f32 %v808, %v808
  %v1065 = vmul.f32 %v809, %v809
  %v1066 = vmul.f32 %v810, %v810
  %v1067 = vmul.f32 %v811, %v811
  %v1068 = vmul.f32 %v812, %v812
  %v1069 = vmul.f32 %v813, %v813
  %v1070 = vmul.f32 %v814, %v814
  %v1071 = vmul.f32 %v815, %v815
  %v1072 = vmul.f32 %v816, %v816
  %v1073 = vmul.f32 %v817, %v817
  %v1074 = vmul.f32 %v818, %v818
  %v1075 = vmul.f32 %v819, %v819
  %v1076 = vmul.f32 %v820, %v820
  %v1077 = vmul.f32 %v821, %v821
  %v1078 = vmul.f32 %v822, %v822
  %v1079 = vmul.f32 %v823, %v823
  %v1080 = vmul.f32 %v824, %v824
  %v1081 = vmul.f32 %v825, %v825
  %v1082 = vmul.f32 %v826, %v826
  %v1083 = vmul.f32 %v827, %v827
  %v1084 = vmul.f32 %v828, %v828
  %v1085 = vmul.f32 %v829, %v829
  %v1086 = vmul.f32 %v830, %v830
  %v1087 = vmul.f32 %v831, %v831
  %v1088 = vmul.f32 %v832, %v832
  %v1089 = vmul.f32 %v833, %v833
  %v1090 = vmul.f32 %v834, %v834
  %v1091 = vmul.f32 %v835, %v835
  %v1092 = vmul.f32 %v836, %v836
  %v1093 = vmul.f32 %v837, %v837
  %v1094 = vmul.f32 %v838, %v838
  %v1095 = vmul.f32 %v839, %v839
  %v1096 = vmul.f32 %v840, %v840
  %v1097 = vmul.f32 %v841, %v841
  %v1098 = vmul.f32 %v842, %v842
  %v1099 = vmul.f32 %v843, %v843
  %v1100 = vmul.f32 %v844, %v844
  %v1101 = vmul.f32 %v845, %v845
  %v1102 = vmul.f32 %v846, %v846
  %v1103 = vmul.f32 %v847, %v847
  %v1104 = vmul.f32 %v848, %v848
  %v1105 = vmul.f32 %v849, %v849
  %v1106 = vmul.f32 %v850, %v850
  %v1107 = vmul.f32 %v851, %v851
  %v1108 = vmul.f32 %v852, %v852
  %v1109 = vmul.f32 %v853, %v853
  %v1110 = vmul.f32 %v854, %v854
  %v1111 = vmul.f32 %v855, %v855
  %v1112 = vmul.f32 %v856, %v856
  %v1113 = vmul.f32 %v857, %v857
  %v1114 = vmul.f32 %v858, %v858
  %v1115 = vmul.f32 %v859, %v859
  %v1116 = vmul.f32 %v860, %v860
  %v1117 = vmul.f32 %v861, %v861
  %v1118 = vmul.f32 %v862, %v862
  %v1119 = vmul.f32 %v863, %v863
  %v1120 = vmul.f32 %v864, %v864
  %v1121 = vmul.f32 %v865, %v865
  %v1122 = vmul.f32 %v866, %v866
  %v1123 = vmul.f32 %v867, %v867
  %v1124 = vmul.f32 %v868, %v868
  %v1125 = vmul.f32 %v869, %v869
  %v1126 = vmul.f32 %v870, %v870
  %v1127 = vmul.f32 %v871, %v871
  %v1128 = vmul.f32 %v872, %v872
  %v1129 = vmul.f32 %v873, %v873
  %v1130 = vmul.f32 %v874, %v874
  %v1131 = vmul.f32 %v875, %v875
  %v1132 = vmul.f32 %v876, %v876
  %v1133 = vmul.f32 %v877, %v877
  %v1134 = vmul.f32 %v878, %v878
  %v1135 = vmul.f32 %v879, %v879
  %v1136 = vmul.f32 %v880, %v880
  %v1137 = vmul.f32 %v881, %v881
  %v1138 = vmul.f32 %v882, %v882
  %v1139 = vmul.f32 %v883, %v883
  %v1140 = vmul.f32 %v884, %v884
  %v1141 = vmul.f32 %v885, %v885
  %v1142 = vmul.f32 %v886, %v886
  %v1143 = vmul.f32 %v887, %v887
  %v1144 = vmul.f32 %v888, %v888
  %v1145 = vmul.f32 %v889, %v889
  %v1146 = vmul.f32 %v890, %v890
  %v1147 = vmul.f32 %v891, %v891
  %v1148 = vmul.f32 %v892, %v892
  %v1149 = vmul.f32 %v893, %v893
  %v1150 = vmul.f32 %v894, %v894
  %v1151 = vmul.f32 %v895, %v895
  %v1152 = vmul.f32 %v896, %v896
  %v1153 = vmul.f32 %v897, %v897
  %v1154 = vmul.f32 %v898, %v898
  %v1155 = vmul.f32 %v899, %v899
  %v1156 = vmul.f32 %v900, %v900
  %v1157 = vmul.f32 %v901, %v901
  %v1158 = vmul.f32 %v902, %v902
  %v1159 = vmul.f32 %v903, %v903
  %v1160 = vmul.f32 %v904, %v904
  %v1161 = vmul.f32 %v905, %v905
  %v1162 = vmul.f32 %v906, %v906
  %v1163 = vmul.f32 %v907, %v907
  %v1164 = vmul.f32 %v908, %v908
  %v1165 = vmul.f32 %v909, %v909
  %v1166 = vmul.f32 %v910, %v910
  %v1167 = vmul.f32 %v911, %v911
  %v1168 = vmul.f32 %v912, %v912
  %v1169 = vmul.f32 %v913, %v913
  %v1170 = vmul.f32 %v914, %v914
  %v1171 = vmul.f32 %v915, %v915
  %v1172 = vmul.f32 %v916, %v916
  %v1173 = vmul.f32 %v917, %v917
  %v1174 = vmul.f32 %v918, %v918
  %v1175 = vmul.f32 %v919, %v919
  %v1176 = vmul.f32 %v920, %v920
  %v1177 = vmul.f32 %v921, %v921
  %v1178 = vmul.f32 %v922, %v922
  %v1179 = vmul.f32 %v923, %v923
  %v1180 = vmul.f32 %v924, %v924
  %v1181 = vmul.f32 %v925, %v925
  %v1182 = vmul.f32 %v926, %v926
  %v1183 = vmul.f32 %v927, %v927
  %v1184 = vmul.f32 %v928, %v928
  %v1185 = vmul.f32 %v929, %v929
  %v1186 = vmul.f32 %v930, %v930
  %v1187 = vmul.f32 %v931, %v931
  %v1188 = vmul.f32 %v932, %v932
  %v1189 = vmul.f32 %v933, %v933
  %v1190 = vmul.f32 %v934, %v934
  %v1191 = vmul.f32 %v935, %v935
  %v1192 = vmul.f32 %v936, %v936
  %v1193 = vmul.f32 %v937, %v937
  %v1194 = vmul.f32 %v938, %v938
  %v1195 = vmul.f32 %v939, %v939
  %v1196 = vmul.f32 %v940, %v940
  %v1197 = vmul.f32 %v941, %v941
  %v1198 = vmul.f32 %v942, %v942
  %v1199 = vmul.f32 %v943, %v943
  %v1200 = vmul.f32 %v944, %v944
  %v1201 = vmul.f32 %v945, %v945
  %v1202 = vmul.f32 %v946, %v946
  %v1203 = vmul.f32 %v947, %v947
  %v1204 = vmul.f32 %v948, %v948
  %v1205 = vmul.f32 %v949, %v949
  %v1206 = vmul.f32 %v950, %v950
  %v1207 = vmul.f32 %v951, %v951
  %v1208 = vmul.f32 %v952, %v952
  %v1209 = vmul.f32 %v953, %v953
  %v1210 = vmul.f32 %v954, %v954
  %v1211 = vmul.f32 %v955, %v955
  %v1212 = vmul.f32 %v956, %v956
  %v1213 = vmul.f32 %v957, %v957
  %v1214 = vmul.f32 %v958, %v958
  %v1215 = vmul.f32 %v959, %v959
  %v1216 = vmul.f32 %v960, %v960
  %v1217 = vmul.f32 %v961, %v961
  %v1218 = vmul.f32 %v962, %v962
  %v1219 = vmul.f32 %v963, %v963
  %v1220 = vmul.f32 %v964, %v964
  %v1221 = vmul.f32 %v965, %v965
  %v1222 = vmul.f32 %v966, %v966
  %v1223 = vmul.f32 %v967, %v967
  %v1224 = vmul.f32 %v968, %v968
  %v1225 = vmul.f32 %v969, %v969
  %v1226 = vmul.f32 %v970, %v970
  %v1227 = vmul.f32 %v971, %v971
  %v1228 = vmul.f32 %v972, %v972
  %v1229 = vmul.f32 %v973, %v973
  %v1230 = vmul.f32 %v974, %v974
  %v1231 = vmul.f32 %v975, %v975
  %v1232 = vmul.f32 %v976, %v976
  %v1233 = vmul.f32 %v977, %v977
  %v1234 = vmul.f32 %v978, %v978
  %v1235 = vmul.f32 %v979, %v979
  %v1236 = vmul.f32 %v980, %v980
  %v1237 = vmul.f32 %v981, %v981
  %v1238 = vmul.f32 %v982, %v982
  %v1239 = vmul.f32 %v983, %v983
  %v1240 = vmul.f32 %v984, %v984
  %v1241 = vmul.f32 %v985, %v985
  %v1242 = vmul.f32 %v986, %v986
  %v1243 = vmul.f32 %v987, %v987
  %v1244 = vmul.f32 %v988, %v988
  %v1245 = vmul.f32 %v989, %v989
  %v1246 = vmul.f32 %v990, %v990
  %v1247 = vmul.f32 %v991, %v991
  %v1248 = vmul.f32 %v992, %v992
  %v1249 = vmul.f32 %v993, %v993
  %v1250 = vmul.f32 %v994, %v994
  %v1251 = vmul.f32 %v995, %v995
  %v1252 = vmul.f32 %v996, %v996
  %v1253 = vmul.f32 %v997, %v997
  %v1254 = vmul.f32 %v998, %v998
  %v1255 = vmul.f32 %v999, %v999
  %v1256 = vmul.f32 %v1000, %v1000
  %v1257 = vmul.f32 %v1001, %v1001
  %v1258 = vmul.f32 %v1002, %v1002
  %v1259 = vmul.f32 %v1003, %v1003
  %v1260 = vmul.f32 %v1004, %v1004
  %v1261 = vmul.f32 %v1005, %v1005
  %v1262 = vmul.f32 %v1006, %v1006
  %v1263 = vmul.f32 %v1007, %v1007
  %v1264 = vmul.f32 %v1008, %v1008
  %v1265 = vmul.f32 %v1009, %v1009
  %v1266 = vmul.f32 %v1010, %v1010
  %v1267 = vmul.f32 %v1011, %v1011
  %v1268 = vmul.f32 %v1012, %v1012
  %v1269 = vmul.f32 %v1013, %v1013
  %v1270 = vmul.f32 %v1014, %v1014
  %v1271 = vmul.f32 %v1015, %v1015
  %v1272 = vmul.f32 %v1016, %v1016
  %v1273 = vmul.f32 %v1017, %v1017
  %v1274 = vmul.f32 %v1018, %v1018
  %v1275 = vmul.f32 %v1019, %v1019
  %v1276 = vmul.f32 %v1020, %v1020
  %v1277 = vmul.f32 %v1021, %v1021
  %v1278 = vmul.f32 %v1022, %v1022
  %v1279 = vmul.f32 %v1023, %v1023
  %v1280 = vmul.f32 %v1024, %v1024
  %v1281 = vmul.f32 %v1025, %v1025
  %v1282 = vmul.f32 %v1026, %v1026
  %v1283 = vmul.f32 %v1027, %v1027
  %v1284 = vmul.f32 %v1028, %v1028
  %v1285 = vmul.f32 %v1029, %v1029
  %v1286 = vmul.f32 %v1030, %v1030
  %v1287 = vmul.f32 %v1031, %v1031
  %v1288 = vmul.f32 %v1032, %v1032
  %v1289 = vmul.f32 %v1033, %v1033
  %v1290 = vmul.f32 %v1034, %v1034
  %v1291 = vmul.f32 %v1035, %v1035
  %v1292 = vmul.f32 %v1036, %v1036
  %v1293 = vmul.f32 %v1037, %v1037
  %v1294 = vmul.f32 %v1038, %v1038
  %v1295 = vmul.f32 %v1039, %v1039
  %v1296 = vsel %vm264, %v1040, 0.0
  %v1297 = vsel %vm264, %v1041, 0.0
  %v1298 = vadd.f32 %v1296, %v1297
  %v1299 = vsel %vm264, %v1042, 0.0
  %v1300 = vadd.f32 %v1298, %v1299
  %v1301 = vsel %vm264, %v1043, 0.0
  %v1302 = vadd.f32 %v1300, %v1301
  %v1303 = vsel %vm264, %v1044, 0.0
  %v1304 = vadd.f32 %v1302, %v1303
  %v1305 = vsel %vm264, %v1045, 0.0
  %v1306 = vadd.f32 %v1304, %v1305
  %v1307 = vsel %vm264, %v1046, 0.0
  %v1308 = vadd.f32 %v1306, %v1307
  %v1309 = vsel %vm264, %v1047, 0.0
  %v1310 = vadd.f32 %v1308, %v1309
  %v1311 = vsel %vm264, %v1048, 0.0
  %v1312 = vadd.f32 %v1310, %v1311
  %v1313 = vsel %vm264, %v1049, 0.0
  %v1314 = vadd.f32 %v1312, %v1313
  %v1315 = vsel %vm264, %v1050, 0.0
  %v1316 = vadd.f32 %v1314, %v1315
  %v1317 = vsel %vm264, %v1051, 0.0
  %v1318 = vadd.f32 %v1316, %v1317
  %v1319 = vsel %vm264, %v1052, 0.0
  %v1320 = vadd.f32 %v1318, %v1319
  %v1321 = vsel %vm264, %v1053, 0.0
  %v1322 = vadd.f32 %v1320, %v1321
  %v1323 = vsel %vm264, %v1054, 0.0
  %v1324 = vadd.f32 %v1322, %v1323
  %v1325 = vsel %vm264, %v1055, 0.0
  %v1326 = vadd.f32 %v1324, %v1325
  %v1327 = vsel %vm264, %v1056, 0.0
  %v1328 = vadd.f32 %v1326, %v1327
  %v1329 = vsel %vm264, %v1057, 0.0
  %v1330 = vadd.f32 %v1328, %v1329
  %v1331 = vsel %vm264, %v1058, 0.0
  %v1332 = vadd.f32 %v1330, %v1331
  %v1333 = vsel %vm264, %v1059, 0.0
  %v1334 = vadd.f32 %v1332, %v1333
  %v1335 = vsel %vm264, %v1060, 0.0
  %v1336 = vadd.f32 %v1334, %v1335
  %v1337 = vsel %vm264, %v1061, 0.0
  %v1338 = vadd.f32 %v1336, %v1337
  %v1339 = vsel %vm264, %v1062, 0.0
  %v1340 = vadd.f32 %v1338, %v1339
  %v1341 = vsel %vm264, %v1063, 0.0
  %v1342 = vadd.f32 %v1340, %v1341
  %v1343 = vsel %vm264, %v1064, 0.0
  %v1344 = vadd.f32 %v1342, %v1343
  %v1345 = vsel %vm264, %v1065, 0.0
  %v1346 = vadd.f32 %v1344, %v1345
  %v1347 = vsel %vm264, %v1066, 0.0
  %v1348 = vadd.f32 %v1346, %v1347
  %v1349 = vsel %vm264, %v1067, 0.0
  %v1350 = vadd.f32 %v1348, %v1349
  %v1351 = vsel %vm264, %v1068, 0.0
  %v1352 = vadd.f32 %v1350, %v1351
  %v1353 = vsel %vm264, %v1069, 0.0
  %v1354 = vadd.f32 %v1352, %v1353
  %v1355 = vsel %vm264, %v1070, 0.0
  %v1356 = vadd.f32 %v1354, %v1355
  %v1357 = vsel %vm264, %v1071, 0.0
  %v1358 = vadd.f32 %v1356, %v1357
  %v1359 = vsel %vm264, %v1072, 0.0
  %v1360 = vadd.f32 %v1358, %v1359
  %v1361 = vsel %vm264, %v1073, 0.0
  %v1362 = vadd.f32 %v1360, %v1361
  %v1363 = vsel %vm264, %v1074, 0.0
  %v1364 = vadd.f32 %v1362, %v1363
  %v1365 = vsel %vm264, %v1075, 0.0
  %v1366 = vadd.f32 %v1364, %v1365
  %v1367 = vsel %vm264, %v1076, 0.0
  %v1368 = vadd.f32 %v1366, %v1367
  %v1369 = vsel %vm264, %v1077, 0.0
  %v1370 = vadd.f32 %v1368, %v1369
  %v1371 = vsel %vm264, %v1078, 0.0
  %v1372 = vadd.f32 %v1370, %v1371
  %v1373 = vsel %vm264, %v1079, 0.0
  %v1374 = vadd.f32 %v1372, %v1373
  %v1375 = vsel %vm264, %v1080, 0.0
  %v1376 = vadd.f32 %v1374, %v1375
  %v1377 = vsel %vm264, %v1081, 0.0
  %v1378 = vadd.f32 %v1376, %v1377
  %v1379 = vsel %vm264, %v1082, 0.0
  %v1380 = vadd.f32 %v1378, %v1379
  %v1381 = vsel %vm264, %v1083, 0.0
  %v1382 = vadd.f32 %v1380, %v1381
  %v1383 = vsel %vm264, %v1084, 0.0
  %v1384 = vadd.f32 %v1382, %v1383
  %v1385 = vsel %vm264, %v1085, 0.0
  %v1386 = vadd.f32 %v1384, %v1385
  %v1387 = vsel %vm264, %v1086, 0.0
  %v1388 = vadd.f32 %v1386, %v1387
  %v1389 = vsel %vm264, %v1087, 0.0
  %v1390 = vadd.f32 %v1388, %v1389
  %v1391 = vsel %vm264, %v1088, 0.0
  %v1392 = vadd.f32 %v1390, %v1391
  %v1393 = vsel %vm264, %v1089, 0.0
  %v1394 = vadd.f32 %v1392, %v1393
  %v1395 = vsel %vm264, %v1090, 0.0
  %v1396 = vadd.f32 %v1394, %v1395
  %v1397 = vsel %vm264, %v1091, 0.0
  %v1398 = vadd.f32 %v1396, %v1397
  %v1399 = vsel %vm264, %v1092, 0.0
  %v1400 = vadd.f32 %v1398, %v1399
  %v1401 = vsel %vm264, %v1093, 0.0
  %v1402 = vadd.f32 %v1400, %v1401
  %v1403 = vsel %vm264, %v1094, 0.0
  %v1404 = vadd.f32 %v1402, %v1403
  %v1405 = vsel %vm264, %v1095, 0.0
  %v1406 = vadd.f32 %v1404, %v1405
  %v1407 = vsel %vm264, %v1096, 0.0
  %v1408 = vadd.f32 %v1406, %v1407
  %v1409 = vsel %vm264, %v1097, 0.0
  %v1410 = vadd.f32 %v1408, %v1409
  %v1411 = vsel %vm264, %v1098, 0.0
  %v1412 = vadd.f32 %v1410, %v1411
  %v1413 = vsel %vm264, %v1099, 0.0
  %v1414 = vadd.f32 %v1412, %v1413
  %v1415 = vsel %vm264, %v1100, 0.0
  %v1416 = vadd.f32 %v1414, %v1415
  %v1417 = vsel %vm264, %v1101, 0.0
  %v1418 = vadd.f32 %v1416, %v1417
  %v1419 = vsel %vm264, %v1102, 0.0
  %v1420 = vadd.f32 %v1418, %v1419
  %v1421 = vsel %vm264, %v1103, 0.0
  %v1422 = vadd.f32 %v1420, %v1421
  %v1423 = vsel %vm264, %v1104, 0.0
  %v1424 = vadd.f32 %v1422, %v1423
  %v1425 = vsel %vm264, %v1105, 0.0
  %v1426 = vadd.f32 %v1424, %v1425
  %v1427 = vsel %vm264, %v1106, 0.0
  %v1428 = vadd.f32 %v1426, %v1427
  %v1429 = vsel %vm264, %v1107, 0.0
  %v1430 = vadd.f32 %v1428, %v1429
  %v1431 = vsel %vm264, %v1108, 0.0
  %v1432 = vadd.f32 %v1430, %v1431
  %v1433 = vsel %vm264, %v1109, 0.0
  %v1434 = vadd.f32 %v1432, %v1433
  %v1435 = vsel %vm264, %v1110, 0.0
  %v1436 = vadd.f32 %v1434, %v1435
  %v1437 = vsel %vm264, %v1111, 0.0
  %v1438 = vadd.f32 %v1436, %v1437
  %v1439 = vsel %vm264, %v1112, 0.0
  %v1440 = vadd.f32 %v1438, %v1439
  %v1441 = vsel %vm264, %v1113, 0.0
  %v1442 = vadd.f32 %v1440, %v1441
  %v1443 = vsel %vm264, %v1114, 0.0
  %v1444 = vadd.f32 %v1442, %v1443
  %v1445 = vsel %vm264, %v1115, 0.0
  %v1446 = vadd.f32 %v1444, %v1445
  %v1447 = vsel %vm264, %v1116, 0.0
  %v1448 = vadd.f32 %v1446, %v1447
  %v1449 = vsel %vm264, %v1117, 0.0
  %v1450 = vadd.f32 %v1448, %v1449
  %v1451 = vsel %vm264, %v1118, 0.0
  %v1452 = vadd.f32 %v1450, %v1451
  %v1453 = vsel %vm264, %v1119, 0.0
  %v1454 = vadd.f32 %v1452, %v1453
  %v1455 = vsel %vm264, %v1120, 0.0
  %v1456 = vadd.f32 %v1454, %v1455
  %v1457 = vsel %vm264, %v1121, 0.0
  %v1458 = vadd.f32 %v1456, %v1457
  %v1459 = vsel %vm264, %v1122, 0.0
  %v1460 = vadd.f32 %v1458, %v1459
  %v1461 = vsel %vm264, %v1123, 0.0
  %v1462 = vadd.f32 %v1460, %v1461
  %v1463 = vsel %vm264, %v1124, 0.0
  %v1464 = vadd.f32 %v1462, %v1463
  %v1465 = vsel %vm264, %v1125, 0.0
  %v1466 = vadd.f32 %v1464, %v1465
  %v1467 = vsel %vm264, %v1126, 0.0
  %v1468 = vadd.f32 %v1466, %v1467
  %v1469 = vsel %vm264, %v1127, 0.0
  %v1470 = vadd.f32 %v1468, %v1469
  %v1471 = vsel %vm264, %v1128, 0.0
  %v1472 = vadd.f32 %v1470, %v1471
  %v1473 = vsel %vm264, %v1129, 0.0
  %v1474 = vadd.f32 %v1472, %v1473
  %v1475 = vsel %vm264, %v1130, 0.0
  %v1476 = vadd.f32 %v1474, %v1475
  %v1477 = vsel %vm264, %v1131, 0.0
  %v1478 = vadd.f32 %v1476, %v1477
  %v1479 = vsel %vm264, %v1132, 0.0
  %v1480 = vadd.f32 %v1478, %v1479
  %v1481 = vsel %vm264, %v1133, 0.0
  %v1482 = vadd.f32 %v1480, %v1481
  %v1483 = vsel %vm264, %v1134, 0.0
  %v1484 = vadd.f32 %v1482, %v1483
  %v1485 = vsel %vm264, %v1135, 0.0
  %v1486 = vadd.f32 %v1484, %v1485
  %v1487 = vsel %vm264, %v1136, 0.0
  %v1488 = vadd.f32 %v1486, %v1487
  %v1489 = vsel %vm264, %v1137, 0.0
  %v1490 = vadd.f32 %v1488, %v1489
  %v1491 = vsel %vm264, %v1138, 0.0
  %v1492 = vadd.f32 %v1490, %v1491
  %v1493 = vsel %vm264, %v1139, 0.0
  %v1494 = vadd.f32 %v1492, %v1493
  %v1495 = vsel %vm264, %v1140, 0.0
  %v1496 = vadd.f32 %v1494, %v1495
  %v1497 = vsel %vm264, %v1141, 0.0
  %v1498 = vadd.f32 %v1496, %v1497
  %v1499 = vsel %vm264, %v1142, 0.0
  %v1500 = vadd.f32 %v1498, %v1499
  %v1501 = vsel %vm264, %v1143, 0.0
  %v1502 = vadd.f32 %v1500, %v1501
  %v1503 = vsel %vm264, %v1144, 0.0
  %v1504 = vadd.f32 %v1502, %v1503
  %v1505 = vsel %vm264, %v1145, 0.0
  %v1506 = vadd.f32 %v1504, %v1505
  %v1507 = vsel %vm264, %v1146, 0.0
  %v1508 = vadd.f32 %v1506, %v1507
  %v1509 = vsel %vm264, %v1147, 0.0
  %v1510 = vadd.f32 %v1508, %v1509
  %v1511 = vsel %vm264, %v1148, 0.0
  %v1512 = vadd.f32 %v1510, %v1511
  %v1513 = vsel %vm264, %v1149, 0.0
  %v1514 = vadd.f32 %v1512, %v1513
  %v1515 = vsel %vm264, %v1150, 0.0
  %v1516 = vadd.f32 %v1514, %v1515
  %v1517 = vsel %vm264, %v1151, 0.0
  %v1518 = vadd.f32 %v1516, %v1517
  %v1519 = vsel %vm264, %v1152, 0.0
  %v1520 = vadd.f32 %v1518, %v1519
  %v1521 = vsel %vm264, %v1153, 0.0
  %v1522 = vadd.f32 %v1520, %v1521
  %v1523 = vsel %vm264, %v1154, 0.0
  %v1524 = vadd.f32 %v1522, %v1523
  %v1525 = vsel %vm264, %v1155, 0.0
  %v1526 = vadd.f32 %v1524, %v1525
  %v1527 = vsel %vm264, %v1156, 0.0
  %v1528 = vadd.f32 %v1526, %v1527
  %v1529 = vsel %vm264, %v1157, 0.0
  %v1530 = vadd.f32 %v1528, %v1529
  %v1531 = vsel %vm264, %v1158, 0.0
  %v1532 = vadd.f32 %v1530, %v1531
  %v1533 = vsel %vm264, %v1159, 0.0
  %v1534 = vadd.f32 %v1532, %v1533
  %v1535 = vsel %vm264, %v1160, 0.0
  %v1536 = vadd.f32 %v1534, %v1535
  %v1537 = vsel %vm264, %v1161, 0.0
  %v1538 = vadd.f32 %v1536, %v1537
  %v1539 = vsel %vm264, %v1162, 0.0
  %v1540 = vadd.f32 %v1538, %v1539
  %v1541 = vsel %vm264, %v1163, 0.0
  %v1542 = vadd.f32 %v1540, %v1541
  %v1543 = vsel %vm264, %v1164, 0.0
  %v1544 = vadd.f32 %v1542, %v1543
  %v1545 = vsel %vm264, %v1165, 0.0
  %v1546 = vadd.f32 %v1544, %v1545
  %v1547 = vsel %vm264, %v1166, 0.0
  %v1548 = vadd.f32 %v1546, %v1547
  %v1549 = vsel %vm264, %v1167, 0.0
  %v1550 = vadd.f32 %v1548, %v1549
  %v1551 = vsel %vm264, %v1168, 0.0
  %v1552 = vadd.f32 %v1550, %v1551
  %v1553 = vsel %vm264, %v1169, 0.0
  %v1554 = vadd.f32 %v1552, %v1553
  %v1555 = vsel %vm264, %v1170, 0.0
  %v1556 = vadd.f32 %v1554, %v1555
  %v1557 = vsel %vm264, %v1171, 0.0
  %v1558 = vadd.f32 %v1556, %v1557
  %v1559 = vsel %vm264, %v1172, 0.0
  %v1560 = vadd.f32 %v1558, %v1559
  %v1561 = vsel %vm264, %v1173, 0.0
  %v1562 = vadd.f32 %v1560, %v1561
  %v1563 = vsel %vm264, %v1174, 0.0
  %v1564 = vadd.f32 %v1562, %v1563
  %v1565 = vsel %vm264, %v1175, 0.0
  %v1566 = vadd.f32 %v1564, %v1565
  %v1567 = vsel %vm264, %v1176, 0.0
  %v1568 = vadd.f32 %v1566, %v1567
  %v1569 = vsel %vm264, %v1177, 0.0
  %v1570 = vadd.f32 %v1568, %v1569
  %v1571 = vsel %vm264, %v1178, 0.0
  %v1572 = vadd.f32 %v1570, %v1571
  %v1573 = vsel %vm264, %v1179, 0.0
  %v1574 = vadd.f32 %v1572, %v1573
  %v1575 = vsel %vm264, %v1180, 0.0
  %v1576 = vadd.f32 %v1574, %v1575
  %v1577 = vsel %vm264, %v1181, 0.0
  %v1578 = vadd.f32 %v1576, %v1577
  %v1579 = vsel %vm264, %v1182, 0.0
  %v1580 = vadd.f32 %v1578, %v1579
  %v1581 = vsel %vm264, %v1183, 0.0
  %v1582 = vadd.f32 %v1580, %v1581
  %v1583 = vsel %vm264, %v1184, 0.0
  %v1584 = vadd.f32 %v1582, %v1583
  %v1585 = vsel %vm264, %v1185, 0.0
  %v1586 = vadd.f32 %v1584, %v1585
  %v1587 = vsel %vm264, %v1186, 0.0
  %v1588 = vadd.f32 %v1586, %v1587
  %v1589 = vsel %vm264, %v1187, 0.0
  %v1590 = vadd.f32 %v1588, %v1589
  %v1591 = vsel %vm264, %v1188, 0.0
  %v1592 = vadd.f32 %v1590, %v1591
  %v1593 = vsel %vm264, %v1189, 0.0
  %v1594 = vadd.f32 %v1592, %v1593
  %v1595 = vsel %vm264, %v1190, 0.0
  %v1596 = vadd.f32 %v1594, %v1595
  %v1597 = vsel %vm264, %v1191, 0.0
  %v1598 = vadd.f32 %v1596, %v1597
  %v1599 = vsel %vm264, %v1192, 0.0
  %v1600 = vadd.f32 %v1598, %v1599
  %v1601 = vsel %vm264, %v1193, 0.0
  %v1602 = vadd.f32 %v1600, %v1601
  %v1603 = vsel %vm264, %v1194, 0.0
  %v1604 = vadd.f32 %v1602, %v1603
  %v1605 = vsel %vm264, %v1195, 0.0
  %v1606 = vadd.f32 %v1604, %v1605
  %v1607 = vsel %vm264, %v1196, 0.0
  %v1608 = vadd.f32 %v1606, %v1607
  %v1609 = vsel %vm264, %v1197, 0.0
  %v1610 = vadd.f32 %v1608, %v1609
  %v1611 = vsel %vm264, %v1198, 0.0
  %v1612 = vadd.f32 %v1610, %v1611
  %v1613 = vsel %vm264, %v1199, 0.0
  %v1614 = vadd.f32 %v1612, %v1613
  %v1615 = vsel %vm264, %v1200, 0.0
  %v1616 = vadd.f32 %v1614, %v1615
  %v1617 = vsel %vm264, %v1201, 0.0
  %v1618 = vadd.f32 %v1616, %v1617
  %v1619 = vsel %vm264, %v1202, 0.0
  %v1620 = vadd.f32 %v1618, %v1619
  %v1621 = vsel %vm264, %v1203, 0.0
  %v1622 = vadd.f32 %v1620, %v1621
  %v1623 = vsel %vm264, %v1204, 0.0
  %v1624 = vadd.f32 %v1622, %v1623
  %v1625 = vsel %vm264, %v1205, 0.0
  %v1626 = vadd.f32 %v1624, %v1625
  %v1627 = vsel %vm264, %v1206, 0.0
  %v1628 = vadd.f32 %v1626, %v1627
  %v1629 = vsel %vm264, %v1207, 0.0
  %v1630 = vadd.f32 %v1628, %v1629
  %v1631 = vsel %vm264, %v1208, 0.0
  %v1632 = vadd.f32 %v1630, %v1631
  %v1633 = vsel %vm264, %v1209, 0.0
  %v1634 = vadd.f32 %v1632, %v1633
  %v1635 = vsel %vm264, %v1210, 0.0
  %v1636 = vadd.f32 %v1634, %v1635
  %v1637 = vsel %vm264, %v1211, 0.0
  %v1638 = vadd.f32 %v1636, %v1637
  %v1639 = vsel %vm264, %v1212, 0.0
  %v1640 = vadd.f32 %v1638, %v1639
  %v1641 = vsel %vm264, %v1213, 0.0
  %v1642 = vadd.f32 %v1640, %v1641
  %v1643 = vsel %vm264, %v1214, 0.0
  %v1644 = vadd.f32 %v1642, %v1643
  %v1645 = vsel %vm264, %v1215, 0.0
  %v1646 = vadd.f32 %v1644, %v1645
  %v1647 = vsel %vm264, %v1216, 0.0
  %v1648 = vadd.f32 %v1646, %v1647
  %v1649 = vsel %vm264, %v1217, 0.0
  %v1650 = vadd.f32 %v1648, %v1649
  %v1651 = vsel %vm264, %v1218, 0.0
  %v1652 = vadd.f32 %v1650, %v1651
  %v1653 = vsel %vm264, %v1219, 0.0
  %v1654 = vadd.f32 %v1652, %v1653
  %v1655 = vsel %vm264, %v1220, 0.0
  %v1656 = vadd.f32 %v1654, %v1655
  %v1657 = vsel %vm264, %v1221, 0.0
  %v1658 = vadd.f32 %v1656, %v1657
  %v1659 = vsel %vm264, %v1222, 0.0
  %v1660 = vadd.f32 %v1658, %v1659
  %v1661 = vsel %vm264, %v1223, 0.0
  %v1662 = vadd.f32 %v1660, %v1661
  %v1663 = vsel %vm264, %v1224, 0.0
  %v1664 = vadd.f32 %v1662, %v1663
  %v1665 = vsel %vm264, %v1225, 0.0
  %v1666 = vadd.f32 %v1664, %v1665
  %v1667 = vsel %vm264, %v1226, 0.0
  %v1668 = vadd.f32 %v1666, %v1667
  %v1669 = vsel %vm264, %v1227, 0.0
  %v1670 = vadd.f32 %v1668, %v1669
  %v1671 = vsel %vm264, %v1228, 0.0
  %v1672 = vadd.f32 %v1670, %v1671
  %v1673 = vsel %vm264, %v1229, 0.0
  %v1674 = vadd.f32 %v1672, %v1673
  %v1675 = vsel %vm264, %v1230, 0.0
  %v1676 = vadd.f32 %v1674, %v1675
  %v1677 = vsel %vm264, %v1231, 0.0
  %v1678 = vadd.f32 %v1676, %v1677
  %v1679 = vsel %vm264, %v1232, 0.0
  %v1680 = vadd.f32 %v1678, %v1679
  %v1681 = vsel %vm264, %v1233, 0.0
  %v1682 = vadd.f32 %v1680, %v1681
  %v1683 = vsel %vm264, %v1234, 0.0
  %v1684 = vadd.f32 %v1682, %v1683
  %v1685 = vsel %vm264, %v1235, 0.0
  %v1686 = vadd.f32 %v1684, %v1685
  %v1687 = vsel %vm264, %v1236, 0.0
  %v1688 = vadd.f32 %v1686, %v1687
  %v1689 = vsel %vm264, %v1237, 0.0
  %v1690 = vadd.f32 %v1688, %v1689
  %v1691 = vsel %vm264, %v1238, 0.0
  %v1692 = vadd.f32 %v1690, %v1691
  %v1693 = vsel %vm264, %v1239, 0.0
  %v1694 = vadd.f32 %v1692, %v1693
  %v1695 = vsel %vm264, %v1240, 0.0
  %v1696 = vadd.f32 %v1694, %v1695
  %v1697 = vsel %vm264, %v1241, 0.0
  %v1698 = vadd.f32 %v1696, %v1697
  %v1699 = vsel %vm264, %v1242, 0.0
  %v1700 = vadd.f32 %v1698, %v1699
  %v1701 = vsel %vm264, %v1243, 0.0
  %v1702 = vadd.f32 %v1700, %v1701
  %v1703 = vsel %vm264, %v1244, 0.0
  %v1704 = vadd.f32 %v1702, %v1703
  %v1705 = vsel %vm264, %v1245, 0.0
  %v1706 = vadd.f32 %v1704, %v1705
  %v1707 = vsel %vm264, %v1246, 0.0
  %v1708 = vadd.f32 %v1706, %v1707
  %v1709 = vsel %vm264, %v1247, 0.0
  %v1710 = vadd.f32 %v1708, %v1709
  %v1711 = vsel %vm264, %v1248, 0.0
  %v1712 = vadd.f32 %v1710, %v1711
  %v1713 = vsel %vm264, %v1249, 0.0
  %v1714 = vadd.f32 %v1712, %v1713
  %v1715 = vsel %vm264, %v1250, 0.0
  %v1716 = vadd.f32 %v1714, %v1715
  %v1717 = vsel %vm264, %v1251, 0.0
  %v1718 = vadd.f32 %v1716, %v1717
  %v1719 = vsel %vm264, %v1252, 0.0
  %v1720 = vadd.f32 %v1718, %v1719
  %v1721 = vsel %vm264, %v1253, 0.0
  %v1722 = vadd.f32 %v1720, %v1721
  %v1723 = vsel %vm264, %v1254, 0.0
  %v1724 = vadd.f32 %v1722, %v1723
  %v1725 = vsel %vm264, %v1255, 0.0
  %v1726 = vadd.f32 %v1724, %v1725
  %v1727 = vsel %vm264, %v1256, 0.0
  %v1728 = vadd.f32 %v1726, %v1727
  %v1729 = vsel %vm264, %v1257, 0.0
  %v1730 = vadd.f32 %v1728, %v1729
  %v1731 = vsel %vm264, %v1258, 0.0
  %v1732 = vadd.f32 %v1730, %v1731
  %v1733 = vsel %vm264, %v1259, 0.0
  %v1734 = vadd.f32 %v1732, %v1733
  %v1735 = vsel %vm264, %v1260, 0.0
  %v1736 = vadd.f32 %v1734, %v1735
  %v1737 = vsel %vm264, %v1261, 0.0
  %v1738 = vadd.f32 %v1736, %v1737
  %v1739 = vsel %vm264, %v1262, 0.0
  %v1740 = vadd.f32 %v1738, %v1739
  %v1741 = vsel %vm264, %v1263, 0.0
  %v1742 = vadd.f32 %v1740, %v1741
  %v1743 = vsel %vm264, %v1264, 0.0
  %v1744 = vadd.f32 %v1742, %v1743
  %v1745 = vsel %vm264, %v1265, 0.0
  %v1746 = vadd.f32 %v1744, %v1745
  %v1747 = vsel %vm264, %v1266, 0.0
  %v1748 = vadd.f32 %v1746, %v1747
  %v1749 = vsel %vm264, %v1267, 0.0
  %v1750 = vadd.f32 %v1748, %v1749
  %v1751 = vsel %vm264, %v1268, 0.0
  %v1752 = vadd.f32 %v1750, %v1751
  %v1753 = vsel %vm264, %v1269, 0.0
  %v1754 = vadd.f32 %v1752, %v1753
  %v1755 = vsel %vm264, %v1270, 0.0
  %v1756 = vadd.f32 %v1754, %v1755
  %v1757 = vsel %vm264, %v1271, 0.0
  %v1758 = vadd.f32 %v1756, %v1757
  %v1759 = vsel %vm264, %v1272, 0.0
  %v1760 = vadd.f32 %v1758, %v1759
  %v1761 = vsel %vm264, %v1273, 0.0
  %v1762 = vadd.f32 %v1760, %v1761
  %v1763 = vsel %vm264, %v1274, 0.0
  %v1764 = vadd.f32 %v1762, %v1763
  %v1765 = vsel %vm264, %v1275, 0.0
  %v1766 = vadd.f32 %v1764, %v1765
  %v1767 = vsel %vm264, %v1276, 0.0
  %v1768 = vadd.f32 %v1766, %v1767
  %v1769 = vsel %vm264, %v1277, 0.0
  %v1770 = vadd.f32 %v1768, %v1769
  %v1771 = vsel %vm264, %v1278, 0.0
  %v1772 = vadd.f32 %v1770, %v1771
  %v1773 = vsel %vm264, %v1279, 0.0
  %v1774 = vadd.f32 %v1772, %v1773
  %v1775 = vsel %vm264, %v1280, 0.0
  %v1776 = vadd.f32 %v1774, %v1775
  %v1777 = vsel %vm264, %v1281, 0.0
  %v1778 = vadd.f32 %v1776, %v1777
  %v1779 = vsel %vm264, %v1282, 0.0
  %v1780 = vadd.f32 %v1778, %v1779
  %v1781 = vsel %vm264, %v1283, 0.0
  %v1782 = vadd.f32 %v1780, %v1781
  %v1783 = vsel %vm264, %v1284, 0.0
  %v1784 = vadd.f32 %v1782, %v1783
  %v1785 = vsel %vm264, %v1285, 0.0
  %v1786 = vadd.f32 %v1784, %v1785
  %v1787 = vsel %vm264, %v1286, 0.0
  %v1788 = vadd.f32 %v1786, %v1787
  %v1789 = vsel %vm264, %v1287, 0.0
  %v1790 = vadd.f32 %v1788, %v1789
  %v1791 = vsel %vm264, %v1288, 0.0
  %v1792 = vadd.f32 %v1790, %v1791
  %v1793 = vsel %vm264, %v1289, 0.0
  %v1794 = vadd.f32 %v1792, %v1793
  %v1795 = vsel %vm264, %v1290, 0.0
  %v1796 = vadd.f32 %v1794, %v1795
  %v1797 = vsel %vm264, %v1291, 0.0
  %v1798 = vadd.f32 %v1796, %v1797
  %v1799 = vsel %vm264, %v1292, 0.0
  %v1800 = vadd.f32 %v1798, %v1799
  %v1801 = vsel %vm264, %v1293, 0.0
  %v1802 = vadd.f32 %v1800, %v1801
  %v1803 = vsel %vm264, %v1294, 0.0
  %v1804 = vadd.f32 %v1802, %v1803
  %v1805 = vsel %vm264, %v1295, 0.0
  %v1806 = vadd.f32 %v1804, %v1805
  %v1807 = vrot.slane %v1806, 4
  %v1808 = vadd.f32 %v1806, %v1807
  %v1809 = vrot.slane %v1808, 2
  %v1810 = vadd.f32 %v1808, %v1809
  %v1811 = vrot.slane %v1810, 1
  %v1812 = vadd.f32 %v1810, %v1811
  %v1813 = vmul.f32 %v1812, %v782
  %v1814 = vadd.f32 %v1813, 1e-05
  %v1815 = vrsqrt.pop %v1814
  %v1816 = vmul.f32 %v784, %v1815
  %v1817 = vmul.f32 %v785, %v1815
  %v1818 = vmul.f32 %v786, %v1815
  %v1819 = vmul.f32 %v787, %v1815
  %v1820 = vmul.f32 %v788, %v1815
  %v1821 = vmul.f32 %v789, %v1815
  %v1822 = vmul.f32 %v790, %v1815
  %v1823 = vmul.f32 %v791, %v1815
  %v1824 = vmul.f32 %v792, %v1815
  %v1825 = vmul.f32 %v793, %v1815
  %v1826 = vmul.f32 %v794, %v1815
  %v1827 = vmul.f32 %v795, %v1815
  %v1828 = vmul.f32 %v796, %v1815
  %v1829 = vmul.f32 %v797, %v1815
  %v1830 = vmul.f32 %v798, %v1815
  %v1831 = vmul.f32 %v799, %v1815
  %v1832 = vmul.f32 %v800, %v1815
  %v1833 = vmul.f32 %v801, %v1815
  %v1834 = vmul.f32 %v802, %v1815
  %v1835 = vmul.f32 %v803, %v1815
  %v1836 = vmul.f32 %v804, %v1815
  %v1837 = vmul.f32 %v805, %v1815
  %v1838 = vmul.f32 %v806, %v1815
  %v1839 = vmul.f32 %v807, %v1815
  %v1840 = vmul.f32 %v808, %v1815
  %v1841 = vmul.f32 %v809, %v1815
  %v1842 = vmul.f32 %v810, %v1815
  %v1843 = vmul.f32 %v811, %v1815
  %v1844 = vmul.f32 %v812, %v1815
  %v1845 = vmul.f32 %v813, %v1815
  %v1846 = vmul.f32 %v814, %v1815
  %v1847 = vmul.f32 %v815, %v1815
  %v1848 = vmul.f32 %v816, %v1815
  %v1849 = vmul.f32 %v817, %v1815
  %v1850 = vmul.f32 %v818, %v1815
  %v1851 = vmul.f32 %v819, %v1815
  %v1852 = vmul.f32 %v820, %v1815
  %v1853 = vmul.f32 %v821, %v1815
  %v1854 = vmul.f32 %v822, %v1815
  %v1855 = vmul.f32 %v823, %v1815
  %v1856 = vmul.f32 %v824, %v1815
  %v1857 = vmul.f32 %v825, %v1815
  %v1858 = vmul.f32 %v826, %v1815
  %v1859 = vmul.f32 %v827, %v1815
  %v1860 = vmul.f32 %v828, %v1815
  %v1861 = vmul.f32 %v829, %v1815
  %v1862 = vmul.f32 %v830, %v1815
  %v1863 = vmul.f32 %v831, %v1815
  %v1864 = vmul.f32 %v832, %v1815
  %v1865 = vmul.f32 %v833, %v1815
  %v1866 = vmul.f32 %v834, %v1815
  %v1867 = vmul.f32 %v835, %v1815
  %v1868 = vmul.f32 %v836, %v1815
  %v1869 = vmul.f32 %v837, %v1815
  %v1870 = vmul.f32 %v838, %v1815
  %v1871 = vmul.f32 %v839, %v1815
  %v1872 = vmul.f32 %v840, %v1815
  %v1873 = vmul.f32 %v841, %v1815
  %v1874 = vmul.f32 %v842, %v1815
  %v1875 = vmul.f32 %v843, %v1815
  %v1876 = vmul.f32 %v844, %v1815
  %v1877 = vmul.f32 %v845, %v1815
  %v1878 = vmul.f32 %v846, %v1815
  %v1879 = vmul.f32 %v847, %v1815
  %v1880 = vmul.f32 %v848, %v1815
  %v1881 = vmul.f32 %v849, %v1815
  %v1882 = vmul.f32 %v850, %v1815
  %v1883 = vmul.f32 %v851, %v1815
  %v1884 = vmul.f32 %v852, %v1815
  %v1885 = vmul.f32 %v853, %v1815
  %v1886 = vmul.f32 %v854, %v1815
  %v1887 = vmul.f32 %v855, %v1815
  %v1888 = vmul.f32 %v856, %v1815
  %v1889 = vmul.f32 %v857, %v1815
  %v1890 = vmul.f32 %v858, %v1815
  %v1891 = vmul.f32 %v859, %v1815
  %v1892 = vmul.f32 %v860, %v1815
  %v1893 = vmul.f32 %v861, %v1815
  %v1894 = vmul.f32 %v862, %v1815
  %v1895 = vmul.f32 %v863, %v1815
  %v1896 = vmul.f32 %v864, %v1815
  %v1897 = vmul.f32 %v865, %v1815
  %v1898 = vmul.f32 %v866, %v1815
  %v1899 = vmul.f32 %v867, %v1815
  %v1900 = vmul.f32 %v868, %v1815
  %v1901 = vmul.f32 %v869, %v1815
  %v1902 = vmul.f32 %v870, %v1815
  %v1903 = vmul.f32 %v871, %v1815
  %v1904 = vmul.f32 %v872, %v1815
  %v1905 = vmul.f32 %v873, %v1815
  %v1906 = vmul.f32 %v874, %v1815
  %v1907 = vmul.f32 %v875, %v1815
  %v1908 = vmul.f32 %v876, %v1815
  %v1909 = vmul.f32 %v877, %v1815
  %v1910 = vmul.f32 %v878, %v1815
  %v1911 = vmul.f32 %v879, %v1815
  %v1912 = vmul.f32 %v880, %v1815
  %v1913 = vmul.f32 %v881, %v1815
  %v1914 = vmul.f32 %v882, %v1815
  %v1915 = vmul.f32 %v883, %v1815
  %v1916 = vmul.f32 %v884, %v1815
  %v1917 = vmul.f32 %v885, %v1815
  %v1918 = vmul.f32 %v886, %v1815
  %v1919 = vmul.f32 %v887, %v1815
  %v1920 = vmul.f32 %v888, %v1815
  %v1921 = vmul.f32 %v889, %v1815
  %v1922 = vmul.f32 %v890, %v1815
  %v1923 = vmul.f32 %v891, %v1815
  %v1924 = vmul.f32 %v892, %v1815
  %v1925 = vmul.f32 %v893, %v1815
  %v1926 = vmul.f32 %v894, %v1815
  %v1927 = vmul.f32 %v895, %v1815
  %v1928 = vmul.f32 %v896, %v1815
  %v1929 = vmul.f32 %v897, %v1815
  %v1930 = vmul.f32 %v898, %v1815
  %v1931 = vmul.f32 %v899, %v1815
  %v1932 = vmul.f32 %v900, %v1815
  %v1933 = vmul.f32 %v901, %v1815
  %v1934 = vmul.f32 %v902, %v1815
  %v1935 = vmul.f32 %v903, %v1815
  %v1936 = vmul.f32 %v904, %v1815
  %v1937 = vmul.f32 %v905, %v1815
  %v1938 = vmul.f32 %v906, %v1815
  %v1939 = vmul.f32 %v907, %v1815
  %v1940 = vmul.f32 %v908, %v1815
  %v1941 = vmul.f32 %v909, %v1815
  %v1942 = vmul.f32 %v910, %v1815
  %v1943 = vmul.f32 %v911, %v1815
  %v1944 = vmul.f32 %v912, %v1815
  %v1945 = vmul.f32 %v913, %v1815
  %v1946 = vmul.f32 %v914, %v1815
  %v1947 = vmul.f32 %v915, %v1815
  %v1948 = vmul.f32 %v916, %v1815
  %v1949 = vmul.f32 %v917, %v1815
  %v1950 = vmul.f32 %v918, %v1815
  %v1951 = vmul.f32 %v919, %v1815
  %v1952 = vmul.f32 %v920, %v1815
  %v1953 = vmul.f32 %v921, %v1815
  %v1954 = vmul.f32 %v922, %v1815
  %v1955 = vmul.f32 %v923, %v1815
  %v1956 = vmul.f32 %v924, %v1815
  %v1957 = vmul.f32 %v925, %v1815
  %v1958 = vmul.f32 %v926, %v1815
  %v1959 = vmul.f32 %v927, %v1815
  %v1960 = vmul.f32 %v928, %v1815
  %v1961 = vmul.f32 %v929, %v1815
  %v1962 = vmul.f32 %v930, %v1815
  %v1963 = vmul.f32 %v931, %v1815
  %v1964 = vmul.f32 %v932, %v1815
  %v1965 = vmul.f32 %v933, %v1815
  %v1966 = vmul.f32 %v934, %v1815
  %v1967 = vmul.f32 %v935, %v1815
  %v1968 = vmul.f32 %v936, %v1815
  %v1969 = vmul.f32 %v937, %v1815
  %v1970 = vmul.f32 %v938, %v1815
  %v1971 = vmul.f32 %v939, %v1815
  %v1972 = vmul.f32 %v940, %v1815
  %v1973 = vmul.f32 %v941, %v1815
  %v1974 = vmul.f32 %v942, %v1815
  %v1975 = vmul.f32 %v943, %v1815
  %v1976 = vmul.f32 %v944, %v1815
  %v1977 = vmul.f32 %v945, %v1815
  %v1978 = vmul.f32 %v946, %v1815
  %v1979 = vmul.f32 %v947, %v1815
  %v1980 = vmul.f32 %v948, %v1815
  %v1981 = vmul.f32 %v949, %v1815
  %v1982 = vmul.f32 %v950, %v1815
  %v1983 = vmul.f32 %v951, %v1815
  %v1984 = vmul.f32 %v952, %v1815
  %v1985 = vmul.f32 %v953, %v1815
  %v1986 = vmul.f32 %v954, %v1815
  %v1987 = vmul.f32 %v955, %v1815
  %v1988 = vmul.f32 %v956, %v1815
  %v1989 = vmul.f32 %v957, %v1815
  %v1990 = vmul.f32 %v958, %v1815
  %v1991 = vmul.f32 %v959, %v1815
  %v1992 = vmul.f32 %v960, %v1815
  %v1993 = vmul.f32 %v961, %v1815
  %v1994 = vmul.f32 %v962, %v1815
  %v1995 = vmul.f32 %v963, %v1815
  %v1996 = vmul.f32 %v964, %v1815
  %v1997 = vmul.f32 %v965, %v1815
  %v1998 = vmul.f32 %v966, %v1815
  %v1999 = vmul.f32 %v967, %v1815
  %v2000 = vmul.f32 %v968, %v1815
  %v2001 = vmul.f32 %v969, %v1815
  %v2002 = vmul.f32 %v970, %v1815
  %v2003 = vmul.f32 %v971, %v1815
  %v2004 = vmul.f32 %v972, %v1815
  %v2005 = vmul.f32 %v973, %v1815
  %v2006 = vmul.f32 %v974, %v1815
  %v2007 = vmul.f32 %v975, %v1815
  %v2008 = vmul.f32 %v976, %v1815
  %v2009 = vmul.f32 %v977, %v1815
  %v2010 = vmul.f32 %v978, %v1815
  %v2011 = vmul.f32 %v979, %v1815
  %v2012 = vmul.f32 %v980, %v1815
  %v2013 = vmul.f32 %v981, %v1815
  %v2014 = vmul.f32 %v982, %v1815
  %v2015 = vmul.f32 %v983, %v1815
  %v2016 = vmul.f32 %v984, %v1815
  %v2017 = vmul.f32 %v985, %v1815
  %v2018 = vmul.f32 %v986, %v1815
  %v2019 = vmul.f32 %v987, %v1815
  %v2020 = vmul.f32 %v988, %v1815
  %v2021 = vmul.f32 %v989, %v1815
  %v2022 = vmul.f32 %v990, %v1815
  %v2023 = vmul.f32 %v991, %v1815
  %v2024 = vmul.f32 %v992, %v1815
  %v2025 = vmul.f32 %v993, %v1815
  %v2026 = vmul.f32 %v994, %v1815
  %v2027 = vmul.f32 %v995, %v1815
  %v2028 = vmul.f32 %v996, %v1815
  %v2029 = vmul.f32 %v997, %v1815
  %v2030 = vmul.f32 %v998, %v1815
  %v2031 = vmul.f32 %v999, %v1815
  %v2032 = vmul.f32 %v1000, %v1815
  %v2033 = vmul.f32 %v1001, %v1815
  %v2034 = vmul.f32 %v1002, %v1815
  %v2035 = vmul.f32 %v1003, %v1815
  %v2036 = vmul.f32 %v1004, %v1815
  %v2037 = vmul.f32 %v1005, %v1815
  %v2038 = vmul.f32 %v1006, %v1815
  %v2039 = vmul.f32 %v1007, %v1815
  %v2040 = vmul.f32 %v1008, %v1815
  %v2041 = vmul.f32 %v1009, %v1815
  %v2042 = vmul.f32 %v1010, %v1815
  %v2043 = vmul.f32 %v1011, %v1815
  %v2044 = vmul.f32 %v1012, %v1815
  %v2045 = vmul.f32 %v1013, %v1815
  %v2046 = vmul.f32 %v1014, %v1815
  %v2047 = vmul.f32 %v1015, %v1815
  %v2048 = vmul.f32 %v1016, %v1815
  %v2049 = vmul.f32 %v1017, %v1815
  %v2050 = vmul.f32 %v1018, %v1815
  %v2051 = vmul.f32 %v1019, %v1815
  %v2052 = vmul.f32 %v1020, %v1815
  %v2053 = vmul.f32 %v1021, %v1815
  %v2054 = vmul.f32 %v1022, %v1815
  %v2055 = vmul.f32 %v1023, %v1815
  %v2056 = vmul.f32 %v1024, %v1815
  %v2057 = vmul.f32 %v1025, %v1815
  %v2058 = vmul.f32 %v1026, %v1815
  %v2059 = vmul.f32 %v1027, %v1815
  %v2060 = vmul.f32 %v1028, %v1815
  %v2061 = vmul.f32 %v1029, %v1815
  %v2062 = vmul.f32 %v1030, %v1815
  %v2063 = vmul.f32 %v1031, %v1815
  %v2064 = vmul.f32 %v1032, %v1815
  %v2065 = vmul.f32 %v1033, %v1815
  %v2066 = vmul.f32 %v1034, %v1815
  %v2067 = vmul.f32 %v1035, %v1815
  %v2068 = vmul.f32 %v1036, %v1815
  %v2069 = vmul.f32 %v1037, %v1815
  %v2070 = vmul.f32 %v1038, %v1815
  %v2071 = vmul.f32 %v1039, %v1815
  %2072 = vst.msk [vmem:[%s1] sm:$0xff] %vm264, %v1816
  %2073 = vst.msk [vmem:[%s1 + $0x8] sm:$0xff] %vm264, %v1817
  %2074 = vst.msk [vmem:[%s1 + $0x10] sm:$0xff] %vm264, %v1818
  %2075 = vst.msk [vmem:[%s1 + $0x18] sm:$0xff] %vm264, %v1819
  %2076 = vst.msk [vmem:[%s1 + $0x20] sm:$0xff] %vm264, %v1820
  %2077 = vst.msk [vmem:[%s1 + $0x28] sm:$0xff] %vm264, %v1821
  %2078 = vst.msk [vmem:[%s1 + $0x30] sm:$0xff] %vm264, %v1822
  %2079 = vst.msk [vmem:[%s1 + $0x38] sm:$0xff] %vm264, %v1823
  %2080 = vst.msk [vmem:[%s1 + $0x40] sm:$0xff] %vm264, %v1824
  %2081 = vst.msk [vmem:[%s1 + $0x48] sm:$0xff] %vm264, %v1825
  %2082 = vst.msk [vmem:[%s1 + $0x50] sm:$0xff] %vm264, %v1826
  %2083 = vst.msk [vmem:[%s1 + $0x58] sm:$0xff] %vm264, %v1827
  %2084 = vst.msk [vmem:[%s1 + $0x60] sm:$0xff] %vm264, %v1828
  %2085 = vst.msk [vmem:[%s1 + $0x68] sm:$0xff] %vm264, %v1829
  %2086 = vst.msk [vmem:[%s1 + $0x70] sm:$0xff] %vm264, %v1830
  %2087 = vst.msk [vmem:[%s1 + $0x78] sm:$0xff] %vm264, %v1831
  %2088 = vst.msk [vmem:[%s1 + $0x80] sm:$0xff] %vm264, %v1832
  %2089 = vst.msk [vmem:[%s1 + $0x88] sm:$0xff] %vm264, %v1833
  %2090 = vst.msk [vmem:[%s1 + $0x90] sm:$0xff] %vm264, %v1834
  %2091 = vst.msk [vmem:[%s1 + $0x98] sm:$0xff] %vm264, %v1835
  %2092 = vst.msk [vmem:[%s1 + $0xa0] sm:$0xff] %vm264, %v1836
  %2093 = vst.msk [vmem:[%s1 + $0xa8] sm:$0xff] %vm264, %v1837
  %2094 = vst.msk [vmem:[%s1 + $0xb0] sm:$0xff] %vm264, %v1838
  %2095 = vst.msk [vmem:[%s1 + $0xb8] sm:$0xff] %vm264, %v1839
  %2096 = vst.msk [vmem:[%s1 + $0xc0] sm:$0xff] %vm264, %v1840
  %2097 = vst.msk [vmem:[%s1 + $0xc8] sm:$0xff] %vm264, %v1841
  %2098 = vst.msk [vmem:[%s1 + $0xd0] sm:$0xff] %vm264, %v1842
  %2099 = vst.msk [vmem:[%s1 + $0xd8] sm:$0xff] %vm264, %v1843
  %2100 = vst.msk [vmem:[%s1 + $0xe0] sm:$0xff] %vm264, %v1844
  %2101 = vst.msk [vmem:[%s1 + $0xe8] sm:$0xff] %vm264, %v1845
  %2102 = vst.msk [vmem:[%s1 + $0xf0] sm:$0xff] %vm264, %v1846
  %2103 = vst.msk [vmem:[%s1 + $0xf8] sm:$0xff] %vm264, %v1847
  %2104 = vst.msk [vmem:[%s1 + $0x100] sm:$0xff] %vm264, %v1848
  %2105 = vst.msk [vmem:[%s1 + $0x108] sm:$0xff] %vm264, %v1849
  %2106 = vst.msk [vmem:[%s1 + $0x110] sm:$0xff] %vm264, %v1850
  %2107 = vst.msk [vmem:[%s1 + $0x118] sm:$0xff] %vm264, %v1851
  %2108 = vst.msk [vmem:[%s1 + $0x120] sm:$0xff] %vm264, %v1852
  %2109 = vst.msk [vmem:[%s1 + $0x128] sm:$0xff] %vm264, %v1853
  %2110 = vst.msk [vmem:[%s1 + $0x130] sm:$0xff] %vm264, %v1854
  %2111 = vst.msk [vmem:[%s1 + $0x138] sm:$0xff] %vm264, %v1855
  %2112 = vst.msk [vmem:[%s1 + $0x140] sm:$0xff] %vm264, %v1856
  %2113 = vst.msk [vmem:[%s1 + $0x148] sm:$0xff] %vm264, %v1857
  %2114 = vst.msk [vmem:[%s1 + $0x150] sm:$0xff] %vm264, %v1858
  %2115 = vst.msk [vmem:[%s1 + $0x158] sm:$0xff] %vm264, %v1859
  %2116 = vst.msk [vmem:[%s1 + $0x160] sm:$0xff] %vm264, %v1860
  %2117 = vst.msk [vmem:[%s1 + $0x168] sm:$0xff] %vm264, %v1861
  %2118 = vst.msk [vmem:[%s1 + $0x170] sm:$0xff] %vm264, %v1862
  %2119 = vst.msk [vmem:[%s1 + $0x178] sm:$0xff] %vm264, %v1863
  %2120 = vst.msk [vmem:[%s1 + $0x180] sm:$0xff] %vm264, %v1864
  %2121 = vst.msk [vmem:[%s1 + $0x188] sm:$0xff] %vm264, %v1865
  %2122 = vst.msk [vmem:[%s1 + $0x190] sm:$0xff] %vm264, %v1866
  %2123 = vst.msk [vmem:[%s1 + $0x198] sm:$0xff] %vm264, %v1867
  %2124 = vst.msk [vmem:[%s1 + $0x1a0] sm:$0xff] %vm264, %v1868
  %2125 = vst.msk [vmem:[%s1 + $0x1a8] sm:$0xff] %vm264, %v1869
  %2126 = vst.msk [vmem:[%s1 + $0x1b0] sm:$0xff] %vm264, %v1870
  %2127 = vst.msk [vmem:[%s1 + $0x1b8] sm:$0xff] %vm264, %v1871
  %2128 = vst.msk [vmem:[%s1 + $0x1c0] sm:$0xff] %vm264, %v1872
  %2129 = vst.msk [vmem:[%s1 + $0x1c8] sm:$0xff] %vm264, %v1873
  %2130 = vst.msk [vmem:[%s1 + $0x1d0] sm:$0xff] %vm264, %v1874
  %2131 = vst.msk [vmem:[%s1 + $0x1d8] sm:$0xff] %vm264, %v1875
  %2132 = vst.msk [vmem:[%s1 + $0x1e0] sm:$0xff] %vm264, %v1876
  %2133 = vst.msk [vmem:[%s1 + $0x1e8] sm:$0xff] %vm264, %v1877
  %2134 = vst.msk [vmem:[%s1 + $0x1f0] sm:$0xff] %vm264, %v1878
  %2135 = vst.msk [vmem:[%s1 + $0x1f8] sm:$0xff] %vm264, %v1879
  %2136 = vst.msk [vmem:[%s1 + $0x200] sm:$0xff] %vm264, %v1880
  %2137 = vst.msk [vmem:[%s1 + $0x208] sm:$0xff] %vm264, %v1881
  %2138 = vst.msk [vmem:[%s1 + $0x210] sm:$0xff] %vm264, %v1882
  %2139 = vst.msk [vmem:[%s1 + $0x218] sm:$0xff] %vm264, %v1883
  %2140 = vst.msk [vmem:[%s1 + $0x220] sm:$0xff] %vm264, %v1884
  %2141 = vst.msk [vmem:[%s1 + $0x228] sm:$0xff] %vm264, %v1885
  %2142 = vst.msk [vmem:[%s1 + $0x230] sm:$0xff] %vm264, %v1886
  %2143 = vst.msk [vmem:[%s1 + $0x238] sm:$0xff] %vm264, %v1887
  %2144 = vst.msk [vmem:[%s1 + $0x240] sm:$0xff] %vm264, %v1888
  %2145 = vst.msk [vmem:[%s1 + $0x248] sm:$0xff] %vm264, %v1889
  %2146 = vst.msk [vmem:[%s1 + $0x250] sm:$0xff] %vm264, %v1890
  %2147 = vst.msk [vmem:[%s1 + $0x258] sm:$0xff] %vm264, %v1891
  %2148 = vst.msk [vmem:[%s1 + $0x260] sm:$0xff] %vm264, %v1892
  %2149 = vst.msk [vmem:[%s1 + $0x268] sm:$0xff] %vm264, %v1893
  %2150 = vst.msk [vmem:[%s1 + $0x270] sm:$0xff] %vm264, %v1894
  %2151 = vst.msk [vmem:[%s1 + $0x278] sm:$0xff] %vm264, %v1895
  %2152 = vst.msk [vmem:[%s1 + $0x280] sm:$0xff] %vm264, %v1896
  %2153 = vst.msk [vmem:[%s1 + $0x288] sm:$0xff] %vm264, %v1897
  %2154 = vst.msk [vmem:[%s1 + $0x290] sm:$0xff] %vm264, %v1898
  %2155 = vst.msk [vmem:[%s1 + $0x298] sm:$0xff] %vm264, %v1899
  %2156 = vst.msk [vmem:[%s1 + $0x2a0] sm:$0xff] %vm264, %v1900
  %2157 = vst.msk [vmem:[%s1 + $0x2a8] sm:$0xff] %vm264, %v1901
  %2158 = vst.msk [vmem:[%s1 + $0x2b0] sm:$0xff] %vm264, %v1902
  %2159 = vst.msk [vmem:[%s1 + $0x2b8] sm:$0xff] %vm264, %v1903
  %2160 = vst.msk [vmem:[%s1 + $0x2c0] sm:$0xff] %vm264, %v1904
  %2161 = vst.msk [vmem:[%s1 + $0x2c8] sm:$0xff] %vm264, %v1905
  %2162 = vst.msk [vmem:[%s1 + $0x2d0] sm:$0xff] %vm264, %v1906
  %2163 = vst.msk [vmem:[%s1 + $0x2d8] sm:$0xff] %vm264, %v1907
  %2164 = vst.msk [vmem:[%s1 + $0x2e0] sm:$0xff] %vm264, %v1908
  %2165 = vst.msk [vmem:[%s1 + $0x2e8] sm:$0xff] %vm264, %v1909
  %2166 = vst.msk [vmem:[%s1 + $0x2f0] sm:$0xff] %vm264, %v1910
  %2167 = vst.msk [vmem:[%s1 + $0x2f8] sm:$0xff] %vm264, %v1911
  %2168 = vst.msk [vmem:[%s1 + $0x300] sm:$0xff] %vm264, %v1912
  %2169 = vst.msk [vmem:[%s1 + $0x308] sm:$0xff] %vm264, %v1913
  %2170 = vst.msk [vmem:[%s1 + $0x310] sm:$0xff] %vm264, %v1914
  %2171 = vst.msk [vmem:[%s1 + $0x318] sm:$0xff] %vm264, %v1915
  %2172 = vst.msk [vmem:[%s1 + $0x320] sm:$0xff] %vm264, %v1916
  %2173 = vst.msk [vmem:[%s1 + $0x328] sm:$0xff] %vm264, %v1917
  %2174 = vst.msk [vmem:[%s1 + $0x330] sm:$0xff] %vm264, %v1918
  %2175 = vst.msk [vmem:[%s1 + $0x338] sm:$0xff] %vm264, %v1919
  %2176 = vst.msk [vmem:[%s1 + $0x340] sm:$0xff] %vm264, %v1920
  %2177 = vst.msk [vmem:[%s1 + $0x348] sm:$0xff] %vm264, %v1921
  %2178 = vst.msk [vmem:[%s1 + $0x350] sm:$0xff] %vm264, %v1922
  %2179 = vst.msk [vmem:[%s1 + $0x358] sm:$0xff] %vm264, %v1923
  %2180 = vst.msk [vmem:[%s1 + $0x360] sm:$0xff] %vm264, %v1924
  %2181 = vst.msk [vmem:[%s1 + $0x368] sm:$0xff] %vm264, %v1925
  %2182 = vst.msk [vmem:[%s1 + $0x370] sm:$0xff] %vm264, %v1926
  %2183 = vst.msk [vmem:[%s1 + $0x378] sm:$0xff] %vm264, %v1927
  %2184 = vst.msk [vmem:[%s1 + $0x380] sm:$0xff] %vm264, %v1928
  %2185 = vst.msk [vmem:[%s1 + $0x388] sm:$0xff] %vm264, %v1929
  %2186 = vst.msk [vmem:[%s1 + $0x390] sm:$0xff] %vm264, %v1930
  %2187 = vst.msk [vmem:[%s1 + $0x398] sm:$0xff] %vm264, %v1931
  %2188 = vst.msk [vmem:[%s1 + $0x3a0] sm:$0xff] %vm264, %v1932
  %2189 = vst.msk [vmem:[%s1 + $0x3a8] sm:$0xff] %vm264, %v1933
  %2190 = vst.msk [vmem:[%s1 + $0x3b0] sm:$0xff] %vm264, %v1934
  %2191 = vst.msk [vmem:[%s1 + $0x3b8] sm:$0xff] %vm264, %v1935
  %2192 = vst.msk [vmem:[%s1 + $0x3c0] sm:$0xff] %vm264, %v1936
  %2193 = vst.msk [vmem:[%s1 + $0x3c8] sm:$0xff] %vm264, %v1937
  %2194 = vst.msk [vmem:[%s1 + $0x3d0] sm:$0xff] %vm264, %v1938
  %2195 = vst.msk [vmem:[%s1 + $0x3d8] sm:$0xff] %vm264, %v1939
  %2196 = vst.msk [vmem:[%s1 + $0x3e0] sm:$0xff] %vm264, %v1940
  %2197 = vst.msk [vmem:[%s1 + $0x3e8] sm:$0xff] %vm264, %v1941
  %2198 = vst.msk [vmem:[%s1 + $0x3f0] sm:$0xff] %vm264, %v1942
  %2199 = vst.msk [vmem:[%s1 + $0x3f8] sm:$0xff] %vm264, %v1943
  %2200 = vst.msk [vmem:[%s1 + $0x400] sm:$0xff] %vm264, %v1944
  %2201 = vst.msk [vmem:[%s1 + $0x408] sm:$0xff] %vm264, %v1945
  %2202 = vst.msk [vmem:[%s1 + $0x410] sm:$0xff] %vm264, %v1946
  %2203 = vst.msk [vmem:[%s1 + $0x418] sm:$0xff] %vm264, %v1947
  %2204 = vst.msk [vmem:[%s1 + $0x420] sm:$0xff] %vm264, %v1948
  %2205 = vst.msk [vmem:[%s1 + $0x428] sm:$0xff] %vm264, %v1949
  %2206 = vst.msk [vmem:[%s1 + $0x430] sm:$0xff] %vm264, %v1950
  %2207 = vst.msk [vmem:[%s1 + $0x438] sm:$0xff] %vm264, %v1951
  %2208 = vst.msk [vmem:[%s1 + $0x440] sm:$0xff] %vm264, %v1952
  %2209 = vst.msk [vmem:[%s1 + $0x448] sm:$0xff] %vm264, %v1953
  %2210 = vst.msk [vmem:[%s1 + $0x450] sm:$0xff] %vm264, %v1954
  %2211 = vst.msk [vmem:[%s1 + $0x458] sm:$0xff] %vm264, %v1955
  %2212 = vst.msk [vmem:[%s1 + $0x460] sm:$0xff] %vm264, %v1956
  %2213 = vst.msk [vmem:[%s1 + $0x468] sm:$0xff] %vm264, %v1957
  %2214 = vst.msk [vmem:[%s1 + $0x470] sm:$0xff] %vm264, %v1958
  %2215 = vst.msk [vmem:[%s1 + $0x478] sm:$0xff] %vm264, %v1959
  %2216 = vst.msk [vmem:[%s1 + $0x480] sm:$0xff] %vm264, %v1960
  %2217 = vst.msk [vmem:[%s1 + $0x488] sm:$0xff] %vm264, %v1961
  %2218 = vst.msk [vmem:[%s1 + $0x490] sm:$0xff] %vm264, %v1962
  %2219 = vst.msk [vmem:[%s1 + $0x498] sm:$0xff] %vm264, %v1963
  %2220 = vst.msk [vmem:[%s1 + $0x4a0] sm:$0xff] %vm264, %v1964
  %2221 = vst.msk [vmem:[%s1 + $0x4a8] sm:$0xff] %vm264, %v1965
  %2222 = vst.msk [vmem:[%s1 + $0x4b0] sm:$0xff] %vm264, %v1966
  %2223 = vst.msk [vmem:[%s1 + $0x4b8] sm:$0xff] %vm264, %v1967
  %2224 = vst.msk [vmem:[%s1 + $0x4c0] sm:$0xff] %vm264, %v1968
  %2225 = vst.msk [vmem:[%s1 + $0x4c8] sm:$0xff] %vm264, %v1969
  %2226 = vst.msk [vmem:[%s1 + $0x4d0] sm:$0xff] %vm264, %v1970
  %2227 = vst.msk [vmem:[%s1 + $0x4d8] sm:$0xff] %vm264, %v1971
  %2228 = vst.msk [vmem:[%s1 + $0x4e0] sm:$0xff] %vm264, %v1972
  %2229 = vst.msk [vmem:[%s1 + $0x4e8] sm:$0xff] %vm264, %v1973
  %2230 = vst.msk [vmem:[%s1 + $0x4f0] sm:$0xff] %vm264, %v1974
  %2231 = vst.msk [vmem:[%s1 + $0x4f8] sm:$0xff] %vm264, %v1975
  %2232 = vst.msk [vmem:[%s1 + $0x500] sm:$0xff] %vm264, %v1976
  %2233 = vst.msk [vmem:[%s1 + $0x508] sm:$0xff] %vm264, %v1977
  %2234 = vst.msk [vmem:[%s1 + $0x510] sm:$0xff] %vm264, %v1978
  %2235 = vst.msk [vmem:[%s1 + $0x518] sm:$0xff] %vm264, %v1979
  %2236 = vst.msk [vmem:[%s1 + $0x520] sm:$0xff] %vm264, %v1980
  %2237 = vst.msk [vmem:[%s1 + $0x528] sm:$0xff] %vm264, %v1981
  %2238 = vst.msk [vmem:[%s1 + $0x530] sm:$0xff] %vm264, %v1982
  %2239 = vst.msk [vmem:[%s1 + $0x538] sm:$0xff] %vm264, %v1983
  %2240 = vst.msk [vmem:[%s1 + $0x540] sm:$0xff] %vm264, %v1984
  %2241 = vst.msk [vmem:[%s1 + $0x548] sm:$0xff] %vm264, %v1985
  %2242 = vst.msk [vmem:[%s1 + $0x550] sm:$0xff] %vm264, %v1986
  %2243 = vst.msk [vmem:[%s1 + $0x558] sm:$0xff] %vm264, %v1987
  %2244 = vst.msk [vmem:[%s1 + $0x560] sm:$0xff] %vm264, %v1988
  %2245 = vst.msk [vmem:[%s1 + $0x568] sm:$0xff] %vm264, %v1989
  %2246 = vst.msk [vmem:[%s1 + $0x570] sm:$0xff] %vm264, %v1990
  %2247 = vst.msk [vmem:[%s1 + $0x578] sm:$0xff] %vm264, %v1991
  %2248 = vst.msk [vmem:[%s1 + $0x580] sm:$0xff] %vm264, %v1992
  %2249 = vst.msk [vmem:[%s1 + $0x588] sm:$0xff] %vm264, %v1993
  %2250 = vst.msk [vmem:[%s1 + $0x590] sm:$0xff] %vm264, %v1994
  %2251 = vst.msk [vmem:[%s1 + $0x598] sm:$0xff] %vm264, %v1995
  %2252 = vst.msk [vmem:[%s1 + $0x5a0] sm:$0xff] %vm264, %v1996
  %2253 = vst.msk [vmem:[%s1 + $0x5a8] sm:$0xff] %vm264, %v1997
  %2254 = vst.msk [vmem:[%s1 + $0x5b0] sm:$0xff] %vm264, %v1998
  %2255 = vst.msk [vmem:[%s1 + $0x5b8] sm:$0xff] %vm264, %v1999
  %2256 = vst.msk [vmem:[%s1 + $0x5c0] sm:$0xff] %vm264, %v2000
  %2257 = vst.msk [vmem:[%s1 + $0x5c8] sm:$0xff] %vm264, %v2001
  %2258 = vst.msk [vmem:[%s1 + $0x5d0] sm:$0xff] %vm264, %v2002
  %2259 = vst.msk [vmem:[%s1 + $0x5d8] sm:$0xff] %vm264, %v2003
  %2260 = vst.msk [vmem:[%s1 + $0x5e0] sm:$0xff] %vm264, %v2004
  %2261 = vst.msk [vmem:[%s1 + $0x5e8] sm:$0xff] %vm264, %v2005
  %2262 = vst.msk [vmem:[%s1 + $0x5f0] sm:$0xff] %vm264, %v2006
  %2263 = vst.msk [vmem:[%s1 + $0x5f8] sm:$0xff] %vm264, %v2007
  %2264 = vst.msk [vmem:[%s1 + $0x600] sm:$0xff] %vm264, %v2008
  %2265 = vst.msk [vmem:[%s1 + $0x608] sm:$0xff] %vm264, %v2009
  %2266 = vst.msk [vmem:[%s1 + $0x610] sm:$0xff] %vm264, %v2010
  %2267 = vst.msk [vmem:[%s1 + $0x618] sm:$0xff] %vm264, %v2011
  %2268 = vst.msk [vmem:[%s1 + $0x620] sm:$0xff] %vm264, %v2012
  %2269 = vst.msk [vmem:[%s1 + $0x628] sm:$0xff] %vm264, %v2013
  %2270 = vst.msk [vmem:[%s1 + $0x630] sm:$0xff] %vm264, %v2014
  %2271 = vst.msk [vmem:[%s1 + $0x638] sm:$0xff] %vm264, %v2015
  %2272 = vst.msk [vmem:[%s1 + $0x640] sm:$0xff] %vm264, %v2016
  %2273 = vst.msk [vmem:[%s1 + $0x648] sm:$0xff] %vm264, %v2017
  %2274 = vst.msk [vmem:[%s1 + $0x650] sm:$0xff] %vm264, %v2018
  %2275 = vst.msk [vmem:[%s1 + $0x658] sm:$0xff] %vm264, %v2019
  %2276 = vst.msk [vmem:[%s1 + $0x660] sm:$0xff] %vm264, %v2020
  %2277 = vst.msk [vmem:[%s1 + $0x668] sm:$0xff] %vm264, %v2021
  %2278 = vst.msk [vmem:[%s1 + $0x670] sm:$0xff] %vm264, %v2022
  %2279 = vst.msk [vmem:[%s1 + $0x678] sm:$0xff] %vm264, %v2023
  %2280 = vst.msk [vmem:[%s1 + $0x680] sm:$0xff] %vm264, %v2024
  %2281 = vst.msk [vmem:[%s1 + $0x688] sm:$0xff] %vm264, %v2025
  %2282 = vst.msk [vmem:[%s1 + $0x690] sm:$0xff] %vm264, %v2026
  %2283 = vst.msk [vmem:[%s1 + $0x698] sm:$0xff] %vm264, %v2027
  %2284 = vst.msk [vmem:[%s1 + $0x6a0] sm:$0xff] %vm264, %v2028
  %2285 = vst.msk [vmem:[%s1 + $0x6a8] sm:$0xff] %vm264, %v2029
  %2286 = vst.msk [vmem:[%s1 + $0x6b0] sm:$0xff] %vm264, %v2030
  %2287 = vst.msk [vmem:[%s1 + $0x6b8] sm:$0xff] %vm264, %v2031
  %2288 = vst.msk [vmem:[%s1 + $0x6c0] sm:$0xff] %vm264, %v2032
  %2289 = vst.msk [vmem:[%s1 + $0x6c8] sm:$0xff] %vm264, %v2033
  %2290 = vst.msk [vmem:[%s1 + $0x6d0] sm:$0xff] %vm264, %v2034
  %2291 = vst.msk [vmem:[%s1 + $0x6d8] sm:$0xff] %vm264, %v2035
  %2292 = vst.msk [vmem:[%s1 + $0x6e0] sm:$0xff] %vm264, %v2036
  %2293 = vst.msk [vmem:[%s1 + $0x6e8] sm:$0xff] %vm264, %v2037
  %2294 = vst.msk [vmem:[%s1 + $0x6f0] sm:$0xff] %vm264, %v2038
  %2295 = vst.msk [vmem:[%s1 + $0x6f8] sm:$0xff] %vm264, %v2039
  %2296 = vst.msk [vmem:[%s1 + $0x700] sm:$0xff] %vm264, %v2040
  %2297 = vst.msk [vmem:[%s1 + $0x708] sm:$0xff] %vm264, %v2041
  %2298 = vst.msk [vmem:[%s1 + $0x710] sm:$0xff] %vm264, %v2042
  %2299 = vst.msk [vmem:[%s1 + $0x718] sm:$0xff] %vm264, %v2043
  %2300 = vst.msk [vmem:[%s1 + $0x720] sm:$0xff] %vm264, %v2044
  %2301 = vst.msk [vmem:[%s1 + $0x728] sm:$0xff] %vm264, %v2045
  %2302 = vst.msk [vmem:[%s1 + $0x730] sm:$0xff] %vm264, %v2046
  %2303 = vst.msk [vmem:[%s1 + $0x738] sm:$0xff] %vm264, %v2047
  %2304 = vst.msk [vmem:[%s1 + $0x740] sm:$0xff] %vm264, %v2048
  %2305 = vst.msk [vmem:[%s1 + $0x748] sm:$0xff] %vm264, %v2049
  %2306 = vst.msk [vmem:[%s1 + $0x750] sm:$0xff] %vm264, %v2050
  %2307 = vst.msk [vmem:[%s1 + $0x758] sm:$0xff] %vm264, %v2051
  %2308 = vst.msk [vmem:[%s1 + $0x760] sm:$0xff] %vm264, %v2052
  %2309 = vst.msk [vmem:[%s1 + $0x768] sm:$0xff] %vm264, %v2053
  %2310 = vst.msk [vmem:[%s1 + $0x770] sm:$0xff] %vm264, %v2054
  %2311 = vst.msk [vmem:[%s1 + $0x778] sm:$0xff] %vm264, %v2055
  %2312 = vst.msk [vmem:[%s1 + $0x780] sm:$0xff] %vm264, %v2056
  %2313 = vst.msk [vmem:[%s1 + $0x788] sm:$0xff] %vm264, %v2057
  %2314 = vst.msk [vmem:[%s1 + $0x790] sm:$0xff] %vm264, %v2058
  %2315 = vst.msk [vmem:[%s1 + $0x798] sm:$0xff] %vm264, %v2059
  %2316 = vst.msk [vmem:[%s1 + $0x7a0] sm:$0xff] %vm264, %v2060
  %2317 = vst.msk [vmem:[%s1 + $0x7a8] sm:$0xff] %vm264, %v2061
  %2318 = vst.msk [vmem:[%s1 + $0x7b0] sm:$0xff] %vm264, %v2062
  %2319 = vst.msk [vmem:[%s1 + $0x7b8] sm:$0xff] %vm264, %v2063
  %2320 = vst.msk [vmem:[%s1 + $0x7c0] sm:$0xff] %vm264, %v2064
  %2321 = vst.msk [vmem:[%s1 + $0x7c8] sm:$0xff] %vm264, %v2065
  %2322 = vst.msk [vmem:[%s1 + $0x7d0] sm:$0xff] %vm264, %v2066
  %2323 = vst.msk [vmem:[%s1 + $0x7d8] sm:$0xff] %vm264, %v2067
  %2324 = vst.msk [vmem:[%s1 + $0x7e0] sm:$0xff] %vm264, %v2068
  %2325 = vst.msk [vmem:[%s1 + $0x7e8] sm:$0xff] %vm264, %v2069
  %2326 = vst.msk [vmem:[%s1 + $0x7f0] sm:$0xff] %vm264, %v2070
  %2327 = vst.msk [vmem:[%s1 + $0x7f8] sm:$0xff] %vm264, %v2071
  // Predicated region
  $region6: #{hessian_layer_u_fwd.9} parent=0 // pred_check
    _
  $region7: #{hessian_layer_u_fwd.9} parent=0 // pred_check_branch
    %2329 = sbr.rel (0) target = $region9
  $region8: #{hessian_layer_u_fwd.9} parent=0 // pred_region
    _
  $region9: #{hessian_layer_u_fwd.9} parent=0 // pred_fallthru
    _
  // Predicated region
  $region10: #{hessian_layer_u_fwd.9} parent=0 // pred_check
    _
  $region11: #{hessian_layer_u_fwd.9} parent=0 // pred_check_branch
    %2331 = sbr.rel (0) target = $region13
  $region12: #{hessian_layer_u_fwd.9} parent=0 // pred_region
    _
  $region13: #{hessian_layer_u_fwd.9} parent=0 // pred_fallthru
    _

</llo_original>
